<compile_context>
chip_gen: v6e
topology: v6e:2x2x1
jax: 0.10.0
libtpu: 0.0.40
codegen_flags: <defaults>
</compile_context>

<pallas_src>
import jax
import jax.numpy as jnp
from jax.experimental import pallas as pl
from jax.experimental.pallas import tpu as pltpu


def basic_net_kernel(x_ref, w1_ref, wr_ref, b_ref, o_ref):
    n_out = o_ref.shape[-1]

    # fc1 (bf16 x bf16 -> f32 accumulate on the MXU) + bias + ReLU
    h = jnp.dot(x_ref[...], w1_ref[...], preferred_element_type=jnp.float32)
    h = jnp.maximum(h + b_ref[0:1, :], 0.0)

    # fc2 + ReLU (f32, tiny)
    h = jnp.dot(h, wr_ref[0], preferred_element_type=jnp.float32)
    h = jnp.maximum(h + b_ref[1:2, :], 0.0)

    # fc3 + ReLU
    h = jnp.dot(h, wr_ref[1], preferred_element_type=jnp.float32)
    h = jnp.maximum(h + b_ref[2:3, :], 0.0)

    # fc4: w4 is zero-padded to (hidden, hidden); keep only the real columns.
    logits_full = jnp.dot(h, wr_ref[2], preferred_element_type=jnp.float32)
    logits = logits_full[:, 0:n_out] + b_ref[3:4, 0:n_out]

    # log_softmax along dim=1, numerically stable
    m = jnp.max(logits, axis=-1, keepdims=True)
    z = logits - m
    lse = jnp.log(jnp.sum(jnp.exp(z), axis=-1, keepdims=True))
    o_ref[...] = (z - lse).astype(o_ref.dtype)


def pack_params(params):
    """Pack weights/biases for the kernel.

    Returns:
      w1_bf16: (12288, hidden) bf16   -- the only big operand, stored bf16.
      wr:      (3, hidden, hidden) f32 -- [w2, w3, w4 zero-padded on columns].
      b_all:   (4, hidden) f32         -- [b1, b2, b3, b4 zero-padded].
    """
    (w1, b1), (w2, b2), (w3, b3), (w4, b4) = params
    hidden = w2.shape[0]
    n_out = w4.shape[1]

    w1_bf16 = w1.astype(jnp.bfloat16)
    w4p = jnp.zeros((hidden, hidden), jnp.float32).at[:, :n_out].set(w4)
    wr = jnp.stack([w2, w3, w4p]).astype(jnp.float32)

    b4p = jnp.zeros((hidden,), jnp.float32).at[:n_out].set(b4.reshape(-1))
    b_all = jnp.stack(
        [b1.reshape(-1), b2.reshape(-1), b3.reshape(-1), b4p]
    ).astype(jnp.float32)
    return w1_bf16, wr, b_all, n_out


def basic_net_forward(x, params, *, tb=128):
    """x: (B, 12288) float32/bfloat16.  params: list of (W[in,out], b[1,out])."""
    w1_bf16, wr, b_all, n_out = pack_params(params)
    B, d_in = x.shape
    hidden = wr.shape[-1]

    tb = min(tb, B)  # small batches: one full-array block
    grid = (pl.cdiv(B, tb),)

    x_bf16 = x.astype(jnp.bfloat16)

    return pl.pallas_call(
        basic_net_kernel,
        out_shape=jax.ShapeDtypeStruct((B, n_out), jnp.float32),
        grid=grid,
        in_specs=[
            # x: one TB-row tile per grid step (pipelined HBM->VMEM DMA)
            pl.BlockSpec((tb, d_in), lambda i: (i, 0)),
            # W1 / packed small weights / packed biases: constant block index
            # -> DMA'd once, VMEM-resident for all grid steps.
            pl.BlockSpec((d_in, hidden), lambda i: (0, 0)),
            pl.BlockSpec((3, hidden, hidden), lambda i: (0, 0, 0)),
            pl.BlockSpec((4, hidden), lambda i: (0, 0)),
        ],
        out_specs=pl.BlockSpec((tb, n_out), lambda i: (i, 0)),
        compiler_params=pltpu.CompilerParams(
            dimension_semantics=("parallel",),
        ),
    )(x_bf16, w1_bf16, wr, b_all)


def init_params(key):
    """Deterministic synthetic init matching nn.Linear shapes (stored as [in, out])."""
    dims = [(12288, 64), (64, 64), (64, 64), (64, 2)]
    params = []
    for i, (fan_in, fan_out) in enumerate(dims):
        kw, kb = jax.random.split(jax.random.fold_in(key, i))
        bound = 1.0 / jnp.sqrt(float(fan_in))
        w = jax.random.uniform(kw, (fan_in, fan_out), jnp.float32, -bound, bound)
        b = jax.random.uniform(kb, (1, fan_out), jnp.float32, -bound, bound)
        params.append((w, b))
    return params


def reference_forward_mixed(x, params):
    """Plain-JAX reference mirroring the PyTorch forward, with the same
    mixed precision as the kernel (bf16 x / W1, f32 accumulate + f32 rest)."""
    (w1, b1), (w2, b2), (w3, b3), (w4, b4) = params
    h = jnp.dot(x.astype(jnp.bfloat16), w1.astype(jnp.bfloat16),
                preferred_element_type=jnp.float32)
    h = jnp.maximum(h + b1, 0.0)
    h = jnp.maximum(h @ w2 + b2, 0.0)
    h = jnp.maximum(h @ w3 + b3, 0.0)
    logits = h @ w4 + b4
    return jax.nn.log_softmax(logits, axis=1)


def reference_forward_f32(x, params):
    (w1, b1), (w2, b2), (w3, b3), (w4, b4) = params
    h = jnp.maximum(x @ w1 + b1, 0.0)
    h = jnp.maximum(h @ w2 + b2, 0.0)
    h = jnp.maximum(h @ w3 + b3, 0.0)
    logits = h @ w4 + b4
    return jax.nn.log_softmax(logits, axis=1)


if __name__ == "__main__":
    key = jax.random.PRNGKey(0)
    kx, kp = jax.random.split(key)

    B = 16  # small batch; tb=8 below exercises the batch grid (2 steps)
    x = jax.random.normal(kx, (B, 12288), jnp.float32)
    params = init_params(kp)

    out = basic_net_forward(x, params, tb=8)
    out = jax.block_until_ready(out)
    assert out.shape == (B, 2)

    # Check against a mixed-precision reference (same bf16 fc1 as the kernel).
    ref_mixed = reference_forward_mixed(x, params)
    assert jnp.allclose(out, ref_mixed, atol=2e-3, rtol=2e-3), \
        "mismatch vs mixed-precision reference"

    # Sanity check against the pure-f32 reference (looser: bf16 fc1 inputs).
    ref_f32 = reference_forward_f32(x, params)
    assert jnp.allclose(out, ref_f32, atol=5e-2, rtol=5e-2), \
        "mismatch vs f32 reference"

    print("KERNEL_OK")
</pallas_src>

<mosaic_0001>
module attributes {stable_mosaic.version = 11 : i64} {
  func.func @basic_net_kernel(%arg0: i32, %arg1: memref<8x12288xbf16, #tpu.memory_space<vmem>>, %arg2: memref<12288x64xbf16, #tpu.memory_space<vmem>>, %arg3: memref<3x64x64xf32, #tpu.memory_space<vmem>>, %arg4: memref<4x64xf32, #tpu.memory_space<vmem>>, %arg5: memref<8x2xf32, #tpu.memory_space<vmem>>) attributes {dimension_semantics = [#tpu.dimension_semantics<parallel>], iteration_bounds = array<i64: 2>, scalar_prefetch = 0 : i64, scratch_operands = 0 : i64, tpu.core_type = #tpu.core_type<tc>, window_params = [{transform_indices = @transform_0, window_bounds = array<i64: 8, 12288>}, {pipeline_mode = #tpu.pipeline_mode<synchronous>, transform_indices = @transform_1, window_bounds = array<i64: 12288, 64>}, {pipeline_mode = #tpu.pipeline_mode<synchronous>, transform_indices = @transform_2, window_bounds = array<i64: 3, 64, 64>}, {pipeline_mode = #tpu.pipeline_mode<synchronous>, transform_indices = @transform_3, window_bounds = array<i64: 4, 64>}, {transform_indices = @transform_4, window_bounds = array<i64: 8, 2>}]} {
    %c0 = arith.constant 0 : index
    %c0_0 = arith.constant 0 : index
    %0 = vector.load %arg1[%c0, %c0_0] : memref<8x12288xbf16, #tpu.memory_space<vmem>>, vector<8x12288xbf16>
    %c0_1 = arith.constant 0 : index
    %c0_2 = arith.constant 0 : index
    %1 = vector.load %arg2[%c0_1, %c0_2] : memref<12288x64xbf16, #tpu.memory_space<vmem>>, vector<12288x64xbf16>
    %cst = arith.constant dense<0.000000e+00> : vector<8x64xf32>
    %2 = tpu.matmul %0, %1, %cst {dimension_numbers = #tpu.dot_dimension_numbers<[1], [0], [0], [1], [0, 0, 1, 1], [], []>} : vector<8x12288xbf16>, vector<12288x64xbf16>, vector<8x64xf32> -> vector<8x64xf32>
    %c0_3 = arith.constant 0 : index
    %c0_4 = arith.constant 0 : index
    %3 = vector.load %arg4[%c0_3, %c0_4] : memref<4x64xf32, #tpu.memory_space<vmem>>, vector<1x64xf32>
    %4 = vector.broadcast %3 : vector<1x64xf32> to vector<8x64xf32>
    %5 = arith.addf %2, %4 : vector<8x64xf32>
    %cst_5 = arith.constant 0.000000e+00 : f32
    %6 = vector.broadcast %cst_5 : f32 to vector<8x64xf32>
    %7 = arith.maximumf %5, %6 : vector<8x64xf32>
    %c0_6 = arith.constant 0 : index
    %c0_7 = arith.constant 0 : index
    %c0_8 = arith.constant 0 : index
    %8 = vector.load %arg3[%c0_6, %c0_7, %c0_8] : memref<3x64x64xf32, #tpu.memory_space<vmem>>, vector<1x64x64xf32>
    %9 = vector.shape_cast %8 : vector<1x64x64xf32> to vector<64x64xf32>
    %cst_9 = arith.constant dense<0.000000e+00> : vector<8x64xf32>
    %10 = tpu.matmul %7, %9, %cst_9 {dimension_numbers = #tpu.dot_dimension_numbers<[1], [0], [0], [1], [0, 0, 1, 1], [], []>} : vector<8x64xf32>, vector<64x64xf32>, vector<8x64xf32> -> vector<8x64xf32>
    %c1 = arith.constant 1 : index
    %c0_10 = arith.constant 0 : index
    %11 = vector.load %arg4[%c1, %c0_10] : memref<4x64xf32, #tpu.memory_space<vmem>>, vector<1x64xf32>
    %12 = vector.broadcast %11 : vector<1x64xf32> to vector<8x64xf32>
    %13 = arith.addf %10, %12 : vector<8x64xf32>
    %cst_11 = arith.constant 0.000000e+00 : f32
    %14 = vector.broadcast %cst_11 : f32 to vector<8x64xf32>
    %15 = arith.maximumf %13, %14 : vector<8x64xf32>
    %c1_12 = arith.constant 1 : index
    %c0_13 = arith.constant 0 : index
    %c0_14 = arith.constant 0 : index
    %16 = vector.load %arg3[%c1_12, %c0_13, %c0_14] : memref<3x64x64xf32, #tpu.memory_space<vmem>>, vector<1x64x64xf32>
    %17 = vector.shape_cast %16 : vector<1x64x64xf32> to vector<64x64xf32>
    %cst_15 = arith.constant dense<0.000000e+00> : vector<8x64xf32>
    %18 = tpu.matmul %15, %17, %cst_15 {dimension_numbers = #tpu.dot_dimension_numbers<[1], [0], [0], [1], [0, 0, 1, 1], [], []>} : vector<8x64xf32>, vector<64x64xf32>, vector<8x64xf32> -> vector<8x64xf32>
    %c2 = arith.constant 2 : index
    %c0_16 = arith.constant 0 : index
    %19 = vector.load %arg4[%c2, %c0_16] : memref<4x64xf32, #tpu.memory_space<vmem>>, vector<1x64xf32>
    %20 = vector.broadcast %19 : vector<1x64xf32> to vector<8x64xf32>
    %21 = arith.addf %18, %20 : vector<8x64xf32>
    %cst_17 = arith.constant 0.000000e+00 : f32
    %22 = vector.broadcast %cst_17 : f32 to vector<8x64xf32>
    %23 = arith.maximumf %21, %22 : vector<8x64xf32>
    %c2_18 = arith.constant 2 : index
    %c0_19 = arith.constant 0 : index
    %c0_20 = arith.constant 0 : index
    %24 = vector.load %arg3[%c2_18, %c0_19, %c0_20] : memref<3x64x64xf32, #tpu.memory_space<vmem>>, vector<1x64x64xf32>
    %25 = vector.shape_cast %24 : vector<1x64x64xf32> to vector<64x64xf32>
    %cst_21 = arith.constant dense<0.000000e+00> : vector<8x64xf32>
    %26 = tpu.matmul %23, %25, %cst_21 {dimension_numbers = #tpu.dot_dimension_numbers<[1], [0], [0], [1], [0, 0, 1, 1], [], []>} : vector<8x64xf32>, vector<64x64xf32>, vector<8x64xf32> -> vector<8x64xf32>
    %27 = vector.extract_strided_slice %26 {offsets = [0, 0], sizes = [8, 2], strides = [1, 1]} : vector<8x64xf32> to vector<8x2xf32>
    %c3 = arith.constant 3 : index
    %c0_22 = arith.constant 0 : index
    %28 = vector.load %arg4[%c3, %c0_22] : memref<4x64xf32, #tpu.memory_space<vmem>>, vector<1x2xf32>
    %29 = vector.broadcast %28 : vector<1x2xf32> to vector<8x2xf32>
    %30 = arith.addf %27, %29 : vector<8x2xf32>
    %cst_23 = arith.constant dense<0xFF800000> : vector<8xf32>
    %31 = vector.multi_reduction <maximumf>, %30, %cst_23 [1] : vector<8x2xf32> to vector<8xf32>
    %32 = vector.shape_cast %31 : vector<8xf32> to vector<8x1xf32>
    %33 = vector.broadcast %32 : vector<8x1xf32> to vector<8x2xf32>
    %34 = arith.subf %30, %33 : vector<8x2xf32>
    %35 = math.exp %34 : vector<8x2xf32>
    %cst_24 = arith.constant dense<0.000000e+00> : vector<8xf32>
    %36 = vector.multi_reduction <add>, %35, %cst_24 [1] : vector<8x2xf32> to vector<8xf32>
    %37 = vector.shape_cast %36 : vector<8xf32> to vector<8x1xf32>
    %38 = math.log %37 : vector<8x1xf32>
    %39 = vector.broadcast %38 : vector<8x1xf32> to vector<8x2xf32>
    %40 = arith.subf %34, %39 : vector<8x2xf32>
    %c0_25 = arith.constant 0 : index
    %c0_26 = arith.constant 0 : index
    %41 = vector.load %arg5[%c0_25, %c0_26] : memref<8x2xf32, #tpu.memory_space<vmem>>, vector<8x2xf32>
    tpu.vector_store %arg5[%c0_25, %c0_26], %40 {strides = array<i32>} : memref<8x2xf32, #tpu.memory_space<vmem>>, vector<8x2xf32>,
    return
  }
  func.func @transform_0(%arg0: i32) -> (i32, i32) {
    %c0_i32 = arith.constant 0 : i32
    %c0_i32_0 = arith.constant 0 : i32
    return %arg0, %c0_i32 : i32, i32
  }
  func.func @transform_1(%arg0: i32) -> (i32, i32) {
    %c0_i32 = arith.constant 0 : i32
    %c0_i32_0 = arith.constant 0 : i32
    %c0_i32_1 = arith.constant 0 : i32
    return %c0_i32, %c0_i32_0 : i32, i32
  }
  func.func @transform_2(%arg0: i32) -> (i32, i32, i32) {
    %c0_i32 = arith.constant 0 : i32
    %c0_i32_0 = arith.constant 0 : i32
    %c0_i32_1 = arith.constant 0 : i32
    %c0_i32_2 = arith.constant 0 : i32
    return %c0_i32, %c0_i32_0, %c0_i32_1 : i32, i32, i32
  }
  func.func @transform_3(%arg0: i32) -> (i32, i32) {
    %c0_i32 = arith.constant 0 : i32
    %c0_i32_0 = arith.constant 0 : i32
    %c0_i32_1 = arith.constant 0 : i32
    return %c0_i32, %c0_i32_0 : i32, i32
  }
  func.func @transform_4(%arg0: i32) -> (i32, i32) {
    %c0_i32 = arith.constant 0 : i32
    %c0_i32_0 = arith.constant 0 : i32
    return %arg0, %c0_i32 : i32, i32
  }
}

</mosaic_0001>

<llo_original>
// kernel: tpu_custom_call.1
$region0: #{tpu_custom_call.1}
  #allocation0 [shape = 'u32[]', space=smem, size = 0x4, offset = 0x4, fixed_abs, tag = 'smem constant byte address 0x4 - core index']
  #allocation1 [shape = 'u32[144,128]{1,0:T(1,128)}', space=vmem, size = 0x12000, scoped, tag = 'internal scratch']
  %s0 = inlined_call_operand.vmem [shape: bf16[16,12288], index: 0, kind: input, shape index: {}]
  %s1 = inlined_call_operand.vmem [shape: bf16[12288,64], index: 1, kind: input, shape index: {}]
  %s2 = inlined_call_operand.vmem [shape: f32[3,64,64], index: 2, kind: input, shape index: {}]
  %s3 = inlined_call_operand.vmem [shape: f32[4,64], index: 3, kind: input, shape index: {}]
  %s4 = inlined_call_operand.vmem [shape: f32[16,2], index: 4, kind: output, shape index: {}]
  %s5 = sld [smem:[#allocation0]]
  $region49: #{tpu_custom_call.1} parent=0
    _
  %s7 = ssub.s32 1, %s5
  %s8 = scalar_select 0, %s7, %s5
  loop: start=0, step=1, limit=4
  $region2: #{tpu_custom_call.1} parent=0 // loop_pre_header
    _
  $region3: #{tpu_custom_call.1} parent=0 // loop_header
    %s10 = sphi 0, %s14
    %p11 = scmp.ge.s32.totalorder %s10, 4
    %s20 = sphi 0, %s22
    %s23 = sphi 0, %s20
    %s24 = sphi 0, %s23
    %s40 = sphi 0, %s24
    %s44 = sphi 0, %s44
    %s46 = sphi 0, %s44
    %s47 = sphi 0, %s46
    %s61 = sphi 0, %s47
    %s65 = sphi 0, %s65
    %s67 = sphi 0, %s65
    %s68 = sphi 0, %s67
    %s82 = sphi 0, %s68
    %s86 = sphi 0, %s86
    %s88 = sphi 0, %s86
    %s89 = sphi 0, %s88
    %s103 = sphi 0, %s89
    %s109 = sphi 0, %s111
    %s112 = sphi 0, %s109
    %s113 = sphi 0, %s112
    %s129 = sphi 0, %s113
  $region4: #{tpu_custom_call.1} parent=0 // loop_header_branch
    %13 = sbr.rel (%p11) target = $region8
  $region5: #{tpu_custom_call.1} parent=0 // loop_body
    %s15 = ssub.s32 %s10, 1
    %s16 = ssub.s32 %s10, 2
    %s17 = sadd.s32 %s10, 1
    %s18 = ssub.s32 %s10, %s17
    %p19 = scmp.eq.s32.totalorder %s18, 0
    %s21 = sadd.s32 %s20, 1
    %s22 = scalar_select %p19, %s20, %s21
    %p25 = pneg %p19
    %p26 = scmp.eq.s32.totalorder %s10, 1
    %p27 = por %p25, %p26
    %p28 = scmp.ne.s32.totalorder %s20, %s23
    %p29 = scmp.eq.s32.totalorder %s10, 0
    %p30 = por %p28, %p29
    %p31 = scmp.ne.s32.totalorder %s20, %s23
    %p32 = scmp.eq.s32.totalorder %s15, 1
    %p33 = por %p31, %p32
    %p34 = scmp.ne.s32.totalorder %s23, %s24
    %p35 = scmp.eq.s32.totalorder %s15, 0
    %p36 = por %p34, %p35
    %p37 = scmp.ne.s32.totalorder %s23, %s24
    %p38 = scmp.eq.s32.totalorder %s16, 1
    %p39 = por %p37, %p38
    %p41 = scmp.ne.s32.totalorder %s24, %s40
    %p42 = scmp.eq.s32.totalorder %s16, 0
    %p43 = por %p41, %p42
    %s45 = sadd.s32 %s44, 1
    %p48 = scmp.eq.s32.totalorder %s10, 1
    %p49 = scmp.ne.s32.totalorder %s44, %s46
    %p50 = scmp.eq.s32.totalorder %s10, 0
    %p51 = por %p49, %p50
    %p52 = scmp.ne.s32.totalorder %s44, %s46
    %p53 = scmp.eq.s32.totalorder %s15, 1
    %p54 = por %p52, %p53
    %p55 = scmp.ne.s32.totalorder %s46, %s47
    %p56 = scmp.eq.s32.totalorder %s15, 0
    %p57 = por %p55, %p56
    %p58 = scmp.ne.s32.totalorder %s46, %s47
    %p59 = scmp.eq.s32.totalorder %s16, 1
    %p60 = por %p58, %p59
    %p62 = scmp.ne.s32.totalorder %s47, %s61
    %p63 = scmp.eq.s32.totalorder %s16, 0
    %p64 = por %p62, %p63
    %s66 = sadd.s32 %s65, 1
    %p69 = scmp.eq.s32.totalorder %s10, 1
    %p70 = scmp.ne.s32.totalorder %s65, %s67
    %p71 = scmp.eq.s32.totalorder %s10, 0
    %p72 = por %p70, %p71
    %p73 = scmp.ne.s32.totalorder %s65, %s67
    %p74 = scmp.eq.s32.totalorder %s15, 1
    %p75 = por %p73, %p74
    %p76 = scmp.ne.s32.totalorder %s67, %s68
    %p77 = scmp.eq.s32.totalorder %s15, 0
    %p78 = por %p76, %p77
    %p79 = scmp.ne.s32.totalorder %s67, %s68
    %p80 = scmp.eq.s32.totalorder %s16, 1
    %p81 = por %p79, %p80
    %p83 = scmp.ne.s32.totalorder %s68, %s82
    %p84 = scmp.eq.s32.totalorder %s16, 0
    %p85 = por %p83, %p84
    %s87 = sadd.s32 %s86, 1
    %p90 = scmp.eq.s32.totalorder %s10, 1
    %p91 = scmp.ne.s32.totalorder %s86, %s88
    %p92 = scmp.eq.s32.totalorder %s10, 0
    %p93 = por %p91, %p92
    %p94 = scmp.ne.s32.totalorder %s86, %s88
    %p95 = scmp.eq.s32.totalorder %s15, 1
    %p96 = por %p94, %p95
    %p97 = scmp.ne.s32.totalorder %s88, %s89
    %p98 = scmp.eq.s32.totalorder %s15, 0
    %p99 = por %p97, %p98
    %p100 = scmp.ne.s32.totalorder %s88, %s89
    %p101 = scmp.eq.s32.totalorder %s16, 1
    %p102 = por %p100, %p101
    %p104 = scmp.ne.s32.totalorder %s89, %s103
    %p105 = scmp.eq.s32.totalorder %s16, 0
    %p106 = por %p104, %p105
    %s107 = ssub.s32 %s10, %s17
    %p108 = scmp.eq.s32.totalorder %s107, 0
    %s110 = sadd.s32 %s109, 1
    %s111 = scalar_select %p108, %s109, %s110
    %p114 = pneg %p108
    %p115 = scmp.eq.s32.totalorder %s10, 1
    %p116 = por %p114, %p115
    %p117 = scmp.ne.s32.totalorder %s109, %s112
    %p118 = scmp.eq.s32.totalorder %s10, 0
    %p119 = por %p117, %p118
    %p120 = scmp.ne.s32.totalorder %s109, %s112
    %p121 = scmp.eq.s32.totalorder %s15, 1
    %p122 = por %p120, %p121
    %p123 = scmp.ne.s32.totalorder %s112, %s113
    %p124 = scmp.eq.s32.totalorder %s15, 0
    %p125 = por %p123, %p124
    %p126 = scmp.ne.s32.totalorder %s112, %s113
    %p127 = scmp.eq.s32.totalorder %s16, 1
    %p128 = por %p126, %p127
    %p130 = scmp.ne.s32.totalorder %s113, %s129
    %p131 = scmp.eq.s32.totalorder %s16, 0
    %p132 = por %p130, %p131
    %p133 = scmp.le.s32.totalorder 1, %s10
    %p134 = scmp.lt.s32.totalorder %s10, 3
    %p135 = pnand %p133, %p134
    %p136 = pneg %p135
    // Predicated region
    $region9: #{tpu_custom_call.1} parent=5 // pred_check
      _
    $region10: #{tpu_custom_call.1} parent=5 // pred_check_branch
      %138 = sbr.rel (%p135) target = $region12
    $region11: #{tpu_custom_call.1} parent=5 // pred_region
      %s139 = ssub.s32 %s10, 1
      // Predicated region
      $region13: #{tpu_custom_call.1} parent=11 // pred_check
        %p140 = pneg %p57
      $region14: #{tpu_custom_call.1} parent=11 // pred_check_branch
        %142 = sbr.rel (%p140) target = $region16
      $region15: #{tpu_custom_call.1} parent=11 // pred_region
        _
      $region16: #{tpu_custom_call.1} parent=11 // pred_fallthru
        _
      // Predicated region
      $region17: #{tpu_custom_call.1} parent=11 // pred_check
        %p143 = pneg %p78
      $region18: #{tpu_custom_call.1} parent=11 // pred_check_branch
        %145 = sbr.rel (%p143) target = $region20
      $region19: #{tpu_custom_call.1} parent=11 // pred_region
        _
      $region20: #{tpu_custom_call.1} parent=11 // pred_fallthru
        _
      // Predicated region
      $region21: #{tpu_custom_call.1} parent=11 // pred_check
        %p146 = pneg %p99
      $region22: #{tpu_custom_call.1} parent=11 // pred_check_branch
        %148 = sbr.rel (%p146) target = $region24
      $region23: #{tpu_custom_call.1} parent=11 // pred_region
        _
      $region24: #{tpu_custom_call.1} parent=11 // pred_fallthru
        _
    $region12: #{tpu_custom_call.1} parent=5 // pred_fallthru
      _
    %p149 = scmp.lt.s32.totalorder %s10, 2
    // Predicated region
    $region25: #{tpu_custom_call.1} parent=5 // pred_check
      %p150 = pneg %p149
    $region26: #{tpu_custom_call.1} parent=5 // pred_check_branch
      %152 = sbr.rel (%p150) target = $region28
    $region27: #{tpu_custom_call.1} parent=5 // pred_region
      // Predicated region
      $region29: #{tpu_custom_call.1} parent=27 // pred_check
        %p153 = pneg %p30
      $region30: #{tpu_custom_call.1} parent=27 // pred_check_branch
        %155 = sbr.rel (%p153) target = $region32
      $region31: #{tpu_custom_call.1} parent=27 // pred_region
        %p156 = scmp.lt.s32.totalorder %s10, 1
        %s157 = scalar_select %p156, %s10, 1
        %s158 = smul.addr %s157, 96
        %s159 = smul.addr %s158, 4
        %s160 = scalar_lea.vmem %s0, %s159
      $region32: #{tpu_custom_call.1} parent=27 // pred_fallthru
        _
    $region28: #{tpu_custom_call.1} parent=5 // pred_fallthru
      _
    %p161 = scmp.le.s32.totalorder 1, %s10
    %p162 = scmp.lt.s32.totalorder %s10, 3
    %p163 = pnand %p161, %p162
    %p164 = pneg %p163
    // Predicated region
    $region33: #{tpu_custom_call.1} parent=5 // pred_check
      _
    $region34: #{tpu_custom_call.1} parent=5 // pred_check_branch
      %166 = sbr.rel (%p163) target = $region36
    $region35: #{tpu_custom_call.1} parent=5 // pred_region
      %s167 = ssub.s32 %s10, 1
      %p168 = scmp.lt.s32.totalorder %s15, 1
      %s169 = scalar_select %p168, %s15, 1
      %s170 = smul.addr %s169, 96
      %s171 = smul.addr %s170, 4
      %s172 = scalar_lea.vmem %s0, %s171
      %p173 = pneg %p36
      %p174 = pneg %p33
      %p175 = pneg %p57
      %p176 = pneg %p54
      %p177 = pneg %p78
      %p178 = pneg %p75
      %p179 = pneg %p99
      %p180 = pneg %p96
      %p181 = pneg %p125
      %p182 = pneg %p122
      %p183 = scmp.lt.s32.totalorder %s15, 1
      %s184 = scalar_select %p183, %s15, 1
      %s185 = smul.addr %s184, 8
      %s186 = scalar_lea.vmem %s4, %s185
      %p187 = scmp.lt.s32.totalorder %s15, 1
      %s188 = scalar_select %p187, %s15, 1
      %s189 = smul.addr %s188, 96
      %s190 = smul.addr %s189, 4
      %s191 = scalar_lea.vmem %s0, %s190
      %p192 = scmp.lt.s32.totalorder %s15, 1
      %s193 = scalar_select %p192, %s15, 1
      %s194 = smul.addr %s193, 8
      %s195 = scalar_lea.vmem %s4, %s194
      %v197 = vld [vmem:[%s191] sm:$0xff]
      %v198 = vld [vmem:[%s191 + $0x8] sm:$0xff]
      %v199 = vld [vmem:[%s191 + $0x10] sm:$0xff]
      %v200 = vld [vmem:[%s191 + $0x18] sm:$0xff]
      %v201 = vld [vmem:[%s191 + $0x20] sm:$0xff]
      %v202 = vld [vmem:[%s191 + $0x28] sm:$0xff]
      %v203 = vld [vmem:[%s191 + $0x30] sm:$0xff]
      %v204 = vld [vmem:[%s191 + $0x38] sm:$0xff]
      %v205 = vld [vmem:[%s191 + $0x40] sm:$0xff]
      %v206 = vld [vmem:[%s191 + $0x48] sm:$0xff]
      %v207 = vld [vmem:[%s191 + $0x50] sm:$0xff]
      %v208 = vld [vmem:[%s191 + $0x58] sm:$0xff]
      %v209 = vld [vmem:[%s191 + $0x60] sm:$0xff]
      %v210 = vld [vmem:[%s191 + $0x68] sm:$0xff]
      %v211 = vld [vmem:[%s191 + $0x70] sm:$0xff]
      %v212 = vld [vmem:[%s191 + $0x78] sm:$0xff]
      %v213 = vld [vmem:[%s191 + $0x80] sm:$0xff]
      %v214 = vld [vmem:[%s191 + $0x88] sm:$0xff]
      %v215 = vld [vmem:[%s191 + $0x90] sm:$0xff]
      %v216 = vld [vmem:[%s191 + $0x98] sm:$0xff]
      %v217 = vld [vmem:[%s191 + $0xa0] sm:$0xff]
      %v218 = vld [vmem:[%s191 + $0xa8] sm:$0xff]
      %v219 = vld [vmem:[%s191 + $0xb0] sm:$0xff]
      %v220 = vld [vmem:[%s191 + $0xb8] sm:$0xff]
      %v221 = vld [vmem:[%s191 + $0xc0] sm:$0xff]
      %v222 = vld [vmem:[%s191 + $0xc8] sm:$0xff]
      %v223 = vld [vmem:[%s191 + $0xd0] sm:$0xff]
      %v224 = vld [vmem:[%s191 + $0xd8] sm:$0xff]
      %v225 = vld [vmem:[%s191 + $0xe0] sm:$0xff]
      %v226 = vld [vmem:[%s191 + $0xe8] sm:$0xff]
      %v227 = vld [vmem:[%s191 + $0xf0] sm:$0xff]
      %v228 = vld [vmem:[%s191 + $0xf8] sm:$0xff]
      %v229 = vld [vmem:[%s191 + $0x100] sm:$0xff]
      %v230 = vld [vmem:[%s191 + $0x108] sm:$0xff]
      %v231 = vld [vmem:[%s191 + $0x110] sm:$0xff]
      %v232 = vld [vmem:[%s191 + $0x118] sm:$0xff]
      %v233 = vld [vmem:[%s191 + $0x120] sm:$0xff]
      %v234 = vld [vmem:[%s191 + $0x128] sm:$0xff]
      %v235 = vld [vmem:[%s191 + $0x130] sm:$0xff]
      %v236 = vld [vmem:[%s191 + $0x138] sm:$0xff]
      %v237 = vld [vmem:[%s191 + $0x140] sm:$0xff]
      %v238 = vld [vmem:[%s191 + $0x148] sm:$0xff]
      %v239 = vld [vmem:[%s191 + $0x150] sm:$0xff]
      %v240 = vld [vmem:[%s191 + $0x158] sm:$0xff]
      %v241 = vld [vmem:[%s191 + $0x160] sm:$0xff]
      %v242 = vld [vmem:[%s191 + $0x168] sm:$0xff]
      %v243 = vld [vmem:[%s191 + $0x170] sm:$0xff]
      %v244 = vld [vmem:[%s191 + $0x178] sm:$0xff]
      %v245 = vld [vmem:[%s1] sm:$0xf]
      %v246 = vld [vmem:[%s1 + $0x4] sm:$0xf]
      %v247 = vld [vmem:[%s1 + $0x8] sm:$0xf]
      %v248 = vld [vmem:[%s1 + $0xc] sm:$0xf]
      %v249 = vld [vmem:[%s1 + $0x10] sm:$0xf]
      %v250 = vld [vmem:[%s1 + $0x14] sm:$0xf]
      %v251 = vld [vmem:[%s1 + $0x18] sm:$0xf]
      %v252 = vld [vmem:[%s1 + $0x1c] sm:$0xf]
      %v253 = vld [vmem:[%s1 + $0x20] sm:$0xf]
      %v254 = vld [vmem:[%s1 + $0x24] sm:$0xf]
      %v255 = vld [vmem:[%s1 + $0x28] sm:$0xf]
      %v256 = vld [vmem:[%s1 + $0x2c] sm:$0xf]
      %v257 = vld [vmem:[%s1 + $0x30] sm:$0xf]
      %v258 = vld [vmem:[%s1 + $0x34] sm:$0xf]
      %v259 = vld [vmem:[%s1 + $0x38] sm:$0xf]
      %v260 = vld [vmem:[%s1 + $0x3c] sm:$0xf]
      %v261 = vld [vmem:[%s1 + $0x40] sm:$0xf]
      %v262 = vld [vmem:[%s1 + $0x44] sm:$0xf]
      %v263 = vld [vmem:[%s1 + $0x48] sm:$0xf]
      %v264 = vld [vmem:[%s1 + $0x4c] sm:$0xf]
      %v265 = vld [vmem:[%s1 + $0x50] sm:$0xf]
      %v266 = vld [vmem:[%s1 + $0x54] sm:$0xf]
      %v267 = vld [vmem:[%s1 + $0x58] sm:$0xf]
      %v268 = vld [vmem:[%s1 + $0x5c] sm:$0xf]
      %v269 = vld [vmem:[%s1 + $0x60] sm:$0xf]
      %v270 = vld [vmem:[%s1 + $0x64] sm:$0xf]
      %v271 = vld [vmem:[%s1 + $0x68] sm:$0xf]
      %v272 = vld [vmem:[%s1 + $0x6c] sm:$0xf]
      %v273 = vld [vmem:[%s1 + $0x70] sm:$0xf]
      %v274 = vld [vmem:[%s1 + $0x74] sm:$0xf]
      %v275 = vld [vmem:[%s1 + $0x78] sm:$0xf]
      %v276 = vld [vmem:[%s1 + $0x7c] sm:$0xf]
      %v277 = vld [vmem:[%s1 + $0x80] sm:$0xf]
      %v278 = vld [vmem:[%s1 + $0x84] sm:$0xf]
      %v279 = vld [vmem:[%s1 + $0x88] sm:$0xf]
      %v280 = vld [vmem:[%s1 + $0x8c] sm:$0xf]
      %v281 = vld [vmem:[%s1 + $0x90] sm:$0xf]
      %v282 = vld [vmem:[%s1 + $0x94] sm:$0xf]
      %v283 = vld [vmem:[%s1 + $0x98] sm:$0xf]
      %v284 = vld [vmem:[%s1 + $0x9c] sm:$0xf]
      %v285 = vld [vmem:[%s1 + $0xa0] sm:$0xf]
      %v286 = vld [vmem:[%s1 + $0xa4] sm:$0xf]
      %v287 = vld [vmem:[%s1 + $0xa8] sm:$0xf]
      %v288 = vld [vmem:[%s1 + $0xac] sm:$0xf]
      %v289 = vld [vmem:[%s1 + $0xb0] sm:$0xf]
      %v290 = vld [vmem:[%s1 + $0xb4] sm:$0xf]
      %v291 = vld [vmem:[%s1 + $0xb8] sm:$0xf]
      %v292 = vld [vmem:[%s1 + $0xbc] sm:$0xf]
      %v293 = vld [vmem:[%s1 + $0xc0] sm:$0xf]
      %v294 = vld [vmem:[%s1 + $0xc4] sm:$0xf]
      %v295 = vld [vmem:[%s1 + $0xc8] sm:$0xf]
      %v296 = vld [vmem:[%s1 + $0xcc] sm:$0xf]
      %v297 = vld [vmem:[%s1 + $0xd0] sm:$0xf]
      %v298 = vld [vmem:[%s1 + $0xd4] sm:$0xf]
      %v299 = vld [vmem:[%s1 + $0xd8] sm:$0xf]
      %v300 = vld [vmem:[%s1 + $0xdc] sm:$0xf]
      %v301 = vld [vmem:[%s1 + $0xe0] sm:$0xf]
      %v302 = vld [vmem:[%s1 + $0xe4] sm:$0xf]
      %v303 = vld [vmem:[%s1 + $0xe8] sm:$0xf]
      %v304 = vld [vmem:[%s1 + $0xec] sm:$0xf]
      %v305 = vld [vmem:[%s1 + $0xf0] sm:$0xf]
      %v306 = vld [vmem:[%s1 + $0xf4] sm:$0xf]
      %v307 = vld [vmem:[%s1 + $0xf8] sm:$0xf]
      %v308 = vld [vmem:[%s1 + $0xfc] sm:$0xf]
      %v309 = vld [vmem:[%s1 + $0x100] sm:$0xf]
      %v310 = vld [vmem:[%s1 + $0x104] sm:$0xf]
      %v311 = vld [vmem:[%s1 + $0x108] sm:$0xf]
      %v312 = vld [vmem:[%s1 + $0x10c] sm:$0xf]
      %v313 = vld [vmem:[%s1 + $0x110] sm:$0xf]
      %v314 = vld [vmem:[%s1 + $0x114] sm:$0xf]
      %v315 = vld [vmem:[%s1 + $0x118] sm:$0xf]
      %v316 = vld [vmem:[%s1 + $0x11c] sm:$0xf]
      %v317 = vld [vmem:[%s1 + $0x120] sm:$0xf]
      %v318 = vld [vmem:[%s1 + $0x124] sm:$0xf]
      %v319 = vld [vmem:[%s1 + $0x128] sm:$0xf]
      %v320 = vld [vmem:[%s1 + $0x12c] sm:$0xf]
      %v321 = vld [vmem:[%s1 + $0x130] sm:$0xf]
      %v322 = vld [vmem:[%s1 + $0x134] sm:$0xf]
      %v323 = vld [vmem:[%s1 + $0x138] sm:$0xf]
      %v324 = vld [vmem:[%s1 + $0x13c] sm:$0xf]
      %v325 = vld [vmem:[%s1 + $0x140] sm:$0xf]
      %v326 = vld [vmem:[%s1 + $0x144] sm:$0xf]
      %v327 = vld [vmem:[%s1 + $0x148] sm:$0xf]
      %v328 = vld [vmem:[%s1 + $0x14c] sm:$0xf]
      %v329 = vld [vmem:[%s1 + $0x150] sm:$0xf]
      %v330 = vld [vmem:[%s1 + $0x154] sm:$0xf]
      %v331 = vld [vmem:[%s1 + $0x158] sm:$0xf]
      %v332 = vld [vmem:[%s1 + $0x15c] sm:$0xf]
      %v333 = vld [vmem:[%s1 + $0x160] sm:$0xf]
      %v334 = vld [vmem:[%s1 + $0x164] sm:$0xf]
      %v335 = vld [vmem:[%s1 + $0x168] sm:$0xf]
      %v336 = vld [vmem:[%s1 + $0x16c] sm:$0xf]
      %v337 = vld [vmem:[%s1 + $0x170] sm:$0xf]
      %v338 = vld [vmem:[%s1 + $0x174] sm:$0xf]
      %v339 = vld [vmem:[%s1 + $0x178] sm:$0xf]
      %v340 = vld [vmem:[%s1 + $0x17c] sm:$0xf]
      %v341 = vld [vmem:[%s1 + $0x180] sm:$0xf]
      %v342 = vld [vmem:[%s1 + $0x184] sm:$0xf]
      %v343 = vld [vmem:[%s1 + $0x188] sm:$0xf]
      %v344 = vld [vmem:[%s1 + $0x18c] sm:$0xf]
      %v345 = vld [vmem:[%s1 + $0x190] sm:$0xf]
      %v346 = vld [vmem:[%s1 + $0x194] sm:$0xf]
      %v347 = vld [vmem:[%s1 + $0x198] sm:$0xf]
      %v348 = vld [vmem:[%s1 + $0x19c] sm:$0xf]
      %v349 = vld [vmem:[%s1 + $0x1a0] sm:$0xf]
      %v350 = vld [vmem:[%s1 + $0x1a4] sm:$0xf]
      %v351 = vld [vmem:[%s1 + $0x1a8] sm:$0xf]
      %v352 = vld [vmem:[%s1 + $0x1ac] sm:$0xf]
      %v353 = vld [vmem:[%s1 + $0x1b0] sm:$0xf]
      %v354 = vld [vmem:[%s1 + $0x1b4] sm:$0xf]
      %v355 = vld [vmem:[%s1 + $0x1b8] sm:$0xf]
      %v356 = vld [vmem:[%s1 + $0x1bc] sm:$0xf]
      %v357 = vld [vmem:[%s1 + $0x1c0] sm:$0xf]
      %v358 = vld [vmem:[%s1 + $0x1c4] sm:$0xf]
      %v359 = vld [vmem:[%s1 + $0x1c8] sm:$0xf]
      %v360 = vld [vmem:[%s1 + $0x1cc] sm:$0xf]
      %v361 = vld [vmem:[%s1 + $0x1d0] sm:$0xf]
      %v362 = vld [vmem:[%s1 + $0x1d4] sm:$0xf]
      %v363 = vld [vmem:[%s1 + $0x1d8] sm:$0xf]
      %v364 = vld [vmem:[%s1 + $0x1dc] sm:$0xf]
      %v365 = vld [vmem:[%s1 + $0x1e0] sm:$0xf]
      %v366 = vld [vmem:[%s1 + $0x1e4] sm:$0xf]
      %v367 = vld [vmem:[%s1 + $0x1e8] sm:$0xf]
      %v368 = vld [vmem:[%s1 + $0x1ec] sm:$0xf]
      %v369 = vld [vmem:[%s1 + $0x1f0] sm:$0xf]
      %v370 = vld [vmem:[%s1 + $0x1f4] sm:$0xf]
      %v371 = vld [vmem:[%s1 + $0x1f8] sm:$0xf]
      %v372 = vld [vmem:[%s1 + $0x1fc] sm:$0xf]
      %v373 = vld [vmem:[%s1 + $0x200] sm:$0xf]
      %v374 = vld [vmem:[%s1 + $0x204] sm:$0xf]
      %v375 = vld [vmem:[%s1 + $0x208] sm:$0xf]
      %v376 = vld [vmem:[%s1 + $0x20c] sm:$0xf]
      %v377 = vld [vmem:[%s1 + $0x210] sm:$0xf]
      %v378 = vld [vmem:[%s1 + $0x214] sm:$0xf]
      %v379 = vld [vmem:[%s1 + $0x218] sm:$0xf]
      %v380 = vld [vmem:[%s1 + $0x21c] sm:$0xf]
      %v381 = vld [vmem:[%s1 + $0x220] sm:$0xf]
      %v382 = vld [vmem:[%s1 + $0x224] sm:$0xf]
      %v383 = vld [vmem:[%s1 + $0x228] sm:$0xf]
      %v384 = vld [vmem:[%s1 + $0x22c] sm:$0xf]
      %v385 = vld [vmem:[%s1 + $0x230] sm:$0xf]
      %v386 = vld [vmem:[%s1 + $0x234] sm:$0xf]
      %v387 = vld [vmem:[%s1 + $0x238] sm:$0xf]
      %v388 = vld [vmem:[%s1 + $0x23c] sm:$0xf]
      %v389 = vld [vmem:[%s1 + $0x240] sm:$0xf]
      %v390 = vld [vmem:[%s1 + $0x244] sm:$0xf]
      %v391 = vld [vmem:[%s1 + $0x248] sm:$0xf]
      %v392 = vld [vmem:[%s1 + $0x24c] sm:$0xf]
      %v393 = vld [vmem:[%s1 + $0x250] sm:$0xf]
      %v394 = vld [vmem:[%s1 + $0x254] sm:$0xf]
      %v395 = vld [vmem:[%s1 + $0x258] sm:$0xf]
      %v396 = vld [vmem:[%s1 + $0x25c] sm:$0xf]
      %v397 = vld [vmem:[%s1 + $0x260] sm:$0xf]
      %v398 = vld [vmem:[%s1 + $0x264] sm:$0xf]
      %v399 = vld [vmem:[%s1 + $0x268] sm:$0xf]
      %v400 = vld [vmem:[%s1 + $0x26c] sm:$0xf]
      %v401 = vld [vmem:[%s1 + $0x270] sm:$0xf]
      %v402 = vld [vmem:[%s1 + $0x274] sm:$0xf]
      %v403 = vld [vmem:[%s1 + $0x278] sm:$0xf]
      %v404 = vld [vmem:[%s1 + $0x27c] sm:$0xf]
      %v405 = vld [vmem:[%s1 + $0x280] sm:$0xf]
      %v406 = vld [vmem:[%s1 + $0x284] sm:$0xf]
      %v407 = vld [vmem:[%s1 + $0x288] sm:$0xf]
      %v408 = vld [vmem:[%s1 + $0x28c] sm:$0xf]
      %v409 = vld [vmem:[%s1 + $0x290] sm:$0xf]
      %v410 = vld [vmem:[%s1 + $0x294] sm:$0xf]
      %v411 = vld [vmem:[%s1 + $0x298] sm:$0xf]
      %v412 = vld [vmem:[%s1 + $0x29c] sm:$0xf]
      %v413 = vld [vmem:[%s1 + $0x2a0] sm:$0xf]
      %v414 = vld [vmem:[%s1 + $0x2a4] sm:$0xf]
      %v415 = vld [vmem:[%s1 + $0x2a8] sm:$0xf]
      %v416 = vld [vmem:[%s1 + $0x2ac] sm:$0xf]
      %v417 = vld [vmem:[%s1 + $0x2b0] sm:$0xf]
      %v418 = vld [vmem:[%s1 + $0x2b4] sm:$0xf]
      %v419 = vld [vmem:[%s1 + $0x2b8] sm:$0xf]
      %v420 = vld [vmem:[%s1 + $0x2bc] sm:$0xf]
      %v421 = vld [vmem:[%s1 + $0x2c0] sm:$0xf]
      %v422 = vld [vmem:[%s1 + $0x2c4] sm:$0xf]
      %v423 = vld [vmem:[%s1 + $0x2c8] sm:$0xf]
      %v424 = vld [vmem:[%s1 + $0x2cc] sm:$0xf]
      %v425 = vld [vmem:[%s1 + $0x2d0] sm:$0xf]
      %v426 = vld [vmem:[%s1 + $0x2d4] sm:$0xf]
      %v427 = vld [vmem:[%s1 + $0x2d8] sm:$0xf]
      %v428 = vld [vmem:[%s1 + $0x2dc] sm:$0xf]
      %v429 = vld [vmem:[%s1 + $0x2e0] sm:$0xf]
      %v430 = vld [vmem:[%s1 + $0x2e4] sm:$0xf]
      %v431 = vld [vmem:[%s1 + $0x2e8] sm:$0xf]
      %v432 = vld [vmem:[%s1 + $0x2ec] sm:$0xf]
      %v433 = vld [vmem:[%s1 + $0x2f0] sm:$0xf]
      %v434 = vld [vmem:[%s1 + $0x2f4] sm:$0xf]
      %v435 = vld [vmem:[%s1 + $0x2f8] sm:$0xf]
      %v436 = vld [vmem:[%s1 + $0x2fc] sm:$0xf]
      %v437 = vld [vmem:[%s1 + $0x300] sm:$0xf]
      %v438 = vld [vmem:[%s1 + $0x304] sm:$0xf]
      %v439 = vld [vmem:[%s1 + $0x308] sm:$0xf]
      %v440 = vld [vmem:[%s1 + $0x30c] sm:$0xf]
      %v441 = vld [vmem:[%s1 + $0x310] sm:$0xf]
      %v442 = vld [vmem:[%s1 + $0x314] sm:$0xf]
      %v443 = vld [vmem:[%s1 + $0x318] sm:$0xf]
      %v444 = vld [vmem:[%s1 + $0x31c] sm:$0xf]
      %v445 = vld [vmem:[%s1 + $0x320] sm:$0xf]
      %v446 = vld [vmem:[%s1 + $0x324] sm:$0xf]
      %v447 = vld [vmem:[%s1 + $0x328] sm:$0xf]
      %v448 = vld [vmem:[%s1 + $0x32c] sm:$0xf]
      %v449 = vld [vmem:[%s1 + $0x330] sm:$0xf]
      %v450 = vld [vmem:[%s1 + $0x334] sm:$0xf]
      %v451 = vld [vmem:[%s1 + $0x338] sm:$0xf]
      %v452 = vld [vmem:[%s1 + $0x33c] sm:$0xf]
      %v453 = vld [vmem:[%s1 + $0x340] sm:$0xf]
      %v454 = vld [vmem:[%s1 + $0x344] sm:$0xf]
      %v455 = vld [vmem:[%s1 + $0x348] sm:$0xf]
      %v456 = vld [vmem:[%s1 + $0x34c] sm:$0xf]
      %v457 = vld [vmem:[%s1 + $0x350] sm:$0xf]
      %v458 = vld [vmem:[%s1 + $0x354] sm:$0xf]
      %v459 = vld [vmem:[%s1 + $0x358] sm:$0xf]
      %v460 = vld [vmem:[%s1 + $0x35c] sm:$0xf]
      %v461 = vld [vmem:[%s1 + $0x360] sm:$0xf]
      %v462 = vld [vmem:[%s1 + $0x364] sm:$0xf]
      %v463 = vld [vmem:[%s1 + $0x368] sm:$0xf]
      %v464 = vld [vmem:[%s1 + $0x36c] sm:$0xf]
      %v465 = vld [vmem:[%s1 + $0x370] sm:$0xf]
      %v466 = vld [vmem:[%s1 + $0x374] sm:$0xf]
      %v467 = vld [vmem:[%s1 + $0x378] sm:$0xf]
      %v468 = vld [vmem:[%s1 + $0x37c] sm:$0xf]
      %v469 = vld [vmem:[%s1 + $0x380] sm:$0xf]
      %v470 = vld [vmem:[%s1 + $0x384] sm:$0xf]
      %v471 = vld [vmem:[%s1 + $0x388] sm:$0xf]
      %v472 = vld [vmem:[%s1 + $0x38c] sm:$0xf]
      %v473 = vld [vmem:[%s1 + $0x390] sm:$0xf]
      %v474 = vld [vmem:[%s1 + $0x394] sm:$0xf]
      %v475 = vld [vmem:[%s1 + $0x398] sm:$0xf]
      %v476 = vld [vmem:[%s1 + $0x39c] sm:$0xf]
      %v477 = vld [vmem:[%s1 + $0x3a0] sm:$0xf]
      %v478 = vld [vmem:[%s1 + $0x3a4] sm:$0xf]
      %v479 = vld [vmem:[%s1 + $0x3a8] sm:$0xf]
      %v480 = vld [vmem:[%s1 + $0x3ac] sm:$0xf]
      %v481 = vld [vmem:[%s1 + $0x3b0] sm:$0xf]
      %v482 = vld [vmem:[%s1 + $0x3b4] sm:$0xf]
      %v483 = vld [vmem:[%s1 + $0x3b8] sm:$0xf]
      %v484 = vld [vmem:[%s1 + $0x3bc] sm:$0xf]
      %v485 = vld [vmem:[%s1 + $0x3c0] sm:$0xf]
      %v486 = vld [vmem:[%s1 + $0x3c4] sm:$0xf]
      %v487 = vld [vmem:[%s1 + $0x3c8] sm:$0xf]
      %v488 = vld [vmem:[%s1 + $0x3cc] sm:$0xf]
      %v489 = vld [vmem:[%s1 + $0x3d0] sm:$0xf]
      %v490 = vld [vmem:[%s1 + $0x3d4] sm:$0xf]
      %v491 = vld [vmem:[%s1 + $0x3d8] sm:$0xf]
      %v492 = vld [vmem:[%s1 + $0x3dc] sm:$0xf]
      %v493 = vld [vmem:[%s1 + $0x3e0] sm:$0xf]
      %v494 = vld [vmem:[%s1 + $0x3e4] sm:$0xf]
      %v495 = vld [vmem:[%s1 + $0x3e8] sm:$0xf]
      %v496 = vld [vmem:[%s1 + $0x3ec] sm:$0xf]
      %v497 = vld [vmem:[%s1 + $0x3f0] sm:$0xf]
      %v498 = vld [vmem:[%s1 + $0x3f4] sm:$0xf]
      %v499 = vld [vmem:[%s1 + $0x3f8] sm:$0xf]
      %v500 = vld [vmem:[%s1 + $0x3fc] sm:$0xf]
      %v501 = vld [vmem:[%s1 + $0x400] sm:$0xf]
      %v502 = vld [vmem:[%s1 + $0x404] sm:$0xf]
      %v503 = vld [vmem:[%s1 + $0x408] sm:$0xf]
      %v504 = vld [vmem:[%s1 + $0x40c] sm:$0xf]
      %v505 = vld [vmem:[%s1 + $0x410] sm:$0xf]
      %v506 = vld [vmem:[%s1 + $0x414] sm:$0xf]
      %v507 = vld [vmem:[%s1 + $0x418] sm:$0xf]
      %v508 = vld [vmem:[%s1 + $0x41c] sm:$0xf]
      %v509 = vld [vmem:[%s1 + $0x420] sm:$0xf]
      %v510 = vld [vmem:[%s1 + $0x424] sm:$0xf]
      %v511 = vld [vmem:[%s1 + $0x428] sm:$0xf]
      %v512 = vld [vmem:[%s1 + $0x42c] sm:$0xf]
      %v513 = vld [vmem:[%s1 + $0x430] sm:$0xf]
      %v514 = vld [vmem:[%s1 + $0x434] sm:$0xf]
      %v515 = vld [vmem:[%s1 + $0x438] sm:$0xf]
      %v516 = vld [vmem:[%s1 + $0x43c] sm:$0xf]
      %v517 = vld [vmem:[%s1 + $0x440] sm:$0xf]
      %v518 = vld [vmem:[%s1 + $0x444] sm:$0xf]
      %v519 = vld [vmem:[%s1 + $0x448] sm:$0xf]
      %v520 = vld [vmem:[%s1 + $0x44c] sm:$0xf]
      %v521 = vld [vmem:[%s1 + $0x450] sm:$0xf]
      %v522 = vld [vmem:[%s1 + $0x454] sm:$0xf]
      %v523 = vld [vmem:[%s1 + $0x458] sm:$0xf]
      %v524 = vld [vmem:[%s1 + $0x45c] sm:$0xf]
      %v525 = vld [vmem:[%s1 + $0x460] sm:$0xf]
      %v526 = vld [vmem:[%s1 + $0x464] sm:$0xf]
      %v527 = vld [vmem:[%s1 + $0x468] sm:$0xf]
      %v528 = vld [vmem:[%s1 + $0x46c] sm:$0xf]
      %v529 = vld [vmem:[%s1 + $0x470] sm:$0xf]
      %v530 = vld [vmem:[%s1 + $0x474] sm:$0xf]
      %v531 = vld [vmem:[%s1 + $0x478] sm:$0xf]
      %v532 = vld [vmem:[%s1 + $0x47c] sm:$0xf]
      %v533 = vld [vmem:[%s1 + $0x480] sm:$0xf]
      %v534 = vld [vmem:[%s1 + $0x484] sm:$0xf]
      %v535 = vld [vmem:[%s1 + $0x488] sm:$0xf]
      %v536 = vld [vmem:[%s1 + $0x48c] sm:$0xf]
      %v537 = vld [vmem:[%s1 + $0x490] sm:$0xf]
      %v538 = vld [vmem:[%s1 + $0x494] sm:$0xf]
      %v539 = vld [vmem:[%s1 + $0x498] sm:$0xf]
      %v540 = vld [vmem:[%s1 + $0x49c] sm:$0xf]
      %v541 = vld [vmem:[%s1 + $0x4a0] sm:$0xf]
      %v542 = vld [vmem:[%s1 + $0x4a4] sm:$0xf]
      %v543 = vld [vmem:[%s1 + $0x4a8] sm:$0xf]
      %v544 = vld [vmem:[%s1 + $0x4ac] sm:$0xf]
      %v545 = vld [vmem:[%s1 + $0x4b0] sm:$0xf]
      %v546 = vld [vmem:[%s1 + $0x4b4] sm:$0xf]
      %v547 = vld [vmem:[%s1 + $0x4b8] sm:$0xf]
      %v548 = vld [vmem:[%s1 + $0x4bc] sm:$0xf]
      %v549 = vld [vmem:[%s1 + $0x4c0] sm:$0xf]
      %v550 = vld [vmem:[%s1 + $0x4c4] sm:$0xf]
      %v551 = vld [vmem:[%s1 + $0x4c8] sm:$0xf]
      %v552 = vld [vmem:[%s1 + $0x4cc] sm:$0xf]
      %v553 = vld [vmem:[%s1 + $0x4d0] sm:$0xf]
      %v554 = vld [vmem:[%s1 + $0x4d4] sm:$0xf]
      %v555 = vld [vmem:[%s1 + $0x4d8] sm:$0xf]
      %v556 = vld [vmem:[%s1 + $0x4dc] sm:$0xf]
      %v557 = vld [vmem:[%s1 + $0x4e0] sm:$0xf]
      %v558 = vld [vmem:[%s1 + $0x4e4] sm:$0xf]
      %v559 = vld [vmem:[%s1 + $0x4e8] sm:$0xf]
      %v560 = vld [vmem:[%s1 + $0x4ec] sm:$0xf]
      %v561 = vld [vmem:[%s1 + $0x4f0] sm:$0xf]
      %v562 = vld [vmem:[%s1 + $0x4f4] sm:$0xf]
      %v563 = vld [vmem:[%s1 + $0x4f8] sm:$0xf]
      %v564 = vld [vmem:[%s1 + $0x4fc] sm:$0xf]
      %v565 = vld [vmem:[%s1 + $0x500] sm:$0xf]
      %v566 = vld [vmem:[%s1 + $0x504] sm:$0xf]
      %v567 = vld [vmem:[%s1 + $0x508] sm:$0xf]
      %v568 = vld [vmem:[%s1 + $0x50c] sm:$0xf]
      %v569 = vld [vmem:[%s1 + $0x510] sm:$0xf]
      %v570 = vld [vmem:[%s1 + $0x514] sm:$0xf]
      %v571 = vld [vmem:[%s1 + $0x518] sm:$0xf]
      %v572 = vld [vmem:[%s1 + $0x51c] sm:$0xf]
      %v573 = vld [vmem:[%s1 + $0x520] sm:$0xf]
      %v574 = vld [vmem:[%s1 + $0x524] sm:$0xf]
      %v575 = vld [vmem:[%s1 + $0x528] sm:$0xf]
      %v576 = vld [vmem:[%s1 + $0x52c] sm:$0xf]
      %v577 = vld [vmem:[%s1 + $0x530] sm:$0xf]
      %v578 = vld [vmem:[%s1 + $0x534] sm:$0xf]
      %v579 = vld [vmem:[%s1 + $0x538] sm:$0xf]
      %v580 = vld [vmem:[%s1 + $0x53c] sm:$0xf]
      %v581 = vld [vmem:[%s1 + $0x540] sm:$0xf]
      %v582 = vld [vmem:[%s1 + $0x544] sm:$0xf]
      %v583 = vld [vmem:[%s1 + $0x548] sm:$0xf]
      %v584 = vld [vmem:[%s1 + $0x54c] sm:$0xf]
      %v585 = vld [vmem:[%s1 + $0x550] sm:$0xf]
      %v586 = vld [vmem:[%s1 + $0x554] sm:$0xf]
      %v587 = vld [vmem:[%s1 + $0x558] sm:$0xf]
      %v588 = vld [vmem:[%s1 + $0x55c] sm:$0xf]
      %v589 = vld [vmem:[%s1 + $0x560] sm:$0xf]
      %v590 = vld [vmem:[%s1 + $0x564] sm:$0xf]
      %v591 = vld [vmem:[%s1 + $0x568] sm:$0xf]
      %v592 = vld [vmem:[%s1 + $0x56c] sm:$0xf]
      %v593 = vld [vmem:[%s1 + $0x570] sm:$0xf]
      %v594 = vld [vmem:[%s1 + $0x574] sm:$0xf]
      %v595 = vld [vmem:[%s1 + $0x578] sm:$0xf]
      %v596 = vld [vmem:[%s1 + $0x57c] sm:$0xf]
      %v597 = vld [vmem:[%s1 + $0x580] sm:$0xf]
      %v598 = vld [vmem:[%s1 + $0x584] sm:$0xf]
      %v599 = vld [vmem:[%s1 + $0x588] sm:$0xf]
      %v600 = vld [vmem:[%s1 + $0x58c] sm:$0xf]
      %v601 = vld [vmem:[%s1 + $0x590] sm:$0xf]
      %v602 = vld [vmem:[%s1 + $0x594] sm:$0xf]
      %v603 = vld [vmem:[%s1 + $0x598] sm:$0xf]
      %v604 = vld [vmem:[%s1 + $0x59c] sm:$0xf]
      %v605 = vld [vmem:[%s1 + $0x5a0] sm:$0xf]
      %v606 = vld [vmem:[%s1 + $0x5a4] sm:$0xf]
      %v607 = vld [vmem:[%s1 + $0x5a8] sm:$0xf]
      %v608 = vld [vmem:[%s1 + $0x5ac] sm:$0xf]
      %v609 = vld [vmem:[%s1 + $0x5b0] sm:$0xf]
      %v610 = vld [vmem:[%s1 + $0x5b4] sm:$0xf]
      %v611 = vld [vmem:[%s1 + $0x5b8] sm:$0xf]
      %v612 = vld [vmem:[%s1 + $0x5bc] sm:$0xf]
      %v613 = vld [vmem:[%s1 + $0x5c0] sm:$0xf]
      %v614 = vld [vmem:[%s1 + $0x5c4] sm:$0xf]
      %v615 = vld [vmem:[%s1 + $0x5c8] sm:$0xf]
      %v616 = vld [vmem:[%s1 + $0x5cc] sm:$0xf]
      %v617 = vld [vmem:[%s1 + $0x5d0] sm:$0xf]
      %v618 = vld [vmem:[%s1 + $0x5d4] sm:$0xf]
      %v619 = vld [vmem:[%s1 + $0x5d8] sm:$0xf]
      %v620 = vld [vmem:[%s1 + $0x5dc] sm:$0xf]
      %v621 = vld [vmem:[%s1 + $0x5e0] sm:$0xf]
      %v622 = vld [vmem:[%s1 + $0x5e4] sm:$0xf]
      %v623 = vld [vmem:[%s1 + $0x5e8] sm:$0xf]
      %v624 = vld [vmem:[%s1 + $0x5ec] sm:$0xf]
      %v625 = vld [vmem:[%s1 + $0x5f0] sm:$0xf]
      %v626 = vld [vmem:[%s1 + $0x5f4] sm:$0xf]
      %v627 = vld [vmem:[%s1 + $0x5f8] sm:$0xf]
      %v628 = vld [vmem:[%s1 + $0x5fc] sm:$0xf]
      %v629 = vld [vmem:[%s1 + $0x600] sm:$0xf]
      %v630 = vld [vmem:[%s1 + $0x604] sm:$0xf]
      %v631 = vld [vmem:[%s1 + $0x608] sm:$0xf]
      %v632 = vld [vmem:[%s1 + $0x60c] sm:$0xf]
      %v633 = vld [vmem:[%s1 + $0x610] sm:$0xf]
      %v634 = vld [vmem:[%s1 + $0x614] sm:$0xf]
      %v635 = vld [vmem:[%s1 + $0x618] sm:$0xf]
      %v636 = vld [vmem:[%s1 + $0x61c] sm:$0xf]
      %v637 = vld [vmem:[%s1 + $0x620] sm:$0xf]
      %v638 = vld [vmem:[%s1 + $0x624] sm:$0xf]
      %v639 = vld [vmem:[%s1 + $0x628] sm:$0xf]
      %v640 = vld [vmem:[%s1 + $0x62c] sm:$0xf]
      %v641 = vld [vmem:[%s1 + $0x630] sm:$0xf]
      %v642 = vld [vmem:[%s1 + $0x634] sm:$0xf]
      %v643 = vld [vmem:[%s1 + $0x638] sm:$0xf]
      %v644 = vld [vmem:[%s1 + $0x63c] sm:$0xf]
      %v645 = vld [vmem:[%s1 + $0x640] sm:$0xf]
      %v646 = vld [vmem:[%s1 + $0x644] sm:$0xf]
      %v647 = vld [vmem:[%s1 + $0x648] sm:$0xf]
      %v648 = vld [vmem:[%s1 + $0x64c] sm:$0xf]
      %v649 = vld [vmem:[%s1 + $0x650] sm:$0xf]
      %v650 = vld [vmem:[%s1 + $0x654] sm:$0xf]
      %v651 = vld [vmem:[%s1 + $0x658] sm:$0xf]
      %v652 = vld [vmem:[%s1 + $0x65c] sm:$0xf]
      %v653 = vld [vmem:[%s1 + $0x660] sm:$0xf]
      %v654 = vld [vmem:[%s1 + $0x664] sm:$0xf]
      %v655 = vld [vmem:[%s1 + $0x668] sm:$0xf]
      %v656 = vld [vmem:[%s1 + $0x66c] sm:$0xf]
      %v657 = vld [vmem:[%s1 + $0x670] sm:$0xf]
      %v658 = vld [vmem:[%s1 + $0x674] sm:$0xf]
      %v659 = vld [vmem:[%s1 + $0x678] sm:$0xf]
      %v660 = vld [vmem:[%s1 + $0x67c] sm:$0xf]
      %v661 = vld [vmem:[%s1 + $0x680] sm:$0xf]
      %v662 = vld [vmem:[%s1 + $0x684] sm:$0xf]
      %v663 = vld [vmem:[%s1 + $0x688] sm:$0xf]
      %v664 = vld [vmem:[%s1 + $0x68c] sm:$0xf]
      %v665 = vld [vmem:[%s1 + $0x690] sm:$0xf]
      %v666 = vld [vmem:[%s1 + $0x694] sm:$0xf]
      %v667 = vld [vmem:[%s1 + $0x698] sm:$0xf]
      %v668 = vld [vmem:[%s1 + $0x69c] sm:$0xf]
      %v669 = vld [vmem:[%s1 + $0x6a0] sm:$0xf]
      %v670 = vld [vmem:[%s1 + $0x6a4] sm:$0xf]
      %v671 = vld [vmem:[%s1 + $0x6a8] sm:$0xf]
      %v672 = vld [vmem:[%s1 + $0x6ac] sm:$0xf]
      %v673 = vld [vmem:[%s1 + $0x6b0] sm:$0xf]
      %v674 = vld [vmem:[%s1 + $0x6b4] sm:$0xf]
      %v675 = vld [vmem:[%s1 + $0x6b8] sm:$0xf]
      %v676 = vld [vmem:[%s1 + $0x6bc] sm:$0xf]
      %v677 = vld [vmem:[%s1 + $0x6c0] sm:$0xf]
      %v678 = vld [vmem:[%s1 + $0x6c4] sm:$0xf]
      %v679 = vld [vmem:[%s1 + $0x6c8] sm:$0xf]
      %v680 = vld [vmem:[%s1 + $0x6cc] sm:$0xf]
      %v681 = vld [vmem:[%s1 + $0x6d0] sm:$0xf]
      %v682 = vld [vmem:[%s1 + $0x6d4] sm:$0xf]
      %v683 = vld [vmem:[%s1 + $0x6d8] sm:$0xf]
      %v684 = vld [vmem:[%s1 + $0x6dc] sm:$0xf]
      %v685 = vld [vmem:[%s1 + $0x6e0] sm:$0xf]
      %v686 = vld [vmem:[%s1 + $0x6e4] sm:$0xf]
      %v687 = vld [vmem:[%s1 + $0x6e8] sm:$0xf]
      %v688 = vld [vmem:[%s1 + $0x6ec] sm:$0xf]
      %v689 = vld [vmem:[%s1 + $0x6f0] sm:$0xf]
      %v690 = vld [vmem:[%s1 + $0x6f4] sm:$0xf]
      %v691 = vld [vmem:[%s1 + $0x6f8] sm:$0xf]
      %v692 = vld [vmem:[%s1 + $0x6fc] sm:$0xf]
      %v693 = vld [vmem:[%s1 + $0x700] sm:$0xf]
      %v694 = vld [vmem:[%s1 + $0x704] sm:$0xf]
      %v695 = vld [vmem:[%s1 + $0x708] sm:$0xf]
      %v696 = vld [vmem:[%s1 + $0x70c] sm:$0xf]
      %v697 = vld [vmem:[%s1 + $0x710] sm:$0xf]
      %v698 = vld [vmem:[%s1 + $0x714] sm:$0xf]
      %v699 = vld [vmem:[%s1 + $0x718] sm:$0xf]
      %v700 = vld [vmem:[%s1 + $0x71c] sm:$0xf]
      %v701 = vld [vmem:[%s1 + $0x720] sm:$0xf]
      %v702 = vld [vmem:[%s1 + $0x724] sm:$0xf]
      %v703 = vld [vmem:[%s1 + $0x728] sm:$0xf]
      %v704 = vld [vmem:[%s1 + $0x72c] sm:$0xf]
      %v705 = vld [vmem:[%s1 + $0x730] sm:$0xf]
      %v706 = vld [vmem:[%s1 + $0x734] sm:$0xf]
      %v707 = vld [vmem:[%s1 + $0x738] sm:$0xf]
      %v708 = vld [vmem:[%s1 + $0x73c] sm:$0xf]
      %v709 = vld [vmem:[%s1 + $0x740] sm:$0xf]
      %v710 = vld [vmem:[%s1 + $0x744] sm:$0xf]
      %v711 = vld [vmem:[%s1 + $0x748] sm:$0xf]
      %v712 = vld [vmem:[%s1 + $0x74c] sm:$0xf]
      %v713 = vld [vmem:[%s1 + $0x750] sm:$0xf]
      %v714 = vld [vmem:[%s1 + $0x754] sm:$0xf]
      %v715 = vld [vmem:[%s1 + $0x758] sm:$0xf]
      %v716 = vld [vmem:[%s1 + $0x75c] sm:$0xf]
      %v717 = vld [vmem:[%s1 + $0x760] sm:$0xf]
      %v718 = vld [vmem:[%s1 + $0x764] sm:$0xf]
      %v719 = vld [vmem:[%s1 + $0x768] sm:$0xf]
      %v720 = vld [vmem:[%s1 + $0x76c] sm:$0xf]
      %v721 = vld [vmem:[%s1 + $0x770] sm:$0xf]
      %v722 = vld [vmem:[%s1 + $0x774] sm:$0xf]
      %v723 = vld [vmem:[%s1 + $0x778] sm:$0xf]
      %v724 = vld [vmem:[%s1 + $0x77c] sm:$0xf]
      %v725 = vld [vmem:[%s1 + $0x780] sm:$0xf]
      %v726 = vld [vmem:[%s1 + $0x784] sm:$0xf]
      %v727 = vld [vmem:[%s1 + $0x788] sm:$0xf]
      %v728 = vld [vmem:[%s1 + $0x78c] sm:$0xf]
      %v729 = vld [vmem:[%s1 + $0x790] sm:$0xf]
      %v730 = vld [vmem:[%s1 + $0x794] sm:$0xf]
      %v731 = vld [vmem:[%s1 + $0x798] sm:$0xf]
      %v732 = vld [vmem:[%s1 + $0x79c] sm:$0xf]
      %v733 = vld [vmem:[%s1 + $0x7a0] sm:$0xf]
      %v734 = vld [vmem:[%s1 + $0x7a4] sm:$0xf]
      %v735 = vld [vmem:[%s1 + $0x7a8] sm:$0xf]
      %v736 = vld [vmem:[%s1 + $0x7ac] sm:$0xf]
      %v737 = vld [vmem:[%s1 + $0x7b0] sm:$0xf]
      %v738 = vld [vmem:[%s1 + $0x7b4] sm:$0xf]
      %v739 = vld [vmem:[%s1 + $0x7b8] sm:$0xf]
      %v740 = vld [vmem:[%s1 + $0x7bc] sm:$0xf]
      %v741 = vld [vmem:[%s1 + $0x7c0] sm:$0xf]
      %v742 = vld [vmem:[%s1 + $0x7c4] sm:$0xf]
      %v743 = vld [vmem:[%s1 + $0x7c8] sm:$0xf]
      %v744 = vld [vmem:[%s1 + $0x7cc] sm:$0xf]
      %v745 = vld [vmem:[%s1 + $0x7d0] sm:$0xf]
      %v746 = vld [vmem:[%s1 + $0x7d4] sm:$0xf]
      %v747 = vld [vmem:[%s1 + $0x7d8] sm:$0xf]
      %v748 = vld [vmem:[%s1 + $0x7dc] sm:$0xf]
      %v749 = vld [vmem:[%s1 + $0x7e0] sm:$0xf]
      %v750 = vld [vmem:[%s1 + $0x7e4] sm:$0xf]
      %v751 = vld [vmem:[%s1 + $0x7e8] sm:$0xf]
      %v752 = vld [vmem:[%s1 + $0x7ec] sm:$0xf]
      %v753 = vld [vmem:[%s1 + $0x7f0] sm:$0xf]
      %v754 = vld [vmem:[%s1 + $0x7f4] sm:$0xf]
      %v755 = vld [vmem:[%s1 + $0x7f8] sm:$0xf]
      %v756 = vld [vmem:[%s1 + $0x7fc] sm:$0xf]
      %v757 = vld [vmem:[%s1 + $0x800] sm:$0xf]
      %v758 = vld [vmem:[%s1 + $0x804] sm:$0xf]
      %v759 = vld [vmem:[%s1 + $0x808] sm:$0xf]
      %v760 = vld [vmem:[%s1 + $0x80c] sm:$0xf]
      %v761 = vld [vmem:[%s1 + $0x810] sm:$0xf]
      %v762 = vld [vmem:[%s1 + $0x814] sm:$0xf]
      %v763 = vld [vmem:[%s1 + $0x818] sm:$0xf]
      %v764 = vld [vmem:[%s1 + $0x81c] sm:$0xf]
      %v765 = vld [vmem:[%s1 + $0x820] sm:$0xf]
      %v766 = vld [vmem:[%s1 + $0x824] sm:$0xf]
      %v767 = vld [vmem:[%s1 + $0x828] sm:$0xf]
      %v768 = vld [vmem:[%s1 + $0x82c] sm:$0xf]
      %v769 = vld [vmem:[%s1 + $0x830] sm:$0xf]
      %v770 = vld [vmem:[%s1 + $0x834] sm:$0xf]
      %v771 = vld [vmem:[%s1 + $0x838] sm:$0xf]
      %v772 = vld [vmem:[%s1 + $0x83c] sm:$0xf]
      %v773 = vld [vmem:[%s1 + $0x840] sm:$0xf]
      %v774 = vld [vmem:[%s1 + $0x844] sm:$0xf]
      %v775 = vld [vmem:[%s1 + $0x848] sm:$0xf]
      %v776 = vld [vmem:[%s1 + $0x84c] sm:$0xf]
      %v777 = vld [vmem:[%s1 + $0x850] sm:$0xf]
      %v778 = vld [vmem:[%s1 + $0x854] sm:$0xf]
      %v779 = vld [vmem:[%s1 + $0x858] sm:$0xf]
      %v780 = vld [vmem:[%s1 + $0x85c] sm:$0xf]
      %v781 = vld [vmem:[%s1 + $0x860] sm:$0xf]
      %v782 = vld [vmem:[%s1 + $0x864] sm:$0xf]
      %v783 = vld [vmem:[%s1 + $0x868] sm:$0xf]
      %v784 = vld [vmem:[%s1 + $0x86c] sm:$0xf]
      %v785 = vld [vmem:[%s1 + $0x870] sm:$0xf]
      %v786 = vld [vmem:[%s1 + $0x874] sm:$0xf]
      %v787 = vld [vmem:[%s1 + $0x878] sm:$0xf]
      %v788 = vld [vmem:[%s1 + $0x87c] sm:$0xf]
      %v789 = vld [vmem:[%s1 + $0x880] sm:$0xf]
      %v790 = vld [vmem:[%s1 + $0x884] sm:$0xf]
      %v791 = vld [vmem:[%s1 + $0x888] sm:$0xf]
      %v792 = vld [vmem:[%s1 + $0x88c] sm:$0xf]
      %v793 = vld [vmem:[%s1 + $0x890] sm:$0xf]
      %v794 = vld [vmem:[%s1 + $0x894] sm:$0xf]
      %v795 = vld [vmem:[%s1 + $0x898] sm:$0xf]
      %v796 = vld [vmem:[%s1 + $0x89c] sm:$0xf]
      %v797 = vld [vmem:[%s1 + $0x8a0] sm:$0xf]
      %v798 = vld [vmem:[%s1 + $0x8a4] sm:$0xf]
      %v799 = vld [vmem:[%s1 + $0x8a8] sm:$0xf]
      %v800 = vld [vmem:[%s1 + $0x8ac] sm:$0xf]
      %v801 = vld [vmem:[%s1 + $0x8b0] sm:$0xf]
      %v802 = vld [vmem:[%s1 + $0x8b4] sm:$0xf]
      %v803 = vld [vmem:[%s1 + $0x8b8] sm:$0xf]
      %v804 = vld [vmem:[%s1 + $0x8bc] sm:$0xf]
      %v805 = vld [vmem:[%s1 + $0x8c0] sm:$0xf]
      %v806 = vld [vmem:[%s1 + $0x8c4] sm:$0xf]
      %v807 = vld [vmem:[%s1 + $0x8c8] sm:$0xf]
      %v808 = vld [vmem:[%s1 + $0x8cc] sm:$0xf]
      %v809 = vld [vmem:[%s1 + $0x8d0] sm:$0xf]
      %v810 = vld [vmem:[%s1 + $0x8d4] sm:$0xf]
      %v811 = vld [vmem:[%s1 + $0x8d8] sm:$0xf]
      %v812 = vld [vmem:[%s1 + $0x8dc] sm:$0xf]
      %v813 = vld [vmem:[%s1 + $0x8e0] sm:$0xf]
      %v814 = vld [vmem:[%s1 + $0x8e4] sm:$0xf]
      %v815 = vld [vmem:[%s1 + $0x8e8] sm:$0xf]
      %v816 = vld [vmem:[%s1 + $0x8ec] sm:$0xf]
      %v817 = vld [vmem:[%s1 + $0x8f0] sm:$0xf]
      %v818 = vld [vmem:[%s1 + $0x8f4] sm:$0xf]
      %v819 = vld [vmem:[%s1 + $0x8f8] sm:$0xf]
      %v820 = vld [vmem:[%s1 + $0x8fc] sm:$0xf]
      %v821 = vld [vmem:[%s1 + $0x900] sm:$0xf]
      %v822 = vld [vmem:[%s1 + $0x904] sm:$0xf]
      %v823 = vld [vmem:[%s1 + $0x908] sm:$0xf]
      %v824 = vld [vmem:[%s1 + $0x90c] sm:$0xf]
      %v825 = vld [vmem:[%s1 + $0x910] sm:$0xf]
      %v826 = vld [vmem:[%s1 + $0x914] sm:$0xf]
      %v827 = vld [vmem:[%s1 + $0x918] sm:$0xf]
      %v828 = vld [vmem:[%s1 + $0x91c] sm:$0xf]
      %v829 = vld [vmem:[%s1 + $0x920] sm:$0xf]
      %v830 = vld [vmem:[%s1 + $0x924] sm:$0xf]
      %v831 = vld [vmem:[%s1 + $0x928] sm:$0xf]
      %v832 = vld [vmem:[%s1 + $0x92c] sm:$0xf]
      %v833 = vld [vmem:[%s1 + $0x930] sm:$0xf]
      %v834 = vld [vmem:[%s1 + $0x934] sm:$0xf]
      %v835 = vld [vmem:[%s1 + $0x938] sm:$0xf]
      %v836 = vld [vmem:[%s1 + $0x93c] sm:$0xf]
      %v837 = vld [vmem:[%s1 + $0x940] sm:$0xf]
      %v838 = vld [vmem:[%s1 + $0x944] sm:$0xf]
      %v839 = vld [vmem:[%s1 + $0x948] sm:$0xf]
      %v840 = vld [vmem:[%s1 + $0x94c] sm:$0xf]
      %v841 = vld [vmem:[%s1 + $0x950] sm:$0xf]
      %v842 = vld [vmem:[%s1 + $0x954] sm:$0xf]
      %v843 = vld [vmem:[%s1 + $0x958] sm:$0xf]
      %v844 = vld [vmem:[%s1 + $0x95c] sm:$0xf]
      %v845 = vld [vmem:[%s1 + $0x960] sm:$0xf]
      %v846 = vld [vmem:[%s1 + $0x964] sm:$0xf]
      %v847 = vld [vmem:[%s1 + $0x968] sm:$0xf]
      %v848 = vld [vmem:[%s1 + $0x96c] sm:$0xf]
      %v849 = vld [vmem:[%s1 + $0x970] sm:$0xf]
      %v850 = vld [vmem:[%s1 + $0x974] sm:$0xf]
      %v851 = vld [vmem:[%s1 + $0x978] sm:$0xf]
      %v852 = vld [vmem:[%s1 + $0x97c] sm:$0xf]
      %v853 = vld [vmem:[%s1 + $0x980] sm:$0xf]
      %v854 = vld [vmem:[%s1 + $0x984] sm:$0xf]
      %v855 = vld [vmem:[%s1 + $0x988] sm:$0xf]
      %v856 = vld [vmem:[%s1 + $0x98c] sm:$0xf]
      %v857 = vld [vmem:[%s1 + $0x990] sm:$0xf]
      %v858 = vld [vmem:[%s1 + $0x994] sm:$0xf]
      %v859 = vld [vmem:[%s1 + $0x998] sm:$0xf]
      %v860 = vld [vmem:[%s1 + $0x99c] sm:$0xf]
      %v861 = vld [vmem:[%s1 + $0x9a0] sm:$0xf]
      %v862 = vld [vmem:[%s1 + $0x9a4] sm:$0xf]
      %v863 = vld [vmem:[%s1 + $0x9a8] sm:$0xf]
      %v864 = vld [vmem:[%s1 + $0x9ac] sm:$0xf]
      %v865 = vld [vmem:[%s1 + $0x9b0] sm:$0xf]
      %v866 = vld [vmem:[%s1 + $0x9b4] sm:$0xf]
      %v867 = vld [vmem:[%s1 + $0x9b8] sm:$0xf]
      %v868 = vld [vmem:[%s1 + $0x9bc] sm:$0xf]
      %v869 = vld [vmem:[%s1 + $0x9c0] sm:$0xf]
      %v870 = vld [vmem:[%s1 + $0x9c4] sm:$0xf]
      %v871 = vld [vmem:[%s1 + $0x9c8] sm:$0xf]
      %v872 = vld [vmem:[%s1 + $0x9cc] sm:$0xf]
      %v873 = vld [vmem:[%s1 + $0x9d0] sm:$0xf]
      %v874 = vld [vmem:[%s1 + $0x9d4] sm:$0xf]
      %v875 = vld [vmem:[%s1 + $0x9d8] sm:$0xf]
      %v876 = vld [vmem:[%s1 + $0x9dc] sm:$0xf]
      %v877 = vld [vmem:[%s1 + $0x9e0] sm:$0xf]
      %v878 = vld [vmem:[%s1 + $0x9e4] sm:$0xf]
      %v879 = vld [vmem:[%s1 + $0x9e8] sm:$0xf]
      %v880 = vld [vmem:[%s1 + $0x9ec] sm:$0xf]
      %v881 = vld [vmem:[%s1 + $0x9f0] sm:$0xf]
      %v882 = vld [vmem:[%s1 + $0x9f4] sm:$0xf]
      %v883 = vld [vmem:[%s1 + $0x9f8] sm:$0xf]
      %v884 = vld [vmem:[%s1 + $0x9fc] sm:$0xf]
      %v885 = vld [vmem:[%s1 + $0xa00] sm:$0xf]
      %v886 = vld [vmem:[%s1 + $0xa04] sm:$0xf]
      %v887 = vld [vmem:[%s1 + $0xa08] sm:$0xf]
      %v888 = vld [vmem:[%s1 + $0xa0c] sm:$0xf]
      %v889 = vld [vmem:[%s1 + $0xa10] sm:$0xf]
      %v890 = vld [vmem:[%s1 + $0xa14] sm:$0xf]
      %v891 = vld [vmem:[%s1 + $0xa18] sm:$0xf]
      %v892 = vld [vmem:[%s1 + $0xa1c] sm:$0xf]
      %v893 = vld [vmem:[%s1 + $0xa20] sm:$0xf]
      %v894 = vld [vmem:[%s1 + $0xa24] sm:$0xf]
      %v895 = vld [vmem:[%s1 + $0xa28] sm:$0xf]
      %v896 = vld [vmem:[%s1 + $0xa2c] sm:$0xf]
      %v897 = vld [vmem:[%s1 + $0xa30] sm:$0xf]
      %v898 = vld [vmem:[%s1 + $0xa34] sm:$0xf]
      %v899 = vld [vmem:[%s1 + $0xa38] sm:$0xf]
      %v900 = vld [vmem:[%s1 + $0xa3c] sm:$0xf]
      %v901 = vld [vmem:[%s1 + $0xa40] sm:$0xf]
      %v902 = vld [vmem:[%s1 + $0xa44] sm:$0xf]
      %v903 = vld [vmem:[%s1 + $0xa48] sm:$0xf]
      %v904 = vld [vmem:[%s1 + $0xa4c] sm:$0xf]
      %v905 = vld [vmem:[%s1 + $0xa50] sm:$0xf]
      %v906 = vld [vmem:[%s1 + $0xa54] sm:$0xf]
      %v907 = vld [vmem:[%s1 + $0xa58] sm:$0xf]
      %v908 = vld [vmem:[%s1 + $0xa5c] sm:$0xf]
      %v909 = vld [vmem:[%s1 + $0xa60] sm:$0xf]
      %v910 = vld [vmem:[%s1 + $0xa64] sm:$0xf]
      %v911 = vld [vmem:[%s1 + $0xa68] sm:$0xf]
      %v912 = vld [vmem:[%s1 + $0xa6c] sm:$0xf]
      %v913 = vld [vmem:[%s1 + $0xa70] sm:$0xf]
      %v914 = vld [vmem:[%s1 + $0xa74] sm:$0xf]
      %v915 = vld [vmem:[%s1 + $0xa78] sm:$0xf]
      %v916 = vld [vmem:[%s1 + $0xa7c] sm:$0xf]
      %v917 = vld [vmem:[%s1 + $0xa80] sm:$0xf]
      %v918 = vld [vmem:[%s1 + $0xa84] sm:$0xf]
      %v919 = vld [vmem:[%s1 + $0xa88] sm:$0xf]
      %v920 = vld [vmem:[%s1 + $0xa8c] sm:$0xf]
      %v921 = vld [vmem:[%s1 + $0xa90] sm:$0xf]
      %v922 = vld [vmem:[%s1 + $0xa94] sm:$0xf]
      %v923 = vld [vmem:[%s1 + $0xa98] sm:$0xf]
      %v924 = vld [vmem:[%s1 + $0xa9c] sm:$0xf]
      %v925 = vld [vmem:[%s1 + $0xaa0] sm:$0xf]
      %v926 = vld [vmem:[%s1 + $0xaa4] sm:$0xf]
      %v927 = vld [vmem:[%s1 + $0xaa8] sm:$0xf]
      %v928 = vld [vmem:[%s1 + $0xaac] sm:$0xf]
      %v929 = vld [vmem:[%s1 + $0xab0] sm:$0xf]
      %v930 = vld [vmem:[%s1 + $0xab4] sm:$0xf]
      %v931 = vld [vmem:[%s1 + $0xab8] sm:$0xf]
      %v932 = vld [vmem:[%s1 + $0xabc] sm:$0xf]
      %v933 = vld [vmem:[%s1 + $0xac0] sm:$0xf]
      %v934 = vld [vmem:[%s1 + $0xac4] sm:$0xf]
      %v935 = vld [vmem:[%s1 + $0xac8] sm:$0xf]
      %v936 = vld [vmem:[%s1 + $0xacc] sm:$0xf]
      %v937 = vld [vmem:[%s1 + $0xad0] sm:$0xf]
      %v938 = vld [vmem:[%s1 + $0xad4] sm:$0xf]
      %v939 = vld [vmem:[%s1 + $0xad8] sm:$0xf]
      %v940 = vld [vmem:[%s1 + $0xadc] sm:$0xf]
      %v941 = vld [vmem:[%s1 + $0xae0] sm:$0xf]
      %v942 = vld [vmem:[%s1 + $0xae4] sm:$0xf]
      %v943 = vld [vmem:[%s1 + $0xae8] sm:$0xf]
      %v944 = vld [vmem:[%s1 + $0xaec] sm:$0xf]
      %v945 = vld [vmem:[%s1 + $0xaf0] sm:$0xf]
      %v946 = vld [vmem:[%s1 + $0xaf4] sm:$0xf]
      %v947 = vld [vmem:[%s1 + $0xaf8] sm:$0xf]
      %v948 = vld [vmem:[%s1 + $0xafc] sm:$0xf]
      %v949 = vld [vmem:[%s1 + $0xb00] sm:$0xf]
      %v950 = vld [vmem:[%s1 + $0xb04] sm:$0xf]
      %v951 = vld [vmem:[%s1 + $0xb08] sm:$0xf]
      %v952 = vld [vmem:[%s1 + $0xb0c] sm:$0xf]
      %v953 = vld [vmem:[%s1 + $0xb10] sm:$0xf]
      %v954 = vld [vmem:[%s1 + $0xb14] sm:$0xf]
      %v955 = vld [vmem:[%s1 + $0xb18] sm:$0xf]
      %v956 = vld [vmem:[%s1 + $0xb1c] sm:$0xf]
      %v957 = vld [vmem:[%s1 + $0xb20] sm:$0xf]
      %v958 = vld [vmem:[%s1 + $0xb24] sm:$0xf]
      %v959 = vld [vmem:[%s1 + $0xb28] sm:$0xf]
      %v960 = vld [vmem:[%s1 + $0xb2c] sm:$0xf]
      %v961 = vld [vmem:[%s1 + $0xb30] sm:$0xf]
      %v962 = vld [vmem:[%s1 + $0xb34] sm:$0xf]
      %v963 = vld [vmem:[%s1 + $0xb38] sm:$0xf]
      %v964 = vld [vmem:[%s1 + $0xb3c] sm:$0xf]
      %v965 = vld [vmem:[%s1 + $0xb40] sm:$0xf]
      %v966 = vld [vmem:[%s1 + $0xb44] sm:$0xf]
      %v967 = vld [vmem:[%s1 + $0xb48] sm:$0xf]
      %v968 = vld [vmem:[%s1 + $0xb4c] sm:$0xf]
      %v969 = vld [vmem:[%s1 + $0xb50] sm:$0xf]
      %v970 = vld [vmem:[%s1 + $0xb54] sm:$0xf]
      %v971 = vld [vmem:[%s1 + $0xb58] sm:$0xf]
      %v972 = vld [vmem:[%s1 + $0xb5c] sm:$0xf]
      %v973 = vld [vmem:[%s1 + $0xb60] sm:$0xf]
      %v974 = vld [vmem:[%s1 + $0xb64] sm:$0xf]
      %v975 = vld [vmem:[%s1 + $0xb68] sm:$0xf]
      %v976 = vld [vmem:[%s1 + $0xb6c] sm:$0xf]
      %v977 = vld [vmem:[%s1 + $0xb70] sm:$0xf]
      %v978 = vld [vmem:[%s1 + $0xb74] sm:$0xf]
      %v979 = vld [vmem:[%s1 + $0xb78] sm:$0xf]
      %v980 = vld [vmem:[%s1 + $0xb7c] sm:$0xf]
      %v981 = vld [vmem:[%s1 + $0xb80] sm:$0xf]
      %v982 = vld [vmem:[%s1 + $0xb84] sm:$0xf]
      %v983 = vld [vmem:[%s1 + $0xb88] sm:$0xf]
      %v984 = vld [vmem:[%s1 + $0xb8c] sm:$0xf]
      %v985 = vld [vmem:[%s1 + $0xb90] sm:$0xf]
      %v986 = vld [vmem:[%s1 + $0xb94] sm:$0xf]
      %v987 = vld [vmem:[%s1 + $0xb98] sm:$0xf]
      %v988 = vld [vmem:[%s1 + $0xb9c] sm:$0xf]
      %v989 = vld [vmem:[%s1 + $0xba0] sm:$0xf]
      %v990 = vld [vmem:[%s1 + $0xba4] sm:$0xf]
      %v991 = vld [vmem:[%s1 + $0xba8] sm:$0xf]
      %v992 = vld [vmem:[%s1 + $0xbac] sm:$0xf]
      %v993 = vld [vmem:[%s1 + $0xbb0] sm:$0xf]
      %v994 = vld [vmem:[%s1 + $0xbb4] sm:$0xf]
      %v995 = vld [vmem:[%s1 + $0xbb8] sm:$0xf]
      %v996 = vld [vmem:[%s1 + $0xbbc] sm:$0xf]
      %v997 = vld [vmem:[%s1 + $0xbc0] sm:$0xf]
      %v998 = vld [vmem:[%s1 + $0xbc4] sm:$0xf]
      %v999 = vld [vmem:[%s1 + $0xbc8] sm:$0xf]
      %v1000 = vld [vmem:[%s1 + $0xbcc] sm:$0xf]
      %v1001 = vld [vmem:[%s1 + $0xbd0] sm:$0xf]
      %v1002 = vld [vmem:[%s1 + $0xbd4] sm:$0xf]
      %v1003 = vld [vmem:[%s1 + $0xbd8] sm:$0xf]
      %v1004 = vld [vmem:[%s1 + $0xbdc] sm:$0xf]
      %v1005 = vld [vmem:[%s1 + $0xbe0] sm:$0xf]
      %v1006 = vld [vmem:[%s1 + $0xbe4] sm:$0xf]
      %v1007 = vld [vmem:[%s1 + $0xbe8] sm:$0xf]
      %v1008 = vld [vmem:[%s1 + $0xbec] sm:$0xf]
      %v1009 = vld [vmem:[%s1 + $0xbf0] sm:$0xf]
      %v1010 = vld [vmem:[%s1 + $0xbf4] sm:$0xf]
      %v1011 = vld [vmem:[%s1 + $0xbf8] sm:$0xf]
      %v1012 = vld [vmem:[%s1 + $0xbfc] sm:$0xf]
      %v1013 = vld [vmem:[%s1 + $0xc00] sm:$0xf]
      %v1014 = vld [vmem:[%s1 + $0xc04] sm:$0xf]
      %v1015 = vld [vmem:[%s1 + $0xc08] sm:$0xf]
      %v1016 = vld [vmem:[%s1 + $0xc0c] sm:$0xf]
      %v1017 = vld [vmem:[%s1 + $0xc10] sm:$0xf]
      %v1018 = vld [vmem:[%s1 + $0xc14] sm:$0xf]
      %v1019 = vld [vmem:[%s1 + $0xc18] sm:$0xf]
      %v1020 = vld [vmem:[%s1 + $0xc1c] sm:$0xf]
      %v1021 = vld [vmem:[%s1 + $0xc20] sm:$0xf]
      %v1022 = vld [vmem:[%s1 + $0xc24] sm:$0xf]
      %v1023 = vld [vmem:[%s1 + $0xc28] sm:$0xf]
      %v1024 = vld [vmem:[%s1 + $0xc2c] sm:$0xf]
      %v1025 = vld [vmem:[%s1 + $0xc30] sm:$0xf]
      %v1026 = vld [vmem:[%s1 + $0xc34] sm:$0xf]
      %v1027 = vld [vmem:[%s1 + $0xc38] sm:$0xf]
      %v1028 = vld [vmem:[%s1 + $0xc3c] sm:$0xf]
      %v1029 = vld [vmem:[%s1 + $0xc40] sm:$0xf]
      %v1030 = vld [vmem:[%s1 + $0xc44] sm:$0xf]
      %v1031 = vld [vmem:[%s1 + $0xc48] sm:$0xf]
      %v1032 = vld [vmem:[%s1 + $0xc4c] sm:$0xf]
      %v1033 = vld [vmem:[%s1 + $0xc50] sm:$0xf]
      %v1034 = vld [vmem:[%s1 + $0xc54] sm:$0xf]
      %v1035 = vld [vmem:[%s1 + $0xc58] sm:$0xf]
      %v1036 = vld [vmem:[%s1 + $0xc5c] sm:$0xf]
      %v1037 = vld [vmem:[%s1 + $0xc60] sm:$0xf]
      %v1038 = vld [vmem:[%s1 + $0xc64] sm:$0xf]
      %v1039 = vld [vmem:[%s1 + $0xc68] sm:$0xf]
      %v1040 = vld [vmem:[%s1 + $0xc6c] sm:$0xf]
      %v1041 = vld [vmem:[%s1 + $0xc70] sm:$0xf]
      %v1042 = vld [vmem:[%s1 + $0xc74] sm:$0xf]
      %v1043 = vld [vmem:[%s1 + $0xc78] sm:$0xf]
      %v1044 = vld [vmem:[%s1 + $0xc7c] sm:$0xf]
      %v1045 = vld [vmem:[%s1 + $0xc80] sm:$0xf]
      %v1046 = vld [vmem:[%s1 + $0xc84] sm:$0xf]
      %v1047 = vld [vmem:[%s1 + $0xc88] sm:$0xf]
      %v1048 = vld [vmem:[%s1 + $0xc8c] sm:$0xf]
      %v1049 = vld [vmem:[%s1 + $0xc90] sm:$0xf]
      %v1050 = vld [vmem:[%s1 + $0xc94] sm:$0xf]
      %v1051 = vld [vmem:[%s1 + $0xc98] sm:$0xf]
      %v1052 = vld [vmem:[%s1 + $0xc9c] sm:$0xf]
      %v1053 = vld [vmem:[%s1 + $0xca0] sm:$0xf]
      %v1054 = vld [vmem:[%s1 + $0xca4] sm:$0xf]
      %v1055 = vld [vmem:[%s1 + $0xca8] sm:$0xf]
      %v1056 = vld [vmem:[%s1 + $0xcac] sm:$0xf]
      %v1057 = vld [vmem:[%s1 + $0xcb0] sm:$0xf]
      %v1058 = vld [vmem:[%s1 + $0xcb4] sm:$0xf]
      %v1059 = vld [vmem:[%s1 + $0xcb8] sm:$0xf]
      %v1060 = vld [vmem:[%s1 + $0xcbc] sm:$0xf]
      %v1061 = vld [vmem:[%s1 + $0xcc0] sm:$0xf]
      %v1062 = vld [vmem:[%s1 + $0xcc4] sm:$0xf]
      %v1063 = vld [vmem:[%s1 + $0xcc8] sm:$0xf]
      %v1064 = vld [vmem:[%s1 + $0xccc] sm:$0xf]
      %v1065 = vld [vmem:[%s1 + $0xcd0] sm:$0xf]
      %v1066 = vld [vmem:[%s1 + $0xcd4] sm:$0xf]
      %v1067 = vld [vmem:[%s1 + $0xcd8] sm:$0xf]
      %v1068 = vld [vmem:[%s1 + $0xcdc] sm:$0xf]
      %v1069 = vld [vmem:[%s1 + $0xce0] sm:$0xf]
      %v1070 = vld [vmem:[%s1 + $0xce4] sm:$0xf]
      %v1071 = vld [vmem:[%s1 + $0xce8] sm:$0xf]
      %v1072 = vld [vmem:[%s1 + $0xcec] sm:$0xf]
      %v1073 = vld [vmem:[%s1 + $0xcf0] sm:$0xf]
      %v1074 = vld [vmem:[%s1 + $0xcf4] sm:$0xf]
      %v1075 = vld [vmem:[%s1 + $0xcf8] sm:$0xf]
      %v1076 = vld [vmem:[%s1 + $0xcfc] sm:$0xf]
      %v1077 = vld [vmem:[%s1 + $0xd00] sm:$0xf]
      %v1078 = vld [vmem:[%s1 + $0xd04] sm:$0xf]
      %v1079 = vld [vmem:[%s1 + $0xd08] sm:$0xf]
      %v1080 = vld [vmem:[%s1 + $0xd0c] sm:$0xf]
      %v1081 = vld [vmem:[%s1 + $0xd10] sm:$0xf]
      %v1082 = vld [vmem:[%s1 + $0xd14] sm:$0xf]
      %v1083 = vld [vmem:[%s1 + $0xd18] sm:$0xf]
      %v1084 = vld [vmem:[%s1 + $0xd1c] sm:$0xf]
      %v1085 = vld [vmem:[%s1 + $0xd20] sm:$0xf]
      %v1086 = vld [vmem:[%s1 + $0xd24] sm:$0xf]
      %v1087 = vld [vmem:[%s1 + $0xd28] sm:$0xf]
      %v1088 = vld [vmem:[%s1 + $0xd2c] sm:$0xf]
      %v1089 = vld [vmem:[%s1 + $0xd30] sm:$0xf]
      %v1090 = vld [vmem:[%s1 + $0xd34] sm:$0xf]
      %v1091 = vld [vmem:[%s1 + $0xd38] sm:$0xf]
      %v1092 = vld [vmem:[%s1 + $0xd3c] sm:$0xf]
      %v1093 = vld [vmem:[%s1 + $0xd40] sm:$0xf]
      %v1094 = vld [vmem:[%s1 + $0xd44] sm:$0xf]
      %v1095 = vld [vmem:[%s1 + $0xd48] sm:$0xf]
      %v1096 = vld [vmem:[%s1 + $0xd4c] sm:$0xf]
      %v1097 = vld [vmem:[%s1 + $0xd50] sm:$0xf]
      %v1098 = vld [vmem:[%s1 + $0xd54] sm:$0xf]
      %v1099 = vld [vmem:[%s1 + $0xd58] sm:$0xf]
      %v1100 = vld [vmem:[%s1 + $0xd5c] sm:$0xf]
      %v1101 = vld [vmem:[%s1 + $0xd60] sm:$0xf]
      %v1102 = vld [vmem:[%s1 + $0xd64] sm:$0xf]
      %v1103 = vld [vmem:[%s1 + $0xd68] sm:$0xf]
      %v1104 = vld [vmem:[%s1 + $0xd6c] sm:$0xf]
      %v1105 = vld [vmem:[%s1 + $0xd70] sm:$0xf]
      %v1106 = vld [vmem:[%s1 + $0xd74] sm:$0xf]
      %v1107 = vld [vmem:[%s1 + $0xd78] sm:$0xf]
      %v1108 = vld [vmem:[%s1 + $0xd7c] sm:$0xf]
      %v1109 = vld [vmem:[%s1 + $0xd80] sm:$0xf]
      %v1110 = vld [vmem:[%s1 + $0xd84] sm:$0xf]
      %v1111 = vld [vmem:[%s1 + $0xd88] sm:$0xf]
      %v1112 = vld [vmem:[%s1 + $0xd8c] sm:$0xf]
      %v1113 = vld [vmem:[%s1 + $0xd90] sm:$0xf]
      %v1114 = vld [vmem:[%s1 + $0xd94] sm:$0xf]
      %v1115 = vld [vmem:[%s1 + $0xd98] sm:$0xf]
      %v1116 = vld [vmem:[%s1 + $0xd9c] sm:$0xf]
      %v1117 = vld [vmem:[%s1 + $0xda0] sm:$0xf]
      %v1118 = vld [vmem:[%s1 + $0xda4] sm:$0xf]
      %v1119 = vld [vmem:[%s1 + $0xda8] sm:$0xf]
      %v1120 = vld [vmem:[%s1 + $0xdac] sm:$0xf]
      %v1121 = vld [vmem:[%s1 + $0xdb0] sm:$0xf]
      %v1122 = vld [vmem:[%s1 + $0xdb4] sm:$0xf]
      %v1123 = vld [vmem:[%s1 + $0xdb8] sm:$0xf]
      %v1124 = vld [vmem:[%s1 + $0xdbc] sm:$0xf]
      %v1125 = vld [vmem:[%s1 + $0xdc0] sm:$0xf]
      %v1126 = vld [vmem:[%s1 + $0xdc4] sm:$0xf]
      %v1127 = vld [vmem:[%s1 + $0xdc8] sm:$0xf]
      %v1128 = vld [vmem:[%s1 + $0xdcc] sm:$0xf]
      %v1129 = vld [vmem:[%s1 + $0xdd0] sm:$0xf]
      %v1130 = vld [vmem:[%s1 + $0xdd4] sm:$0xf]
      %v1131 = vld [vmem:[%s1 + $0xdd8] sm:$0xf]
      %v1132 = vld [vmem:[%s1 + $0xddc] sm:$0xf]
      %v1133 = vld [vmem:[%s1 + $0xde0] sm:$0xf]
      %v1134 = vld [vmem:[%s1 + $0xde4] sm:$0xf]
      %v1135 = vld [vmem:[%s1 + $0xde8] sm:$0xf]
      %v1136 = vld [vmem:[%s1 + $0xdec] sm:$0xf]
      %v1137 = vld [vmem:[%s1 + $0xdf0] sm:$0xf]
      %v1138 = vld [vmem:[%s1 + $0xdf4] sm:$0xf]
      %v1139 = vld [vmem:[%s1 + $0xdf8] sm:$0xf]
      %v1140 = vld [vmem:[%s1 + $0xdfc] sm:$0xf]
      %v1141 = vld [vmem:[%s1 + $0xe00] sm:$0xf]
      %v1142 = vld [vmem:[%s1 + $0xe04] sm:$0xf]
      %v1143 = vld [vmem:[%s1 + $0xe08] sm:$0xf]
      %v1144 = vld [vmem:[%s1 + $0xe0c] sm:$0xf]
      %v1145 = vld [vmem:[%s1 + $0xe10] sm:$0xf]
      %v1146 = vld [vmem:[%s1 + $0xe14] sm:$0xf]
      %v1147 = vld [vmem:[%s1 + $0xe18] sm:$0xf]
      %v1148 = vld [vmem:[%s1 + $0xe1c] sm:$0xf]
      %v1149 = vld [vmem:[%s1 + $0xe20] sm:$0xf]
      %v1150 = vld [vmem:[%s1 + $0xe24] sm:$0xf]
      %v1151 = vld [vmem:[%s1 + $0xe28] sm:$0xf]
      %v1152 = vld [vmem:[%s1 + $0xe2c] sm:$0xf]
      %v1153 = vld [vmem:[%s1 + $0xe30] sm:$0xf]
      %v1154 = vld [vmem:[%s1 + $0xe34] sm:$0xf]
      %v1155 = vld [vmem:[%s1 + $0xe38] sm:$0xf]
      %v1156 = vld [vmem:[%s1 + $0xe3c] sm:$0xf]
      %v1157 = vld [vmem:[%s1 + $0xe40] sm:$0xf]
      %v1158 = vld [vmem:[%s1 + $0xe44] sm:$0xf]
      %v1159 = vld [vmem:[%s1 + $0xe48] sm:$0xf]
      %v1160 = vld [vmem:[%s1 + $0xe4c] sm:$0xf]
      %v1161 = vld [vmem:[%s1 + $0xe50] sm:$0xf]
      %v1162 = vld [vmem:[%s1 + $0xe54] sm:$0xf]
      %v1163 = vld [vmem:[%s1 + $0xe58] sm:$0xf]
      %v1164 = vld [vmem:[%s1 + $0xe5c] sm:$0xf]
      %v1165 = vld [vmem:[%s1 + $0xe60] sm:$0xf]
      %v1166 = vld [vmem:[%s1 + $0xe64] sm:$0xf]
      %v1167 = vld [vmem:[%s1 + $0xe68] sm:$0xf]
      %v1168 = vld [vmem:[%s1 + $0xe6c] sm:$0xf]
      %v1169 = vld [vmem:[%s1 + $0xe70] sm:$0xf]
      %v1170 = vld [vmem:[%s1 + $0xe74] sm:$0xf]
      %v1171 = vld [vmem:[%s1 + $0xe78] sm:$0xf]
      %v1172 = vld [vmem:[%s1 + $0xe7c] sm:$0xf]
      %v1173 = vld [vmem:[%s1 + $0xe80] sm:$0xf]
      %v1174 = vld [vmem:[%s1 + $0xe84] sm:$0xf]
      %v1175 = vld [vmem:[%s1 + $0xe88] sm:$0xf]
      %v1176 = vld [vmem:[%s1 + $0xe8c] sm:$0xf]
      %v1177 = vld [vmem:[%s1 + $0xe90] sm:$0xf]
      %v1178 = vld [vmem:[%s1 + $0xe94] sm:$0xf]
      %v1179 = vld [vmem:[%s1 + $0xe98] sm:$0xf]
      %v1180 = vld [vmem:[%s1 + $0xe9c] sm:$0xf]
      %v1181 = vld [vmem:[%s1 + $0xea0] sm:$0xf]
      %v1182 = vld [vmem:[%s1 + $0xea4] sm:$0xf]
      %v1183 = vld [vmem:[%s1 + $0xea8] sm:$0xf]
      %v1184 = vld [vmem:[%s1 + $0xeac] sm:$0xf]
      %v1185 = vld [vmem:[%s1 + $0xeb0] sm:$0xf]
      %v1186 = vld [vmem:[%s1 + $0xeb4] sm:$0xf]
      %v1187 = vld [vmem:[%s1 + $0xeb8] sm:$0xf]
      %v1188 = vld [vmem:[%s1 + $0xebc] sm:$0xf]
      %v1189 = vld [vmem:[%s1 + $0xec0] sm:$0xf]
      %v1190 = vld [vmem:[%s1 + $0xec4] sm:$0xf]
      %v1191 = vld [vmem:[%s1 + $0xec8] sm:$0xf]
      %v1192 = vld [vmem:[%s1 + $0xecc] sm:$0xf]
      %v1193 = vld [vmem:[%s1 + $0xed0] sm:$0xf]
      %v1194 = vld [vmem:[%s1 + $0xed4] sm:$0xf]
      %v1195 = vld [vmem:[%s1 + $0xed8] sm:$0xf]
      %v1196 = vld [vmem:[%s1 + $0xedc] sm:$0xf]
      %v1197 = vld [vmem:[%s1 + $0xee0] sm:$0xf]
      %v1198 = vld [vmem:[%s1 + $0xee4] sm:$0xf]
      %v1199 = vld [vmem:[%s1 + $0xee8] sm:$0xf]
      %v1200 = vld [vmem:[%s1 + $0xeec] sm:$0xf]
      %v1201 = vld [vmem:[%s1 + $0xef0] sm:$0xf]
      %v1202 = vld [vmem:[%s1 + $0xef4] sm:$0xf]
      %v1203 = vld [vmem:[%s1 + $0xef8] sm:$0xf]
      %v1204 = vld [vmem:[%s1 + $0xefc] sm:$0xf]
      %v1205 = vld [vmem:[%s1 + $0xf00] sm:$0xf]
      %v1206 = vld [vmem:[%s1 + $0xf04] sm:$0xf]
      %v1207 = vld [vmem:[%s1 + $0xf08] sm:$0xf]
      %v1208 = vld [vmem:[%s1 + $0xf0c] sm:$0xf]
      %v1209 = vld [vmem:[%s1 + $0xf10] sm:$0xf]
      %v1210 = vld [vmem:[%s1 + $0xf14] sm:$0xf]
      %v1211 = vld [vmem:[%s1 + $0xf18] sm:$0xf]
      %v1212 = vld [vmem:[%s1 + $0xf1c] sm:$0xf]
      %v1213 = vld [vmem:[%s1 + $0xf20] sm:$0xf]
      %v1214 = vld [vmem:[%s1 + $0xf24] sm:$0xf]
      %v1215 = vld [vmem:[%s1 + $0xf28] sm:$0xf]
      %v1216 = vld [vmem:[%s1 + $0xf2c] sm:$0xf]
      %v1217 = vld [vmem:[%s1 + $0xf30] sm:$0xf]
      %v1218 = vld [vmem:[%s1 + $0xf34] sm:$0xf]
      %v1219 = vld [vmem:[%s1 + $0xf38] sm:$0xf]
      %v1220 = vld [vmem:[%s1 + $0xf3c] sm:$0xf]
      %v1221 = vld [vmem:[%s1 + $0xf40] sm:$0xf]
      %v1222 = vld [vmem:[%s1 + $0xf44] sm:$0xf]
      %v1223 = vld [vmem:[%s1 + $0xf48] sm:$0xf]
      %v1224 = vld [vmem:[%s1 + $0xf4c] sm:$0xf]
      %v1225 = vld [vmem:[%s1 + $0xf50] sm:$0xf]
      %v1226 = vld [vmem:[%s1 + $0xf54] sm:$0xf]
      %v1227 = vld [vmem:[%s1 + $0xf58] sm:$0xf]
      %v1228 = vld [vmem:[%s1 + $0xf5c] sm:$0xf]
      %v1229 = vld [vmem:[%s1 + $0xf60] sm:$0xf]
      %v1230 = vld [vmem:[%s1 + $0xf64] sm:$0xf]
      %v1231 = vld [vmem:[%s1 + $0xf68] sm:$0xf]
      %v1232 = vld [vmem:[%s1 + $0xf6c] sm:$0xf]
      %v1233 = vld [vmem:[%s1 + $0xf70] sm:$0xf]
      %v1234 = vld [vmem:[%s1 + $0xf74] sm:$0xf]
      %v1235 = vld [vmem:[%s1 + $0xf78] sm:$0xf]
      %v1236 = vld [vmem:[%s1 + $0xf7c] sm:$0xf]
      %v1237 = vld [vmem:[%s1 + $0xf80] sm:$0xf]
      %v1238 = vld [vmem:[%s1 + $0xf84] sm:$0xf]
      %v1239 = vld [vmem:[%s1 + $0xf88] sm:$0xf]
      %v1240 = vld [vmem:[%s1 + $0xf8c] sm:$0xf]
      %v1241 = vld [vmem:[%s1 + $0xf90] sm:$0xf]
      %v1242 = vld [vmem:[%s1 + $0xf94] sm:$0xf]
      %v1243 = vld [vmem:[%s1 + $0xf98] sm:$0xf]
      %v1244 = vld [vmem:[%s1 + $0xf9c] sm:$0xf]
      %v1245 = vld [vmem:[%s1 + $0xfa0] sm:$0xf]
      %v1246 = vld [vmem:[%s1 + $0xfa4] sm:$0xf]
      %v1247 = vld [vmem:[%s1 + $0xfa8] sm:$0xf]
      %v1248 = vld [vmem:[%s1 + $0xfac] sm:$0xf]
      %v1249 = vld [vmem:[%s1 + $0xfb0] sm:$0xf]
      %v1250 = vld [vmem:[%s1 + $0xfb4] sm:$0xf]
      %v1251 = vld [vmem:[%s1 + $0xfb8] sm:$0xf]
      %v1252 = vld [vmem:[%s1 + $0xfbc] sm:$0xf]
      %v1253 = vld [vmem:[%s1 + $0xfc0] sm:$0xf]
      %v1254 = vld [vmem:[%s1 + $0xfc4] sm:$0xf]
      %v1255 = vld [vmem:[%s1 + $0xfc8] sm:$0xf]
      %v1256 = vld [vmem:[%s1 + $0xfcc] sm:$0xf]
      %v1257 = vld [vmem:[%s1 + $0xfd0] sm:$0xf]
      %v1258 = vld [vmem:[%s1 + $0xfd4] sm:$0xf]
      %v1259 = vld [vmem:[%s1 + $0xfd8] sm:$0xf]
      %v1260 = vld [vmem:[%s1 + $0xfdc] sm:$0xf]
      %v1261 = vld [vmem:[%s1 + $0xfe0] sm:$0xf]
      %v1262 = vld [vmem:[%s1 + $0xfe4] sm:$0xf]
      %v1263 = vld [vmem:[%s1 + $0xfe8] sm:$0xf]
      %v1264 = vld [vmem:[%s1 + $0xfec] sm:$0xf]
      %v1265 = vld [vmem:[%s1 + $0xff0] sm:$0xf]
      %v1266 = vld [vmem:[%s1 + $0xff4] sm:$0xf]
      %v1267 = vld [vmem:[%s1 + $0xff8] sm:$0xf]
      %v1268 = vld [vmem:[%s1 + $0xffc] sm:$0xf]
      %v1269 = vld [vmem:[%s1 + $0x1000] sm:$0xf]
      %v1270 = vld [vmem:[%s1 + $0x1004] sm:$0xf]
      %v1271 = vld [vmem:[%s1 + $0x1008] sm:$0xf]
      %v1272 = vld [vmem:[%s1 + $0x100c] sm:$0xf]
      %v1273 = vld [vmem:[%s1 + $0x1010] sm:$0xf]
      %v1274 = vld [vmem:[%s1 + $0x1014] sm:$0xf]
      %v1275 = vld [vmem:[%s1 + $0x1018] sm:$0xf]
      %v1276 = vld [vmem:[%s1 + $0x101c] sm:$0xf]
      %v1277 = vld [vmem:[%s1 + $0x1020] sm:$0xf]
      %v1278 = vld [vmem:[%s1 + $0x1024] sm:$0xf]
      %v1279 = vld [vmem:[%s1 + $0x1028] sm:$0xf]
      %v1280 = vld [vmem:[%s1 + $0x102c] sm:$0xf]
      %v1281 = vld [vmem:[%s1 + $0x1030] sm:$0xf]
      %v1282 = vld [vmem:[%s1 + $0x1034] sm:$0xf]
      %v1283 = vld [vmem:[%s1 + $0x1038] sm:$0xf]
      %v1284 = vld [vmem:[%s1 + $0x103c] sm:$0xf]
      %v1285 = vld [vmem:[%s1 + $0x1040] sm:$0xf]
      %v1286 = vld [vmem:[%s1 + $0x1044] sm:$0xf]
      %v1287 = vld [vmem:[%s1 + $0x1048] sm:$0xf]
      %v1288 = vld [vmem:[%s1 + $0x104c] sm:$0xf]
      %v1289 = vld [vmem:[%s1 + $0x1050] sm:$0xf]
      %v1290 = vld [vmem:[%s1 + $0x1054] sm:$0xf]
      %v1291 = vld [vmem:[%s1 + $0x1058] sm:$0xf]
      %v1292 = vld [vmem:[%s1 + $0x105c] sm:$0xf]
      %v1293 = vld [vmem:[%s1 + $0x1060] sm:$0xf]
      %v1294 = vld [vmem:[%s1 + $0x1064] sm:$0xf]
      %v1295 = vld [vmem:[%s1 + $0x1068] sm:$0xf]
      %v1296 = vld [vmem:[%s1 + $0x106c] sm:$0xf]
      %v1297 = vld [vmem:[%s1 + $0x1070] sm:$0xf]
      %v1298 = vld [vmem:[%s1 + $0x1074] sm:$0xf]
      %v1299 = vld [vmem:[%s1 + $0x1078] sm:$0xf]
      %v1300 = vld [vmem:[%s1 + $0x107c] sm:$0xf]
      %v1301 = vld [vmem:[%s1 + $0x1080] sm:$0xf]
      %v1302 = vld [vmem:[%s1 + $0x1084] sm:$0xf]
      %v1303 = vld [vmem:[%s1 + $0x1088] sm:$0xf]
      %v1304 = vld [vmem:[%s1 + $0x108c] sm:$0xf]
      %v1305 = vld [vmem:[%s1 + $0x1090] sm:$0xf]
      %v1306 = vld [vmem:[%s1 + $0x1094] sm:$0xf]
      %v1307 = vld [vmem:[%s1 + $0x1098] sm:$0xf]
      %v1308 = vld [vmem:[%s1 + $0x109c] sm:$0xf]
      %v1309 = vld [vmem:[%s1 + $0x10a0] sm:$0xf]
      %v1310 = vld [vmem:[%s1 + $0x10a4] sm:$0xf]
      %v1311 = vld [vmem:[%s1 + $0x10a8] sm:$0xf]
      %v1312 = vld [vmem:[%s1 + $0x10ac] sm:$0xf]
      %v1313 = vld [vmem:[%s1 + $0x10b0] sm:$0xf]
      %v1314 = vld [vmem:[%s1 + $0x10b4] sm:$0xf]
      %v1315 = vld [vmem:[%s1 + $0x10b8] sm:$0xf]
      %v1316 = vld [vmem:[%s1 + $0x10bc] sm:$0xf]
      %v1317 = vld [vmem:[%s1 + $0x10c0] sm:$0xf]
      %v1318 = vld [vmem:[%s1 + $0x10c4] sm:$0xf]
      %v1319 = vld [vmem:[%s1 + $0x10c8] sm:$0xf]
      %v1320 = vld [vmem:[%s1 + $0x10cc] sm:$0xf]
      %v1321 = vld [vmem:[%s1 + $0x10d0] sm:$0xf]
      %v1322 = vld [vmem:[%s1 + $0x10d4] sm:$0xf]
      %v1323 = vld [vmem:[%s1 + $0x10d8] sm:$0xf]
      %v1324 = vld [vmem:[%s1 + $0x10dc] sm:$0xf]
      %v1325 = vld [vmem:[%s1 + $0x10e0] sm:$0xf]
      %v1326 = vld [vmem:[%s1 + $0x10e4] sm:$0xf]
      %v1327 = vld [vmem:[%s1 + $0x10e8] sm:$0xf]
      %v1328 = vld [vmem:[%s1 + $0x10ec] sm:$0xf]
      %v1329 = vld [vmem:[%s1 + $0x10f0] sm:$0xf]
      %v1330 = vld [vmem:[%s1 + $0x10f4] sm:$0xf]
      %v1331 = vld [vmem:[%s1 + $0x10f8] sm:$0xf]
      %v1332 = vld [vmem:[%s1 + $0x10fc] sm:$0xf]
      %v1333 = vld [vmem:[%s1 + $0x1100] sm:$0xf]
      %v1334 = vld [vmem:[%s1 + $0x1104] sm:$0xf]
      %v1335 = vld [vmem:[%s1 + $0x1108] sm:$0xf]
      %v1336 = vld [vmem:[%s1 + $0x110c] sm:$0xf]
      %v1337 = vld [vmem:[%s1 + $0x1110] sm:$0xf]
      %v1338 = vld [vmem:[%s1 + $0x1114] sm:$0xf]
      %v1339 = vld [vmem:[%s1 + $0x1118] sm:$0xf]
      %v1340 = vld [vmem:[%s1 + $0x111c] sm:$0xf]
      %v1341 = vld [vmem:[%s1 + $0x1120] sm:$0xf]
      %v1342 = vld [vmem:[%s1 + $0x1124] sm:$0xf]
      %v1343 = vld [vmem:[%s1 + $0x1128] sm:$0xf]
      %v1344 = vld [vmem:[%s1 + $0x112c] sm:$0xf]
      %v1345 = vld [vmem:[%s1 + $0x1130] sm:$0xf]
      %v1346 = vld [vmem:[%s1 + $0x1134] sm:$0xf]
      %v1347 = vld [vmem:[%s1 + $0x1138] sm:$0xf]
      %v1348 = vld [vmem:[%s1 + $0x113c] sm:$0xf]
      %v1349 = vld [vmem:[%s1 + $0x1140] sm:$0xf]
      %v1350 = vld [vmem:[%s1 + $0x1144] sm:$0xf]
      %v1351 = vld [vmem:[%s1 + $0x1148] sm:$0xf]
      %v1352 = vld [vmem:[%s1 + $0x114c] sm:$0xf]
      %v1353 = vld [vmem:[%s1 + $0x1150] sm:$0xf]
      %v1354 = vld [vmem:[%s1 + $0x1154] sm:$0xf]
      %v1355 = vld [vmem:[%s1 + $0x1158] sm:$0xf]
      %v1356 = vld [vmem:[%s1 + $0x115c] sm:$0xf]
      %v1357 = vld [vmem:[%s1 + $0x1160] sm:$0xf]
      %v1358 = vld [vmem:[%s1 + $0x1164] sm:$0xf]
      %v1359 = vld [vmem:[%s1 + $0x1168] sm:$0xf]
      %v1360 = vld [vmem:[%s1 + $0x116c] sm:$0xf]
      %v1361 = vld [vmem:[%s1 + $0x1170] sm:$0xf]
      %v1362 = vld [vmem:[%s1 + $0x1174] sm:$0xf]
      %v1363 = vld [vmem:[%s1 + $0x1178] sm:$0xf]
      %v1364 = vld [vmem:[%s1 + $0x117c] sm:$0xf]
      %v1365 = vld [vmem:[%s1 + $0x1180] sm:$0xf]
      %v1366 = vld [vmem:[%s1 + $0x1184] sm:$0xf]
      %v1367 = vld [vmem:[%s1 + $0x1188] sm:$0xf]
      %v1368 = vld [vmem:[%s1 + $0x118c] sm:$0xf]
      %v1369 = vld [vmem:[%s1 + $0x1190] sm:$0xf]
      %v1370 = vld [vmem:[%s1 + $0x1194] sm:$0xf]
      %v1371 = vld [vmem:[%s1 + $0x1198] sm:$0xf]
      %v1372 = vld [vmem:[%s1 + $0x119c] sm:$0xf]
      %v1373 = vld [vmem:[%s1 + $0x11a0] sm:$0xf]
      %v1374 = vld [vmem:[%s1 + $0x11a4] sm:$0xf]
      %v1375 = vld [vmem:[%s1 + $0x11a8] sm:$0xf]
      %v1376 = vld [vmem:[%s1 + $0x11ac] sm:$0xf]
      %v1377 = vld [vmem:[%s1 + $0x11b0] sm:$0xf]
      %v1378 = vld [vmem:[%s1 + $0x11b4] sm:$0xf]
      %v1379 = vld [vmem:[%s1 + $0x11b8] sm:$0xf]
      %v1380 = vld [vmem:[%s1 + $0x11bc] sm:$0xf]
      %v1381 = vld [vmem:[%s1 + $0x11c0] sm:$0xf]
      %v1382 = vld [vmem:[%s1 + $0x11c4] sm:$0xf]
      %v1383 = vld [vmem:[%s1 + $0x11c8] sm:$0xf]
      %v1384 = vld [vmem:[%s1 + $0x11cc] sm:$0xf]
      %v1385 = vld [vmem:[%s1 + $0x11d0] sm:$0xf]
      %v1386 = vld [vmem:[%s1 + $0x11d4] sm:$0xf]
      %v1387 = vld [vmem:[%s1 + $0x11d8] sm:$0xf]
      %v1388 = vld [vmem:[%s1 + $0x11dc] sm:$0xf]
      %v1389 = vld [vmem:[%s1 + $0x11e0] sm:$0xf]
      %v1390 = vld [vmem:[%s1 + $0x11e4] sm:$0xf]
      %v1391 = vld [vmem:[%s1 + $0x11e8] sm:$0xf]
      %v1392 = vld [vmem:[%s1 + $0x11ec] sm:$0xf]
      %v1393 = vld [vmem:[%s1 + $0x11f0] sm:$0xf]
      %v1394 = vld [vmem:[%s1 + $0x11f4] sm:$0xf]
      %v1395 = vld [vmem:[%s1 + $0x11f8] sm:$0xf]
      %v1396 = vld [vmem:[%s1 + $0x11fc] sm:$0xf]
      %v1397 = vld [vmem:[%s1 + $0x1200] sm:$0xf]
      %v1398 = vld [vmem:[%s1 + $0x1204] sm:$0xf]
      %v1399 = vld [vmem:[%s1 + $0x1208] sm:$0xf]
      %v1400 = vld [vmem:[%s1 + $0x120c] sm:$0xf]
      %v1401 = vld [vmem:[%s1 + $0x1210] sm:$0xf]
      %v1402 = vld [vmem:[%s1 + $0x1214] sm:$0xf]
      %v1403 = vld [vmem:[%s1 + $0x1218] sm:$0xf]
      %v1404 = vld [vmem:[%s1 + $0x121c] sm:$0xf]
      %v1405 = vld [vmem:[%s1 + $0x1220] sm:$0xf]
      %v1406 = vld [vmem:[%s1 + $0x1224] sm:$0xf]
      %v1407 = vld [vmem:[%s1 + $0x1228] sm:$0xf]
      %v1408 = vld [vmem:[%s1 + $0x122c] sm:$0xf]
      %v1409 = vld [vmem:[%s1 + $0x1230] sm:$0xf]
      %v1410 = vld [vmem:[%s1 + $0x1234] sm:$0xf]
      %v1411 = vld [vmem:[%s1 + $0x1238] sm:$0xf]
      %v1412 = vld [vmem:[%s1 + $0x123c] sm:$0xf]
      %v1413 = vld [vmem:[%s1 + $0x1240] sm:$0xf]
      %v1414 = vld [vmem:[%s1 + $0x1244] sm:$0xf]
      %v1415 = vld [vmem:[%s1 + $0x1248] sm:$0xf]
      %v1416 = vld [vmem:[%s1 + $0x124c] sm:$0xf]
      %v1417 = vld [vmem:[%s1 + $0x1250] sm:$0xf]
      %v1418 = vld [vmem:[%s1 + $0x1254] sm:$0xf]
      %v1419 = vld [vmem:[%s1 + $0x1258] sm:$0xf]
      %v1420 = vld [vmem:[%s1 + $0x125c] sm:$0xf]
      %v1421 = vld [vmem:[%s1 + $0x1260] sm:$0xf]
      %v1422 = vld [vmem:[%s1 + $0x1264] sm:$0xf]
      %v1423 = vld [vmem:[%s1 + $0x1268] sm:$0xf]
      %v1424 = vld [vmem:[%s1 + $0x126c] sm:$0xf]
      %v1425 = vld [vmem:[%s1 + $0x1270] sm:$0xf]
      %v1426 = vld [vmem:[%s1 + $0x1274] sm:$0xf]
      %v1427 = vld [vmem:[%s1 + $0x1278] sm:$0xf]
      %v1428 = vld [vmem:[%s1 + $0x127c] sm:$0xf]
      %v1429 = vld [vmem:[%s1 + $0x1280] sm:$0xf]
      %v1430 = vld [vmem:[%s1 + $0x1284] sm:$0xf]
      %v1431 = vld [vmem:[%s1 + $0x1288] sm:$0xf]
      %v1432 = vld [vmem:[%s1 + $0x128c] sm:$0xf]
      %v1433 = vld [vmem:[%s1 + $0x1290] sm:$0xf]
      %v1434 = vld [vmem:[%s1 + $0x1294] sm:$0xf]
      %v1435 = vld [vmem:[%s1 + $0x1298] sm:$0xf]
      %v1436 = vld [vmem:[%s1 + $0x129c] sm:$0xf]
      %v1437 = vld [vmem:[%s1 + $0x12a0] sm:$0xf]
      %v1438 = vld [vmem:[%s1 + $0x12a4] sm:$0xf]
      %v1439 = vld [vmem:[%s1 + $0x12a8] sm:$0xf]
      %v1440 = vld [vmem:[%s1 + $0x12ac] sm:$0xf]
      %v1441 = vld [vmem:[%s1 + $0x12b0] sm:$0xf]
      %v1442 = vld [vmem:[%s1 + $0x12b4] sm:$0xf]
      %v1443 = vld [vmem:[%s1 + $0x12b8] sm:$0xf]
      %v1444 = vld [vmem:[%s1 + $0x12bc] sm:$0xf]
      %v1445 = vld [vmem:[%s1 + $0x12c0] sm:$0xf]
      %v1446 = vld [vmem:[%s1 + $0x12c4] sm:$0xf]
      %v1447 = vld [vmem:[%s1 + $0x12c8] sm:$0xf]
      %v1448 = vld [vmem:[%s1 + $0x12cc] sm:$0xf]
      %v1449 = vld [vmem:[%s1 + $0x12d0] sm:$0xf]
      %v1450 = vld [vmem:[%s1 + $0x12d4] sm:$0xf]
      %v1451 = vld [vmem:[%s1 + $0x12d8] sm:$0xf]
      %v1452 = vld [vmem:[%s1 + $0x12dc] sm:$0xf]
      %v1453 = vld [vmem:[%s1 + $0x12e0] sm:$0xf]
      %v1454 = vld [vmem:[%s1 + $0x12e4] sm:$0xf]
      %v1455 = vld [vmem:[%s1 + $0x12e8] sm:$0xf]
      %v1456 = vld [vmem:[%s1 + $0x12ec] sm:$0xf]
      %v1457 = vld [vmem:[%s1 + $0x12f0] sm:$0xf]
      %v1458 = vld [vmem:[%s1 + $0x12f4] sm:$0xf]
      %v1459 = vld [vmem:[%s1 + $0x12f8] sm:$0xf]
      %v1460 = vld [vmem:[%s1 + $0x12fc] sm:$0xf]
      %v1461 = vld [vmem:[%s1 + $0x1300] sm:$0xf]
      %v1462 = vld [vmem:[%s1 + $0x1304] sm:$0xf]
      %v1463 = vld [vmem:[%s1 + $0x1308] sm:$0xf]
      %v1464 = vld [vmem:[%s1 + $0x130c] sm:$0xf]
      %v1465 = vld [vmem:[%s1 + $0x1310] sm:$0xf]
      %v1466 = vld [vmem:[%s1 + $0x1314] sm:$0xf]
      %v1467 = vld [vmem:[%s1 + $0x1318] sm:$0xf]
      %v1468 = vld [vmem:[%s1 + $0x131c] sm:$0xf]
      %v1469 = vld [vmem:[%s1 + $0x1320] sm:$0xf]
      %v1470 = vld [vmem:[%s1 + $0x1324] sm:$0xf]
      %v1471 = vld [vmem:[%s1 + $0x1328] sm:$0xf]
      %v1472 = vld [vmem:[%s1 + $0x132c] sm:$0xf]
      %v1473 = vld [vmem:[%s1 + $0x1330] sm:$0xf]
      %v1474 = vld [vmem:[%s1 + $0x1334] sm:$0xf]
      %v1475 = vld [vmem:[%s1 + $0x1338] sm:$0xf]
      %v1476 = vld [vmem:[%s1 + $0x133c] sm:$0xf]
      %v1477 = vld [vmem:[%s1 + $0x1340] sm:$0xf]
      %v1478 = vld [vmem:[%s1 + $0x1344] sm:$0xf]
      %v1479 = vld [vmem:[%s1 + $0x1348] sm:$0xf]
      %v1480 = vld [vmem:[%s1 + $0x134c] sm:$0xf]
      %v1481 = vld [vmem:[%s1 + $0x1350] sm:$0xf]
      %v1482 = vld [vmem:[%s1 + $0x1354] sm:$0xf]
      %v1483 = vld [vmem:[%s1 + $0x1358] sm:$0xf]
      %v1484 = vld [vmem:[%s1 + $0x135c] sm:$0xf]
      %v1485 = vld [vmem:[%s1 + $0x1360] sm:$0xf]
      %v1486 = vld [vmem:[%s1 + $0x1364] sm:$0xf]
      %v1487 = vld [vmem:[%s1 + $0x1368] sm:$0xf]
      %v1488 = vld [vmem:[%s1 + $0x136c] sm:$0xf]
      %v1489 = vld [vmem:[%s1 + $0x1370] sm:$0xf]
      %v1490 = vld [vmem:[%s1 + $0x1374] sm:$0xf]
      %v1491 = vld [vmem:[%s1 + $0x1378] sm:$0xf]
      %v1492 = vld [vmem:[%s1 + $0x137c] sm:$0xf]
      %v1493 = vld [vmem:[%s1 + $0x1380] sm:$0xf]
      %v1494 = vld [vmem:[%s1 + $0x1384] sm:$0xf]
      %v1495 = vld [vmem:[%s1 + $0x1388] sm:$0xf]
      %v1496 = vld [vmem:[%s1 + $0x138c] sm:$0xf]
      %v1497 = vld [vmem:[%s1 + $0x1390] sm:$0xf]
      %v1498 = vld [vmem:[%s1 + $0x1394] sm:$0xf]
      %v1499 = vld [vmem:[%s1 + $0x1398] sm:$0xf]
      %v1500 = vld [vmem:[%s1 + $0x139c] sm:$0xf]
      %v1501 = vld [vmem:[%s1 + $0x13a0] sm:$0xf]
      %v1502 = vld [vmem:[%s1 + $0x13a4] sm:$0xf]
      %v1503 = vld [vmem:[%s1 + $0x13a8] sm:$0xf]
      %v1504 = vld [vmem:[%s1 + $0x13ac] sm:$0xf]
      %v1505 = vld [vmem:[%s1 + $0x13b0] sm:$0xf]
      %v1506 = vld [vmem:[%s1 + $0x13b4] sm:$0xf]
      %v1507 = vld [vmem:[%s1 + $0x13b8] sm:$0xf]
      %v1508 = vld [vmem:[%s1 + $0x13bc] sm:$0xf]
      %v1509 = vld [vmem:[%s1 + $0x13c0] sm:$0xf]
      %v1510 = vld [vmem:[%s1 + $0x13c4] sm:$0xf]
      %v1511 = vld [vmem:[%s1 + $0x13c8] sm:$0xf]
      %v1512 = vld [vmem:[%s1 + $0x13cc] sm:$0xf]
      %v1513 = vld [vmem:[%s1 + $0x13d0] sm:$0xf]
      %v1514 = vld [vmem:[%s1 + $0x13d4] sm:$0xf]
      %v1515 = vld [vmem:[%s1 + $0x13d8] sm:$0xf]
      %v1516 = vld [vmem:[%s1 + $0x13dc] sm:$0xf]
      %v1517 = vld [vmem:[%s1 + $0x13e0] sm:$0xf]
      %v1518 = vld [vmem:[%s1 + $0x13e4] sm:$0xf]
      %v1519 = vld [vmem:[%s1 + $0x13e8] sm:$0xf]
      %v1520 = vld [vmem:[%s1 + $0x13ec] sm:$0xf]
      %v1521 = vld [vmem:[%s1 + $0x13f0] sm:$0xf]
      %v1522 = vld [vmem:[%s1 + $0x13f4] sm:$0xf]
      %v1523 = vld [vmem:[%s1 + $0x13f8] sm:$0xf]
      %v1524 = vld [vmem:[%s1 + $0x13fc] sm:$0xf]
      %v1525 = vld [vmem:[%s1 + $0x1400] sm:$0xf]
      %v1526 = vld [vmem:[%s1 + $0x1404] sm:$0xf]
      %v1527 = vld [vmem:[%s1 + $0x1408] sm:$0xf]
      %v1528 = vld [vmem:[%s1 + $0x140c] sm:$0xf]
      %v1529 = vld [vmem:[%s1 + $0x1410] sm:$0xf]
      %v1530 = vld [vmem:[%s1 + $0x1414] sm:$0xf]
      %v1531 = vld [vmem:[%s1 + $0x1418] sm:$0xf]
      %v1532 = vld [vmem:[%s1 + $0x141c] sm:$0xf]
      %v1533 = vld [vmem:[%s1 + $0x1420] sm:$0xf]
      %v1534 = vld [vmem:[%s1 + $0x1424] sm:$0xf]
      %v1535 = vld [vmem:[%s1 + $0x1428] sm:$0xf]
      %v1536 = vld [vmem:[%s1 + $0x142c] sm:$0xf]
      %v1537 = vld [vmem:[%s1 + $0x1430] sm:$0xf]
      %v1538 = vld [vmem:[%s1 + $0x1434] sm:$0xf]
      %v1539 = vld [vmem:[%s1 + $0x1438] sm:$0xf]
      %v1540 = vld [vmem:[%s1 + $0x143c] sm:$0xf]
      %v1541 = vld [vmem:[%s1 + $0x1440] sm:$0xf]
      %v1542 = vld [vmem:[%s1 + $0x1444] sm:$0xf]
      %v1543 = vld [vmem:[%s1 + $0x1448] sm:$0xf]
      %v1544 = vld [vmem:[%s1 + $0x144c] sm:$0xf]
      %v1545 = vld [vmem:[%s1 + $0x1450] sm:$0xf]
      %v1546 = vld [vmem:[%s1 + $0x1454] sm:$0xf]
      %v1547 = vld [vmem:[%s1 + $0x1458] sm:$0xf]
      %v1548 = vld [vmem:[%s1 + $0x145c] sm:$0xf]
      %v1549 = vld [vmem:[%s1 + $0x1460] sm:$0xf]
      %v1550 = vld [vmem:[%s1 + $0x1464] sm:$0xf]
      %v1551 = vld [vmem:[%s1 + $0x1468] sm:$0xf]
      %v1552 = vld [vmem:[%s1 + $0x146c] sm:$0xf]
      %v1553 = vld [vmem:[%s1 + $0x1470] sm:$0xf]
      %v1554 = vld [vmem:[%s1 + $0x1474] sm:$0xf]
      %v1555 = vld [vmem:[%s1 + $0x1478] sm:$0xf]
      %v1556 = vld [vmem:[%s1 + $0x147c] sm:$0xf]
      %v1557 = vld [vmem:[%s1 + $0x1480] sm:$0xf]
      %v1558 = vld [vmem:[%s1 + $0x1484] sm:$0xf]
      %v1559 = vld [vmem:[%s1 + $0x1488] sm:$0xf]
      %v1560 = vld [vmem:[%s1 + $0x148c] sm:$0xf]
      %v1561 = vld [vmem:[%s1 + $0x1490] sm:$0xf]
      %v1562 = vld [vmem:[%s1 + $0x1494] sm:$0xf]
      %v1563 = vld [vmem:[%s1 + $0x1498] sm:$0xf]
      %v1564 = vld [vmem:[%s1 + $0x149c] sm:$0xf]
      %v1565 = vld [vmem:[%s1 + $0x14a0] sm:$0xf]
      %v1566 = vld [vmem:[%s1 + $0x14a4] sm:$0xf]
      %v1567 = vld [vmem:[%s1 + $0x14a8] sm:$0xf]
      %v1568 = vld [vmem:[%s1 + $0x14ac] sm:$0xf]
      %v1569 = vld [vmem:[%s1 + $0x14b0] sm:$0xf]
      %v1570 = vld [vmem:[%s1 + $0x14b4] sm:$0xf]
      %v1571 = vld [vmem:[%s1 + $0x14b8] sm:$0xf]
      %v1572 = vld [vmem:[%s1 + $0x14bc] sm:$0xf]
      %v1573 = vld [vmem:[%s1 + $0x14c0] sm:$0xf]
      %v1574 = vld [vmem:[%s1 + $0x14c4] sm:$0xf]
      %v1575 = vld [vmem:[%s1 + $0x14c8] sm:$0xf]
      %v1576 = vld [vmem:[%s1 + $0x14cc] sm:$0xf]
      %v1577 = vld [vmem:[%s1 + $0x14d0] sm:$0xf]
      %v1578 = vld [vmem:[%s1 + $0x14d4] sm:$0xf]
      %v1579 = vld [vmem:[%s1 + $0x14d8] sm:$0xf]
      %v1580 = vld [vmem:[%s1 + $0x14dc] sm:$0xf]
      %v1581 = vld [vmem:[%s1 + $0x14e0] sm:$0xf]
      %v1582 = vld [vmem:[%s1 + $0x14e4] sm:$0xf]
      %v1583 = vld [vmem:[%s1 + $0x14e8] sm:$0xf]
      %v1584 = vld [vmem:[%s1 + $0x14ec] sm:$0xf]
      %v1585 = vld [vmem:[%s1 + $0x14f0] sm:$0xf]
      %v1586 = vld [vmem:[%s1 + $0x14f4] sm:$0xf]
      %v1587 = vld [vmem:[%s1 + $0x14f8] sm:$0xf]
      %v1588 = vld [vmem:[%s1 + $0x14fc] sm:$0xf]
      %v1589 = vld [vmem:[%s1 + $0x1500] sm:$0xf]
      %v1590 = vld [vmem:[%s1 + $0x1504] sm:$0xf]
      %v1591 = vld [vmem:[%s1 + $0x1508] sm:$0xf]
      %v1592 = vld [vmem:[%s1 + $0x150c] sm:$0xf]
      %v1593 = vld [vmem:[%s1 + $0x1510] sm:$0xf]
      %v1594 = vld [vmem:[%s1 + $0x1514] sm:$0xf]
      %v1595 = vld [vmem:[%s1 + $0x1518] sm:$0xf]
      %v1596 = vld [vmem:[%s1 + $0x151c] sm:$0xf]
      %v1597 = vld [vmem:[%s1 + $0x1520] sm:$0xf]
      %v1598 = vld [vmem:[%s1 + $0x1524] sm:$0xf]
      %v1599 = vld [vmem:[%s1 + $0x1528] sm:$0xf]
      %v1600 = vld [vmem:[%s1 + $0x152c] sm:$0xf]
      %v1601 = vld [vmem:[%s1 + $0x1530] sm:$0xf]
      %v1602 = vld [vmem:[%s1 + $0x1534] sm:$0xf]
      %v1603 = vld [vmem:[%s1 + $0x1538] sm:$0xf]
      %v1604 = vld [vmem:[%s1 + $0x153c] sm:$0xf]
      %v1605 = vld [vmem:[%s1 + $0x1540] sm:$0xf]
      %v1606 = vld [vmem:[%s1 + $0x1544] sm:$0xf]
      %v1607 = vld [vmem:[%s1 + $0x1548] sm:$0xf]
      %v1608 = vld [vmem:[%s1 + $0x154c] sm:$0xf]
      %v1609 = vld [vmem:[%s1 + $0x1550] sm:$0xf]
      %v1610 = vld [vmem:[%s1 + $0x1554] sm:$0xf]
      %v1611 = vld [vmem:[%s1 + $0x1558] sm:$0xf]
      %v1612 = vld [vmem:[%s1 + $0x155c] sm:$0xf]
      %v1613 = vld [vmem:[%s1 + $0x1560] sm:$0xf]
      %v1614 = vld [vmem:[%s1 + $0x1564] sm:$0xf]
      %v1615 = vld [vmem:[%s1 + $0x1568] sm:$0xf]
      %v1616 = vld [vmem:[%s1 + $0x156c] sm:$0xf]
      %v1617 = vld [vmem:[%s1 + $0x1570] sm:$0xf]
      %v1618 = vld [vmem:[%s1 + $0x1574] sm:$0xf]
      %v1619 = vld [vmem:[%s1 + $0x1578] sm:$0xf]
      %v1620 = vld [vmem:[%s1 + $0x157c] sm:$0xf]
      %v1621 = vld [vmem:[%s1 + $0x1580] sm:$0xf]
      %v1622 = vld [vmem:[%s1 + $0x1584] sm:$0xf]
      %v1623 = vld [vmem:[%s1 + $0x1588] sm:$0xf]
      %v1624 = vld [vmem:[%s1 + $0x158c] sm:$0xf]
      %v1625 = vld [vmem:[%s1 + $0x1590] sm:$0xf]
      %v1626 = vld [vmem:[%s1 + $0x1594] sm:$0xf]
      %v1627 = vld [vmem:[%s1 + $0x1598] sm:$0xf]
      %v1628 = vld [vmem:[%s1 + $0x159c] sm:$0xf]
      %v1629 = vld [vmem:[%s1 + $0x15a0] sm:$0xf]
      %v1630 = vld [vmem:[%s1 + $0x15a4] sm:$0xf]
      %v1631 = vld [vmem:[%s1 + $0x15a8] sm:$0xf]
      %v1632 = vld [vmem:[%s1 + $0x15ac] sm:$0xf]
      %v1633 = vld [vmem:[%s1 + $0x15b0] sm:$0xf]
      %v1634 = vld [vmem:[%s1 + $0x15b4] sm:$0xf]
      %v1635 = vld [vmem:[%s1 + $0x15b8] sm:$0xf]
      %v1636 = vld [vmem:[%s1 + $0x15bc] sm:$0xf]
      %v1637 = vld [vmem:[%s1 + $0x15c0] sm:$0xf]
      %v1638 = vld [vmem:[%s1 + $0x15c4] sm:$0xf]
      %v1639 = vld [vmem:[%s1 + $0x15c8] sm:$0xf]
      %v1640 = vld [vmem:[%s1 + $0x15cc] sm:$0xf]
      %v1641 = vld [vmem:[%s1 + $0x15d0] sm:$0xf]
      %v1642 = vld [vmem:[%s1 + $0x15d4] sm:$0xf]
      %v1643 = vld [vmem:[%s1 + $0x15d8] sm:$0xf]
      %v1644 = vld [vmem:[%s1 + $0x15dc] sm:$0xf]
      %v1645 = vld [vmem:[%s1 + $0x15e0] sm:$0xf]
      %v1646 = vld [vmem:[%s1 + $0x15e4] sm:$0xf]
      %v1647 = vld [vmem:[%s1 + $0x15e8] sm:$0xf]
      %v1648 = vld [vmem:[%s1 + $0x15ec] sm:$0xf]
      %v1649 = vld [vmem:[%s1 + $0x15f0] sm:$0xf]
      %v1650 = vld [vmem:[%s1 + $0x15f4] sm:$0xf]
      %v1651 = vld [vmem:[%s1 + $0x15f8] sm:$0xf]
      %v1652 = vld [vmem:[%s1 + $0x15fc] sm:$0xf]
      %v1653 = vld [vmem:[%s1 + $0x1600] sm:$0xf]
      %v1654 = vld [vmem:[%s1 + $0x1604] sm:$0xf]
      %v1655 = vld [vmem:[%s1 + $0x1608] sm:$0xf]
      %v1656 = vld [vmem:[%s1 + $0x160c] sm:$0xf]
      %v1657 = vld [vmem:[%s1 + $0x1610] sm:$0xf]
      %v1658 = vld [vmem:[%s1 + $0x1614] sm:$0xf]
      %v1659 = vld [vmem:[%s1 + $0x1618] sm:$0xf]
      %v1660 = vld [vmem:[%s1 + $0x161c] sm:$0xf]
      %v1661 = vld [vmem:[%s1 + $0x1620] sm:$0xf]
      %v1662 = vld [vmem:[%s1 + $0x1624] sm:$0xf]
      %v1663 = vld [vmem:[%s1 + $0x1628] sm:$0xf]
      %v1664 = vld [vmem:[%s1 + $0x162c] sm:$0xf]
      %v1665 = vld [vmem:[%s1 + $0x1630] sm:$0xf]
      %v1666 = vld [vmem:[%s1 + $0x1634] sm:$0xf]
      %v1667 = vld [vmem:[%s1 + $0x1638] sm:$0xf]
      %v1668 = vld [vmem:[%s1 + $0x163c] sm:$0xf]
      %v1669 = vld [vmem:[%s1 + $0x1640] sm:$0xf]
      %v1670 = vld [vmem:[%s1 + $0x1644] sm:$0xf]
      %v1671 = vld [vmem:[%s1 + $0x1648] sm:$0xf]
      %v1672 = vld [vmem:[%s1 + $0x164c] sm:$0xf]
      %v1673 = vld [vmem:[%s1 + $0x1650] sm:$0xf]
      %v1674 = vld [vmem:[%s1 + $0x1654] sm:$0xf]
      %v1675 = vld [vmem:[%s1 + $0x1658] sm:$0xf]
      %v1676 = vld [vmem:[%s1 + $0x165c] sm:$0xf]
      %v1677 = vld [vmem:[%s1 + $0x1660] sm:$0xf]
      %v1678 = vld [vmem:[%s1 + $0x1664] sm:$0xf]
      %v1679 = vld [vmem:[%s1 + $0x1668] sm:$0xf]
      %v1680 = vld [vmem:[%s1 + $0x166c] sm:$0xf]
      %v1681 = vld [vmem:[%s1 + $0x1670] sm:$0xf]
      %v1682 = vld [vmem:[%s1 + $0x1674] sm:$0xf]
      %v1683 = vld [vmem:[%s1 + $0x1678] sm:$0xf]
      %v1684 = vld [vmem:[%s1 + $0x167c] sm:$0xf]
      %v1685 = vld [vmem:[%s1 + $0x1680] sm:$0xf]
      %v1686 = vld [vmem:[%s1 + $0x1684] sm:$0xf]
      %v1687 = vld [vmem:[%s1 + $0x1688] sm:$0xf]
      %v1688 = vld [vmem:[%s1 + $0x168c] sm:$0xf]
      %v1689 = vld [vmem:[%s1 + $0x1690] sm:$0xf]
      %v1690 = vld [vmem:[%s1 + $0x1694] sm:$0xf]
      %v1691 = vld [vmem:[%s1 + $0x1698] sm:$0xf]
      %v1692 = vld [vmem:[%s1 + $0x169c] sm:$0xf]
      %v1693 = vld [vmem:[%s1 + $0x16a0] sm:$0xf]
      %v1694 = vld [vmem:[%s1 + $0x16a4] sm:$0xf]
      %v1695 = vld [vmem:[%s1 + $0x16a8] sm:$0xf]
      %v1696 = vld [vmem:[%s1 + $0x16ac] sm:$0xf]
      %v1697 = vld [vmem:[%s1 + $0x16b0] sm:$0xf]
      %v1698 = vld [vmem:[%s1 + $0x16b4] sm:$0xf]
      %v1699 = vld [vmem:[%s1 + $0x16b8] sm:$0xf]
      %v1700 = vld [vmem:[%s1 + $0x16bc] sm:$0xf]
      %v1701 = vld [vmem:[%s1 + $0x16c0] sm:$0xf]
      %v1702 = vld [vmem:[%s1 + $0x16c4] sm:$0xf]
      %v1703 = vld [vmem:[%s1 + $0x16c8] sm:$0xf]
      %v1704 = vld [vmem:[%s1 + $0x16cc] sm:$0xf]
      %v1705 = vld [vmem:[%s1 + $0x16d0] sm:$0xf]
      %v1706 = vld [vmem:[%s1 + $0x16d4] sm:$0xf]
      %v1707 = vld [vmem:[%s1 + $0x16d8] sm:$0xf]
      %v1708 = vld [vmem:[%s1 + $0x16dc] sm:$0xf]
      %v1709 = vld [vmem:[%s1 + $0x16e0] sm:$0xf]
      %v1710 = vld [vmem:[%s1 + $0x16e4] sm:$0xf]
      %v1711 = vld [vmem:[%s1 + $0x16e8] sm:$0xf]
      %v1712 = vld [vmem:[%s1 + $0x16ec] sm:$0xf]
      %v1713 = vld [vmem:[%s1 + $0x16f0] sm:$0xf]
      %v1714 = vld [vmem:[%s1 + $0x16f4] sm:$0xf]
      %v1715 = vld [vmem:[%s1 + $0x16f8] sm:$0xf]
      %v1716 = vld [vmem:[%s1 + $0x16fc] sm:$0xf]
      %v1717 = vld [vmem:[%s1 + $0x1700] sm:$0xf]
      %v1718 = vld [vmem:[%s1 + $0x1704] sm:$0xf]
      %v1719 = vld [vmem:[%s1 + $0x1708] sm:$0xf]
      %v1720 = vld [vmem:[%s1 + $0x170c] sm:$0xf]
      %v1721 = vld [vmem:[%s1 + $0x1710] sm:$0xf]
      %v1722 = vld [vmem:[%s1 + $0x1714] sm:$0xf]
      %v1723 = vld [vmem:[%s1 + $0x1718] sm:$0xf]
      %v1724 = vld [vmem:[%s1 + $0x171c] sm:$0xf]
      %v1725 = vld [vmem:[%s1 + $0x1720] sm:$0xf]
      %v1726 = vld [vmem:[%s1 + $0x1724] sm:$0xf]
      %v1727 = vld [vmem:[%s1 + $0x1728] sm:$0xf]
      %v1728 = vld [vmem:[%s1 + $0x172c] sm:$0xf]
      %v1729 = vld [vmem:[%s1 + $0x1730] sm:$0xf]
      %v1730 = vld [vmem:[%s1 + $0x1734] sm:$0xf]
      %v1731 = vld [vmem:[%s1 + $0x1738] sm:$0xf]
      %v1732 = vld [vmem:[%s1 + $0x173c] sm:$0xf]
      %v1733 = vld [vmem:[%s1 + $0x1740] sm:$0xf]
      %v1734 = vld [vmem:[%s1 + $0x1744] sm:$0xf]
      %v1735 = vld [vmem:[%s1 + $0x1748] sm:$0xf]
      %v1736 = vld [vmem:[%s1 + $0x174c] sm:$0xf]
      %v1737 = vld [vmem:[%s1 + $0x1750] sm:$0xf]
      %v1738 = vld [vmem:[%s1 + $0x1754] sm:$0xf]
      %v1739 = vld [vmem:[%s1 + $0x1758] sm:$0xf]
      %v1740 = vld [vmem:[%s1 + $0x175c] sm:$0xf]
      %v1741 = vld [vmem:[%s1 + $0x1760] sm:$0xf]
      %v1742 = vld [vmem:[%s1 + $0x1764] sm:$0xf]
      %v1743 = vld [vmem:[%s1 + $0x1768] sm:$0xf]
      %v1744 = vld [vmem:[%s1 + $0x176c] sm:$0xf]
      %v1745 = vld [vmem:[%s1 + $0x1770] sm:$0xf]
      %v1746 = vld [vmem:[%s1 + $0x1774] sm:$0xf]
      %v1747 = vld [vmem:[%s1 + $0x1778] sm:$0xf]
      %v1748 = vld [vmem:[%s1 + $0x177c] sm:$0xf]
      %v1749 = vld [vmem:[%s1 + $0x1780] sm:$0xf]
      %v1750 = vld [vmem:[%s1 + $0x1784] sm:$0xf]
      %v1751 = vld [vmem:[%s1 + $0x1788] sm:$0xf]
      %v1752 = vld [vmem:[%s1 + $0x178c] sm:$0xf]
      %v1753 = vld [vmem:[%s1 + $0x1790] sm:$0xf]
      %v1754 = vld [vmem:[%s1 + $0x1794] sm:$0xf]
      %v1755 = vld [vmem:[%s1 + $0x1798] sm:$0xf]
      %v1756 = vld [vmem:[%s1 + $0x179c] sm:$0xf]
      %v1757 = vld [vmem:[%s1 + $0x17a0] sm:$0xf]
      %v1758 = vld [vmem:[%s1 + $0x17a4] sm:$0xf]
      %v1759 = vld [vmem:[%s1 + $0x17a8] sm:$0xf]
      %v1760 = vld [vmem:[%s1 + $0x17ac] sm:$0xf]
      %v1761 = vld [vmem:[%s1 + $0x17b0] sm:$0xf]
      %v1762 = vld [vmem:[%s1 + $0x17b4] sm:$0xf]
      %v1763 = vld [vmem:[%s1 + $0x17b8] sm:$0xf]
      %v1764 = vld [vmem:[%s1 + $0x17bc] sm:$0xf]
      %v1765 = vld [vmem:[%s1 + $0x17c0] sm:$0xf]
      %v1766 = vld [vmem:[%s1 + $0x17c4] sm:$0xf]
      %v1767 = vld [vmem:[%s1 + $0x17c8] sm:$0xf]
      %v1768 = vld [vmem:[%s1 + $0x17cc] sm:$0xf]
      %v1769 = vld [vmem:[%s1 + $0x17d0] sm:$0xf]
      %v1770 = vld [vmem:[%s1 + $0x17d4] sm:$0xf]
      %v1771 = vld [vmem:[%s1 + $0x17d8] sm:$0xf]
      %v1772 = vld [vmem:[%s1 + $0x17dc] sm:$0xf]
      %v1773 = vld [vmem:[%s1 + $0x17e0] sm:$0xf]
      %v1774 = vld [vmem:[%s1 + $0x17e4] sm:$0xf]
      %v1775 = vld [vmem:[%s1 + $0x17e8] sm:$0xf]
      %v1776 = vld [vmem:[%s1 + $0x17ec] sm:$0xf]
      %v1777 = vld [vmem:[%s1 + $0x17f0] sm:$0xf]
      %v1778 = vld [vmem:[%s1 + $0x17f4] sm:$0xf]
      %v1779 = vld [vmem:[%s1 + $0x17f8] sm:$0xf]
      %v1780 = vld [vmem:[%s1 + $0x17fc] sm:$0xf]
      %v1781 = vld [vmem:[%s3] sm:$0x1]
      %v1782 = vlaneseq
      %v1783 = vshrl.u32 %v1782, 7
      %v1784 = vsub.s32 0, %v1783
      %v1785 = vrot.slane %v1781, %v1784
      %v1834 = vunpack.c.l.b16 %v197
      %v1835 = vunpack.c.h.b16 %v197
      %v1836 = vunpack.c.l.b16 %v198
      %v1837 = vunpack.c.h.b16 %v198
      %v1838 = vunpack.c.l.b16 %v199
      %v1839 = vunpack.c.h.b16 %v199
      %v1840 = vunpack.c.l.b16 %v200
      %v1841 = vunpack.c.h.b16 %v200
      %v1842 = vunpack.c.l.b16 %v201
      %v1843 = vunpack.c.h.b16 %v201
      %v1844 = vunpack.c.l.b16 %v202
      %v1845 = vunpack.c.h.b16 %v202
      %v1846 = vunpack.c.l.b16 %v203
      %v1847 = vunpack.c.h.b16 %v203
      %v1848 = vunpack.c.l.b16 %v204
      %v1849 = vunpack.c.h.b16 %v204
      %v1850 = vunpack.c.l.b16 %v205
      %v1851 = vunpack.c.h.b16 %v205
      %v1852 = vunpack.c.l.b16 %v206
      %v1853 = vunpack.c.h.b16 %v206
      %v1854 = vunpack.c.l.b16 %v207
      %v1855 = vunpack.c.h.b16 %v207
      %v1856 = vunpack.c.l.b16 %v208
      %v1857 = vunpack.c.h.b16 %v208
      %v1858 = vunpack.c.l.b16 %v209
      %v1859 = vunpack.c.h.b16 %v209
      %v1860 = vunpack.c.l.b16 %v210
      %v1861 = vunpack.c.h.b16 %v210
      %v1862 = vunpack.c.l.b16 %v211
      %v1863 = vunpack.c.h.b16 %v211
      %v1864 = vunpack.c.l.b16 %v212
      %v1865 = vunpack.c.h.b16 %v212
      %v1866 = vunpack.c.l.b16 %v213
      %v1867 = vunpack.c.h.b16 %v213
      %v1868 = vunpack.c.l.b16 %v214
      %v1869 = vunpack.c.h.b16 %v214
      %v1870 = vunpack.c.l.b16 %v215
      %v1871 = vunpack.c.h.b16 %v215
      %v1872 = vunpack.c.l.b16 %v216
      %v1873 = vunpack.c.h.b16 %v216
      %v1874 = vunpack.c.l.b16 %v217
      %v1875 = vunpack.c.h.b16 %v217
      %v1876 = vunpack.c.l.b16 %v218
      %v1877 = vunpack.c.h.b16 %v218
      %v1878 = vunpack.c.l.b16 %v219
      %v1879 = vunpack.c.h.b16 %v219
      %v1880 = vunpack.c.l.b16 %v220
      %v1881 = vunpack.c.h.b16 %v220
      %v1882 = vunpack.c.l.b16 %v221
      %v1883 = vunpack.c.h.b16 %v221
      %v1884 = vunpack.c.l.b16 %v222
      %v1885 = vunpack.c.h.b16 %v222
      %v1886 = vunpack.c.l.b16 %v223
      %v1887 = vunpack.c.h.b16 %v223
      %v1888 = vunpack.c.l.b16 %v224
      %v1889 = vunpack.c.h.b16 %v224
      %v1890 = vunpack.c.l.b16 %v225
      %v1891 = vunpack.c.h.b16 %v225
      %v1892 = vunpack.c.l.b16 %v226
      %v1893 = vunpack.c.h.b16 %v226
      %v1894 = vunpack.c.l.b16 %v227
      %v1895 = vunpack.c.h.b16 %v227
      %v1896 = vunpack.c.l.b16 %v228
      %v1897 = vunpack.c.h.b16 %v228
      %v1898 = vunpack.c.l.b16 %v229
      %v1899 = vunpack.c.h.b16 %v229
      %v1900 = vunpack.c.l.b16 %v230
      %v1901 = vunpack.c.h.b16 %v230
      %v1902 = vunpack.c.l.b16 %v231
      %v1903 = vunpack.c.h.b16 %v231
      %v1904 = vunpack.c.l.b16 %v232
      %v1905 = vunpack.c.h.b16 %v232
      %v1906 = vunpack.c.l.b16 %v233
      %v1907 = vunpack.c.h.b16 %v233
      %v1908 = vunpack.c.l.b16 %v234
      %v1909 = vunpack.c.h.b16 %v234
      %v1910 = vunpack.c.l.b16 %v235
      %v1911 = vunpack.c.h.b16 %v235
      %v1912 = vunpack.c.l.b16 %v236
      %v1913 = vunpack.c.h.b16 %v236
      %v1914 = vunpack.c.l.b16 %v237
      %v1915 = vunpack.c.h.b16 %v237
      %v1916 = vunpack.c.l.b16 %v238
      %v1917 = vunpack.c.h.b16 %v238
      %v1918 = vunpack.c.l.b16 %v239
      %v1919 = vunpack.c.h.b16 %v239
      %v1920 = vunpack.c.l.b16 %v240
      %v1921 = vunpack.c.h.b16 %v240
      %v1922 = vunpack.c.l.b16 %v241
      %v1923 = vunpack.c.h.b16 %v241
      %v1924 = vunpack.c.l.b16 %v242
      %v1925 = vunpack.c.h.b16 %v242
      %v1926 = vunpack.c.l.b16 %v243
      %v1927 = vunpack.c.h.b16 %v243
      %v1928 = vunpack.c.l.b16 %v244
      %v1929 = vunpack.c.h.b16 %v244
      %v1930 = vpack.c.b16 %v1834, %v1834
      %v1931 = vpack.c.b16 %v1835, %v1835
      %v1932 = vpack.c.b16 %v1836, %v1836
      %v1933 = vpack.c.b16 %v1837, %v1837
      %v1934 = vpack.c.b16 %v1838, %v1838
      %v1935 = vpack.c.b16 %v1839, %v1839
      %v1936 = vpack.c.b16 %v1840, %v1840
      %v1937 = vpack.c.b16 %v1841, %v1841
      %v1938 = vpack.c.b16 %v1842, %v1842
      %v1939 = vpack.c.b16 %v1843, %v1843
      %v1940 = vpack.c.b16 %v1844, %v1844
      %v1941 = vpack.c.b16 %v1845, %v1845
      %v1942 = vpack.c.b16 %v1846, %v1846
      %v1943 = vpack.c.b16 %v1847, %v1847
      %v1944 = vpack.c.b16 %v1848, %v1848
      %v1945 = vpack.c.b16 %v1849, %v1849
      %v1946 = vpack.c.b16 %v1850, %v1850
      %v1947 = vpack.c.b16 %v1851, %v1851
      %v1948 = vpack.c.b16 %v1852, %v1852
      %v1949 = vpack.c.b16 %v1853, %v1853
      %v1950 = vpack.c.b16 %v1854, %v1854
      %v1951 = vpack.c.b16 %v1855, %v1855
      %v1952 = vpack.c.b16 %v1856, %v1856
      %v1953 = vpack.c.b16 %v1857, %v1857
      %v1954 = vpack.c.b16 %v1858, %v1858
      %v1955 = vpack.c.b16 %v1859, %v1859
      %v1956 = vpack.c.b16 %v1860, %v1860
      %v1957 = vpack.c.b16 %v1861, %v1861
      %v1958 = vpack.c.b16 %v1862, %v1862
      %v1959 = vpack.c.b16 %v1863, %v1863
      %v1960 = vpack.c.b16 %v1864, %v1864
      %v1961 = vpack.c.b16 %v1865, %v1865
      %v1962 = vpack.c.b16 %v1866, %v1866
      %v1963 = vpack.c.b16 %v1867, %v1867
      %v1964 = vpack.c.b16 %v1868, %v1868
      %v1965 = vpack.c.b16 %v1869, %v1869
      %v1966 = vpack.c.b16 %v1870, %v1870
      %v1967 = vpack.c.b16 %v1871, %v1871
      %v1968 = vpack.c.b16 %v1872, %v1872
      %v1969 = vpack.c.b16 %v1873, %v1873
      %v1970 = vpack.c.b16 %v1874, %v1874
      %v1971 = vpack.c.b16 %v1875, %v1875
      %v1972 = vpack.c.b16 %v1876, %v1876
      %v1973 = vpack.c.b16 %v1877, %v1877
      %v1974 = vpack.c.b16 %v1878, %v1878
      %v1975 = vpack.c.b16 %v1879, %v1879
      %v1976 = vpack.c.b16 %v1880, %v1880
      %v1977 = vpack.c.b16 %v1881, %v1881
      %v1978 = vpack.c.b16 %v1882, %v1882
      %v1979 = vpack.c.b16 %v1883, %v1883
      %v1980 = vpack.c.b16 %v1884, %v1884
      %v1981 = vpack.c.b16 %v1885, %v1885
      %v1982 = vpack.c.b16 %v1886, %v1886
      %v1983 = vpack.c.b16 %v1887, %v1887
      %v1984 = vpack.c.b16 %v1888, %v1888
      %v1985 = vpack.c.b16 %v1889, %v1889
      %v1986 = vpack.c.b16 %v1890, %v1890
      %v1987 = vpack.c.b16 %v1891, %v1891
      %v1988 = vpack.c.b16 %v1892, %v1892
      %v1989 = vpack.c.b16 %v1893, %v1893
      %v1990 = vpack.c.b16 %v1894, %v1894
      %v1991 = vpack.c.b16 %v1895, %v1895
      %v1992 = vpack.c.b16 %v1896, %v1896
      %v1993 = vpack.c.b16 %v1897, %v1897
      %v1994 = vpack.c.b16 %v1898, %v1898
      %v1995 = vpack.c.b16 %v1899, %v1899
      %v1996 = vpack.c.b16 %v1900, %v1900
      %v1997 = vpack.c.b16 %v1901, %v1901
      %v1998 = vpack.c.b16 %v1902, %v1902
      %v1999 = vpack.c.b16 %v1903, %v1903
      %v2000 = vpack.c.b16 %v1904, %v1904
      %v2001 = vpack.c.b16 %v1905, %v1905
      %v2002 = vpack.c.b16 %v1906, %v1906
      %v2003 = vpack.c.b16 %v1907, %v1907
      %v2004 = vpack.c.b16 %v1908, %v1908
      %v2005 = vpack.c.b16 %v1909, %v1909
      %v2006 = vpack.c.b16 %v1910, %v1910
      %v2007 = vpack.c.b16 %v1911, %v1911
      %v2008 = vpack.c.b16 %v1912, %v1912
      %v2009 = vpack.c.b16 %v1913, %v1913
      %v2010 = vpack.c.b16 %v1914, %v1914
      %v2011 = vpack.c.b16 %v1915, %v1915
      %v2012 = vpack.c.b16 %v1916, %v1916
      %v2013 = vpack.c.b16 %v1917, %v1917
      %v2014 = vpack.c.b16 %v1918, %v1918
      %v2015 = vpack.c.b16 %v1919, %v1919
      %v2016 = vpack.c.b16 %v1920, %v1920
      %v2017 = vpack.c.b16 %v1921, %v1921
      %v2018 = vpack.c.b16 %v1922, %v1922
      %v2019 = vpack.c.b16 %v1923, %v1923
      %v2020 = vpack.c.b16 %v1924, %v1924
      %v2021 = vpack.c.b16 %v1925, %v1925
      %v2022 = vpack.c.b16 %v1926, %v1926
      %v2023 = vpack.c.b16 %v1927, %v1927
      %v2024 = vpack.c.b16 %v1928, %v1928
      %v2025 = vpack.c.b16 %v1929, %v1929
      %v3658 = vunpack.c.l.b16 %v245
      %v3659 = vunpack.c.l.b16 %v246
      %v3660 = vunpack.c.l.b16 %v247
      %v3661 = vunpack.c.l.b16 %v248
      %v3662 = vunpack.c.l.b16 %v249
      %v3663 = vunpack.c.l.b16 %v250
      %v3664 = vunpack.c.l.b16 %v251
      %v3665 = vunpack.c.l.b16 %v252
      %v3666 = vunpack.c.l.b16 %v253
      %v3667 = vunpack.c.l.b16 %v254
      %v3668 = vunpack.c.l.b16 %v255
      %v3669 = vunpack.c.l.b16 %v256
      %v3670 = vunpack.c.l.b16 %v257
      %v3671 = vunpack.c.l.b16 %v258
      %v3672 = vunpack.c.l.b16 %v259
      %v3673 = vunpack.c.l.b16 %v260
      %v3674 = vunpack.c.l.b16 %v261
      %v3675 = vunpack.c.l.b16 %v262
      %v3676 = vunpack.c.l.b16 %v263
      %v3677 = vunpack.c.l.b16 %v264
      %v3678 = vunpack.c.l.b16 %v265
      %v3679 = vunpack.c.l.b16 %v266
      %v3680 = vunpack.c.l.b16 %v267
      %v3681 = vunpack.c.l.b16 %v268
      %v3682 = vunpack.c.l.b16 %v269
      %v3683 = vunpack.c.l.b16 %v270
      %v3684 = vunpack.c.l.b16 %v271
      %v3685 = vunpack.c.l.b16 %v272
      %v3686 = vunpack.c.l.b16 %v273
      %v3687 = vunpack.c.l.b16 %v274
      %v3688 = vunpack.c.l.b16 %v275
      %v3689 = vunpack.c.l.b16 %v276
      %v3690 = vunpack.c.l.b16 %v277
      %v3691 = vunpack.c.l.b16 %v278
      %v3692 = vunpack.c.l.b16 %v279
      %v3693 = vunpack.c.l.b16 %v280
      %v3694 = vunpack.c.l.b16 %v281
      %v3695 = vunpack.c.l.b16 %v282
      %v3696 = vunpack.c.l.b16 %v283
      %v3697 = vunpack.c.l.b16 %v284
      %v3698 = vunpack.c.l.b16 %v285
      %v3699 = vunpack.c.l.b16 %v286
      %v3700 = vunpack.c.l.b16 %v287
      %v3701 = vunpack.c.l.b16 %v288
      %v3702 = vunpack.c.l.b16 %v289
      %v3703 = vunpack.c.l.b16 %v290
      %v3704 = vunpack.c.l.b16 %v291
      %v3705 = vunpack.c.l.b16 %v292
      %v3706 = vunpack.c.l.b16 %v293
      %v3707 = vunpack.c.l.b16 %v294
      %v3708 = vunpack.c.l.b16 %v295
      %v3709 = vunpack.c.l.b16 %v296
      %v3710 = vunpack.c.l.b16 %v297
      %v3711 = vunpack.c.l.b16 %v298
      %v3712 = vunpack.c.l.b16 %v299
      %v3713 = vunpack.c.l.b16 %v300
      %v3714 = vunpack.c.l.b16 %v301
      %v3715 = vunpack.c.l.b16 %v302
      %v3716 = vunpack.c.l.b16 %v303
      %v3717 = vunpack.c.l.b16 %v304
      %v3718 = vunpack.c.l.b16 %v305
      %v3719 = vunpack.c.l.b16 %v306
      %v3720 = vunpack.c.l.b16 %v307
      %v3721 = vunpack.c.l.b16 %v308
      %v3722 = vunpack.c.l.b16 %v309
      %v3723 = vunpack.c.l.b16 %v310
      %v3724 = vunpack.c.l.b16 %v311
      %v3725 = vunpack.c.l.b16 %v312
      %v3726 = vunpack.c.l.b16 %v313
      %v3727 = vunpack.c.l.b16 %v314
      %v3728 = vunpack.c.l.b16 %v315
      %v3729 = vunpack.c.l.b16 %v316
      %v3730 = vunpack.c.l.b16 %v317
      %v3731 = vunpack.c.l.b16 %v318
      %v3732 = vunpack.c.l.b16 %v319
      %v3733 = vunpack.c.l.b16 %v320
      %v3734 = vunpack.c.l.b16 %v321
      %v3735 = vunpack.c.l.b16 %v322
      %v3736 = vunpack.c.l.b16 %v323
      %v3737 = vunpack.c.l.b16 %v324
      %v3738 = vunpack.c.l.b16 %v325
      %v3739 = vunpack.c.l.b16 %v326
      %v3740 = vunpack.c.l.b16 %v327
      %v3741 = vunpack.c.l.b16 %v328
      %v3742 = vunpack.c.l.b16 %v329
      %v3743 = vunpack.c.l.b16 %v330
      %v3744 = vunpack.c.l.b16 %v331
      %v3745 = vunpack.c.l.b16 %v332
      %v3746 = vunpack.c.l.b16 %v333
      %v3747 = vunpack.c.l.b16 %v334
      %v3748 = vunpack.c.l.b16 %v335
      %v3749 = vunpack.c.l.b16 %v336
      %v3750 = vunpack.c.l.b16 %v337
      %v3751 = vunpack.c.l.b16 %v338
      %v3752 = vunpack.c.l.b16 %v339
      %v3753 = vunpack.c.l.b16 %v340
      %v3754 = vunpack.c.l.b16 %v341
      %v3755 = vunpack.c.l.b16 %v342
      %v3756 = vunpack.c.l.b16 %v343
      %v3757 = vunpack.c.l.b16 %v344
      %v3758 = vunpack.c.l.b16 %v345
      %v3759 = vunpack.c.l.b16 %v346
      %v3760 = vunpack.c.l.b16 %v347
      %v3761 = vunpack.c.l.b16 %v348
      %v3762 = vunpack.c.l.b16 %v349
      %v3763 = vunpack.c.l.b16 %v350
      %v3764 = vunpack.c.l.b16 %v351
      %v3765 = vunpack.c.l.b16 %v352
      %v3766 = vunpack.c.l.b16 %v353
      %v3767 = vunpack.c.l.b16 %v354
      %v3768 = vunpack.c.l.b16 %v355
      %v3769 = vunpack.c.l.b16 %v356
      %v3770 = vunpack.c.l.b16 %v357
      %v3771 = vunpack.c.l.b16 %v358
      %v3772 = vunpack.c.l.b16 %v359
      %v3773 = vunpack.c.l.b16 %v360
      %v3774 = vunpack.c.l.b16 %v361
      %v3775 = vunpack.c.l.b16 %v362
      %v3776 = vunpack.c.l.b16 %v363
      %v3777 = vunpack.c.l.b16 %v364
      %v3778 = vunpack.c.l.b16 %v365
      %v3779 = vunpack.c.l.b16 %v366
      %v3780 = vunpack.c.l.b16 %v367
      %v3781 = vunpack.c.l.b16 %v368
      %v3782 = vunpack.c.l.b16 %v369
      %v3783 = vunpack.c.l.b16 %v370
      %v3784 = vunpack.c.l.b16 %v371
      %v3785 = vunpack.c.l.b16 %v372
      %v3786 = vunpack.c.l.b16 %v373
      %v3787 = vunpack.c.l.b16 %v374
      %v3788 = vunpack.c.l.b16 %v375
      %v3789 = vunpack.c.l.b16 %v376
      %v3790 = vunpack.c.l.b16 %v377
      %v3791 = vunpack.c.l.b16 %v378
      %v3792 = vunpack.c.l.b16 %v379
      %v3793 = vunpack.c.l.b16 %v380
      %v3794 = vunpack.c.l.b16 %v381
      %v3795 = vunpack.c.l.b16 %v382
      %v3796 = vunpack.c.l.b16 %v383
      %v3797 = vunpack.c.l.b16 %v384
      %v3798 = vunpack.c.l.b16 %v385
      %v3799 = vunpack.c.l.b16 %v386
      %v3800 = vunpack.c.l.b16 %v387
      %v3801 = vunpack.c.l.b16 %v388
      %v3802 = vunpack.c.l.b16 %v389
      %v3803 = vunpack.c.l.b16 %v390
      %v3804 = vunpack.c.l.b16 %v391
      %v3805 = vunpack.c.l.b16 %v392
      %v3806 = vunpack.c.l.b16 %v393
      %v3807 = vunpack.c.l.b16 %v394
      %v3808 = vunpack.c.l.b16 %v395
      %v3809 = vunpack.c.l.b16 %v396
      %v3810 = vunpack.c.l.b16 %v397
      %v3811 = vunpack.c.l.b16 %v398
      %v3812 = vunpack.c.l.b16 %v399
      %v3813 = vunpack.c.l.b16 %v400
      %v3814 = vunpack.c.l.b16 %v401
      %v3815 = vunpack.c.l.b16 %v402
      %v3816 = vunpack.c.l.b16 %v403
      %v3817 = vunpack.c.l.b16 %v404
      %v3818 = vunpack.c.l.b16 %v405
      %v3819 = vunpack.c.l.b16 %v406
      %v3820 = vunpack.c.l.b16 %v407
      %v3821 = vunpack.c.l.b16 %v408
      %v3822 = vunpack.c.l.b16 %v409
      %v3823 = vunpack.c.l.b16 %v410
      %v3824 = vunpack.c.l.b16 %v411
      %v3825 = vunpack.c.l.b16 %v412
      %v3826 = vunpack.c.l.b16 %v413
      %v3827 = vunpack.c.l.b16 %v414
      %v3828 = vunpack.c.l.b16 %v415
      %v3829 = vunpack.c.l.b16 %v416
      %v3830 = vunpack.c.l.b16 %v417
      %v3831 = vunpack.c.l.b16 %v418
      %v3832 = vunpack.c.l.b16 %v419
      %v3833 = vunpack.c.l.b16 %v420
      %v3834 = vunpack.c.l.b16 %v421
      %v3835 = vunpack.c.l.b16 %v422
      %v3836 = vunpack.c.l.b16 %v423
      %v3837 = vunpack.c.l.b16 %v424
      %v3838 = vunpack.c.l.b16 %v425
      %v3839 = vunpack.c.l.b16 %v426
      %v3840 = vunpack.c.l.b16 %v427
      %v3841 = vunpack.c.l.b16 %v428
      %v3842 = vunpack.c.l.b16 %v429
      %v3843 = vunpack.c.l.b16 %v430
      %v3844 = vunpack.c.l.b16 %v431
      %v3845 = vunpack.c.l.b16 %v432
      %v3846 = vunpack.c.l.b16 %v433
      %v3847 = vunpack.c.l.b16 %v434
      %v3848 = vunpack.c.l.b16 %v435
      %v3849 = vunpack.c.l.b16 %v436
      %v3850 = vunpack.c.l.b16 %v437
      %v3851 = vunpack.c.l.b16 %v438
      %v3852 = vunpack.c.l.b16 %v439
      %v3853 = vunpack.c.l.b16 %v440
      %v3854 = vunpack.c.l.b16 %v441
      %v3855 = vunpack.c.l.b16 %v442
      %v3856 = vunpack.c.l.b16 %v443
      %v3857 = vunpack.c.l.b16 %v444
      %v3858 = vunpack.c.l.b16 %v445
      %v3859 = vunpack.c.l.b16 %v446
      %v3860 = vunpack.c.l.b16 %v447
      %v3861 = vunpack.c.l.b16 %v448
      %v3862 = vunpack.c.l.b16 %v449
      %v3863 = vunpack.c.l.b16 %v450
      %v3864 = vunpack.c.l.b16 %v451
      %v3865 = vunpack.c.l.b16 %v452
      %v3866 = vunpack.c.l.b16 %v453
      %v3867 = vunpack.c.l.b16 %v454
      %v3868 = vunpack.c.l.b16 %v455
      %v3869 = vunpack.c.l.b16 %v456
      %v3870 = vunpack.c.l.b16 %v457
      %v3871 = vunpack.c.l.b16 %v458
      %v3872 = vunpack.c.l.b16 %v459
      %v3873 = vunpack.c.l.b16 %v460
      %v3874 = vunpack.c.l.b16 %v461
      %v3875 = vunpack.c.l.b16 %v462
      %v3876 = vunpack.c.l.b16 %v463
      %v3877 = vunpack.c.l.b16 %v464
      %v3878 = vunpack.c.l.b16 %v465
      %v3879 = vunpack.c.l.b16 %v466
      %v3880 = vunpack.c.l.b16 %v467
      %v3881 = vunpack.c.l.b16 %v468
      %v3882 = vunpack.c.l.b16 %v469
      %v3883 = vunpack.c.l.b16 %v470
      %v3884 = vunpack.c.l.b16 %v471
      %v3885 = vunpack.c.l.b16 %v472
      %v3886 = vunpack.c.l.b16 %v473
      %v3887 = vunpack.c.l.b16 %v474
      %v3888 = vunpack.c.l.b16 %v475
      %v3889 = vunpack.c.l.b16 %v476
      %v3890 = vunpack.c.l.b16 %v477
      %v3891 = vunpack.c.l.b16 %v478
      %v3892 = vunpack.c.l.b16 %v479
      %v3893 = vunpack.c.l.b16 %v480
      %v3894 = vunpack.c.l.b16 %v481
      %v3895 = vunpack.c.l.b16 %v482
      %v3896 = vunpack.c.l.b16 %v483
      %v3897 = vunpack.c.l.b16 %v484
      %v3898 = vunpack.c.l.b16 %v485
      %v3899 = vunpack.c.l.b16 %v486
      %v3900 = vunpack.c.l.b16 %v487
      %v3901 = vunpack.c.l.b16 %v488
      %v3902 = vunpack.c.l.b16 %v489
      %v3903 = vunpack.c.l.b16 %v490
      %v3904 = vunpack.c.l.b16 %v491
      %v3905 = vunpack.c.l.b16 %v492
      %v3906 = vunpack.c.l.b16 %v493
      %v3907 = vunpack.c.l.b16 %v494
      %v3908 = vunpack.c.l.b16 %v495
      %v3909 = vunpack.c.l.b16 %v496
      %v3910 = vunpack.c.l.b16 %v497
      %v3911 = vunpack.c.l.b16 %v498
      %v3912 = vunpack.c.l.b16 %v499
      %v3913 = vunpack.c.l.b16 %v500
      %v3914 = vunpack.c.l.b16 %v501
      %v3915 = vunpack.c.l.b16 %v502
      %v3916 = vunpack.c.l.b16 %v503
      %v3917 = vunpack.c.l.b16 %v504
      %v3918 = vunpack.c.l.b16 %v505
      %v3919 = vunpack.c.l.b16 %v506
      %v3920 = vunpack.c.l.b16 %v507
      %v3921 = vunpack.c.l.b16 %v508
      %v3922 = vunpack.c.l.b16 %v509
      %v3923 = vunpack.c.l.b16 %v510
      %v3924 = vunpack.c.l.b16 %v511
      %v3925 = vunpack.c.l.b16 %v512
      %v3926 = vunpack.c.l.b16 %v513
      %v3927 = vunpack.c.l.b16 %v514
      %v3928 = vunpack.c.l.b16 %v515
      %v3929 = vunpack.c.l.b16 %v516
      %v3930 = vunpack.c.l.b16 %v517
      %v3931 = vunpack.c.l.b16 %v518
      %v3932 = vunpack.c.l.b16 %v519
      %v3933 = vunpack.c.l.b16 %v520
      %v3934 = vunpack.c.l.b16 %v521
      %v3935 = vunpack.c.l.b16 %v522
      %v3936 = vunpack.c.l.b16 %v523
      %v3937 = vunpack.c.l.b16 %v524
      %v3938 = vunpack.c.l.b16 %v525
      %v3939 = vunpack.c.l.b16 %v526
      %v3940 = vunpack.c.l.b16 %v527
      %v3941 = vunpack.c.l.b16 %v528
      %v3942 = vunpack.c.l.b16 %v529
      %v3943 = vunpack.c.l.b16 %v530
      %v3944 = vunpack.c.l.b16 %v531
      %v3945 = vunpack.c.l.b16 %v532
      %v3946 = vunpack.c.l.b16 %v533
      %v3947 = vunpack.c.l.b16 %v534
      %v3948 = vunpack.c.l.b16 %v535
      %v3949 = vunpack.c.l.b16 %v536
      %v3950 = vunpack.c.l.b16 %v537
      %v3951 = vunpack.c.l.b16 %v538
      %v3952 = vunpack.c.l.b16 %v539
      %v3953 = vunpack.c.l.b16 %v540
      %v3954 = vunpack.c.l.b16 %v541
      %v3955 = vunpack.c.l.b16 %v542
      %v3956 = vunpack.c.l.b16 %v543
      %v3957 = vunpack.c.l.b16 %v544
      %v3958 = vunpack.c.l.b16 %v545
      %v3959 = vunpack.c.l.b16 %v546
      %v3960 = vunpack.c.l.b16 %v547
      %v3961 = vunpack.c.l.b16 %v548
      %v3962 = vunpack.c.l.b16 %v549
      %v3963 = vunpack.c.l.b16 %v550
      %v3964 = vunpack.c.l.b16 %v551
      %v3965 = vunpack.c.l.b16 %v552
      %v3966 = vunpack.c.l.b16 %v553
      %v3967 = vunpack.c.l.b16 %v554
      %v3968 = vunpack.c.l.b16 %v555
      %v3969 = vunpack.c.l.b16 %v556
      %v3970 = vunpack.c.l.b16 %v557
      %v3971 = vunpack.c.l.b16 %v558
      %v3972 = vunpack.c.l.b16 %v559
      %v3973 = vunpack.c.l.b16 %v560
      %v3974 = vunpack.c.l.b16 %v561
      %v3975 = vunpack.c.l.b16 %v562
      %v3976 = vunpack.c.l.b16 %v563
      %v3977 = vunpack.c.l.b16 %v564
      %v3978 = vunpack.c.l.b16 %v565
      %v3979 = vunpack.c.l.b16 %v566
      %v3980 = vunpack.c.l.b16 %v567
      %v3981 = vunpack.c.l.b16 %v568
      %v3982 = vunpack.c.l.b16 %v569
      %v3983 = vunpack.c.l.b16 %v570
      %v3984 = vunpack.c.l.b16 %v571
      %v3985 = vunpack.c.l.b16 %v572
      %v3986 = vunpack.c.l.b16 %v573
      %v3987 = vunpack.c.l.b16 %v574
      %v3988 = vunpack.c.l.b16 %v575
      %v3989 = vunpack.c.l.b16 %v576
      %v3990 = vunpack.c.l.b16 %v577
      %v3991 = vunpack.c.l.b16 %v578
      %v3992 = vunpack.c.l.b16 %v579
      %v3993 = vunpack.c.l.b16 %v580
      %v3994 = vunpack.c.l.b16 %v581
      %v3995 = vunpack.c.l.b16 %v582
      %v3996 = vunpack.c.l.b16 %v583
      %v3997 = vunpack.c.l.b16 %v584
      %v3998 = vunpack.c.l.b16 %v585
      %v3999 = vunpack.c.l.b16 %v586
      %v4000 = vunpack.c.l.b16 %v587
      %v4001 = vunpack.c.l.b16 %v588
      %v4002 = vunpack.c.l.b16 %v589
      %v4003 = vunpack.c.l.b16 %v590
      %v4004 = vunpack.c.l.b16 %v591
      %v4005 = vunpack.c.l.b16 %v592
      %v4006 = vunpack.c.l.b16 %v593
      %v4007 = vunpack.c.l.b16 %v594
      %v4008 = vunpack.c.l.b16 %v595
      %v4009 = vunpack.c.l.b16 %v596
      %v4010 = vunpack.c.l.b16 %v597
      %v4011 = vunpack.c.l.b16 %v598
      %v4012 = vunpack.c.l.b16 %v599
      %v4013 = vunpack.c.l.b16 %v600
      %v4014 = vunpack.c.l.b16 %v601
      %v4015 = vunpack.c.l.b16 %v602
      %v4016 = vunpack.c.l.b16 %v603
      %v4017 = vunpack.c.l.b16 %v604
      %v4018 = vunpack.c.l.b16 %v605
      %v4019 = vunpack.c.l.b16 %v606
      %v4020 = vunpack.c.l.b16 %v607
      %v4021 = vunpack.c.l.b16 %v608
      %v4022 = vunpack.c.l.b16 %v609
      %v4023 = vunpack.c.l.b16 %v610
      %v4024 = vunpack.c.l.b16 %v611
      %v4025 = vunpack.c.l.b16 %v612
      %v4026 = vunpack.c.l.b16 %v613
      %v4027 = vunpack.c.l.b16 %v614
      %v4028 = vunpack.c.l.b16 %v615
      %v4029 = vunpack.c.l.b16 %v616
      %v4030 = vunpack.c.l.b16 %v617
      %v4031 = vunpack.c.l.b16 %v618
      %v4032 = vunpack.c.l.b16 %v619
      %v4033 = vunpack.c.l.b16 %v620
      %v4034 = vunpack.c.l.b16 %v621
      %v4035 = vunpack.c.l.b16 %v622
      %v4036 = vunpack.c.l.b16 %v623
      %v4037 = vunpack.c.l.b16 %v624
      %v4038 = vunpack.c.l.b16 %v625
      %v4039 = vunpack.c.l.b16 %v626
      %v4040 = vunpack.c.l.b16 %v627
      %v4041 = vunpack.c.l.b16 %v628
      %v4042 = vunpack.c.l.b16 %v629
      %v4043 = vunpack.c.l.b16 %v630
      %v4044 = vunpack.c.l.b16 %v631
      %v4045 = vunpack.c.l.b16 %v632
      %v4046 = vunpack.c.l.b16 %v633
      %v4047 = vunpack.c.l.b16 %v634
      %v4048 = vunpack.c.l.b16 %v635
      %v4049 = vunpack.c.l.b16 %v636
      %v4050 = vunpack.c.l.b16 %v637
      %v4051 = vunpack.c.l.b16 %v638
      %v4052 = vunpack.c.l.b16 %v639
      %v4053 = vunpack.c.l.b16 %v640
      %v4054 = vunpack.c.l.b16 %v641
      %v4055 = vunpack.c.l.b16 %v642
      %v4056 = vunpack.c.l.b16 %v643
      %v4057 = vunpack.c.l.b16 %v644
      %v4058 = vunpack.c.l.b16 %v645
      %v4059 = vunpack.c.l.b16 %v646
      %v4060 = vunpack.c.l.b16 %v647
      %v4061 = vunpack.c.l.b16 %v648
      %v4062 = vunpack.c.l.b16 %v649
      %v4063 = vunpack.c.l.b16 %v650
      %v4064 = vunpack.c.l.b16 %v651
      %v4065 = vunpack.c.l.b16 %v652
      %v4066 = vunpack.c.l.b16 %v653
      %v4067 = vunpack.c.l.b16 %v654
      %v4068 = vunpack.c.l.b16 %v655
      %v4069 = vunpack.c.l.b16 %v656
      %v4070 = vunpack.c.l.b16 %v657
      %v4071 = vunpack.c.l.b16 %v658
      %v4072 = vunpack.c.l.b16 %v659
      %v4073 = vunpack.c.l.b16 %v660
      %v4074 = vunpack.c.l.b16 %v661
      %v4075 = vunpack.c.l.b16 %v662
      %v4076 = vunpack.c.l.b16 %v663
      %v4077 = vunpack.c.l.b16 %v664
      %v4078 = vunpack.c.l.b16 %v665
      %v4079 = vunpack.c.l.b16 %v666
      %v4080 = vunpack.c.l.b16 %v667
      %v4081 = vunpack.c.l.b16 %v668
      %v4082 = vunpack.c.l.b16 %v669
      %v4083 = vunpack.c.l.b16 %v670
      %v4084 = vunpack.c.l.b16 %v671
      %v4085 = vunpack.c.l.b16 %v672
      %v4086 = vunpack.c.l.b16 %v673
      %v4087 = vunpack.c.l.b16 %v674
      %v4088 = vunpack.c.l.b16 %v675
      %v4089 = vunpack.c.l.b16 %v676
      %v4090 = vunpack.c.l.b16 %v677
      %v4091 = vunpack.c.l.b16 %v678
      %v4092 = vunpack.c.l.b16 %v679
      %v4093 = vunpack.c.l.b16 %v680
      %v4094 = vunpack.c.l.b16 %v681
      %v4095 = vunpack.c.l.b16 %v682
      %v4096 = vunpack.c.l.b16 %v683
      %v4097 = vunpack.c.l.b16 %v684
      %v4098 = vunpack.c.l.b16 %v685
      %v4099 = vunpack.c.l.b16 %v686
      %v4100 = vunpack.c.l.b16 %v687
      %v4101 = vunpack.c.l.b16 %v688
      %v4102 = vunpack.c.l.b16 %v689
      %v4103 = vunpack.c.l.b16 %v690
      %v4104 = vunpack.c.l.b16 %v691
      %v4105 = vunpack.c.l.b16 %v692
      %v4106 = vunpack.c.l.b16 %v693
      %v4107 = vunpack.c.l.b16 %v694
      %v4108 = vunpack.c.l.b16 %v695
      %v4109 = vunpack.c.l.b16 %v696
      %v4110 = vunpack.c.l.b16 %v697
      %v4111 = vunpack.c.l.b16 %v698
      %v4112 = vunpack.c.l.b16 %v699
      %v4113 = vunpack.c.l.b16 %v700
      %v4114 = vunpack.c.l.b16 %v701
      %v4115 = vunpack.c.l.b16 %v702
      %v4116 = vunpack.c.l.b16 %v703
      %v4117 = vunpack.c.l.b16 %v704
      %v4118 = vunpack.c.l.b16 %v705
      %v4119 = vunpack.c.l.b16 %v706
      %v4120 = vunpack.c.l.b16 %v707
      %v4121 = vunpack.c.l.b16 %v708
      %v4122 = vunpack.c.l.b16 %v709
      %v4123 = vunpack.c.l.b16 %v710
      %v4124 = vunpack.c.l.b16 %v711
      %v4125 = vunpack.c.l.b16 %v712
      %v4126 = vunpack.c.l.b16 %v713
      %v4127 = vunpack.c.l.b16 %v714
      %v4128 = vunpack.c.l.b16 %v715
      %v4129 = vunpack.c.l.b16 %v716
      %v4130 = vunpack.c.l.b16 %v717
      %v4131 = vunpack.c.l.b16 %v718
      %v4132 = vunpack.c.l.b16 %v719
      %v4133 = vunpack.c.l.b16 %v720
      %v4134 = vunpack.c.l.b16 %v721
      %v4135 = vunpack.c.l.b16 %v722
      %v4136 = vunpack.c.l.b16 %v723
      %v4137 = vunpack.c.l.b16 %v724
      %v4138 = vunpack.c.l.b16 %v725
      %v4139 = vunpack.c.l.b16 %v726
      %v4140 = vunpack.c.l.b16 %v727
      %v4141 = vunpack.c.l.b16 %v728
      %v4142 = vunpack.c.l.b16 %v729
      %v4143 = vunpack.c.l.b16 %v730
      %v4144 = vunpack.c.l.b16 %v731
      %v4145 = vunpack.c.l.b16 %v732
      %v4146 = vunpack.c.l.b16 %v733
      %v4147 = vunpack.c.l.b16 %v734
      %v4148 = vunpack.c.l.b16 %v735
      %v4149 = vunpack.c.l.b16 %v736
      %v4150 = vunpack.c.l.b16 %v737
      %v4151 = vunpack.c.l.b16 %v738
      %v4152 = vunpack.c.l.b16 %v739
      %v4153 = vunpack.c.l.b16 %v740
      %v4154 = vunpack.c.l.b16 %v741
      %v4155 = vunpack.c.l.b16 %v742
      %v4156 = vunpack.c.l.b16 %v743
      %v4157 = vunpack.c.l.b16 %v744
      %v4158 = vunpack.c.l.b16 %v745
      %v4159 = vunpack.c.l.b16 %v746
      %v4160 = vunpack.c.l.b16 %v747
      %v4161 = vunpack.c.l.b16 %v748
      %v4162 = vunpack.c.l.b16 %v749
      %v4163 = vunpack.c.l.b16 %v750
      %v4164 = vunpack.c.l.b16 %v751
      %v4165 = vunpack.c.l.b16 %v752
      %v4166 = vunpack.c.l.b16 %v753
      %v4167 = vunpack.c.l.b16 %v754
      %v4168 = vunpack.c.l.b16 %v755
      %v4169 = vunpack.c.l.b16 %v756
      %v4170 = vunpack.c.l.b16 %v757
      %v4171 = vunpack.c.l.b16 %v758
      %v4172 = vunpack.c.l.b16 %v759
      %v4173 = vunpack.c.l.b16 %v760
      %v4174 = vunpack.c.l.b16 %v761
      %v4175 = vunpack.c.l.b16 %v762
      %v4176 = vunpack.c.l.b16 %v763
      %v4177 = vunpack.c.l.b16 %v764
      %v4178 = vunpack.c.l.b16 %v765
      %v4179 = vunpack.c.l.b16 %v766
      %v4180 = vunpack.c.l.b16 %v767
      %v4181 = vunpack.c.l.b16 %v768
      %v4182 = vunpack.c.l.b16 %v769
      %v4183 = vunpack.c.l.b16 %v770
      %v4184 = vunpack.c.l.b16 %v771
      %v4185 = vunpack.c.l.b16 %v772
      %v4186 = vunpack.c.l.b16 %v773
      %v4187 = vunpack.c.l.b16 %v774
      %v4188 = vunpack.c.l.b16 %v775
      %v4189 = vunpack.c.l.b16 %v776
      %v4190 = vunpack.c.l.b16 %v777
      %v4191 = vunpack.c.l.b16 %v778
      %v4192 = vunpack.c.l.b16 %v779
      %v4193 = vunpack.c.l.b16 %v780
      %v4194 = vunpack.c.l.b16 %v781
      %v4195 = vunpack.c.l.b16 %v782
      %v4196 = vunpack.c.l.b16 %v783
      %v4197 = vunpack.c.l.b16 %v784
      %v4198 = vunpack.c.l.b16 %v785
      %v4199 = vunpack.c.l.b16 %v786
      %v4200 = vunpack.c.l.b16 %v787
      %v4201 = vunpack.c.l.b16 %v788
      %v4202 = vunpack.c.l.b16 %v789
      %v4203 = vunpack.c.l.b16 %v790
      %v4204 = vunpack.c.l.b16 %v791
      %v4205 = vunpack.c.l.b16 %v792
      %v4206 = vunpack.c.l.b16 %v793
      %v4207 = vunpack.c.l.b16 %v794
      %v4208 = vunpack.c.l.b16 %v795
      %v4209 = vunpack.c.l.b16 %v796
      %v4210 = vunpack.c.l.b16 %v797
      %v4211 = vunpack.c.l.b16 %v798
      %v4212 = vunpack.c.l.b16 %v799
      %v4213 = vunpack.c.l.b16 %v800
      %v4214 = vunpack.c.l.b16 %v801
      %v4215 = vunpack.c.l.b16 %v802
      %v4216 = vunpack.c.l.b16 %v803
      %v4217 = vunpack.c.l.b16 %v804
      %v4218 = vunpack.c.l.b16 %v805
      %v4219 = vunpack.c.l.b16 %v806
      %v4220 = vunpack.c.l.b16 %v807
      %v4221 = vunpack.c.l.b16 %v808
      %v4222 = vunpack.c.l.b16 %v809
      %v4223 = vunpack.c.l.b16 %v810
      %v4224 = vunpack.c.l.b16 %v811
      %v4225 = vunpack.c.l.b16 %v812
      %v4226 = vunpack.c.l.b16 %v813
      %v4227 = vunpack.c.l.b16 %v814
      %v4228 = vunpack.c.l.b16 %v815
      %v4229 = vunpack.c.l.b16 %v816
      %v4230 = vunpack.c.l.b16 %v817
      %v4231 = vunpack.c.l.b16 %v818
      %v4232 = vunpack.c.l.b16 %v819
      %v4233 = vunpack.c.l.b16 %v820
      %v4234 = vunpack.c.l.b16 %v821
      %v4235 = vunpack.c.l.b16 %v822
      %v4236 = vunpack.c.l.b16 %v823
      %v4237 = vunpack.c.l.b16 %v824
      %v4238 = vunpack.c.l.b16 %v825
      %v4239 = vunpack.c.l.b16 %v826
      %v4240 = vunpack.c.l.b16 %v827
      %v4241 = vunpack.c.l.b16 %v828
      %v4242 = vunpack.c.l.b16 %v829
      %v4243 = vunpack.c.l.b16 %v830
      %v4244 = vunpack.c.l.b16 %v831
      %v4245 = vunpack.c.l.b16 %v832
      %v4246 = vunpack.c.l.b16 %v833
      %v4247 = vunpack.c.l.b16 %v834
      %v4248 = vunpack.c.l.b16 %v835
      %v4249 = vunpack.c.l.b16 %v836
      %v4250 = vunpack.c.l.b16 %v837
      %v4251 = vunpack.c.l.b16 %v838
      %v4252 = vunpack.c.l.b16 %v839
      %v4253 = vunpack.c.l.b16 %v840
      %v4254 = vunpack.c.l.b16 %v841
      %v4255 = vunpack.c.l.b16 %v842
      %v4256 = vunpack.c.l.b16 %v843
      %v4257 = vunpack.c.l.b16 %v844
      %v4258 = vunpack.c.l.b16 %v845
      %v4259 = vunpack.c.l.b16 %v846
      %v4260 = vunpack.c.l.b16 %v847
      %v4261 = vunpack.c.l.b16 %v848
      %v4262 = vunpack.c.l.b16 %v849
      %v4263 = vunpack.c.l.b16 %v850
      %v4264 = vunpack.c.l.b16 %v851
      %v4265 = vunpack.c.l.b16 %v852
      %v4266 = vunpack.c.l.b16 %v853
      %v4267 = vunpack.c.l.b16 %v854
      %v4268 = vunpack.c.l.b16 %v855
      %v4269 = vunpack.c.l.b16 %v856
      %v4270 = vunpack.c.l.b16 %v857
      %v4271 = vunpack.c.l.b16 %v858
      %v4272 = vunpack.c.l.b16 %v859
      %v4273 = vunpack.c.l.b16 %v860
      %v4274 = vunpack.c.l.b16 %v861
      %v4275 = vunpack.c.l.b16 %v862
      %v4276 = vunpack.c.l.b16 %v863
      %v4277 = vunpack.c.l.b16 %v864
      %v4278 = vunpack.c.l.b16 %v865
      %v4279 = vunpack.c.l.b16 %v866
      %v4280 = vunpack.c.l.b16 %v867
      %v4281 = vunpack.c.l.b16 %v868
      %v4282 = vunpack.c.l.b16 %v869
      %v4283 = vunpack.c.l.b16 %v870
      %v4284 = vunpack.c.l.b16 %v871
      %v4285 = vunpack.c.l.b16 %v872
      %v4286 = vunpack.c.l.b16 %v873
      %v4287 = vunpack.c.l.b16 %v874
      %v4288 = vunpack.c.l.b16 %v875
      %v4289 = vunpack.c.l.b16 %v876
      %v4290 = vunpack.c.l.b16 %v877
      %v4291 = vunpack.c.l.b16 %v878
      %v4292 = vunpack.c.l.b16 %v879
      %v4293 = vunpack.c.l.b16 %v880
      %v4294 = vunpack.c.l.b16 %v881
      %v4295 = vunpack.c.l.b16 %v882
      %v4296 = vunpack.c.l.b16 %v883
      %v4297 = vunpack.c.l.b16 %v884
      %v4298 = vunpack.c.l.b16 %v885
      %v4299 = vunpack.c.l.b16 %v886
      %v4300 = vunpack.c.l.b16 %v887
      %v4301 = vunpack.c.l.b16 %v888
      %v4302 = vunpack.c.l.b16 %v889
      %v4303 = vunpack.c.l.b16 %v890
      %v4304 = vunpack.c.l.b16 %v891
      %v4305 = vunpack.c.l.b16 %v892
      %v4306 = vunpack.c.l.b16 %v893
      %v4307 = vunpack.c.l.b16 %v894
      %v4308 = vunpack.c.l.b16 %v895
      %v4309 = vunpack.c.l.b16 %v896
      %v4310 = vunpack.c.l.b16 %v897
      %v4311 = vunpack.c.l.b16 %v898
      %v4312 = vunpack.c.l.b16 %v899
      %v4313 = vunpack.c.l.b16 %v900
      %v4314 = vunpack.c.l.b16 %v901
      %v4315 = vunpack.c.l.b16 %v902
      %v4316 = vunpack.c.l.b16 %v903
      %v4317 = vunpack.c.l.b16 %v904
      %v4318 = vunpack.c.l.b16 %v905
      %v4319 = vunpack.c.l.b16 %v906
      %v4320 = vunpack.c.l.b16 %v907
      %v4321 = vunpack.c.l.b16 %v908
      %v4322 = vunpack.c.l.b16 %v909
      %v4323 = vunpack.c.l.b16 %v910
      %v4324 = vunpack.c.l.b16 %v911
      %v4325 = vunpack.c.l.b16 %v912
      %v4326 = vunpack.c.l.b16 %v913
      %v4327 = vunpack.c.l.b16 %v914
      %v4328 = vunpack.c.l.b16 %v915
      %v4329 = vunpack.c.l.b16 %v916
      %v4330 = vunpack.c.l.b16 %v917
      %v4331 = vunpack.c.l.b16 %v918
      %v4332 = vunpack.c.l.b16 %v919
      %v4333 = vunpack.c.l.b16 %v920
      %v4334 = vunpack.c.l.b16 %v921
      %v4335 = vunpack.c.l.b16 %v922
      %v4336 = vunpack.c.l.b16 %v923
      %v4337 = vunpack.c.l.b16 %v924
      %v4338 = vunpack.c.l.b16 %v925
      %v4339 = vunpack.c.l.b16 %v926
      %v4340 = vunpack.c.l.b16 %v927
      %v4341 = vunpack.c.l.b16 %v928
      %v4342 = vunpack.c.l.b16 %v929
      %v4343 = vunpack.c.l.b16 %v930
      %v4344 = vunpack.c.l.b16 %v931
      %v4345 = vunpack.c.l.b16 %v932
      %v4346 = vunpack.c.l.b16 %v933
      %v4347 = vunpack.c.l.b16 %v934
      %v4348 = vunpack.c.l.b16 %v935
      %v4349 = vunpack.c.l.b16 %v936
      %v4350 = vunpack.c.l.b16 %v937
      %v4351 = vunpack.c.l.b16 %v938
      %v4352 = vunpack.c.l.b16 %v939
      %v4353 = vunpack.c.l.b16 %v940
      %v4354 = vunpack.c.l.b16 %v941
      %v4355 = vunpack.c.l.b16 %v942
      %v4356 = vunpack.c.l.b16 %v943
      %v4357 = vunpack.c.l.b16 %v944
      %v4358 = vunpack.c.l.b16 %v945
      %v4359 = vunpack.c.l.b16 %v946
      %v4360 = vunpack.c.l.b16 %v947
      %v4361 = vunpack.c.l.b16 %v948
      %v4362 = vunpack.c.l.b16 %v949
      %v4363 = vunpack.c.l.b16 %v950
      %v4364 = vunpack.c.l.b16 %v951
      %v4365 = vunpack.c.l.b16 %v952
      %v4366 = vunpack.c.l.b16 %v953
      %v4367 = vunpack.c.l.b16 %v954
      %v4368 = vunpack.c.l.b16 %v955
      %v4369 = vunpack.c.l.b16 %v956
      %v4370 = vunpack.c.l.b16 %v957
      %v4371 = vunpack.c.l.b16 %v958
      %v4372 = vunpack.c.l.b16 %v959
      %v4373 = vunpack.c.l.b16 %v960
      %v4374 = vunpack.c.l.b16 %v961
      %v4375 = vunpack.c.l.b16 %v962
      %v4376 = vunpack.c.l.b16 %v963
      %v4377 = vunpack.c.l.b16 %v964
      %v4378 = vunpack.c.l.b16 %v965
      %v4379 = vunpack.c.l.b16 %v966
      %v4380 = vunpack.c.l.b16 %v967
      %v4381 = vunpack.c.l.b16 %v968
      %v4382 = vunpack.c.l.b16 %v969
      %v4383 = vunpack.c.l.b16 %v970
      %v4384 = vunpack.c.l.b16 %v971
      %v4385 = vunpack.c.l.b16 %v972
      %v4386 = vunpack.c.l.b16 %v973
      %v4387 = vunpack.c.l.b16 %v974
      %v4388 = vunpack.c.l.b16 %v975
      %v4389 = vunpack.c.l.b16 %v976
      %v4390 = vunpack.c.l.b16 %v977
      %v4391 = vunpack.c.l.b16 %v978
      %v4392 = vunpack.c.l.b16 %v979
      %v4393 = vunpack.c.l.b16 %v980
      %v4394 = vunpack.c.l.b16 %v981
      %v4395 = vunpack.c.l.b16 %v982
      %v4396 = vunpack.c.l.b16 %v983
      %v4397 = vunpack.c.l.b16 %v984
      %v4398 = vunpack.c.l.b16 %v985
      %v4399 = vunpack.c.l.b16 %v986
      %v4400 = vunpack.c.l.b16 %v987
      %v4401 = vunpack.c.l.b16 %v988
      %v4402 = vunpack.c.l.b16 %v989
      %v4403 = vunpack.c.l.b16 %v990
      %v4404 = vunpack.c.l.b16 %v991
      %v4405 = vunpack.c.l.b16 %v992
      %v4406 = vunpack.c.l.b16 %v993
      %v4407 = vunpack.c.l.b16 %v994
      %v4408 = vunpack.c.l.b16 %v995
      %v4409 = vunpack.c.l.b16 %v996
      %v4410 = vunpack.c.l.b16 %v997
      %v4411 = vunpack.c.l.b16 %v998
      %v4412 = vunpack.c.l.b16 %v999
      %v4413 = vunpack.c.l.b16 %v1000
      %v4414 = vunpack.c.l.b16 %v1001
      %v4415 = vunpack.c.l.b16 %v1002
      %v4416 = vunpack.c.l.b16 %v1003
      %v4417 = vunpack.c.l.b16 %v1004
      %v4418 = vunpack.c.l.b16 %v1005
      %v4419 = vunpack.c.l.b16 %v1006
      %v4420 = vunpack.c.l.b16 %v1007
      %v4421 = vunpack.c.l.b16 %v1008
      %v4422 = vunpack.c.l.b16 %v1009
      %v4423 = vunpack.c.l.b16 %v1010
      %v4424 = vunpack.c.l.b16 %v1011
      %v4425 = vunpack.c.l.b16 %v1012
      %v4426 = vunpack.c.l.b16 %v1013
      %v4427 = vunpack.c.l.b16 %v1014
      %v4428 = vunpack.c.l.b16 %v1015
      %v4429 = vunpack.c.l.b16 %v1016
      %v4430 = vunpack.c.l.b16 %v1017
      %v4431 = vunpack.c.l.b16 %v1018
      %v4432 = vunpack.c.l.b16 %v1019
      %v4433 = vunpack.c.l.b16 %v1020
      %v4434 = vunpack.c.l.b16 %v1021
      %v4435 = vunpack.c.l.b16 %v1022
      %v4436 = vunpack.c.l.b16 %v1023
      %v4437 = vunpack.c.l.b16 %v1024
      %v4438 = vunpack.c.l.b16 %v1025
      %v4439 = vunpack.c.l.b16 %v1026
      %v4440 = vunpack.c.l.b16 %v1027
      %v4441 = vunpack.c.l.b16 %v1028
      %v4442 = vunpack.c.l.b16 %v1029
      %v4443 = vunpack.c.l.b16 %v1030
      %v4444 = vunpack.c.l.b16 %v1031
      %v4445 = vunpack.c.l.b16 %v1032
      %v4446 = vunpack.c.l.b16 %v1033
      %v4447 = vunpack.c.l.b16 %v1034
      %v4448 = vunpack.c.l.b16 %v1035
      %v4449 = vunpack.c.l.b16 %v1036
      %v4450 = vunpack.c.l.b16 %v1037
      %v4451 = vunpack.c.l.b16 %v1038
      %v4452 = vunpack.c.l.b16 %v1039
      %v4453 = vunpack.c.l.b16 %v1040
      %v4454 = vunpack.c.l.b16 %v1041
      %v4455 = vunpack.c.l.b16 %v1042
      %v4456 = vunpack.c.l.b16 %v1043
      %v4457 = vunpack.c.l.b16 %v1044
      %v4458 = vunpack.c.l.b16 %v1045
      %v4459 = vunpack.c.l.b16 %v1046
      %v4460 = vunpack.c.l.b16 %v1047
      %v4461 = vunpack.c.l.b16 %v1048
      %v4462 = vunpack.c.l.b16 %v1049
      %v4463 = vunpack.c.l.b16 %v1050
      %v4464 = vunpack.c.l.b16 %v1051
      %v4465 = vunpack.c.l.b16 %v1052
      %v4466 = vunpack.c.l.b16 %v1053
      %v4467 = vunpack.c.l.b16 %v1054
      %v4468 = vunpack.c.l.b16 %v1055
      %v4469 = vunpack.c.l.b16 %v1056
      %v4470 = vunpack.c.l.b16 %v1057
      %v4471 = vunpack.c.l.b16 %v1058
      %v4472 = vunpack.c.l.b16 %v1059
      %v4473 = vunpack.c.l.b16 %v1060
      %v4474 = vunpack.c.l.b16 %v1061
      %v4475 = vunpack.c.l.b16 %v1062
      %v4476 = vunpack.c.l.b16 %v1063
      %v4477 = vunpack.c.l.b16 %v1064
      %v4478 = vunpack.c.l.b16 %v1065
      %v4479 = vunpack.c.l.b16 %v1066
      %v4480 = vunpack.c.l.b16 %v1067
      %v4481 = vunpack.c.l.b16 %v1068
      %v4482 = vunpack.c.l.b16 %v1069
      %v4483 = vunpack.c.l.b16 %v1070
      %v4484 = vunpack.c.l.b16 %v1071
      %v4485 = vunpack.c.l.b16 %v1072
      %v4486 = vunpack.c.l.b16 %v1073
      %v4487 = vunpack.c.l.b16 %v1074
      %v4488 = vunpack.c.l.b16 %v1075
      %v4489 = vunpack.c.l.b16 %v1076
      %v4490 = vunpack.c.l.b16 %v1077
      %v4491 = vunpack.c.l.b16 %v1078
      %v4492 = vunpack.c.l.b16 %v1079
      %v4493 = vunpack.c.l.b16 %v1080
      %v4494 = vunpack.c.l.b16 %v1081
      %v4495 = vunpack.c.l.b16 %v1082
      %v4496 = vunpack.c.l.b16 %v1083
      %v4497 = vunpack.c.l.b16 %v1084
      %v4498 = vunpack.c.l.b16 %v1085
      %v4499 = vunpack.c.l.b16 %v1086
      %v4500 = vunpack.c.l.b16 %v1087
      %v4501 = vunpack.c.l.b16 %v1088
      %v4502 = vunpack.c.l.b16 %v1089
      %v4503 = vunpack.c.l.b16 %v1090
      %v4504 = vunpack.c.l.b16 %v1091
      %v4505 = vunpack.c.l.b16 %v1092
      %v4506 = vunpack.c.l.b16 %v1093
      %v4507 = vunpack.c.l.b16 %v1094
      %v4508 = vunpack.c.l.b16 %v1095
      %v4509 = vunpack.c.l.b16 %v1096
      %v4510 = vunpack.c.l.b16 %v1097
      %v4511 = vunpack.c.l.b16 %v1098
      %v4512 = vunpack.c.l.b16 %v1099
      %v4513 = vunpack.c.l.b16 %v1100
      %v4514 = vunpack.c.l.b16 %v1101
      %v4515 = vunpack.c.l.b16 %v1102
      %v4516 = vunpack.c.l.b16 %v1103
      %v4517 = vunpack.c.l.b16 %v1104
      %v4518 = vunpack.c.l.b16 %v1105
      %v4519 = vunpack.c.l.b16 %v1106
      %v4520 = vunpack.c.l.b16 %v1107
      %v4521 = vunpack.c.l.b16 %v1108
      %v4522 = vunpack.c.l.b16 %v1109
      %v4523 = vunpack.c.l.b16 %v1110
      %v4524 = vunpack.c.l.b16 %v1111
      %v4525 = vunpack.c.l.b16 %v1112
      %v4526 = vunpack.c.l.b16 %v1113
      %v4527 = vunpack.c.l.b16 %v1114
      %v4528 = vunpack.c.l.b16 %v1115
      %v4529 = vunpack.c.l.b16 %v1116
      %v4530 = vunpack.c.l.b16 %v1117
      %v4531 = vunpack.c.l.b16 %v1118
      %v4532 = vunpack.c.l.b16 %v1119
      %v4533 = vunpack.c.l.b16 %v1120
      %v4534 = vunpack.c.l.b16 %v1121
      %v4535 = vunpack.c.l.b16 %v1122
      %v4536 = vunpack.c.l.b16 %v1123
      %v4537 = vunpack.c.l.b16 %v1124
      %v4538 = vunpack.c.l.b16 %v1125
      %v4539 = vunpack.c.l.b16 %v1126
      %v4540 = vunpack.c.l.b16 %v1127
      %v4541 = vunpack.c.l.b16 %v1128
      %v4542 = vunpack.c.l.b16 %v1129
      %v4543 = vunpack.c.l.b16 %v1130
      %v4544 = vunpack.c.l.b16 %v1131
      %v4545 = vunpack.c.l.b16 %v1132
      %v4546 = vunpack.c.l.b16 %v1133
      %v4547 = vunpack.c.l.b16 %v1134
      %v4548 = vunpack.c.l.b16 %v1135
      %v4549 = vunpack.c.l.b16 %v1136
      %v4550 = vunpack.c.l.b16 %v1137
      %v4551 = vunpack.c.l.b16 %v1138
      %v4552 = vunpack.c.l.b16 %v1139
      %v4553 = vunpack.c.l.b16 %v1140
      %v4554 = vunpack.c.l.b16 %v1141
      %v4555 = vunpack.c.l.b16 %v1142
      %v4556 = vunpack.c.l.b16 %v1143
      %v4557 = vunpack.c.l.b16 %v1144
      %v4558 = vunpack.c.l.b16 %v1145
      %v4559 = vunpack.c.l.b16 %v1146
      %v4560 = vunpack.c.l.b16 %v1147
      %v4561 = vunpack.c.l.b16 %v1148
      %v4562 = vunpack.c.l.b16 %v1149
      %v4563 = vunpack.c.l.b16 %v1150
      %v4564 = vunpack.c.l.b16 %v1151
      %v4565 = vunpack.c.l.b16 %v1152
      %v4566 = vunpack.c.l.b16 %v1153
      %v4567 = vunpack.c.l.b16 %v1154
      %v4568 = vunpack.c.l.b16 %v1155
      %v4569 = vunpack.c.l.b16 %v1156
      %v4570 = vunpack.c.l.b16 %v1157
      %v4571 = vunpack.c.l.b16 %v1158
      %v4572 = vunpack.c.l.b16 %v1159
      %v4573 = vunpack.c.l.b16 %v1160
      %v4574 = vunpack.c.l.b16 %v1161
      %v4575 = vunpack.c.l.b16 %v1162
      %v4576 = vunpack.c.l.b16 %v1163
      %v4577 = vunpack.c.l.b16 %v1164
      %v4578 = vunpack.c.l.b16 %v1165
      %v4579 = vunpack.c.l.b16 %v1166
      %v4580 = vunpack.c.l.b16 %v1167
      %v4581 = vunpack.c.l.b16 %v1168
      %v4582 = vunpack.c.l.b16 %v1169
      %v4583 = vunpack.c.l.b16 %v1170
      %v4584 = vunpack.c.l.b16 %v1171
      %v4585 = vunpack.c.l.b16 %v1172
      %v4586 = vunpack.c.l.b16 %v1173
      %v4587 = vunpack.c.l.b16 %v1174
      %v4588 = vunpack.c.l.b16 %v1175
      %v4589 = vunpack.c.l.b16 %v1176
      %v4590 = vunpack.c.l.b16 %v1177
      %v4591 = vunpack.c.l.b16 %v1178
      %v4592 = vunpack.c.l.b16 %v1179
      %v4593 = vunpack.c.l.b16 %v1180
      %v4594 = vunpack.c.l.b16 %v1181
      %v4595 = vunpack.c.l.b16 %v1182
      %v4596 = vunpack.c.l.b16 %v1183
      %v4597 = vunpack.c.l.b16 %v1184
      %v4598 = vunpack.c.l.b16 %v1185
      %v4599 = vunpack.c.l.b16 %v1186
      %v4600 = vunpack.c.l.b16 %v1187
      %v4601 = vunpack.c.l.b16 %v1188
      %v4602 = vunpack.c.l.b16 %v1189
      %v4603 = vunpack.c.l.b16 %v1190
      %v4604 = vunpack.c.l.b16 %v1191
      %v4605 = vunpack.c.l.b16 %v1192
      %v4606 = vunpack.c.l.b16 %v1193
      %v4607 = vunpack.c.l.b16 %v1194
      %v4608 = vunpack.c.l.b16 %v1195
      %v4609 = vunpack.c.l.b16 %v1196
      %v4610 = vunpack.c.l.b16 %v1197
      %v4611 = vunpack.c.l.b16 %v1198
      %v4612 = vunpack.c.l.b16 %v1199
      %v4613 = vunpack.c.l.b16 %v1200
      %v4614 = vunpack.c.l.b16 %v1201
      %v4615 = vunpack.c.l.b16 %v1202
      %v4616 = vunpack.c.l.b16 %v1203
      %v4617 = vunpack.c.l.b16 %v1204
      %v4618 = vunpack.c.l.b16 %v1205
      %v4619 = vunpack.c.l.b16 %v1206
      %v4620 = vunpack.c.l.b16 %v1207
      %v4621 = vunpack.c.l.b16 %v1208
      %v4622 = vunpack.c.l.b16 %v1209
      %v4623 = vunpack.c.l.b16 %v1210
      %v4624 = vunpack.c.l.b16 %v1211
      %v4625 = vunpack.c.l.b16 %v1212
      %v4626 = vunpack.c.l.b16 %v1213
      %v4627 = vunpack.c.l.b16 %v1214
      %v4628 = vunpack.c.l.b16 %v1215
      %v4629 = vunpack.c.l.b16 %v1216
      %v4630 = vunpack.c.l.b16 %v1217
      %v4631 = vunpack.c.l.b16 %v1218
      %v4632 = vunpack.c.l.b16 %v1219
      %v4633 = vunpack.c.l.b16 %v1220
      %v4634 = vunpack.c.l.b16 %v1221
      %v4635 = vunpack.c.l.b16 %v1222
      %v4636 = vunpack.c.l.b16 %v1223
      %v4637 = vunpack.c.l.b16 %v1224
      %v4638 = vunpack.c.l.b16 %v1225
      %v4639 = vunpack.c.l.b16 %v1226
      %v4640 = vunpack.c.l.b16 %v1227
      %v4641 = vunpack.c.l.b16 %v1228
      %v4642 = vunpack.c.l.b16 %v1229
      %v4643 = vunpack.c.l.b16 %v1230
      %v4644 = vunpack.c.l.b16 %v1231
      %v4645 = vunpack.c.l.b16 %v1232
      %v4646 = vunpack.c.l.b16 %v1233
      %v4647 = vunpack.c.l.b16 %v1234
      %v4648 = vunpack.c.l.b16 %v1235
      %v4649 = vunpack.c.l.b16 %v1236
      %v4650 = vunpack.c.l.b16 %v1237
      %v4651 = vunpack.c.l.b16 %v1238
      %v4652 = vunpack.c.l.b16 %v1239
      %v4653 = vunpack.c.l.b16 %v1240
      %v4654 = vunpack.c.l.b16 %v1241
      %v4655 = vunpack.c.l.b16 %v1242
      %v4656 = vunpack.c.l.b16 %v1243
      %v4657 = vunpack.c.l.b16 %v1244
      %v4658 = vunpack.c.l.b16 %v1245
      %v4659 = vunpack.c.l.b16 %v1246
      %v4660 = vunpack.c.l.b16 %v1247
      %v4661 = vunpack.c.l.b16 %v1248
      %v4662 = vunpack.c.l.b16 %v1249
      %v4663 = vunpack.c.l.b16 %v1250
      %v4664 = vunpack.c.l.b16 %v1251
      %v4665 = vunpack.c.l.b16 %v1252
      %v4666 = vunpack.c.l.b16 %v1253
      %v4667 = vunpack.c.l.b16 %v1254
      %v4668 = vunpack.c.l.b16 %v1255
      %v4669 = vunpack.c.l.b16 %v1256
      %v4670 = vunpack.c.l.b16 %v1257
      %v4671 = vunpack.c.l.b16 %v1258
      %v4672 = vunpack.c.l.b16 %v1259
      %v4673 = vunpack.c.l.b16 %v1260
      %v4674 = vunpack.c.l.b16 %v1261
      %v4675 = vunpack.c.l.b16 %v1262
      %v4676 = vunpack.c.l.b16 %v1263
      %v4677 = vunpack.c.l.b16 %v1264
      %v4678 = vunpack.c.l.b16 %v1265
      %v4679 = vunpack.c.l.b16 %v1266
      %v4680 = vunpack.c.l.b16 %v1267
      %v4681 = vunpack.c.l.b16 %v1268
      %v4682 = vunpack.c.l.b16 %v1269
      %v4683 = vunpack.c.l.b16 %v1270
      %v4684 = vunpack.c.l.b16 %v1271
      %v4685 = vunpack.c.l.b16 %v1272
      %v4686 = vunpack.c.l.b16 %v1273
      %v4687 = vunpack.c.l.b16 %v1274
      %v4688 = vunpack.c.l.b16 %v1275
      %v4689 = vunpack.c.l.b16 %v1276
      %v4690 = vunpack.c.l.b16 %v1277
      %v4691 = vunpack.c.l.b16 %v1278
      %v4692 = vunpack.c.l.b16 %v1279
      %v4693 = vunpack.c.l.b16 %v1280
      %v4694 = vunpack.c.l.b16 %v1281
      %v4695 = vunpack.c.l.b16 %v1282
      %v4696 = vunpack.c.l.b16 %v1283
      %v4697 = vunpack.c.l.b16 %v1284
      %v4698 = vunpack.c.l.b16 %v1285
      %v4699 = vunpack.c.l.b16 %v1286
      %v4700 = vunpack.c.l.b16 %v1287
      %v4701 = vunpack.c.l.b16 %v1288
      %v4702 = vunpack.c.l.b16 %v1289
      %v4703 = vunpack.c.l.b16 %v1290
      %v4704 = vunpack.c.l.b16 %v1291
      %v4705 = vunpack.c.l.b16 %v1292
      %v4706 = vunpack.c.l.b16 %v1293
      %v4707 = vunpack.c.l.b16 %v1294
      %v4708 = vunpack.c.l.b16 %v1295
      %v4709 = vunpack.c.l.b16 %v1296
      %v4710 = vunpack.c.l.b16 %v1297
      %v4711 = vunpack.c.l.b16 %v1298
      %v4712 = vunpack.c.l.b16 %v1299
      %v4713 = vunpack.c.l.b16 %v1300
      %v4714 = vunpack.c.l.b16 %v1301
      %v4715 = vunpack.c.l.b16 %v1302
      %v4716 = vunpack.c.l.b16 %v1303
      %v4717 = vunpack.c.l.b16 %v1304
      %v4718 = vunpack.c.l.b16 %v1305
      %v4719 = vunpack.c.l.b16 %v1306
      %v4720 = vunpack.c.l.b16 %v1307
      %v4721 = vunpack.c.l.b16 %v1308
      %v4722 = vunpack.c.l.b16 %v1309
      %v4723 = vunpack.c.l.b16 %v1310
      %v4724 = vunpack.c.l.b16 %v1311
      %v4725 = vunpack.c.l.b16 %v1312
      %v4726 = vunpack.c.l.b16 %v1313
      %v4727 = vunpack.c.l.b16 %v1314
      %v4728 = vunpack.c.l.b16 %v1315
      %v4729 = vunpack.c.l.b16 %v1316
      %v4730 = vunpack.c.l.b16 %v1317
      %v4731 = vunpack.c.l.b16 %v1318
      %v4732 = vunpack.c.l.b16 %v1319
      %v4733 = vunpack.c.l.b16 %v1320
      %v4734 = vunpack.c.l.b16 %v1321
      %v4735 = vunpack.c.l.b16 %v1322
      %v4736 = vunpack.c.l.b16 %v1323
      %v4737 = vunpack.c.l.b16 %v1324
      %v4738 = vunpack.c.l.b16 %v1325
      %v4739 = vunpack.c.l.b16 %v1326
      %v4740 = vunpack.c.l.b16 %v1327
      %v4741 = vunpack.c.l.b16 %v1328
      %v4742 = vunpack.c.l.b16 %v1329
      %v4743 = vunpack.c.l.b16 %v1330
      %v4744 = vunpack.c.l.b16 %v1331
      %v4745 = vunpack.c.l.b16 %v1332
      %v4746 = vunpack.c.l.b16 %v1333
      %v4747 = vunpack.c.l.b16 %v1334
      %v4748 = vunpack.c.l.b16 %v1335
      %v4749 = vunpack.c.l.b16 %v1336
      %v4750 = vunpack.c.l.b16 %v1337
      %v4751 = vunpack.c.l.b16 %v1338
      %v4752 = vunpack.c.l.b16 %v1339
      %v4753 = vunpack.c.l.b16 %v1340
      %v4754 = vunpack.c.l.b16 %v1341
      %v4755 = vunpack.c.l.b16 %v1342
      %v4756 = vunpack.c.l.b16 %v1343
      %v4757 = vunpack.c.l.b16 %v1344
      %v4758 = vunpack.c.l.b16 %v1345
      %v4759 = vunpack.c.l.b16 %v1346
      %v4760 = vunpack.c.l.b16 %v1347
      %v4761 = vunpack.c.l.b16 %v1348
      %v4762 = vunpack.c.l.b16 %v1349
      %v4763 = vunpack.c.l.b16 %v1350
      %v4764 = vunpack.c.l.b16 %v1351
      %v4765 = vunpack.c.l.b16 %v1352
      %v4766 = vunpack.c.l.b16 %v1353
      %v4767 = vunpack.c.l.b16 %v1354
      %v4768 = vunpack.c.l.b16 %v1355
      %v4769 = vunpack.c.l.b16 %v1356
      %v4770 = vunpack.c.l.b16 %v1357
      %v4771 = vunpack.c.l.b16 %v1358
      %v4772 = vunpack.c.l.b16 %v1359
      %v4773 = vunpack.c.l.b16 %v1360
      %v4774 = vunpack.c.l.b16 %v1361
      %v4775 = vunpack.c.l.b16 %v1362
      %v4776 = vunpack.c.l.b16 %v1363
      %v4777 = vunpack.c.l.b16 %v1364
      %v4778 = vunpack.c.l.b16 %v1365
      %v4779 = vunpack.c.l.b16 %v1366
      %v4780 = vunpack.c.l.b16 %v1367
      %v4781 = vunpack.c.l.b16 %v1368
      %v4782 = vunpack.c.l.b16 %v1369
      %v4783 = vunpack.c.l.b16 %v1370
      %v4784 = vunpack.c.l.b16 %v1371
      %v4785 = vunpack.c.l.b16 %v1372
      %v4786 = vunpack.c.l.b16 %v1373
      %v4787 = vunpack.c.l.b16 %v1374
      %v4788 = vunpack.c.l.b16 %v1375
      %v4789 = vunpack.c.l.b16 %v1376
      %v4790 = vunpack.c.l.b16 %v1377
      %v4791 = vunpack.c.l.b16 %v1378
      %v4792 = vunpack.c.l.b16 %v1379
      %v4793 = vunpack.c.l.b16 %v1380
      %v4794 = vunpack.c.l.b16 %v1381
      %v4795 = vunpack.c.l.b16 %v1382
      %v4796 = vunpack.c.l.b16 %v1383
      %v4797 = vunpack.c.l.b16 %v1384
      %v4798 = vunpack.c.l.b16 %v1385
      %v4799 = vunpack.c.l.b16 %v1386
      %v4800 = vunpack.c.l.b16 %v1387
      %v4801 = vunpack.c.l.b16 %v1388
      %v4802 = vunpack.c.l.b16 %v1389
      %v4803 = vunpack.c.l.b16 %v1390
      %v4804 = vunpack.c.l.b16 %v1391
      %v4805 = vunpack.c.l.b16 %v1392
      %v4806 = vunpack.c.l.b16 %v1393
      %v4807 = vunpack.c.l.b16 %v1394
      %v4808 = vunpack.c.l.b16 %v1395
      %v4809 = vunpack.c.l.b16 %v1396
      %v4810 = vunpack.c.l.b16 %v1397
      %v4811 = vunpack.c.l.b16 %v1398
      %v4812 = vunpack.c.l.b16 %v1399
      %v4813 = vunpack.c.l.b16 %v1400
      %v4814 = vunpack.c.l.b16 %v1401
      %v4815 = vunpack.c.l.b16 %v1402
      %v4816 = vunpack.c.l.b16 %v1403
      %v4817 = vunpack.c.l.b16 %v1404
      %v4818 = vunpack.c.l.b16 %v1405
      %v4819 = vunpack.c.l.b16 %v1406
      %v4820 = vunpack.c.l.b16 %v1407
      %v4821 = vunpack.c.l.b16 %v1408
      %v4822 = vunpack.c.l.b16 %v1409
      %v4823 = vunpack.c.l.b16 %v1410
      %v4824 = vunpack.c.l.b16 %v1411
      %v4825 = vunpack.c.l.b16 %v1412
      %v4826 = vunpack.c.l.b16 %v1413
      %v4827 = vunpack.c.l.b16 %v1414
      %v4828 = vunpack.c.l.b16 %v1415
      %v4829 = vunpack.c.l.b16 %v1416
      %v4830 = vunpack.c.l.b16 %v1417
      %v4831 = vunpack.c.l.b16 %v1418
      %v4832 = vunpack.c.l.b16 %v1419
      %v4833 = vunpack.c.l.b16 %v1420
      %v4834 = vunpack.c.l.b16 %v1421
      %v4835 = vunpack.c.l.b16 %v1422
      %v4836 = vunpack.c.l.b16 %v1423
      %v4837 = vunpack.c.l.b16 %v1424
      %v4838 = vunpack.c.l.b16 %v1425
      %v4839 = vunpack.c.l.b16 %v1426
      %v4840 = vunpack.c.l.b16 %v1427
      %v4841 = vunpack.c.l.b16 %v1428
      %v4842 = vunpack.c.l.b16 %v1429
      %v4843 = vunpack.c.l.b16 %v1430
      %v4844 = vunpack.c.l.b16 %v1431
      %v4845 = vunpack.c.l.b16 %v1432
      %v4846 = vunpack.c.l.b16 %v1433
      %v4847 = vunpack.c.l.b16 %v1434
      %v4848 = vunpack.c.l.b16 %v1435
      %v4849 = vunpack.c.l.b16 %v1436
      %v4850 = vunpack.c.l.b16 %v1437
      %v4851 = vunpack.c.l.b16 %v1438
      %v4852 = vunpack.c.l.b16 %v1439
      %v4853 = vunpack.c.l.b16 %v1440
      %v4854 = vunpack.c.l.b16 %v1441
      %v4855 = vunpack.c.l.b16 %v1442
      %v4856 = vunpack.c.l.b16 %v1443
      %v4857 = vunpack.c.l.b16 %v1444
      %v4858 = vunpack.c.l.b16 %v1445
      %v4859 = vunpack.c.l.b16 %v1446
      %v4860 = vunpack.c.l.b16 %v1447
      %v4861 = vunpack.c.l.b16 %v1448
      %v4862 = vunpack.c.l.b16 %v1449
      %v4863 = vunpack.c.l.b16 %v1450
      %v4864 = vunpack.c.l.b16 %v1451
      %v4865 = vunpack.c.l.b16 %v1452
      %v4866 = vunpack.c.l.b16 %v1453
      %v4867 = vunpack.c.l.b16 %v1454
      %v4868 = vunpack.c.l.b16 %v1455
      %v4869 = vunpack.c.l.b16 %v1456
      %v4870 = vunpack.c.l.b16 %v1457
      %v4871 = vunpack.c.l.b16 %v1458
      %v4872 = vunpack.c.l.b16 %v1459
      %v4873 = vunpack.c.l.b16 %v1460
      %v4874 = vunpack.c.l.b16 %v1461
      %v4875 = vunpack.c.l.b16 %v1462
      %v4876 = vunpack.c.l.b16 %v1463
      %v4877 = vunpack.c.l.b16 %v1464
      %v4878 = vunpack.c.l.b16 %v1465
      %v4879 = vunpack.c.l.b16 %v1466
      %v4880 = vunpack.c.l.b16 %v1467
      %v4881 = vunpack.c.l.b16 %v1468
      %v4882 = vunpack.c.l.b16 %v1469
      %v4883 = vunpack.c.l.b16 %v1470
      %v4884 = vunpack.c.l.b16 %v1471
      %v4885 = vunpack.c.l.b16 %v1472
      %v4886 = vunpack.c.l.b16 %v1473
      %v4887 = vunpack.c.l.b16 %v1474
      %v4888 = vunpack.c.l.b16 %v1475
      %v4889 = vunpack.c.l.b16 %v1476
      %v4890 = vunpack.c.l.b16 %v1477
      %v4891 = vunpack.c.l.b16 %v1478
      %v4892 = vunpack.c.l.b16 %v1479
      %v4893 = vunpack.c.l.b16 %v1480
      %v4894 = vunpack.c.l.b16 %v1481
      %v4895 = vunpack.c.l.b16 %v1482
      %v4896 = vunpack.c.l.b16 %v1483
      %v4897 = vunpack.c.l.b16 %v1484
      %v4898 = vunpack.c.l.b16 %v1485
      %v4899 = vunpack.c.l.b16 %v1486
      %v4900 = vunpack.c.l.b16 %v1487
      %v4901 = vunpack.c.l.b16 %v1488
      %v4902 = vunpack.c.l.b16 %v1489
      %v4903 = vunpack.c.l.b16 %v1490
      %v4904 = vunpack.c.l.b16 %v1491
      %v4905 = vunpack.c.l.b16 %v1492
      %v4906 = vunpack.c.l.b16 %v1493
      %v4907 = vunpack.c.l.b16 %v1494
      %v4908 = vunpack.c.l.b16 %v1495
      %v4909 = vunpack.c.l.b16 %v1496
      %v4910 = vunpack.c.l.b16 %v1497
      %v4911 = vunpack.c.l.b16 %v1498
      %v4912 = vunpack.c.l.b16 %v1499
      %v4913 = vunpack.c.l.b16 %v1500
      %v4914 = vunpack.c.l.b16 %v1501
      %v4915 = vunpack.c.l.b16 %v1502
      %v4916 = vunpack.c.l.b16 %v1503
      %v4917 = vunpack.c.l.b16 %v1504
      %v4918 = vunpack.c.l.b16 %v1505
      %v4919 = vunpack.c.l.b16 %v1506
      %v4920 = vunpack.c.l.b16 %v1507
      %v4921 = vunpack.c.l.b16 %v1508
      %v4922 = vunpack.c.l.b16 %v1509
      %v4923 = vunpack.c.l.b16 %v1510
      %v4924 = vunpack.c.l.b16 %v1511
      %v4925 = vunpack.c.l.b16 %v1512
      %v4926 = vunpack.c.l.b16 %v1513
      %v4927 = vunpack.c.l.b16 %v1514
      %v4928 = vunpack.c.l.b16 %v1515
      %v4929 = vunpack.c.l.b16 %v1516
      %v4930 = vunpack.c.l.b16 %v1517
      %v4931 = vunpack.c.l.b16 %v1518
      %v4932 = vunpack.c.l.b16 %v1519
      %v4933 = vunpack.c.l.b16 %v1520
      %v4934 = vunpack.c.l.b16 %v1521
      %v4935 = vunpack.c.l.b16 %v1522
      %v4936 = vunpack.c.l.b16 %v1523
      %v4937 = vunpack.c.l.b16 %v1524
      %v4938 = vunpack.c.l.b16 %v1525
      %v4939 = vunpack.c.l.b16 %v1526
      %v4940 = vunpack.c.l.b16 %v1527
      %v4941 = vunpack.c.l.b16 %v1528
      %v4942 = vunpack.c.l.b16 %v1529
      %v4943 = vunpack.c.l.b16 %v1530
      %v4944 = vunpack.c.l.b16 %v1531
      %v4945 = vunpack.c.l.b16 %v1532
      %v4946 = vunpack.c.l.b16 %v1533
      %v4947 = vunpack.c.l.b16 %v1534
      %v4948 = vunpack.c.l.b16 %v1535
      %v4949 = vunpack.c.l.b16 %v1536
      %v4950 = vunpack.c.l.b16 %v1537
      %v4951 = vunpack.c.l.b16 %v1538
      %v4952 = vunpack.c.l.b16 %v1539
      %v4953 = vunpack.c.l.b16 %v1540
      %v4954 = vunpack.c.l.b16 %v1541
      %v4955 = vunpack.c.l.b16 %v1542
      %v4956 = vunpack.c.l.b16 %v1543
      %v4957 = vunpack.c.l.b16 %v1544
      %v4958 = vunpack.c.l.b16 %v1545
      %v4959 = vunpack.c.l.b16 %v1546
      %v4960 = vunpack.c.l.b16 %v1547
      %v4961 = vunpack.c.l.b16 %v1548
      %v4962 = vunpack.c.l.b16 %v1549
      %v4963 = vunpack.c.l.b16 %v1550
      %v4964 = vunpack.c.l.b16 %v1551
      %v4965 = vunpack.c.l.b16 %v1552
      %v4966 = vunpack.c.l.b16 %v1553
      %v4967 = vunpack.c.l.b16 %v1554
      %v4968 = vunpack.c.l.b16 %v1555
      %v4969 = vunpack.c.l.b16 %v1556
      %v4970 = vunpack.c.l.b16 %v1557
      %v4971 = vunpack.c.l.b16 %v1558
      %v4972 = vunpack.c.l.b16 %v1559
      %v4973 = vunpack.c.l.b16 %v1560
      %v4974 = vunpack.c.l.b16 %v1561
      %v4975 = vunpack.c.l.b16 %v1562
      %v4976 = vunpack.c.l.b16 %v1563
      %v4977 = vunpack.c.l.b16 %v1564
      %v4978 = vunpack.c.l.b16 %v1565
      %v4979 = vunpack.c.l.b16 %v1566
      %v4980 = vunpack.c.l.b16 %v1567
      %v4981 = vunpack.c.l.b16 %v1568
      %v4982 = vunpack.c.l.b16 %v1569
      %v4983 = vunpack.c.l.b16 %v1570
      %v4984 = vunpack.c.l.b16 %v1571
      %v4985 = vunpack.c.l.b16 %v1572
      %v4986 = vunpack.c.l.b16 %v1573
      %v4987 = vunpack.c.l.b16 %v1574
      %v4988 = vunpack.c.l.b16 %v1575
      %v4989 = vunpack.c.l.b16 %v1576
      %v4990 = vunpack.c.l.b16 %v1577
      %v4991 = vunpack.c.l.b16 %v1578
      %v4992 = vunpack.c.l.b16 %v1579
      %v4993 = vunpack.c.l.b16 %v1580
      %v4994 = vunpack.c.l.b16 %v1581
      %v4995 = vunpack.c.l.b16 %v1582
      %v4996 = vunpack.c.l.b16 %v1583
      %v4997 = vunpack.c.l.b16 %v1584
      %v4998 = vunpack.c.l.b16 %v1585
      %v4999 = vunpack.c.l.b16 %v1586
      %v5000 = vunpack.c.l.b16 %v1587
      %v5001 = vunpack.c.l.b16 %v1588
      %v5002 = vunpack.c.l.b16 %v1589
      %v5003 = vunpack.c.l.b16 %v1590
      %v5004 = vunpack.c.l.b16 %v1591
      %v5005 = vunpack.c.l.b16 %v1592
      %v5006 = vunpack.c.l.b16 %v1593
      %v5007 = vunpack.c.l.b16 %v1594
      %v5008 = vunpack.c.l.b16 %v1595
      %v5009 = vunpack.c.l.b16 %v1596
      %v5010 = vunpack.c.l.b16 %v1597
      %v5011 = vunpack.c.l.b16 %v1598
      %v5012 = vunpack.c.l.b16 %v1599
      %v5013 = vunpack.c.l.b16 %v1600
      %v5014 = vunpack.c.l.b16 %v1601
      %v5015 = vunpack.c.l.b16 %v1602
      %v5016 = vunpack.c.l.b16 %v1603
      %v5017 = vunpack.c.l.b16 %v1604
      %v5018 = vunpack.c.l.b16 %v1605
      %v5019 = vunpack.c.l.b16 %v1606
      %v5020 = vunpack.c.l.b16 %v1607
      %v5021 = vunpack.c.l.b16 %v1608
      %v5022 = vunpack.c.l.b16 %v1609
      %v5023 = vunpack.c.l.b16 %v1610
      %v5024 = vunpack.c.l.b16 %v1611
      %v5025 = vunpack.c.l.b16 %v1612
      %v5026 = vunpack.c.l.b16 %v1613
      %v5027 = vunpack.c.l.b16 %v1614
      %v5028 = vunpack.c.l.b16 %v1615
      %v5029 = vunpack.c.l.b16 %v1616
      %v5030 = vunpack.c.l.b16 %v1617
      %v5031 = vunpack.c.l.b16 %v1618
      %v5032 = vunpack.c.l.b16 %v1619
      %v5033 = vunpack.c.l.b16 %v1620
      %v5034 = vunpack.c.l.b16 %v1621
      %v5035 = vunpack.c.l.b16 %v1622
      %v5036 = vunpack.c.l.b16 %v1623
      %v5037 = vunpack.c.l.b16 %v1624
      %v5038 = vunpack.c.l.b16 %v1625
      %v5039 = vunpack.c.l.b16 %v1626
      %v5040 = vunpack.c.l.b16 %v1627
      %v5041 = vunpack.c.l.b16 %v1628
      %v5042 = vunpack.c.l.b16 %v1629
      %v5043 = vunpack.c.l.b16 %v1630
      %v5044 = vunpack.c.l.b16 %v1631
      %v5045 = vunpack.c.l.b16 %v1632
      %v5046 = vunpack.c.l.b16 %v1633
      %v5047 = vunpack.c.l.b16 %v1634
      %v5048 = vunpack.c.l.b16 %v1635
      %v5049 = vunpack.c.l.b16 %v1636
      %v5050 = vunpack.c.l.b16 %v1637
      %v5051 = vunpack.c.l.b16 %v1638
      %v5052 = vunpack.c.l.b16 %v1639
      %v5053 = vunpack.c.l.b16 %v1640
      %v5054 = vunpack.c.l.b16 %v1641
      %v5055 = vunpack.c.l.b16 %v1642
      %v5056 = vunpack.c.l.b16 %v1643
      %v5057 = vunpack.c.l.b16 %v1644
      %v5058 = vunpack.c.l.b16 %v1645
      %v5059 = vunpack.c.l.b16 %v1646
      %v5060 = vunpack.c.l.b16 %v1647
      %v5061 = vunpack.c.l.b16 %v1648
      %v5062 = vunpack.c.l.b16 %v1649
      %v5063 = vunpack.c.l.b16 %v1650
      %v5064 = vunpack.c.l.b16 %v1651
      %v5065 = vunpack.c.l.b16 %v1652
      %v5066 = vunpack.c.l.b16 %v1653
      %v5067 = vunpack.c.l.b16 %v1654
      %v5068 = vunpack.c.l.b16 %v1655
      %v5069 = vunpack.c.l.b16 %v1656
      %v5070 = vunpack.c.l.b16 %v1657
      %v5071 = vunpack.c.l.b16 %v1658
      %v5072 = vunpack.c.l.b16 %v1659
      %v5073 = vunpack.c.l.b16 %v1660
      %v5074 = vunpack.c.l.b16 %v1661
      %v5075 = vunpack.c.l.b16 %v1662
      %v5076 = vunpack.c.l.b16 %v1663
      %v5077 = vunpack.c.l.b16 %v1664
      %v5078 = vunpack.c.l.b16 %v1665
      %v5079 = vunpack.c.l.b16 %v1666
      %v5080 = vunpack.c.l.b16 %v1667
      %v5081 = vunpack.c.l.b16 %v1668
      %v5082 = vunpack.c.l.b16 %v1669
      %v5083 = vunpack.c.l.b16 %v1670
      %v5084 = vunpack.c.l.b16 %v1671
      %v5085 = vunpack.c.l.b16 %v1672
      %v5086 = vunpack.c.l.b16 %v1673
      %v5087 = vunpack.c.l.b16 %v1674
      %v5088 = vunpack.c.l.b16 %v1675
      %v5089 = vunpack.c.l.b16 %v1676
      %v5090 = vunpack.c.l.b16 %v1677
      %v5091 = vunpack.c.l.b16 %v1678
      %v5092 = vunpack.c.l.b16 %v1679
      %v5093 = vunpack.c.l.b16 %v1680
      %v5094 = vunpack.c.l.b16 %v1681
      %v5095 = vunpack.c.l.b16 %v1682
      %v5096 = vunpack.c.l.b16 %v1683
      %v5097 = vunpack.c.l.b16 %v1684
      %v5098 = vunpack.c.l.b16 %v1685
      %v5099 = vunpack.c.l.b16 %v1686
      %v5100 = vunpack.c.l.b16 %v1687
      %v5101 = vunpack.c.l.b16 %v1688
      %v5102 = vunpack.c.l.b16 %v1689
      %v5103 = vunpack.c.l.b16 %v1690
      %v5104 = vunpack.c.l.b16 %v1691
      %v5105 = vunpack.c.l.b16 %v1692
      %v5106 = vunpack.c.l.b16 %v1693
      %v5107 = vunpack.c.l.b16 %v1694
      %v5108 = vunpack.c.l.b16 %v1695
      %v5109 = vunpack.c.l.b16 %v1696
      %v5110 = vunpack.c.l.b16 %v1697
      %v5111 = vunpack.c.l.b16 %v1698
      %v5112 = vunpack.c.l.b16 %v1699
      %v5113 = vunpack.c.l.b16 %v1700
      %v5114 = vunpack.c.l.b16 %v1701
      %v5115 = vunpack.c.l.b16 %v1702
      %v5116 = vunpack.c.l.b16 %v1703
      %v5117 = vunpack.c.l.b16 %v1704
      %v5118 = vunpack.c.l.b16 %v1705
      %v5119 = vunpack.c.l.b16 %v1706
      %v5120 = vunpack.c.l.b16 %v1707
      %v5121 = vunpack.c.l.b16 %v1708
      %v5122 = vunpack.c.l.b16 %v1709
      %v5123 = vunpack.c.l.b16 %v1710
      %v5124 = vunpack.c.l.b16 %v1711
      %v5125 = vunpack.c.l.b16 %v1712
      %v5126 = vunpack.c.l.b16 %v1713
      %v5127 = vunpack.c.l.b16 %v1714
      %v5128 = vunpack.c.l.b16 %v1715
      %v5129 = vunpack.c.l.b16 %v1716
      %v5130 = vunpack.c.l.b16 %v1717
      %v5131 = vunpack.c.l.b16 %v1718
      %v5132 = vunpack.c.l.b16 %v1719
      %v5133 = vunpack.c.l.b16 %v1720
      %v5134 = vunpack.c.l.b16 %v1721
      %v5135 = vunpack.c.l.b16 %v1722
      %v5136 = vunpack.c.l.b16 %v1723
      %v5137 = vunpack.c.l.b16 %v1724
      %v5138 = vunpack.c.l.b16 %v1725
      %v5139 = vunpack.c.l.b16 %v1726
      %v5140 = vunpack.c.l.b16 %v1727
      %v5141 = vunpack.c.l.b16 %v1728
      %v5142 = vunpack.c.l.b16 %v1729
      %v5143 = vunpack.c.l.b16 %v1730
      %v5144 = vunpack.c.l.b16 %v1731
      %v5145 = vunpack.c.l.b16 %v1732
      %v5146 = vunpack.c.l.b16 %v1733
      %v5147 = vunpack.c.l.b16 %v1734
      %v5148 = vunpack.c.l.b16 %v1735
      %v5149 = vunpack.c.l.b16 %v1736
      %v5150 = vunpack.c.l.b16 %v1737
      %v5151 = vunpack.c.l.b16 %v1738
      %v5152 = vunpack.c.l.b16 %v1739
      %v5153 = vunpack.c.l.b16 %v1740
      %v5154 = vunpack.c.l.b16 %v1741
      %v5155 = vunpack.c.l.b16 %v1742
      %v5156 = vunpack.c.l.b16 %v1743
      %v5157 = vunpack.c.l.b16 %v1744
      %v5158 = vunpack.c.l.b16 %v1745
      %v5159 = vunpack.c.l.b16 %v1746
      %v5160 = vunpack.c.l.b16 %v1747
      %v5161 = vunpack.c.l.b16 %v1748
      %v5162 = vunpack.c.l.b16 %v1749
      %v5163 = vunpack.c.l.b16 %v1750
      %v5164 = vunpack.c.l.b16 %v1751
      %v5165 = vunpack.c.l.b16 %v1752
      %v5166 = vunpack.c.l.b16 %v1753
      %v5167 = vunpack.c.l.b16 %v1754
      %v5168 = vunpack.c.l.b16 %v1755
      %v5169 = vunpack.c.l.b16 %v1756
      %v5170 = vunpack.c.l.b16 %v1757
      %v5171 = vunpack.c.l.b16 %v1758
      %v5172 = vunpack.c.l.b16 %v1759
      %v5173 = vunpack.c.l.b16 %v1760
      %v5174 = vunpack.c.l.b16 %v1761
      %v5175 = vunpack.c.l.b16 %v1762
      %v5176 = vunpack.c.l.b16 %v1763
      %v5177 = vunpack.c.l.b16 %v1764
      %v5178 = vunpack.c.l.b16 %v1765
      %v5179 = vunpack.c.l.b16 %v1766
      %v5180 = vunpack.c.l.b16 %v1767
      %v5181 = vunpack.c.l.b16 %v1768
      %v5182 = vunpack.c.l.b16 %v1769
      %v5183 = vunpack.c.l.b16 %v1770
      %v5184 = vunpack.c.l.b16 %v1771
      %v5185 = vunpack.c.l.b16 %v1772
      %v5186 = vunpack.c.l.b16 %v1773
      %v5187 = vunpack.c.l.b16 %v1774
      %v5188 = vunpack.c.l.b16 %v1775
      %v5189 = vunpack.c.l.b16 %v1776
      %v5190 = vunpack.c.l.b16 %v1777
      %v5191 = vunpack.c.l.b16 %v1778
      %v5192 = vunpack.c.l.b16 %v1779
      %v5193 = vunpack.c.l.b16 %v1780
      %v5194 = vpack.c.b16 %v3659, %v3658
      %v5195 = vpack.c.b16 %v3661, %v3660
      %v5196 = vpack.c.b16 %v3663, %v3662
      %v5197 = vpack.c.b16 %v3665, %v3664
      %v5198 = vpack.c.b16 %v3667, %v3666
      %v5199 = vpack.c.b16 %v3669, %v3668
      %v5200 = vpack.c.b16 %v3671, %v3670
      %v5201 = vpack.c.b16 %v3673, %v3672
      %v5202 = vpack.c.b16 %v3675, %v3674
      %v5203 = vpack.c.b16 %v3677, %v3676
      %v5204 = vpack.c.b16 %v3679, %v3678
      %v5205 = vpack.c.b16 %v3681, %v3680
      %v5206 = vpack.c.b16 %v3683, %v3682
      %v5207 = vpack.c.b16 %v3685, %v3684
      %v5208 = vpack.c.b16 %v3687, %v3686
      %v5209 = vpack.c.b16 %v3689, %v3688
      %v5210 = vpack.c.b16 %v3691, %v3690
      %v5211 = vpack.c.b16 %v3693, %v3692
      %v5212 = vpack.c.b16 %v3695, %v3694
      %v5213 = vpack.c.b16 %v3697, %v3696
      %v5214 = vpack.c.b16 %v3699, %v3698
      %v5215 = vpack.c.b16 %v3701, %v3700
      %v5216 = vpack.c.b16 %v3703, %v3702
      %v5217 = vpack.c.b16 %v3705, %v3704
      %v5218 = vpack.c.b16 %v3707, %v3706
      %v5219 = vpack.c.b16 %v3709, %v3708
      %v5220 = vpack.c.b16 %v3711, %v3710
      %v5221 = vpack.c.b16 %v3713, %v3712
      %v5222 = vpack.c.b16 %v3715, %v3714
      %v5223 = vpack.c.b16 %v3717, %v3716
      %v5224 = vpack.c.b16 %v3719, %v3718
      %v5225 = vpack.c.b16 %v3721, %v3720
      %v5226 = vpack.c.b16 %v3723, %v3722
      %v5227 = vpack.c.b16 %v3725, %v3724
      %v5228 = vpack.c.b16 %v3727, %v3726
      %v5229 = vpack.c.b16 %v3729, %v3728
      %v5230 = vpack.c.b16 %v3731, %v3730
      %v5231 = vpack.c.b16 %v3733, %v3732
      %v5232 = vpack.c.b16 %v3735, %v3734
      %v5233 = vpack.c.b16 %v3737, %v3736
      %v5234 = vpack.c.b16 %v3739, %v3738
      %v5235 = vpack.c.b16 %v3741, %v3740
      %v5236 = vpack.c.b16 %v3743, %v3742
      %v5237 = vpack.c.b16 %v3745, %v3744
      %v5238 = vpack.c.b16 %v3747, %v3746
      %v5239 = vpack.c.b16 %v3749, %v3748
      %v5240 = vpack.c.b16 %v3751, %v3750
      %v5241 = vpack.c.b16 %v3753, %v3752
      %v5242 = vpack.c.b16 %v3755, %v3754
      %v5243 = vpack.c.b16 %v3757, %v3756
      %v5244 = vpack.c.b16 %v3759, %v3758
      %v5245 = vpack.c.b16 %v3761, %v3760
      %v5246 = vpack.c.b16 %v3763, %v3762
      %v5247 = vpack.c.b16 %v3765, %v3764
      %v5248 = vpack.c.b16 %v3767, %v3766
      %v5249 = vpack.c.b16 %v3769, %v3768
      %v5250 = vpack.c.b16 %v3771, %v3770
      %v5251 = vpack.c.b16 %v3773, %v3772
      %v5252 = vpack.c.b16 %v3775, %v3774
      %v5253 = vpack.c.b16 %v3777, %v3776
      %v5254 = vpack.c.b16 %v3779, %v3778
      %v5255 = vpack.c.b16 %v3781, %v3780
      %v5256 = vpack.c.b16 %v3783, %v3782
      %v5257 = vpack.c.b16 %v3785, %v3784
      %v5258 = vpack.c.b16 %v3787, %v3786
      %v5259 = vpack.c.b16 %v3789, %v3788
      %v5260 = vpack.c.b16 %v3791, %v3790
      %v5261 = vpack.c.b16 %v3793, %v3792
      %v5262 = vpack.c.b16 %v3795, %v3794
      %v5263 = vpack.c.b16 %v3797, %v3796
      %v5264 = vpack.c.b16 %v3799, %v3798
      %v5265 = vpack.c.b16 %v3801, %v3800
      %v5266 = vpack.c.b16 %v3803, %v3802
      %v5267 = vpack.c.b16 %v3805, %v3804
      %v5268 = vpack.c.b16 %v3807, %v3806
      %v5269 = vpack.c.b16 %v3809, %v3808
      %v5270 = vpack.c.b16 %v3811, %v3810
      %v5271 = vpack.c.b16 %v3813, %v3812
      %v5272 = vpack.c.b16 %v3815, %v3814
      %v5273 = vpack.c.b16 %v3817, %v3816
      %v5274 = vpack.c.b16 %v3819, %v3818
      %v5275 = vpack.c.b16 %v3821, %v3820
      %v5276 = vpack.c.b16 %v3823, %v3822
      %v5277 = vpack.c.b16 %v3825, %v3824
      %v5278 = vpack.c.b16 %v3827, %v3826
      %v5279 = vpack.c.b16 %v3829, %v3828
      %v5280 = vpack.c.b16 %v3831, %v3830
      %v5281 = vpack.c.b16 %v3833, %v3832
      %v5282 = vpack.c.b16 %v3835, %v3834
      %v5283 = vpack.c.b16 %v3837, %v3836
      %v5284 = vpack.c.b16 %v3839, %v3838
      %v5285 = vpack.c.b16 %v3841, %v3840
      %v5286 = vpack.c.b16 %v3843, %v3842
      %v5287 = vpack.c.b16 %v3845, %v3844
      %v5288 = vpack.c.b16 %v3847, %v3846
      %v5289 = vpack.c.b16 %v3849, %v3848
      %v5290 = vpack.c.b16 %v3851, %v3850
      %v5291 = vpack.c.b16 %v3853, %v3852
      %v5292 = vpack.c.b16 %v3855, %v3854
      %v5293 = vpack.c.b16 %v3857, %v3856
      %v5294 = vpack.c.b16 %v3859, %v3858
      %v5295 = vpack.c.b16 %v3861, %v3860
      %v5296 = vpack.c.b16 %v3863, %v3862
      %v5297 = vpack.c.b16 %v3865, %v3864
      %v5298 = vpack.c.b16 %v3867, %v3866
      %v5299 = vpack.c.b16 %v3869, %v3868
      %v5300 = vpack.c.b16 %v3871, %v3870
      %v5301 = vpack.c.b16 %v3873, %v3872
      %v5302 = vpack.c.b16 %v3875, %v3874
      %v5303 = vpack.c.b16 %v3877, %v3876
      %v5304 = vpack.c.b16 %v3879, %v3878
      %v5305 = vpack.c.b16 %v3881, %v3880
      %v5306 = vpack.c.b16 %v3883, %v3882
      %v5307 = vpack.c.b16 %v3885, %v3884
      %v5308 = vpack.c.b16 %v3887, %v3886
      %v5309 = vpack.c.b16 %v3889, %v3888
      %v5310 = vpack.c.b16 %v3891, %v3890
      %v5311 = vpack.c.b16 %v3893, %v3892
      %v5312 = vpack.c.b16 %v3895, %v3894
      %v5313 = vpack.c.b16 %v3897, %v3896
      %v5314 = vpack.c.b16 %v3899, %v3898
      %v5315 = vpack.c.b16 %v3901, %v3900
      %v5316 = vpack.c.b16 %v3903, %v3902
      %v5317 = vpack.c.b16 %v3905, %v3904
      %v5318 = vpack.c.b16 %v3907, %v3906
      %v5319 = vpack.c.b16 %v3909, %v3908
      %v5320 = vpack.c.b16 %v3911, %v3910
      %v5321 = vpack.c.b16 %v3913, %v3912
      %v5322 = vpack.c.b16 %v3915, %v3914
      %v5323 = vpack.c.b16 %v3917, %v3916
      %v5324 = vpack.c.b16 %v3919, %v3918
      %v5325 = vpack.c.b16 %v3921, %v3920
      %v5326 = vpack.c.b16 %v3923, %v3922
      %v5327 = vpack.c.b16 %v3925, %v3924
      %v5328 = vpack.c.b16 %v3927, %v3926
      %v5329 = vpack.c.b16 %v3929, %v3928
      %v5330 = vpack.c.b16 %v3931, %v3930
      %v5331 = vpack.c.b16 %v3933, %v3932
      %v5332 = vpack.c.b16 %v3935, %v3934
      %v5333 = vpack.c.b16 %v3937, %v3936
      %v5334 = vpack.c.b16 %v3939, %v3938
      %v5335 = vpack.c.b16 %v3941, %v3940
      %v5336 = vpack.c.b16 %v3943, %v3942
      %v5337 = vpack.c.b16 %v3945, %v3944
      %v5338 = vpack.c.b16 %v3947, %v3946
      %v5339 = vpack.c.b16 %v3949, %v3948
      %v5340 = vpack.c.b16 %v3951, %v3950
      %v5341 = vpack.c.b16 %v3953, %v3952
      %v5342 = vpack.c.b16 %v3955, %v3954
      %v5343 = vpack.c.b16 %v3957, %v3956
      %v5344 = vpack.c.b16 %v3959, %v3958
      %v5345 = vpack.c.b16 %v3961, %v3960
      %v5346 = vpack.c.b16 %v3963, %v3962
      %v5347 = vpack.c.b16 %v3965, %v3964
      %v5348 = vpack.c.b16 %v3967, %v3966
      %v5349 = vpack.c.b16 %v3969, %v3968
      %v5350 = vpack.c.b16 %v3971, %v3970
      %v5351 = vpack.c.b16 %v3973, %v3972
      %v5352 = vpack.c.b16 %v3975, %v3974
      %v5353 = vpack.c.b16 %v3977, %v3976
      %v5354 = vpack.c.b16 %v3979, %v3978
      %v5355 = vpack.c.b16 %v3981, %v3980
      %v5356 = vpack.c.b16 %v3983, %v3982
      %v5357 = vpack.c.b16 %v3985, %v3984
      %v5358 = vpack.c.b16 %v3987, %v3986
      %v5359 = vpack.c.b16 %v3989, %v3988
      %v5360 = vpack.c.b16 %v3991, %v3990
      %v5361 = vpack.c.b16 %v3993, %v3992
      %v5362 = vpack.c.b16 %v3995, %v3994
      %v5363 = vpack.c.b16 %v3997, %v3996
      %v5364 = vpack.c.b16 %v3999, %v3998
      %v5365 = vpack.c.b16 %v4001, %v4000
      %v5366 = vpack.c.b16 %v4003, %v4002
      %v5367 = vpack.c.b16 %v4005, %v4004
      %v5368 = vpack.c.b16 %v4007, %v4006
      %v5369 = vpack.c.b16 %v4009, %v4008
      %v5370 = vpack.c.b16 %v4011, %v4010
      %v5371 = vpack.c.b16 %v4013, %v4012
      %v5372 = vpack.c.b16 %v4015, %v4014
      %v5373 = vpack.c.b16 %v4017, %v4016
      %v5374 = vpack.c.b16 %v4019, %v4018
      %v5375 = vpack.c.b16 %v4021, %v4020
      %v5376 = vpack.c.b16 %v4023, %v4022
      %v5377 = vpack.c.b16 %v4025, %v4024
      %v5378 = vpack.c.b16 %v4027, %v4026
      %v5379 = vpack.c.b16 %v4029, %v4028
      %v5380 = vpack.c.b16 %v4031, %v4030
      %v5381 = vpack.c.b16 %v4033, %v4032
      %v5382 = vpack.c.b16 %v4035, %v4034
      %v5383 = vpack.c.b16 %v4037, %v4036
      %v5384 = vpack.c.b16 %v4039, %v4038
      %v5385 = vpack.c.b16 %v4041, %v4040
      %v5386 = vpack.c.b16 %v4043, %v4042
      %v5387 = vpack.c.b16 %v4045, %v4044
      %v5388 = vpack.c.b16 %v4047, %v4046
      %v5389 = vpack.c.b16 %v4049, %v4048
      %v5390 = vpack.c.b16 %v4051, %v4050
      %v5391 = vpack.c.b16 %v4053, %v4052
      %v5392 = vpack.c.b16 %v4055, %v4054
      %v5393 = vpack.c.b16 %v4057, %v4056
      %v5394 = vpack.c.b16 %v4059, %v4058
      %v5395 = vpack.c.b16 %v4061, %v4060
      %v5396 = vpack.c.b16 %v4063, %v4062
      %v5397 = vpack.c.b16 %v4065, %v4064
      %v5398 = vpack.c.b16 %v4067, %v4066
      %v5399 = vpack.c.b16 %v4069, %v4068
      %v5400 = vpack.c.b16 %v4071, %v4070
      %v5401 = vpack.c.b16 %v4073, %v4072
      %v5402 = vpack.c.b16 %v4075, %v4074
      %v5403 = vpack.c.b16 %v4077, %v4076
      %v5404 = vpack.c.b16 %v4079, %v4078
      %v5405 = vpack.c.b16 %v4081, %v4080
      %v5406 = vpack.c.b16 %v4083, %v4082
      %v5407 = vpack.c.b16 %v4085, %v4084
      %v5408 = vpack.c.b16 %v4087, %v4086
      %v5409 = vpack.c.b16 %v4089, %v4088
      %v5410 = vpack.c.b16 %v4091, %v4090
      %v5411 = vpack.c.b16 %v4093, %v4092
      %v5412 = vpack.c.b16 %v4095, %v4094
      %v5413 = vpack.c.b16 %v4097, %v4096
      %v5414 = vpack.c.b16 %v4099, %v4098
      %v5415 = vpack.c.b16 %v4101, %v4100
      %v5416 = vpack.c.b16 %v4103, %v4102
      %v5417 = vpack.c.b16 %v4105, %v4104
      %v5418 = vpack.c.b16 %v4107, %v4106
      %v5419 = vpack.c.b16 %v4109, %v4108
      %v5420 = vpack.c.b16 %v4111, %v4110
      %v5421 = vpack.c.b16 %v4113, %v4112
      %v5422 = vpack.c.b16 %v4115, %v4114
      %v5423 = vpack.c.b16 %v4117, %v4116
      %v5424 = vpack.c.b16 %v4119, %v4118
      %v5425 = vpack.c.b16 %v4121, %v4120
      %v5426 = vpack.c.b16 %v4123, %v4122
      %v5427 = vpack.c.b16 %v4125, %v4124
      %v5428 = vpack.c.b16 %v4127, %v4126
      %v5429 = vpack.c.b16 %v4129, %v4128
      %v5430 = vpack.c.b16 %v4131, %v4130
      %v5431 = vpack.c.b16 %v4133, %v4132
      %v5432 = vpack.c.b16 %v4135, %v4134
      %v5433 = vpack.c.b16 %v4137, %v4136
      %v5434 = vpack.c.b16 %v4139, %v4138
      %v5435 = vpack.c.b16 %v4141, %v4140
      %v5436 = vpack.c.b16 %v4143, %v4142
      %v5437 = vpack.c.b16 %v4145, %v4144
      %v5438 = vpack.c.b16 %v4147, %v4146
      %v5439 = vpack.c.b16 %v4149, %v4148
      %v5440 = vpack.c.b16 %v4151, %v4150
      %v5441 = vpack.c.b16 %v4153, %v4152
      %v5442 = vpack.c.b16 %v4155, %v4154
      %v5443 = vpack.c.b16 %v4157, %v4156
      %v5444 = vpack.c.b16 %v4159, %v4158
      %v5445 = vpack.c.b16 %v4161, %v4160
      %v5446 = vpack.c.b16 %v4163, %v4162
      %v5447 = vpack.c.b16 %v4165, %v4164
      %v5448 = vpack.c.b16 %v4167, %v4166
      %v5449 = vpack.c.b16 %v4169, %v4168
      %v5450 = vpack.c.b16 %v4171, %v4170
      %v5451 = vpack.c.b16 %v4173, %v4172
      %v5452 = vpack.c.b16 %v4175, %v4174
      %v5453 = vpack.c.b16 %v4177, %v4176
      %v5454 = vpack.c.b16 %v4179, %v4178
      %v5455 = vpack.c.b16 %v4181, %v4180
      %v5456 = vpack.c.b16 %v4183, %v4182
      %v5457 = vpack.c.b16 %v4185, %v4184
      %v5458 = vpack.c.b16 %v4187, %v4186
      %v5459 = vpack.c.b16 %v4189, %v4188
      %v5460 = vpack.c.b16 %v4191, %v4190
      %v5461 = vpack.c.b16 %v4193, %v4192
      %v5462 = vpack.c.b16 %v4195, %v4194
      %v5463 = vpack.c.b16 %v4197, %v4196
      %v5464 = vpack.c.b16 %v4199, %v4198
      %v5465 = vpack.c.b16 %v4201, %v4200
      %v5466 = vpack.c.b16 %v4203, %v4202
      %v5467 = vpack.c.b16 %v4205, %v4204
      %v5468 = vpack.c.b16 %v4207, %v4206
      %v5469 = vpack.c.b16 %v4209, %v4208
      %v5470 = vpack.c.b16 %v4211, %v4210
      %v5471 = vpack.c.b16 %v4213, %v4212
      %v5472 = vpack.c.b16 %v4215, %v4214
      %v5473 = vpack.c.b16 %v4217, %v4216
      %v5474 = vpack.c.b16 %v4219, %v4218
      %v5475 = vpack.c.b16 %v4221, %v4220
      %v5476 = vpack.c.b16 %v4223, %v4222
      %v5477 = vpack.c.b16 %v4225, %v4224
      %v5478 = vpack.c.b16 %v4227, %v4226
      %v5479 = vpack.c.b16 %v4229, %v4228
      %v5480 = vpack.c.b16 %v4231, %v4230
      %v5481 = vpack.c.b16 %v4233, %v4232
      %v5482 = vpack.c.b16 %v4235, %v4234
      %v5483 = vpack.c.b16 %v4237, %v4236
      %v5484 = vpack.c.b16 %v4239, %v4238
      %v5485 = vpack.c.b16 %v4241, %v4240
      %v5486 = vpack.c.b16 %v4243, %v4242
      %v5487 = vpack.c.b16 %v4245, %v4244
      %v5488 = vpack.c.b16 %v4247, %v4246
      %v5489 = vpack.c.b16 %v4249, %v4248
      %v5490 = vpack.c.b16 %v4251, %v4250
      %v5491 = vpack.c.b16 %v4253, %v4252
      %v5492 = vpack.c.b16 %v4255, %v4254
      %v5493 = vpack.c.b16 %v4257, %v4256
      %v5494 = vpack.c.b16 %v4259, %v4258
      %v5495 = vpack.c.b16 %v4261, %v4260
      %v5496 = vpack.c.b16 %v4263, %v4262
      %v5497 = vpack.c.b16 %v4265, %v4264
      %v5498 = vpack.c.b16 %v4267, %v4266
      %v5499 = vpack.c.b16 %v4269, %v4268
      %v5500 = vpack.c.b16 %v4271, %v4270
      %v5501 = vpack.c.b16 %v4273, %v4272
      %v5502 = vpack.c.b16 %v4275, %v4274
      %v5503 = vpack.c.b16 %v4277, %v4276
      %v5504 = vpack.c.b16 %v4279, %v4278
      %v5505 = vpack.c.b16 %v4281, %v4280
      %v5506 = vpack.c.b16 %v4283, %v4282
      %v5507 = vpack.c.b16 %v4285, %v4284
      %v5508 = vpack.c.b16 %v4287, %v4286
      %v5509 = vpack.c.b16 %v4289, %v4288
      %v5510 = vpack.c.b16 %v4291, %v4290
      %v5511 = vpack.c.b16 %v4293, %v4292
      %v5512 = vpack.c.b16 %v4295, %v4294
      %v5513 = vpack.c.b16 %v4297, %v4296
      %v5514 = vpack.c.b16 %v4299, %v4298
      %v5515 = vpack.c.b16 %v4301, %v4300
      %v5516 = vpack.c.b16 %v4303, %v4302
      %v5517 = vpack.c.b16 %v4305, %v4304
      %v5518 = vpack.c.b16 %v4307, %v4306
      %v5519 = vpack.c.b16 %v4309, %v4308
      %v5520 = vpack.c.b16 %v4311, %v4310
      %v5521 = vpack.c.b16 %v4313, %v4312
      %v5522 = vpack.c.b16 %v4315, %v4314
      %v5523 = vpack.c.b16 %v4317, %v4316
      %v5524 = vpack.c.b16 %v4319, %v4318
      %v5525 = vpack.c.b16 %v4321, %v4320
      %v5526 = vpack.c.b16 %v4323, %v4322
      %v5527 = vpack.c.b16 %v4325, %v4324
      %v5528 = vpack.c.b16 %v4327, %v4326
      %v5529 = vpack.c.b16 %v4329, %v4328
      %v5530 = vpack.c.b16 %v4331, %v4330
      %v5531 = vpack.c.b16 %v4333, %v4332
      %v5532 = vpack.c.b16 %v4335, %v4334
      %v5533 = vpack.c.b16 %v4337, %v4336
      %v5534 = vpack.c.b16 %v4339, %v4338
      %v5535 = vpack.c.b16 %v4341, %v4340
      %v5536 = vpack.c.b16 %v4343, %v4342
      %v5537 = vpack.c.b16 %v4345, %v4344
      %v5538 = vpack.c.b16 %v4347, %v4346
      %v5539 = vpack.c.b16 %v4349, %v4348
      %v5540 = vpack.c.b16 %v4351, %v4350
      %v5541 = vpack.c.b16 %v4353, %v4352
      %v5542 = vpack.c.b16 %v4355, %v4354
      %v5543 = vpack.c.b16 %v4357, %v4356
      %v5544 = vpack.c.b16 %v4359, %v4358
      %v5545 = vpack.c.b16 %v4361, %v4360
      %v5546 = vpack.c.b16 %v4363, %v4362
      %v5547 = vpack.c.b16 %v4365, %v4364
      %v5548 = vpack.c.b16 %v4367, %v4366
      %v5549 = vpack.c.b16 %v4369, %v4368
      %v5550 = vpack.c.b16 %v4371, %v4370
      %v5551 = vpack.c.b16 %v4373, %v4372
      %v5552 = vpack.c.b16 %v4375, %v4374
      %v5553 = vpack.c.b16 %v4377, %v4376
      %v5554 = vpack.c.b16 %v4379, %v4378
      %v5555 = vpack.c.b16 %v4381, %v4380
      %v5556 = vpack.c.b16 %v4383, %v4382
      %v5557 = vpack.c.b16 %v4385, %v4384
      %v5558 = vpack.c.b16 %v4387, %v4386
      %v5559 = vpack.c.b16 %v4389, %v4388
      %v5560 = vpack.c.b16 %v4391, %v4390
      %v5561 = vpack.c.b16 %v4393, %v4392
      %v5562 = vpack.c.b16 %v4395, %v4394
      %v5563 = vpack.c.b16 %v4397, %v4396
      %v5564 = vpack.c.b16 %v4399, %v4398
      %v5565 = vpack.c.b16 %v4401, %v4400
      %v5566 = vpack.c.b16 %v4403, %v4402
      %v5567 = vpack.c.b16 %v4405, %v4404
      %v5568 = vpack.c.b16 %v4407, %v4406
      %v5569 = vpack.c.b16 %v4409, %v4408
      %v5570 = vpack.c.b16 %v4411, %v4410
      %v5571 = vpack.c.b16 %v4413, %v4412
      %v5572 = vpack.c.b16 %v4415, %v4414
      %v5573 = vpack.c.b16 %v4417, %v4416
      %v5574 = vpack.c.b16 %v4419, %v4418
      %v5575 = vpack.c.b16 %v4421, %v4420
      %v5576 = vpack.c.b16 %v4423, %v4422
      %v5577 = vpack.c.b16 %v4425, %v4424
      %v5578 = vpack.c.b16 %v4427, %v4426
      %v5579 = vpack.c.b16 %v4429, %v4428
      %v5580 = vpack.c.b16 %v4431, %v4430
      %v5581 = vpack.c.b16 %v4433, %v4432
      %v5582 = vpack.c.b16 %v4435, %v4434
      %v5583 = vpack.c.b16 %v4437, %v4436
      %v5584 = vpack.c.b16 %v4439, %v4438
      %v5585 = vpack.c.b16 %v4441, %v4440
      %v5586 = vpack.c.b16 %v4443, %v4442
      %v5587 = vpack.c.b16 %v4445, %v4444
      %v5588 = vpack.c.b16 %v4447, %v4446
      %v5589 = vpack.c.b16 %v4449, %v4448
      %v5590 = vpack.c.b16 %v4451, %v4450
      %v5591 = vpack.c.b16 %v4453, %v4452
      %v5592 = vpack.c.b16 %v4455, %v4454
      %v5593 = vpack.c.b16 %v4457, %v4456
      %v5594 = vpack.c.b16 %v4459, %v4458
      %v5595 = vpack.c.b16 %v4461, %v4460
      %v5596 = vpack.c.b16 %v4463, %v4462
      %v5597 = vpack.c.b16 %v4465, %v4464
      %v5598 = vpack.c.b16 %v4467, %v4466
      %v5599 = vpack.c.b16 %v4469, %v4468
      %v5600 = vpack.c.b16 %v4471, %v4470
      %v5601 = vpack.c.b16 %v4473, %v4472
      %v5602 = vpack.c.b16 %v4475, %v4474
      %v5603 = vpack.c.b16 %v4477, %v4476
      %v5604 = vpack.c.b16 %v4479, %v4478
      %v5605 = vpack.c.b16 %v4481, %v4480
      %v5606 = vpack.c.b16 %v4483, %v4482
      %v5607 = vpack.c.b16 %v4485, %v4484
      %v5608 = vpack.c.b16 %v4487, %v4486
      %v5609 = vpack.c.b16 %v4489, %v4488
      %v5610 = vpack.c.b16 %v4491, %v4490
      %v5611 = vpack.c.b16 %v4493, %v4492
      %v5612 = vpack.c.b16 %v4495, %v4494
      %v5613 = vpack.c.b16 %v4497, %v4496
      %v5614 = vpack.c.b16 %v4499, %v4498
      %v5615 = vpack.c.b16 %v4501, %v4500
      %v5616 = vpack.c.b16 %v4503, %v4502
      %v5617 = vpack.c.b16 %v4505, %v4504
      %v5618 = vpack.c.b16 %v4507, %v4506
      %v5619 = vpack.c.b16 %v4509, %v4508
      %v5620 = vpack.c.b16 %v4511, %v4510
      %v5621 = vpack.c.b16 %v4513, %v4512
      %v5622 = vpack.c.b16 %v4515, %v4514
      %v5623 = vpack.c.b16 %v4517, %v4516
      %v5624 = vpack.c.b16 %v4519, %v4518
      %v5625 = vpack.c.b16 %v4521, %v4520
      %v5626 = vpack.c.b16 %v4523, %v4522
      %v5627 = vpack.c.b16 %v4525, %v4524
      %v5628 = vpack.c.b16 %v4527, %v4526
      %v5629 = vpack.c.b16 %v4529, %v4528
      %v5630 = vpack.c.b16 %v4531, %v4530
      %v5631 = vpack.c.b16 %v4533, %v4532
      %v5632 = vpack.c.b16 %v4535, %v4534
      %v5633 = vpack.c.b16 %v4537, %v4536
      %v5634 = vpack.c.b16 %v4539, %v4538
      %v5635 = vpack.c.b16 %v4541, %v4540
      %v5636 = vpack.c.b16 %v4543, %v4542
      %v5637 = vpack.c.b16 %v4545, %v4544
      %v5638 = vpack.c.b16 %v4547, %v4546
      %v5639 = vpack.c.b16 %v4549, %v4548
      %v5640 = vpack.c.b16 %v4551, %v4550
      %v5641 = vpack.c.b16 %v4553, %v4552
      %v5642 = vpack.c.b16 %v4555, %v4554
      %v5643 = vpack.c.b16 %v4557, %v4556
      %v5644 = vpack.c.b16 %v4559, %v4558
      %v5645 = vpack.c.b16 %v4561, %v4560
      %v5646 = vpack.c.b16 %v4563, %v4562
      %v5647 = vpack.c.b16 %v4565, %v4564
      %v5648 = vpack.c.b16 %v4567, %v4566
      %v5649 = vpack.c.b16 %v4569, %v4568
      %v5650 = vpack.c.b16 %v4571, %v4570
      %v5651 = vpack.c.b16 %v4573, %v4572
      %v5652 = vpack.c.b16 %v4575, %v4574
      %v5653 = vpack.c.b16 %v4577, %v4576
      %v5654 = vpack.c.b16 %v4579, %v4578
      %v5655 = vpack.c.b16 %v4581, %v4580
      %v5656 = vpack.c.b16 %v4583, %v4582
      %v5657 = vpack.c.b16 %v4585, %v4584
      %v5658 = vpack.c.b16 %v4587, %v4586
      %v5659 = vpack.c.b16 %v4589, %v4588
      %v5660 = vpack.c.b16 %v4591, %v4590
      %v5661 = vpack.c.b16 %v4593, %v4592
      %v5662 = vpack.c.b16 %v4595, %v4594
      %v5663 = vpack.c.b16 %v4597, %v4596
      %v5664 = vpack.c.b16 %v4599, %v4598
      %v5665 = vpack.c.b16 %v4601, %v4600
      %v5666 = vpack.c.b16 %v4603, %v4602
      %v5667 = vpack.c.b16 %v4605, %v4604
      %v5668 = vpack.c.b16 %v4607, %v4606
      %v5669 = vpack.c.b16 %v4609, %v4608
      %v5670 = vpack.c.b16 %v4611, %v4610
      %v5671 = vpack.c.b16 %v4613, %v4612
      %v5672 = vpack.c.b16 %v4615, %v4614
      %v5673 = vpack.c.b16 %v4617, %v4616
      %v5674 = vpack.c.b16 %v4619, %v4618
      %v5675 = vpack.c.b16 %v4621, %v4620
      %v5676 = vpack.c.b16 %v4623, %v4622
      %v5677 = vpack.c.b16 %v4625, %v4624
      %v5678 = vpack.c.b16 %v4627, %v4626
      %v5679 = vpack.c.b16 %v4629, %v4628
      %v5680 = vpack.c.b16 %v4631, %v4630
      %v5681 = vpack.c.b16 %v4633, %v4632
      %v5682 = vpack.c.b16 %v4635, %v4634
      %v5683 = vpack.c.b16 %v4637, %v4636
      %v5684 = vpack.c.b16 %v4639, %v4638
      %v5685 = vpack.c.b16 %v4641, %v4640
      %v5686 = vpack.c.b16 %v4643, %v4642
      %v5687 = vpack.c.b16 %v4645, %v4644
      %v5688 = vpack.c.b16 %v4647, %v4646
      %v5689 = vpack.c.b16 %v4649, %v4648
      %v5690 = vpack.c.b16 %v4651, %v4650
      %v5691 = vpack.c.b16 %v4653, %v4652
      %v5692 = vpack.c.b16 %v4655, %v4654
      %v5693 = vpack.c.b16 %v4657, %v4656
      %v5694 = vpack.c.b16 %v4659, %v4658
      %v5695 = vpack.c.b16 %v4661, %v4660
      %v5696 = vpack.c.b16 %v4663, %v4662
      %v5697 = vpack.c.b16 %v4665, %v4664
      %v5698 = vpack.c.b16 %v4667, %v4666
      %v5699 = vpack.c.b16 %v4669, %v4668
      %v5700 = vpack.c.b16 %v4671, %v4670
      %v5701 = vpack.c.b16 %v4673, %v4672
      %v5702 = vpack.c.b16 %v4675, %v4674
      %v5703 = vpack.c.b16 %v4677, %v4676
      %v5704 = vpack.c.b16 %v4679, %v4678
      %v5705 = vpack.c.b16 %v4681, %v4680
      %v5706 = vpack.c.b16 %v4683, %v4682
      %v5707 = vpack.c.b16 %v4685, %v4684
      %v5708 = vpack.c.b16 %v4687, %v4686
      %v5709 = vpack.c.b16 %v4689, %v4688
      %v5710 = vpack.c.b16 %v4691, %v4690
      %v5711 = vpack.c.b16 %v4693, %v4692
      %v5712 = vpack.c.b16 %v4695, %v4694
      %v5713 = vpack.c.b16 %v4697, %v4696
      %v5714 = vpack.c.b16 %v4699, %v4698
      %v5715 = vpack.c.b16 %v4701, %v4700
      %v5716 = vpack.c.b16 %v4703, %v4702
      %v5717 = vpack.c.b16 %v4705, %v4704
      %v5718 = vpack.c.b16 %v4707, %v4706
      %v5719 = vpack.c.b16 %v4709, %v4708
      %v5720 = vpack.c.b16 %v4711, %v4710
      %v5721 = vpack.c.b16 %v4713, %v4712
      %v5722 = vpack.c.b16 %v4715, %v4714
      %v5723 = vpack.c.b16 %v4717, %v4716
      %v5724 = vpack.c.b16 %v4719, %v4718
      %v5725 = vpack.c.b16 %v4721, %v4720
      %v5726 = vpack.c.b16 %v4723, %v4722
      %v5727 = vpack.c.b16 %v4725, %v4724
      %v5728 = vpack.c.b16 %v4727, %v4726
      %v5729 = vpack.c.b16 %v4729, %v4728
      %v5730 = vpack.c.b16 %v4731, %v4730
      %v5731 = vpack.c.b16 %v4733, %v4732
      %v5732 = vpack.c.b16 %v4735, %v4734
      %v5733 = vpack.c.b16 %v4737, %v4736
      %v5734 = vpack.c.b16 %v4739, %v4738
      %v5735 = vpack.c.b16 %v4741, %v4740
      %v5736 = vpack.c.b16 %v4743, %v4742
      %v5737 = vpack.c.b16 %v4745, %v4744
      %v5738 = vpack.c.b16 %v4747, %v4746
      %v5739 = vpack.c.b16 %v4749, %v4748
      %v5740 = vpack.c.b16 %v4751, %v4750
      %v5741 = vpack.c.b16 %v4753, %v4752
      %v5742 = vpack.c.b16 %v4755, %v4754
      %v5743 = vpack.c.b16 %v4757, %v4756
      %v5744 = vpack.c.b16 %v4759, %v4758
      %v5745 = vpack.c.b16 %v4761, %v4760
      %v5746 = vpack.c.b16 %v4763, %v4762
      %v5747 = vpack.c.b16 %v4765, %v4764
      %v5748 = vpack.c.b16 %v4767, %v4766
      %v5749 = vpack.c.b16 %v4769, %v4768
      %v5750 = vpack.c.b16 %v4771, %v4770
      %v5751 = vpack.c.b16 %v4773, %v4772
      %v5752 = vpack.c.b16 %v4775, %v4774
      %v5753 = vpack.c.b16 %v4777, %v4776
      %v5754 = vpack.c.b16 %v4779, %v4778
      %v5755 = vpack.c.b16 %v4781, %v4780
      %v5756 = vpack.c.b16 %v4783, %v4782
      %v5757 = vpack.c.b16 %v4785, %v4784
      %v5758 = vpack.c.b16 %v4787, %v4786
      %v5759 = vpack.c.b16 %v4789, %v4788
      %v5760 = vpack.c.b16 %v4791, %v4790
      %v5761 = vpack.c.b16 %v4793, %v4792
      %v5762 = vpack.c.b16 %v4795, %v4794
      %v5763 = vpack.c.b16 %v4797, %v4796
      %v5764 = vpack.c.b16 %v4799, %v4798
      %v5765 = vpack.c.b16 %v4801, %v4800
      %v5766 = vpack.c.b16 %v4803, %v4802
      %v5767 = vpack.c.b16 %v4805, %v4804
      %v5768 = vpack.c.b16 %v4807, %v4806
      %v5769 = vpack.c.b16 %v4809, %v4808
      %v5770 = vpack.c.b16 %v4811, %v4810
      %v5771 = vpack.c.b16 %v4813, %v4812
      %v5772 = vpack.c.b16 %v4815, %v4814
      %v5773 = vpack.c.b16 %v4817, %v4816
      %v5774 = vpack.c.b16 %v4819, %v4818
      %v5775 = vpack.c.b16 %v4821, %v4820
      %v5776 = vpack.c.b16 %v4823, %v4822
      %v5777 = vpack.c.b16 %v4825, %v4824
      %v5778 = vpack.c.b16 %v4827, %v4826
      %v5779 = vpack.c.b16 %v4829, %v4828
      %v5780 = vpack.c.b16 %v4831, %v4830
      %v5781 = vpack.c.b16 %v4833, %v4832
      %v5782 = vpack.c.b16 %v4835, %v4834
      %v5783 = vpack.c.b16 %v4837, %v4836
      %v5784 = vpack.c.b16 %v4839, %v4838
      %v5785 = vpack.c.b16 %v4841, %v4840
      %v5786 = vpack.c.b16 %v4843, %v4842
      %v5787 = vpack.c.b16 %v4845, %v4844
      %v5788 = vpack.c.b16 %v4847, %v4846
      %v5789 = vpack.c.b16 %v4849, %v4848
      %v5790 = vpack.c.b16 %v4851, %v4850
      %v5791 = vpack.c.b16 %v4853, %v4852
      %v5792 = vpack.c.b16 %v4855, %v4854
      %v5793 = vpack.c.b16 %v4857, %v4856
      %v5794 = vpack.c.b16 %v4859, %v4858
      %v5795 = vpack.c.b16 %v4861, %v4860
      %v5796 = vpack.c.b16 %v4863, %v4862
      %v5797 = vpack.c.b16 %v4865, %v4864
      %v5798 = vpack.c.b16 %v4867, %v4866
      %v5799 = vpack.c.b16 %v4869, %v4868
      %v5800 = vpack.c.b16 %v4871, %v4870
      %v5801 = vpack.c.b16 %v4873, %v4872
      %v5802 = vpack.c.b16 %v4875, %v4874
      %v5803 = vpack.c.b16 %v4877, %v4876
      %v5804 = vpack.c.b16 %v4879, %v4878
      %v5805 = vpack.c.b16 %v4881, %v4880
      %v5806 = vpack.c.b16 %v4883, %v4882
      %v5807 = vpack.c.b16 %v4885, %v4884
      %v5808 = vpack.c.b16 %v4887, %v4886
      %v5809 = vpack.c.b16 %v4889, %v4888
      %v5810 = vpack.c.b16 %v4891, %v4890
      %v5811 = vpack.c.b16 %v4893, %v4892
      %v5812 = vpack.c.b16 %v4895, %v4894
      %v5813 = vpack.c.b16 %v4897, %v4896
      %v5814 = vpack.c.b16 %v4899, %v4898
      %v5815 = vpack.c.b16 %v4901, %v4900
      %v5816 = vpack.c.b16 %v4903, %v4902
      %v5817 = vpack.c.b16 %v4905, %v4904
      %v5818 = vpack.c.b16 %v4907, %v4906
      %v5819 = vpack.c.b16 %v4909, %v4908
      %v5820 = vpack.c.b16 %v4911, %v4910
      %v5821 = vpack.c.b16 %v4913, %v4912
      %v5822 = vpack.c.b16 %v4915, %v4914
      %v5823 = vpack.c.b16 %v4917, %v4916
      %v5824 = vpack.c.b16 %v4919, %v4918
      %v5825 = vpack.c.b16 %v4921, %v4920
      %v5826 = vpack.c.b16 %v4923, %v4922
      %v5827 = vpack.c.b16 %v4925, %v4924
      %v5828 = vpack.c.b16 %v4927, %v4926
      %v5829 = vpack.c.b16 %v4929, %v4928
      %v5830 = vpack.c.b16 %v4931, %v4930
      %v5831 = vpack.c.b16 %v4933, %v4932
      %v5832 = vpack.c.b16 %v4935, %v4934
      %v5833 = vpack.c.b16 %v4937, %v4936
      %v5834 = vpack.c.b16 %v4939, %v4938
      %v5835 = vpack.c.b16 %v4941, %v4940
      %v5836 = vpack.c.b16 %v4943, %v4942
      %v5837 = vpack.c.b16 %v4945, %v4944
      %v5838 = vpack.c.b16 %v4947, %v4946
      %v5839 = vpack.c.b16 %v4949, %v4948
      %v5840 = vpack.c.b16 %v4951, %v4950
      %v5841 = vpack.c.b16 %v4953, %v4952
      %v5842 = vpack.c.b16 %v4955, %v4954
      %v5843 = vpack.c.b16 %v4957, %v4956
      %v5844 = vpack.c.b16 %v4959, %v4958
      %v5845 = vpack.c.b16 %v4961, %v4960
      %v5846 = vpack.c.b16 %v4963, %v4962
      %v5847 = vpack.c.b16 %v4965, %v4964
      %v5848 = vpack.c.b16 %v4967, %v4966
      %v5849 = vpack.c.b16 %v4969, %v4968
      %v5850 = vpack.c.b16 %v4971, %v4970
      %v5851 = vpack.c.b16 %v4973, %v4972
      %v5852 = vpack.c.b16 %v4975, %v4974
      %v5853 = vpack.c.b16 %v4977, %v4976
      %v5854 = vpack.c.b16 %v4979, %v4978
      %v5855 = vpack.c.b16 %v4981, %v4980
      %v5856 = vpack.c.b16 %v4983, %v4982
      %v5857 = vpack.c.b16 %v4985, %v4984
      %v5858 = vpack.c.b16 %v4987, %v4986
      %v5859 = vpack.c.b16 %v4989, %v4988
      %v5860 = vpack.c.b16 %v4991, %v4990
      %v5861 = vpack.c.b16 %v4993, %v4992
      %v5862 = vpack.c.b16 %v4995, %v4994
      %v5863 = vpack.c.b16 %v4997, %v4996
      %v5864 = vpack.c.b16 %v4999, %v4998
      %v5865 = vpack.c.b16 %v5001, %v5000
      %v5866 = vpack.c.b16 %v5003, %v5002
      %v5867 = vpack.c.b16 %v5005, %v5004
      %v5868 = vpack.c.b16 %v5007, %v5006
      %v5869 = vpack.c.b16 %v5009, %v5008
      %v5870 = vpack.c.b16 %v5011, %v5010
      %v5871 = vpack.c.b16 %v5013, %v5012
      %v5872 = vpack.c.b16 %v5015, %v5014
      %v5873 = vpack.c.b16 %v5017, %v5016
      %v5874 = vpack.c.b16 %v5019, %v5018
      %v5875 = vpack.c.b16 %v5021, %v5020
      %v5876 = vpack.c.b16 %v5023, %v5022
      %v5877 = vpack.c.b16 %v5025, %v5024
      %v5878 = vpack.c.b16 %v5027, %v5026
      %v5879 = vpack.c.b16 %v5029, %v5028
      %v5880 = vpack.c.b16 %v5031, %v5030
      %v5881 = vpack.c.b16 %v5033, %v5032
      %v5882 = vpack.c.b16 %v5035, %v5034
      %v5883 = vpack.c.b16 %v5037, %v5036
      %v5884 = vpack.c.b16 %v5039, %v5038
      %v5885 = vpack.c.b16 %v5041, %v5040
      %v5886 = vpack.c.b16 %v5043, %v5042
      %v5887 = vpack.c.b16 %v5045, %v5044
      %v5888 = vpack.c.b16 %v5047, %v5046
      %v5889 = vpack.c.b16 %v5049, %v5048
      %v5890 = vpack.c.b16 %v5051, %v5050
      %v5891 = vpack.c.b16 %v5053, %v5052
      %v5892 = vpack.c.b16 %v5055, %v5054
      %v5893 = vpack.c.b16 %v5057, %v5056
      %v5894 = vpack.c.b16 %v5059, %v5058
      %v5895 = vpack.c.b16 %v5061, %v5060
      %v5896 = vpack.c.b16 %v5063, %v5062
      %v5897 = vpack.c.b16 %v5065, %v5064
      %v5898 = vpack.c.b16 %v5067, %v5066
      %v5899 = vpack.c.b16 %v5069, %v5068
      %v5900 = vpack.c.b16 %v5071, %v5070
      %v5901 = vpack.c.b16 %v5073, %v5072
      %v5902 = vpack.c.b16 %v5075, %v5074
      %v5903 = vpack.c.b16 %v5077, %v5076
      %v5904 = vpack.c.b16 %v5079, %v5078
      %v5905 = vpack.c.b16 %v5081, %v5080
      %v5906 = vpack.c.b16 %v5083, %v5082
      %v5907 = vpack.c.b16 %v5085, %v5084
      %v5908 = vpack.c.b16 %v5087, %v5086
      %v5909 = vpack.c.b16 %v5089, %v5088
      %v5910 = vpack.c.b16 %v5091, %v5090
      %v5911 = vpack.c.b16 %v5093, %v5092
      %v5912 = vpack.c.b16 %v5095, %v5094
      %v5913 = vpack.c.b16 %v5097, %v5096
      %v5914 = vpack.c.b16 %v5099, %v5098
      %v5915 = vpack.c.b16 %v5101, %v5100
      %v5916 = vpack.c.b16 %v5103, %v5102
      %v5917 = vpack.c.b16 %v5105, %v5104
      %v5918 = vpack.c.b16 %v5107, %v5106
      %v5919 = vpack.c.b16 %v5109, %v5108
      %v5920 = vpack.c.b16 %v5111, %v5110
      %v5921 = vpack.c.b16 %v5113, %v5112
      %v5922 = vpack.c.b16 %v5115, %v5114
      %v5923 = vpack.c.b16 %v5117, %v5116
      %v5924 = vpack.c.b16 %v5119, %v5118
      %v5925 = vpack.c.b16 %v5121, %v5120
      %v5926 = vpack.c.b16 %v5123, %v5122
      %v5927 = vpack.c.b16 %v5125, %v5124
      %v5928 = vpack.c.b16 %v5127, %v5126
      %v5929 = vpack.c.b16 %v5129, %v5128
      %v5930 = vpack.c.b16 %v5131, %v5130
      %v5931 = vpack.c.b16 %v5133, %v5132
      %v5932 = vpack.c.b16 %v5135, %v5134
      %v5933 = vpack.c.b16 %v5137, %v5136
      %v5934 = vpack.c.b16 %v5139, %v5138
      %v5935 = vpack.c.b16 %v5141, %v5140
      %v5936 = vpack.c.b16 %v5143, %v5142
      %v5937 = vpack.c.b16 %v5145, %v5144
      %v5938 = vpack.c.b16 %v5147, %v5146
      %v5939 = vpack.c.b16 %v5149, %v5148
      %v5940 = vpack.c.b16 %v5151, %v5150
      %v5941 = vpack.c.b16 %v5153, %v5152
      %v5942 = vpack.c.b16 %v5155, %v5154
      %v5943 = vpack.c.b16 %v5157, %v5156
      %v5944 = vpack.c.b16 %v5159, %v5158
      %v5945 = vpack.c.b16 %v5161, %v5160
      %v5946 = vpack.c.b16 %v5163, %v5162
      %v5947 = vpack.c.b16 %v5165, %v5164
      %v5948 = vpack.c.b16 %v5167, %v5166
      %v5949 = vpack.c.b16 %v5169, %v5168
      %v5950 = vpack.c.b16 %v5171, %v5170
      %v5951 = vpack.c.b16 %v5173, %v5172
      %v5952 = vpack.c.b16 %v5175, %v5174
      %v5953 = vpack.c.b16 %v5177, %v5176
      %v5954 = vpack.c.b16 %v5179, %v5178
      %v5955 = vpack.c.b16 %v5181, %v5180
      %v5956 = vpack.c.b16 %v5183, %v5182
      %v5957 = vpack.c.b16 %v5185, %v5184
      %v5958 = vpack.c.b16 %v5187, %v5186
      %v5959 = vpack.c.b16 %v5189, %v5188
      %v5960 = vpack.c.b16 %v5191, %v5190
      %v5961 = vpack.c.b16 %v5193, %v5192
      %6730 = vmatprep.subr.bf16.mxu0 0
      %6731 = vmatpush1.bf16.msra.mxu0 %v5201
      %6732 = vmatprep.subr.bf16.mxu0 0
      %6733 = vmatpush1.bf16.msra.mxu0 %v5200
      %6734 = vmatprep.subr.bf16.mxu0 0
      %6735 = vmatpush1.bf16.msra.mxu0 %v5199
      %6736 = vmatprep.subr.bf16.mxu0 0
      %6737 = vmatpush1.bf16.msra.mxu0 %v5198
      %6738 = vmatprep.subr.bf16.mxu0 0
      %6739 = vmatpush1.bf16.msra.mxu0 %v5197
      %6740 = vmatprep.subr.bf16.mxu0 0
      %6741 = vmatpush1.bf16.msra.mxu0 %v5196
      %6742 = vmatprep.subr.bf16.mxu0 0
      %6743 = vmatpush1.bf16.msra.mxu0 %v5195
      %6744 = vmatprep.subr.bf16.mxu0 0
      %6745 = vmatpush1.bf16.msra.mxu0 %v5194
      %6746 = vmatprep.subr.bf16.mxu0 0
      %6747 = vmatpush2.bf16.msra.mxu0 %v5209
      %6748 = vmatprep.subr.bf16.mxu0 0
      %6749 = vmatpush2.bf16.msra.mxu0 %v5208
      %6750 = vmatprep.subr.bf16.mxu0 0
      %6751 = vmatpush2.bf16.msra.mxu0 %v5207
      %6752 = vmatprep.subr.bf16.mxu0 0
      %6753 = vmatpush2.bf16.msra.mxu0 %v5206
      %6754 = vmatprep.subr.bf16.mxu0 0
      %6755 = vmatpush2.bf16.msra.mxu0 %v5205
      %6756 = vmatprep.subr.bf16.mxu0 0
      %6757 = vmatpush2.bf16.msra.mxu0 %v5204
      %6758 = vmatprep.subr.bf16.mxu0 0
      %6759 = vmatpush2.bf16.msra.mxu0 %v5203
      %6760 = vmatprep.subr.bf16.mxu0 0
      %6761 = vmatpush2.bf16.msra.mxu0 %v5202
      %6762 = vmatprep.mubr.bf16.mxu0 %v1931
      %6763 = vmatmul.mubr.bf16.gmra.mxu0 %v1930
      %v6764 = vpop.f32.mrf.mxu0
      %v6765 = vadd.f32 %v1785, %v6764
      %v6766 = vpop.f32.mrf.mxu0
      %v6767 = vpop.f32.mrf.mxu0
      %v6768 = vpop.f32.mrf.mxu0
      %6769 = vdwg.mxu0
      %6770 = vmatprep.subr.bf16.mxu0 0
      %6771 = vmatpush1.bf16.msra.mxu0 %v5217
      %6772 = vmatprep.subr.bf16.mxu0 0
      %6773 = vmatpush1.bf16.msra.mxu0 %v5216
      %6774 = vmatprep.subr.bf16.mxu0 0
      %6775 = vmatpush1.bf16.msra.mxu0 %v5215
      %6776 = vmatprep.subr.bf16.mxu0 0
      %6777 = vmatpush1.bf16.msra.mxu0 %v5214
      %6778 = vmatprep.subr.bf16.mxu0 0
      %6779 = vmatpush1.bf16.msra.mxu0 %v5213
      %6780 = vmatprep.subr.bf16.mxu0 0
      %6781 = vmatpush1.bf16.msra.mxu0 %v5212
      %6782 = vmatprep.subr.bf16.mxu0 0
      %6783 = vmatpush1.bf16.msra.mxu0 %v5211
      %6784 = vmatprep.subr.bf16.mxu0 0
      %6785 = vmatpush1.bf16.msra.mxu0 %v5210
      %6786 = vmatprep.subr.bf16.mxu0 0
      %6787 = vmatpush2.bf16.msra.mxu0 %v5225
      %6788 = vmatprep.subr.bf16.mxu0 0
      %6789 = vmatpush2.bf16.msra.mxu0 %v5224
      %6790 = vmatprep.subr.bf16.mxu0 0
      %6791 = vmatpush2.bf16.msra.mxu0 %v5223
      %6792 = vmatprep.subr.bf16.mxu0 0
      %6793 = vmatpush2.bf16.msra.mxu0 %v5222
      %6794 = vmatprep.subr.bf16.mxu0 0
      %6795 = vmatpush2.bf16.msra.mxu0 %v5221
      %6796 = vmatprep.subr.bf16.mxu0 0
      %6797 = vmatpush2.bf16.msra.mxu0 %v5220
      %6798 = vmatprep.subr.bf16.mxu0 0
      %6799 = vmatpush2.bf16.msra.mxu0 %v5219
      %6800 = vmatprep.subr.bf16.mxu0 0
      %6801 = vmatpush2.bf16.msra.mxu0 %v5218
      %6802 = vmatprep.mubr.bf16.mxu0 %v1933
      %6803 = vmatmul.mubr.bf16.gmra.mxu0 %v1932
      %v6804 = vpop.f32.mrf.mxu0
      %v6805 = vadd.f32 %v6765, %v6804
      %v6806 = vpop.f32.mrf.mxu0
      %v6807 = vpop.f32.mrf.mxu0
      %v6808 = vpop.f32.mrf.mxu0
      %6809 = vdwg.mxu0
      %6810 = vmatprep.subr.bf16.mxu0 0
      %6811 = vmatpush1.bf16.msra.mxu0 %v5233
      %6812 = vmatprep.subr.bf16.mxu0 0
      %6813 = vmatpush1.bf16.msra.mxu0 %v5232
      %6814 = vmatprep.subr.bf16.mxu0 0
      %6815 = vmatpush1.bf16.msra.mxu0 %v5231
      %6816 = vmatprep.subr.bf16.mxu0 0
      %6817 = vmatpush1.bf16.msra.mxu0 %v5230
      %6818 = vmatprep.subr.bf16.mxu0 0
      %6819 = vmatpush1.bf16.msra.mxu0 %v5229
      %6820 = vmatprep.subr.bf16.mxu0 0
      %6821 = vmatpush1.bf16.msra.mxu0 %v5228
      %6822 = vmatprep.subr.bf16.mxu0 0
      %6823 = vmatpush1.bf16.msra.mxu0 %v5227
      %6824 = vmatprep.subr.bf16.mxu0 0
      %6825 = vmatpush1.bf16.msra.mxu0 %v5226
      %6826 = vmatprep.subr.bf16.mxu0 0
      %6827 = vmatpush2.bf16.msra.mxu0 %v5241
      %6828 = vmatprep.subr.bf16.mxu0 0
      %6829 = vmatpush2.bf16.msra.mxu0 %v5240
      %6830 = vmatprep.subr.bf16.mxu0 0
      %6831 = vmatpush2.bf16.msra.mxu0 %v5239
      %6832 = vmatprep.subr.bf16.mxu0 0
      %6833 = vmatpush2.bf16.msra.mxu0 %v5238
      %6834 = vmatprep.subr.bf16.mxu0 0
      %6835 = vmatpush2.bf16.msra.mxu0 %v5237
      %6836 = vmatprep.subr.bf16.mxu0 0
      %6837 = vmatpush2.bf16.msra.mxu0 %v5236
      %6838 = vmatprep.subr.bf16.mxu0 0
      %6839 = vmatpush2.bf16.msra.mxu0 %v5235
      %6840 = vmatprep.subr.bf16.mxu0 0
      %6841 = vmatpush2.bf16.msra.mxu0 %v5234
      %6842 = vmatprep.mubr.bf16.mxu0 %v1935
      %6843 = vmatmul.mubr.bf16.gmra.mxu0 %v1934
      %v6844 = vpop.f32.mrf.mxu0
      %v6845 = vadd.f32 %v6805, %v6844
      %v6846 = vpop.f32.mrf.mxu0
      %v6847 = vpop.f32.mrf.mxu0
      %v6848 = vpop.f32.mrf.mxu0
      %6849 = vdwg.mxu0
      %6850 = vmatprep.subr.bf16.mxu0 0
      %6851 = vmatpush1.bf16.msra.mxu0 %v5249
      %6852 = vmatprep.subr.bf16.mxu0 0
      %6853 = vmatpush1.bf16.msra.mxu0 %v5248
      %6854 = vmatprep.subr.bf16.mxu0 0
      %6855 = vmatpush1.bf16.msra.mxu0 %v5247
      %6856 = vmatprep.subr.bf16.mxu0 0
      %6857 = vmatpush1.bf16.msra.mxu0 %v5246
      %6858 = vmatprep.subr.bf16.mxu0 0
      %6859 = vmatpush1.bf16.msra.mxu0 %v5245
      %6860 = vmatprep.subr.bf16.mxu0 0
      %6861 = vmatpush1.bf16.msra.mxu0 %v5244
      %6862 = vmatprep.subr.bf16.mxu0 0
      %6863 = vmatpush1.bf16.msra.mxu0 %v5243
      %6864 = vmatprep.subr.bf16.mxu0 0
      %6865 = vmatpush1.bf16.msra.mxu0 %v5242
      %6866 = vmatprep.subr.bf16.mxu0 0
      %6867 = vmatpush2.bf16.msra.mxu0 %v5257
      %6868 = vmatprep.subr.bf16.mxu0 0
      %6869 = vmatpush2.bf16.msra.mxu0 %v5256
      %6870 = vmatprep.subr.bf16.mxu0 0
      %6871 = vmatpush2.bf16.msra.mxu0 %v5255
      %6872 = vmatprep.subr.bf16.mxu0 0
      %6873 = vmatpush2.bf16.msra.mxu0 %v5254
      %6874 = vmatprep.subr.bf16.mxu0 0
      %6875 = vmatpush2.bf16.msra.mxu0 %v5253
      %6876 = vmatprep.subr.bf16.mxu0 0
      %6877 = vmatpush2.bf16.msra.mxu0 %v5252
      %6878 = vmatprep.subr.bf16.mxu0 0
      %6879 = vmatpush2.bf16.msra.mxu0 %v5251
      %6880 = vmatprep.subr.bf16.mxu0 0
      %6881 = vmatpush2.bf16.msra.mxu0 %v5250
      %6882 = vmatprep.mubr.bf16.mxu0 %v1937
      %6883 = vmatmul.mubr.bf16.gmra.mxu0 %v1936
      %v6884 = vpop.f32.mrf.mxu0
      %v6885 = vadd.f32 %v6845, %v6884
      %v6886 = vpop.f32.mrf.mxu0
      %v6887 = vpop.f32.mrf.mxu0
      %v6888 = vpop.f32.mrf.mxu0
      %6889 = vdwg.mxu0
      %6890 = vmatprep.subr.bf16.mxu0 0
      %6891 = vmatpush1.bf16.msra.mxu0 %v5265
      %6892 = vmatprep.subr.bf16.mxu0 0
      %6893 = vmatpush1.bf16.msra.mxu0 %v5264
      %6894 = vmatprep.subr.bf16.mxu0 0
      %6895 = vmatpush1.bf16.msra.mxu0 %v5263
      %6896 = vmatprep.subr.bf16.mxu0 0
      %6897 = vmatpush1.bf16.msra.mxu0 %v5262
      %6898 = vmatprep.subr.bf16.mxu0 0
      %6899 = vmatpush1.bf16.msra.mxu0 %v5261
      %6900 = vmatprep.subr.bf16.mxu0 0
      %6901 = vmatpush1.bf16.msra.mxu0 %v5260
      %6902 = vmatprep.subr.bf16.mxu0 0
      %6903 = vmatpush1.bf16.msra.mxu0 %v5259
      %6904 = vmatprep.subr.bf16.mxu0 0
      %6905 = vmatpush1.bf16.msra.mxu0 %v5258
      %6906 = vmatprep.subr.bf16.mxu0 0
      %6907 = vmatpush2.bf16.msra.mxu0 %v5273
      %6908 = vmatprep.subr.bf16.mxu0 0
      %6909 = vmatpush2.bf16.msra.mxu0 %v5272
      %6910 = vmatprep.subr.bf16.mxu0 0
      %6911 = vmatpush2.bf16.msra.mxu0 %v5271
      %6912 = vmatprep.subr.bf16.mxu0 0
      %6913 = vmatpush2.bf16.msra.mxu0 %v5270
      %6914 = vmatprep.subr.bf16.mxu0 0
      %6915 = vmatpush2.bf16.msra.mxu0 %v5269
      %6916 = vmatprep.subr.bf16.mxu0 0
      %6917 = vmatpush2.bf16.msra.mxu0 %v5268
      %6918 = vmatprep.subr.bf16.mxu0 0
      %6919 = vmatpush2.bf16.msra.mxu0 %v5267
      %6920 = vmatprep.subr.bf16.mxu0 0
      %6921 = vmatpush2.bf16.msra.mxu0 %v5266
      %6922 = vmatprep.mubr.bf16.mxu0 %v1939
      %6923 = vmatmul.mubr.bf16.gmra.mxu0 %v1938
      %v6924 = vpop.f32.mrf.mxu0
      %v6925 = vadd.f32 %v6885, %v6924
      %v6926 = vpop.f32.mrf.mxu0
      %v6927 = vpop.f32.mrf.mxu0
      %v6928 = vpop.f32.mrf.mxu0
      %6929 = vdwg.mxu0
      %6930 = vmatprep.subr.bf16.mxu0 0
      %6931 = vmatpush1.bf16.msra.mxu0 %v5281
      %6932 = vmatprep.subr.bf16.mxu0 0
      %6933 = vmatpush1.bf16.msra.mxu0 %v5280
      %6934 = vmatprep.subr.bf16.mxu0 0
      %6935 = vmatpush1.bf16.msra.mxu0 %v5279
      %6936 = vmatprep.subr.bf16.mxu0 0
      %6937 = vmatpush1.bf16.msra.mxu0 %v5278
      %6938 = vmatprep.subr.bf16.mxu0 0
      %6939 = vmatpush1.bf16.msra.mxu0 %v5277
      %6940 = vmatprep.subr.bf16.mxu0 0
      %6941 = vmatpush1.bf16.msra.mxu0 %v5276
      %6942 = vmatprep.subr.bf16.mxu0 0
      %6943 = vmatpush1.bf16.msra.mxu0 %v5275
      %6944 = vmatprep.subr.bf16.mxu0 0
      %6945 = vmatpush1.bf16.msra.mxu0 %v5274
      %6946 = vmatprep.subr.bf16.mxu0 0
      %6947 = vmatpush2.bf16.msra.mxu0 %v5289
      %6948 = vmatprep.subr.bf16.mxu0 0
      %6949 = vmatpush2.bf16.msra.mxu0 %v5288
      %6950 = vmatprep.subr.bf16.mxu0 0
      %6951 = vmatpush2.bf16.msra.mxu0 %v5287
      %6952 = vmatprep.subr.bf16.mxu0 0
      %6953 = vmatpush2.bf16.msra.mxu0 %v5286
      %6954 = vmatprep.subr.bf16.mxu0 0
      %6955 = vmatpush2.bf16.msra.mxu0 %v5285
      %6956 = vmatprep.subr.bf16.mxu0 0
      %6957 = vmatpush2.bf16.msra.mxu0 %v5284
      %6958 = vmatprep.subr.bf16.mxu0 0
      %6959 = vmatpush2.bf16.msra.mxu0 %v5283
      %6960 = vmatprep.subr.bf16.mxu0 0
      %6961 = vmatpush2.bf16.msra.mxu0 %v5282
      %6962 = vmatprep.mubr.bf16.mxu0 %v1941
      %6963 = vmatmul.mubr.bf16.gmra.mxu0 %v1940
      %v6964 = vpop.f32.mrf.mxu0
      %v6965 = vadd.f32 %v6925, %v6964
      %v6966 = vpop.f32.mrf.mxu0
      %v6967 = vpop.f32.mrf.mxu0
      %v6968 = vpop.f32.mrf.mxu0
      %6969 = vdwg.mxu0
      %6970 = vmatprep.subr.bf16.mxu0 0
      %6971 = vmatpush1.bf16.msra.mxu0 %v5297
      %6972 = vmatprep.subr.bf16.mxu0 0
      %6973 = vmatpush1.bf16.msra.mxu0 %v5296
      %6974 = vmatprep.subr.bf16.mxu0 0
      %6975 = vmatpush1.bf16.msra.mxu0 %v5295
      %6976 = vmatprep.subr.bf16.mxu0 0
      %6977 = vmatpush1.bf16.msra.mxu0 %v5294
      %6978 = vmatprep.subr.bf16.mxu0 0
      %6979 = vmatpush1.bf16.msra.mxu0 %v5293
      %6980 = vmatprep.subr.bf16.mxu0 0
      %6981 = vmatpush1.bf16.msra.mxu0 %v5292
      %6982 = vmatprep.subr.bf16.mxu0 0
      %6983 = vmatpush1.bf16.msra.mxu0 %v5291
      %6984 = vmatprep.subr.bf16.mxu0 0
      %6985 = vmatpush1.bf16.msra.mxu0 %v5290
      %6986 = vmatprep.subr.bf16.mxu0 0
      %6987 = vmatpush2.bf16.msra.mxu0 %v5305
      %6988 = vmatprep.subr.bf16.mxu0 0
      %6989 = vmatpush2.bf16.msra.mxu0 %v5304
      %6990 = vmatprep.subr.bf16.mxu0 0
      %6991 = vmatpush2.bf16.msra.mxu0 %v5303
      %6992 = vmatprep.subr.bf16.mxu0 0
      %6993 = vmatpush2.bf16.msra.mxu0 %v5302
      %6994 = vmatprep.subr.bf16.mxu0 0
      %6995 = vmatpush2.bf16.msra.mxu0 %v5301
      %6996 = vmatprep.subr.bf16.mxu0 0
      %6997 = vmatpush2.bf16.msra.mxu0 %v5300
      %6998 = vmatprep.subr.bf16.mxu0 0
      %6999 = vmatpush2.bf16.msra.mxu0 %v5299
      %7000 = vmatprep.subr.bf16.mxu0 0
      %7001 = vmatpush2.bf16.msra.mxu0 %v5298
      %7002 = vmatprep.mubr.bf16.mxu0 %v1943
      %7003 = vmatmul.mubr.bf16.gmra.mxu0 %v1942
      %v7004 = vpop.f32.mrf.mxu0
      %v7005 = vadd.f32 %v6965, %v7004
      %v7006 = vpop.f32.mrf.mxu0
      %v7007 = vpop.f32.mrf.mxu0
      %v7008 = vpop.f32.mrf.mxu0
      %7009 = vdwg.mxu0
      %7010 = vmatprep.subr.bf16.mxu0 0
      %7011 = vmatpush1.bf16.msra.mxu0 %v5313
      %7012 = vmatprep.subr.bf16.mxu0 0
      %7013 = vmatpush1.bf16.msra.mxu0 %v5312
      %7014 = vmatprep.subr.bf16.mxu0 0
      %7015 = vmatpush1.bf16.msra.mxu0 %v5311
      %7016 = vmatprep.subr.bf16.mxu0 0
      %7017 = vmatpush1.bf16.msra.mxu0 %v5310
      %7018 = vmatprep.subr.bf16.mxu0 0
      %7019 = vmatpush1.bf16.msra.mxu0 %v5309
      %7020 = vmatprep.subr.bf16.mxu0 0
      %7021 = vmatpush1.bf16.msra.mxu0 %v5308
      %7022 = vmatprep.subr.bf16.mxu0 0
      %7023 = vmatpush1.bf16.msra.mxu0 %v5307
      %7024 = vmatprep.subr.bf16.mxu0 0
      %7025 = vmatpush1.bf16.msra.mxu0 %v5306
      %7026 = vmatprep.subr.bf16.mxu0 0
      %7027 = vmatpush2.bf16.msra.mxu0 %v5321
      %7028 = vmatprep.subr.bf16.mxu0 0
      %7029 = vmatpush2.bf16.msra.mxu0 %v5320
      %7030 = vmatprep.subr.bf16.mxu0 0
      %7031 = vmatpush2.bf16.msra.mxu0 %v5319
      %7032 = vmatprep.subr.bf16.mxu0 0
      %7033 = vmatpush2.bf16.msra.mxu0 %v5318
      %7034 = vmatprep.subr.bf16.mxu0 0
      %7035 = vmatpush2.bf16.msra.mxu0 %v5317
      %7036 = vmatprep.subr.bf16.mxu0 0
      %7037 = vmatpush2.bf16.msra.mxu0 %v5316
      %7038 = vmatprep.subr.bf16.mxu0 0
      %7039 = vmatpush2.bf16.msra.mxu0 %v5315
      %7040 = vmatprep.subr.bf16.mxu0 0
      %7041 = vmatpush2.bf16.msra.mxu0 %v5314
      %7042 = vmatprep.mubr.bf16.mxu0 %v1945
      %7043 = vmatmul.mubr.bf16.gmra.mxu0 %v1944
      %v7044 = vpop.f32.mrf.mxu0
      %v7045 = vadd.f32 %v7005, %v7044
      %v7046 = vpop.f32.mrf.mxu0
      %v7047 = vpop.f32.mrf.mxu0
      %v7048 = vpop.f32.mrf.mxu0
      %7049 = vdwg.mxu0
      %7050 = vmatprep.subr.bf16.mxu0 0
      %7051 = vmatpush1.bf16.msra.mxu0 %v5329
      %7052 = vmatprep.subr.bf16.mxu0 0
      %7053 = vmatpush1.bf16.msra.mxu0 %v5328
      %7054 = vmatprep.subr.bf16.mxu0 0
      %7055 = vmatpush1.bf16.msra.mxu0 %v5327
      %7056 = vmatprep.subr.bf16.mxu0 0
      %7057 = vmatpush1.bf16.msra.mxu0 %v5326
      %7058 = vmatprep.subr.bf16.mxu0 0
      %7059 = vmatpush1.bf16.msra.mxu0 %v5325
      %7060 = vmatprep.subr.bf16.mxu0 0
      %7061 = vmatpush1.bf16.msra.mxu0 %v5324
      %7062 = vmatprep.subr.bf16.mxu0 0
      %7063 = vmatpush1.bf16.msra.mxu0 %v5323
      %7064 = vmatprep.subr.bf16.mxu0 0
      %7065 = vmatpush1.bf16.msra.mxu0 %v5322
      %7066 = vmatprep.subr.bf16.mxu0 0
      %7067 = vmatpush2.bf16.msra.mxu0 %v5337
      %7068 = vmatprep.subr.bf16.mxu0 0
      %7069 = vmatpush2.bf16.msra.mxu0 %v5336
      %7070 = vmatprep.subr.bf16.mxu0 0
      %7071 = vmatpush2.bf16.msra.mxu0 %v5335
      %7072 = vmatprep.subr.bf16.mxu0 0
      %7073 = vmatpush2.bf16.msra.mxu0 %v5334
      %7074 = vmatprep.subr.bf16.mxu0 0
      %7075 = vmatpush2.bf16.msra.mxu0 %v5333
      %7076 = vmatprep.subr.bf16.mxu0 0
      %7077 = vmatpush2.bf16.msra.mxu0 %v5332
      %7078 = vmatprep.subr.bf16.mxu0 0
      %7079 = vmatpush2.bf16.msra.mxu0 %v5331
      %7080 = vmatprep.subr.bf16.mxu0 0
      %7081 = vmatpush2.bf16.msra.mxu0 %v5330
      %7082 = vmatprep.mubr.bf16.mxu0 %v1947
      %7083 = vmatmul.mubr.bf16.gmra.mxu0 %v1946
      %v7084 = vpop.f32.mrf.mxu0
      %v7085 = vadd.f32 %v7045, %v7084
      %v7086 = vpop.f32.mrf.mxu0
      %v7087 = vpop.f32.mrf.mxu0
      %v7088 = vpop.f32.mrf.mxu0
      %7089 = vdwg.mxu0
      %7090 = vmatprep.subr.bf16.mxu0 0
      %7091 = vmatpush1.bf16.msra.mxu0 %v5345
      %7092 = vmatprep.subr.bf16.mxu0 0
      %7093 = vmatpush1.bf16.msra.mxu0 %v5344
      %7094 = vmatprep.subr.bf16.mxu0 0
      %7095 = vmatpush1.bf16.msra.mxu0 %v5343
      %7096 = vmatprep.subr.bf16.mxu0 0
      %7097 = vmatpush1.bf16.msra.mxu0 %v5342
      %7098 = vmatprep.subr.bf16.mxu0 0
      %7099 = vmatpush1.bf16.msra.mxu0 %v5341
      %7100 = vmatprep.subr.bf16.mxu0 0
      %7101 = vmatpush1.bf16.msra.mxu0 %v5340
      %7102 = vmatprep.subr.bf16.mxu0 0
      %7103 = vmatpush1.bf16.msra.mxu0 %v5339
      %7104 = vmatprep.subr.bf16.mxu0 0
      %7105 = vmatpush1.bf16.msra.mxu0 %v5338
      %7106 = vmatprep.subr.bf16.mxu0 0
      %7107 = vmatpush2.bf16.msra.mxu0 %v5353
      %7108 = vmatprep.subr.bf16.mxu0 0
      %7109 = vmatpush2.bf16.msra.mxu0 %v5352
      %7110 = vmatprep.subr.bf16.mxu0 0
      %7111 = vmatpush2.bf16.msra.mxu0 %v5351
      %7112 = vmatprep.subr.bf16.mxu0 0
      %7113 = vmatpush2.bf16.msra.mxu0 %v5350
      %7114 = vmatprep.subr.bf16.mxu0 0
      %7115 = vmatpush2.bf16.msra.mxu0 %v5349
      %7116 = vmatprep.subr.bf16.mxu0 0
      %7117 = vmatpush2.bf16.msra.mxu0 %v5348
      %7118 = vmatprep.subr.bf16.mxu0 0
      %7119 = vmatpush2.bf16.msra.mxu0 %v5347
      %7120 = vmatprep.subr.bf16.mxu0 0
      %7121 = vmatpush2.bf16.msra.mxu0 %v5346
      %7122 = vmatprep.mubr.bf16.mxu0 %v1949
      %7123 = vmatmul.mubr.bf16.gmra.mxu0 %v1948
      %v7124 = vpop.f32.mrf.mxu0
      %v7125 = vadd.f32 %v7085, %v7124
      %v7126 = vpop.f32.mrf.mxu0
      %v7127 = vpop.f32.mrf.mxu0
      %v7128 = vpop.f32.mrf.mxu0
      %7129 = vdwg.mxu0
      %7130 = vmatprep.subr.bf16.mxu0 0
      %7131 = vmatpush1.bf16.msra.mxu0 %v5361
      %7132 = vmatprep.subr.bf16.mxu0 0
      %7133 = vmatpush1.bf16.msra.mxu0 %v5360
      %7134 = vmatprep.subr.bf16.mxu0 0
      %7135 = vmatpush1.bf16.msra.mxu0 %v5359
      %7136 = vmatprep.subr.bf16.mxu0 0
      %7137 = vmatpush1.bf16.msra.mxu0 %v5358
      %7138 = vmatprep.subr.bf16.mxu0 0
      %7139 = vmatpush1.bf16.msra.mxu0 %v5357
      %7140 = vmatprep.subr.bf16.mxu0 0
      %7141 = vmatpush1.bf16.msra.mxu0 %v5356
      %7142 = vmatprep.subr.bf16.mxu0 0
      %7143 = vmatpush1.bf16.msra.mxu0 %v5355
      %7144 = vmatprep.subr.bf16.mxu0 0
      %7145 = vmatpush1.bf16.msra.mxu0 %v5354
      %7146 = vmatprep.subr.bf16.mxu0 0
      %7147 = vmatpush2.bf16.msra.mxu0 %v5369
      %7148 = vmatprep.subr.bf16.mxu0 0
      %7149 = vmatpush2.bf16.msra.mxu0 %v5368
      %7150 = vmatprep.subr.bf16.mxu0 0
      %7151 = vmatpush2.bf16.msra.mxu0 %v5367
      %7152 = vmatprep.subr.bf16.mxu0 0
      %7153 = vmatpush2.bf16.msra.mxu0 %v5366
      %7154 = vmatprep.subr.bf16.mxu0 0
      %7155 = vmatpush2.bf16.msra.mxu0 %v5365
      %7156 = vmatprep.subr.bf16.mxu0 0
      %7157 = vmatpush2.bf16.msra.mxu0 %v5364
      %7158 = vmatprep.subr.bf16.mxu0 0
      %7159 = vmatpush2.bf16.msra.mxu0 %v5363
      %7160 = vmatprep.subr.bf16.mxu0 0
      %7161 = vmatpush2.bf16.msra.mxu0 %v5362
      %7162 = vmatprep.mubr.bf16.mxu0 %v1951
      %7163 = vmatmul.mubr.bf16.gmra.mxu0 %v1950
      %v7164 = vpop.f32.mrf.mxu0
      %v7165 = vadd.f32 %v7125, %v7164
      %v7166 = vpop.f32.mrf.mxu0
      %v7167 = vpop.f32.mrf.mxu0
      %v7168 = vpop.f32.mrf.mxu0
      %7169 = vdwg.mxu0
      %7170 = vmatprep.subr.bf16.mxu0 0
      %7171 = vmatpush1.bf16.msra.mxu0 %v5377
      %7172 = vmatprep.subr.bf16.mxu0 0
      %7173 = vmatpush1.bf16.msra.mxu0 %v5376
      %7174 = vmatprep.subr.bf16.mxu0 0
      %7175 = vmatpush1.bf16.msra.mxu0 %v5375
      %7176 = vmatprep.subr.bf16.mxu0 0
      %7177 = vmatpush1.bf16.msra.mxu0 %v5374
      %7178 = vmatprep.subr.bf16.mxu0 0
      %7179 = vmatpush1.bf16.msra.mxu0 %v5373
      %7180 = vmatprep.subr.bf16.mxu0 0
      %7181 = vmatpush1.bf16.msra.mxu0 %v5372
      %7182 = vmatprep.subr.bf16.mxu0 0
      %7183 = vmatpush1.bf16.msra.mxu0 %v5371
      %7184 = vmatprep.subr.bf16.mxu0 0
      %7185 = vmatpush1.bf16.msra.mxu0 %v5370
      %7186 = vmatprep.subr.bf16.mxu0 0
      %7187 = vmatpush2.bf16.msra.mxu0 %v5385
      %7188 = vmatprep.subr.bf16.mxu0 0
      %7189 = vmatpush2.bf16.msra.mxu0 %v5384
      %7190 = vmatprep.subr.bf16.mxu0 0
      %7191 = vmatpush2.bf16.msra.mxu0 %v5383
      %7192 = vmatprep.subr.bf16.mxu0 0
      %7193 = vmatpush2.bf16.msra.mxu0 %v5382
      %7194 = vmatprep.subr.bf16.mxu0 0
      %7195 = vmatpush2.bf16.msra.mxu0 %v5381
      %7196 = vmatprep.subr.bf16.mxu0 0
      %7197 = vmatpush2.bf16.msra.mxu0 %v5380
      %7198 = vmatprep.subr.bf16.mxu0 0
      %7199 = vmatpush2.bf16.msra.mxu0 %v5379
      %7200 = vmatprep.subr.bf16.mxu0 0
      %7201 = vmatpush2.bf16.msra.mxu0 %v5378
      %7202 = vmatprep.mubr.bf16.mxu0 %v1953
      %7203 = vmatmul.mubr.bf16.gmra.mxu0 %v1952
      %v7204 = vpop.f32.mrf.mxu0
      %v7205 = vadd.f32 %v7165, %v7204
      %v7206 = vpop.f32.mrf.mxu0
      %v7207 = vpop.f32.mrf.mxu0
      %v7208 = vpop.f32.mrf.mxu0
      %7209 = vdwg.mxu0
      %7210 = vmatprep.subr.bf16.mxu0 0
      %7211 = vmatpush1.bf16.msra.mxu0 %v5393
      %7212 = vmatprep.subr.bf16.mxu0 0
      %7213 = vmatpush1.bf16.msra.mxu0 %v5392
      %7214 = vmatprep.subr.bf16.mxu0 0
      %7215 = vmatpush1.bf16.msra.mxu0 %v5391
      %7216 = vmatprep.subr.bf16.mxu0 0
      %7217 = vmatpush1.bf16.msra.mxu0 %v5390
      %7218 = vmatprep.subr.bf16.mxu0 0
      %7219 = vmatpush1.bf16.msra.mxu0 %v5389
      %7220 = vmatprep.subr.bf16.mxu0 0
      %7221 = vmatpush1.bf16.msra.mxu0 %v5388
      %7222 = vmatprep.subr.bf16.mxu0 0
      %7223 = vmatpush1.bf16.msra.mxu0 %v5387
      %7224 = vmatprep.subr.bf16.mxu0 0
      %7225 = vmatpush1.bf16.msra.mxu0 %v5386
      %7226 = vmatprep.subr.bf16.mxu0 0
      %7227 = vmatpush2.bf16.msra.mxu0 %v5401
      %7228 = vmatprep.subr.bf16.mxu0 0
      %7229 = vmatpush2.bf16.msra.mxu0 %v5400
      %7230 = vmatprep.subr.bf16.mxu0 0
      %7231 = vmatpush2.bf16.msra.mxu0 %v5399
      %7232 = vmatprep.subr.bf16.mxu0 0
      %7233 = vmatpush2.bf16.msra.mxu0 %v5398
      %7234 = vmatprep.subr.bf16.mxu0 0
      %7235 = vmatpush2.bf16.msra.mxu0 %v5397
      %7236 = vmatprep.subr.bf16.mxu0 0
      %7237 = vmatpush2.bf16.msra.mxu0 %v5396
      %7238 = vmatprep.subr.bf16.mxu0 0
      %7239 = vmatpush2.bf16.msra.mxu0 %v5395
      %7240 = vmatprep.subr.bf16.mxu0 0
      %7241 = vmatpush2.bf16.msra.mxu0 %v5394
      %7242 = vmatprep.mubr.bf16.mxu0 %v1955
      %7243 = vmatmul.mubr.bf16.gmra.mxu0 %v1954
      %v7244 = vpop.f32.mrf.mxu0
      %v7245 = vadd.f32 %v7205, %v7244
      %v7246 = vpop.f32.mrf.mxu0
      %v7247 = vpop.f32.mrf.mxu0
      %v7248 = vpop.f32.mrf.mxu0
      %7249 = vdwg.mxu0
      %7250 = vmatprep.subr.bf16.mxu0 0
      %7251 = vmatpush1.bf16.msra.mxu0 %v5409
      %7252 = vmatprep.subr.bf16.mxu0 0
      %7253 = vmatpush1.bf16.msra.mxu0 %v5408
      %7254 = vmatprep.subr.bf16.mxu0 0
      %7255 = vmatpush1.bf16.msra.mxu0 %v5407
      %7256 = vmatprep.subr.bf16.mxu0 0
      %7257 = vmatpush1.bf16.msra.mxu0 %v5406
      %7258 = vmatprep.subr.bf16.mxu0 0
      %7259 = vmatpush1.bf16.msra.mxu0 %v5405
      %7260 = vmatprep.subr.bf16.mxu0 0
      %7261 = vmatpush1.bf16.msra.mxu0 %v5404
      %7262 = vmatprep.subr.bf16.mxu0 0
      %7263 = vmatpush1.bf16.msra.mxu0 %v5403
      %7264 = vmatprep.subr.bf16.mxu0 0
      %7265 = vmatpush1.bf16.msra.mxu0 %v5402
      %7266 = vmatprep.subr.bf16.mxu0 0
      %7267 = vmatpush2.bf16.msra.mxu0 %v5417
      %7268 = vmatprep.subr.bf16.mxu0 0
      %7269 = vmatpush2.bf16.msra.mxu0 %v5416
      %7270 = vmatprep.subr.bf16.mxu0 0
      %7271 = vmatpush2.bf16.msra.mxu0 %v5415
      %7272 = vmatprep.subr.bf16.mxu0 0
      %7273 = vmatpush2.bf16.msra.mxu0 %v5414
      %7274 = vmatprep.subr.bf16.mxu0 0
      %7275 = vmatpush2.bf16.msra.mxu0 %v5413
      %7276 = vmatprep.subr.bf16.mxu0 0
      %7277 = vmatpush2.bf16.msra.mxu0 %v5412
      %7278 = vmatprep.subr.bf16.mxu0 0
      %7279 = vmatpush2.bf16.msra.mxu0 %v5411
      %7280 = vmatprep.subr.bf16.mxu0 0
      %7281 = vmatpush2.bf16.msra.mxu0 %v5410
      %7282 = vmatprep.mubr.bf16.mxu0 %v1957
      %7283 = vmatmul.mubr.bf16.gmra.mxu0 %v1956
      %v7284 = vpop.f32.mrf.mxu0
      %v7285 = vadd.f32 %v7245, %v7284
      %v7286 = vpop.f32.mrf.mxu0
      %v7287 = vpop.f32.mrf.mxu0
      %v7288 = vpop.f32.mrf.mxu0
      %7289 = vdwg.mxu0
      %7290 = vmatprep.subr.bf16.mxu0 0
      %7291 = vmatpush1.bf16.msra.mxu0 %v5425
      %7292 = vmatprep.subr.bf16.mxu0 0
      %7293 = vmatpush1.bf16.msra.mxu0 %v5424
      %7294 = vmatprep.subr.bf16.mxu0 0
      %7295 = vmatpush1.bf16.msra.mxu0 %v5423
      %7296 = vmatprep.subr.bf16.mxu0 0
      %7297 = vmatpush1.bf16.msra.mxu0 %v5422
      %7298 = vmatprep.subr.bf16.mxu0 0
      %7299 = vmatpush1.bf16.msra.mxu0 %v5421
      %7300 = vmatprep.subr.bf16.mxu0 0
      %7301 = vmatpush1.bf16.msra.mxu0 %v5420
      %7302 = vmatprep.subr.bf16.mxu0 0
      %7303 = vmatpush1.bf16.msra.mxu0 %v5419
      %7304 = vmatprep.subr.bf16.mxu0 0
      %7305 = vmatpush1.bf16.msra.mxu0 %v5418
      %7306 = vmatprep.subr.bf16.mxu0 0
      %7307 = vmatpush2.bf16.msra.mxu0 %v5433
      %7308 = vmatprep.subr.bf16.mxu0 0
      %7309 = vmatpush2.bf16.msra.mxu0 %v5432
      %7310 = vmatprep.subr.bf16.mxu0 0
      %7311 = vmatpush2.bf16.msra.mxu0 %v5431
      %7312 = vmatprep.subr.bf16.mxu0 0
      %7313 = vmatpush2.bf16.msra.mxu0 %v5430
      %7314 = vmatprep.subr.bf16.mxu0 0
      %7315 = vmatpush2.bf16.msra.mxu0 %v5429
      %7316 = vmatprep.subr.bf16.mxu0 0
      %7317 = vmatpush2.bf16.msra.mxu0 %v5428
      %7318 = vmatprep.subr.bf16.mxu0 0
      %7319 = vmatpush2.bf16.msra.mxu0 %v5427
      %7320 = vmatprep.subr.bf16.mxu0 0
      %7321 = vmatpush2.bf16.msra.mxu0 %v5426
      %7322 = vmatprep.mubr.bf16.mxu0 %v1959
      %7323 = vmatmul.mubr.bf16.gmra.mxu0 %v1958
      %v7324 = vpop.f32.mrf.mxu0
      %v7325 = vadd.f32 %v7285, %v7324
      %v7326 = vpop.f32.mrf.mxu0
      %v7327 = vpop.f32.mrf.mxu0
      %v7328 = vpop.f32.mrf.mxu0
      %7329 = vdwg.mxu0
      %7330 = vmatprep.subr.bf16.mxu0 0
      %7331 = vmatpush1.bf16.msra.mxu0 %v5441
      %7332 = vmatprep.subr.bf16.mxu0 0
      %7333 = vmatpush1.bf16.msra.mxu0 %v5440
      %7334 = vmatprep.subr.bf16.mxu0 0
      %7335 = vmatpush1.bf16.msra.mxu0 %v5439
      %7336 = vmatprep.subr.bf16.mxu0 0
      %7337 = vmatpush1.bf16.msra.mxu0 %v5438
      %7338 = vmatprep.subr.bf16.mxu0 0
      %7339 = vmatpush1.bf16.msra.mxu0 %v5437
      %7340 = vmatprep.subr.bf16.mxu0 0
      %7341 = vmatpush1.bf16.msra.mxu0 %v5436
      %7342 = vmatprep.subr.bf16.mxu0 0
      %7343 = vmatpush1.bf16.msra.mxu0 %v5435
      %7344 = vmatprep.subr.bf16.mxu0 0
      %7345 = vmatpush1.bf16.msra.mxu0 %v5434
      %7346 = vmatprep.subr.bf16.mxu0 0
      %7347 = vmatpush2.bf16.msra.mxu0 %v5449
      %7348 = vmatprep.subr.bf16.mxu0 0
      %7349 = vmatpush2.bf16.msra.mxu0 %v5448
      %7350 = vmatprep.subr.bf16.mxu0 0
      %7351 = vmatpush2.bf16.msra.mxu0 %v5447
      %7352 = vmatprep.subr.bf16.mxu0 0
      %7353 = vmatpush2.bf16.msra.mxu0 %v5446
      %7354 = vmatprep.subr.bf16.mxu0 0
      %7355 = vmatpush2.bf16.msra.mxu0 %v5445
      %7356 = vmatprep.subr.bf16.mxu0 0
      %7357 = vmatpush2.bf16.msra.mxu0 %v5444
      %7358 = vmatprep.subr.bf16.mxu0 0
      %7359 = vmatpush2.bf16.msra.mxu0 %v5443
      %7360 = vmatprep.subr.bf16.mxu0 0
      %7361 = vmatpush2.bf16.msra.mxu0 %v5442
      %7362 = vmatprep.mubr.bf16.mxu0 %v1961
      %7363 = vmatmul.mubr.bf16.gmra.mxu0 %v1960
      %v7364 = vpop.f32.mrf.mxu0
      %v7365 = vadd.f32 %v7325, %v7364
      %v7366 = vpop.f32.mrf.mxu0
      %v7367 = vpop.f32.mrf.mxu0
      %v7368 = vpop.f32.mrf.mxu0
      %7369 = vdwg.mxu0
      %7370 = vmatprep.subr.bf16.mxu0 0
      %7371 = vmatpush1.bf16.msra.mxu0 %v5457
      %7372 = vmatprep.subr.bf16.mxu0 0
      %7373 = vmatpush1.bf16.msra.mxu0 %v5456
      %7374 = vmatprep.subr.bf16.mxu0 0
      %7375 = vmatpush1.bf16.msra.mxu0 %v5455
      %7376 = vmatprep.subr.bf16.mxu0 0
      %7377 = vmatpush1.bf16.msra.mxu0 %v5454
      %7378 = vmatprep.subr.bf16.mxu0 0
      %7379 = vmatpush1.bf16.msra.mxu0 %v5453
      %7380 = vmatprep.subr.bf16.mxu0 0
      %7381 = vmatpush1.bf16.msra.mxu0 %v5452
      %7382 = vmatprep.subr.bf16.mxu0 0
      %7383 = vmatpush1.bf16.msra.mxu0 %v5451
      %7384 = vmatprep.subr.bf16.mxu0 0
      %7385 = vmatpush1.bf16.msra.mxu0 %v5450
      %7386 = vmatprep.subr.bf16.mxu0 0
      %7387 = vmatpush2.bf16.msra.mxu0 %v5465
      %7388 = vmatprep.subr.bf16.mxu0 0
      %7389 = vmatpush2.bf16.msra.mxu0 %v5464
      %7390 = vmatprep.subr.bf16.mxu0 0
      %7391 = vmatpush2.bf16.msra.mxu0 %v5463
      %7392 = vmatprep.subr.bf16.mxu0 0
      %7393 = vmatpush2.bf16.msra.mxu0 %v5462
      %7394 = vmatprep.subr.bf16.mxu0 0
      %7395 = vmatpush2.bf16.msra.mxu0 %v5461
      %7396 = vmatprep.subr.bf16.mxu0 0
      %7397 = vmatpush2.bf16.msra.mxu0 %v5460
      %7398 = vmatprep.subr.bf16.mxu0 0
      %7399 = vmatpush2.bf16.msra.mxu0 %v5459
      %7400 = vmatprep.subr.bf16.mxu0 0
      %7401 = vmatpush2.bf16.msra.mxu0 %v5458
      %7402 = vmatprep.mubr.bf16.mxu0 %v1963
      %7403 = vmatmul.mubr.bf16.gmra.mxu0 %v1962
      %v7404 = vpop.f32.mrf.mxu0
      %v7405 = vadd.f32 %v7365, %v7404
      %v7406 = vpop.f32.mrf.mxu0
      %v7407 = vpop.f32.mrf.mxu0
      %v7408 = vpop.f32.mrf.mxu0
      %7409 = vdwg.mxu0
      %7410 = vmatprep.subr.bf16.mxu0 0
      %7411 = vmatpush1.bf16.msra.mxu0 %v5473
      %7412 = vmatprep.subr.bf16.mxu0 0
      %7413 = vmatpush1.bf16.msra.mxu0 %v5472
      %7414 = vmatprep.subr.bf16.mxu0 0
      %7415 = vmatpush1.bf16.msra.mxu0 %v5471
      %7416 = vmatprep.subr.bf16.mxu0 0
      %7417 = vmatpush1.bf16.msra.mxu0 %v5470
      %7418 = vmatprep.subr.bf16.mxu0 0
      %7419 = vmatpush1.bf16.msra.mxu0 %v5469
      %7420 = vmatprep.subr.bf16.mxu0 0
      %7421 = vmatpush1.bf16.msra.mxu0 %v5468
      %7422 = vmatprep.subr.bf16.mxu0 0
      %7423 = vmatpush1.bf16.msra.mxu0 %v5467
      %7424 = vmatprep.subr.bf16.mxu0 0
      %7425 = vmatpush1.bf16.msra.mxu0 %v5466
      %7426 = vmatprep.subr.bf16.mxu0 0
      %7427 = vmatpush2.bf16.msra.mxu0 %v5481
      %7428 = vmatprep.subr.bf16.mxu0 0
      %7429 = vmatpush2.bf16.msra.mxu0 %v5480
      %7430 = vmatprep.subr.bf16.mxu0 0
      %7431 = vmatpush2.bf16.msra.mxu0 %v5479
      %7432 = vmatprep.subr.bf16.mxu0 0
      %7433 = vmatpush2.bf16.msra.mxu0 %v5478
      %7434 = vmatprep.subr.bf16.mxu0 0
      %7435 = vmatpush2.bf16.msra.mxu0 %v5477
      %7436 = vmatprep.subr.bf16.mxu0 0
      %7437 = vmatpush2.bf16.msra.mxu0 %v5476
      %7438 = vmatprep.subr.bf16.mxu0 0
      %7439 = vmatpush2.bf16.msra.mxu0 %v5475
      %7440 = vmatprep.subr.bf16.mxu0 0
      %7441 = vmatpush2.bf16.msra.mxu0 %v5474
      %7442 = vmatprep.mubr.bf16.mxu0 %v1965
      %7443 = vmatmul.mubr.bf16.gmra.mxu0 %v1964
      %v7444 = vpop.f32.mrf.mxu0
      %v7445 = vadd.f32 %v7405, %v7444
      %v7446 = vpop.f32.mrf.mxu0
      %v7447 = vpop.f32.mrf.mxu0
      %v7448 = vpop.f32.mrf.mxu0
      %7449 = vdwg.mxu0
      %7450 = vmatprep.subr.bf16.mxu0 0
      %7451 = vmatpush1.bf16.msra.mxu0 %v5489
      %7452 = vmatprep.subr.bf16.mxu0 0
      %7453 = vmatpush1.bf16.msra.mxu0 %v5488
      %7454 = vmatprep.subr.bf16.mxu0 0
      %7455 = vmatpush1.bf16.msra.mxu0 %v5487
      %7456 = vmatprep.subr.bf16.mxu0 0
      %7457 = vmatpush1.bf16.msra.mxu0 %v5486
      %7458 = vmatprep.subr.bf16.mxu0 0
      %7459 = vmatpush1.bf16.msra.mxu0 %v5485
      %7460 = vmatprep.subr.bf16.mxu0 0
      %7461 = vmatpush1.bf16.msra.mxu0 %v5484
      %7462 = vmatprep.subr.bf16.mxu0 0
      %7463 = vmatpush1.bf16.msra.mxu0 %v5483
      %7464 = vmatprep.subr.bf16.mxu0 0
      %7465 = vmatpush1.bf16.msra.mxu0 %v5482
      %7466 = vmatprep.subr.bf16.mxu0 0
      %7467 = vmatpush2.bf16.msra.mxu0 %v5497
      %7468 = vmatprep.subr.bf16.mxu0 0
      %7469 = vmatpush2.bf16.msra.mxu0 %v5496
      %7470 = vmatprep.subr.bf16.mxu0 0
      %7471 = vmatpush2.bf16.msra.mxu0 %v5495
      %7472 = vmatprep.subr.bf16.mxu0 0
      %7473 = vmatpush2.bf16.msra.mxu0 %v5494
      %7474 = vmatprep.subr.bf16.mxu0 0
      %7475 = vmatpush2.bf16.msra.mxu0 %v5493
      %7476 = vmatprep.subr.bf16.mxu0 0
      %7477 = vmatpush2.bf16.msra.mxu0 %v5492
      %7478 = vmatprep.subr.bf16.mxu0 0
      %7479 = vmatpush2.bf16.msra.mxu0 %v5491
      %7480 = vmatprep.subr.bf16.mxu0 0
      %7481 = vmatpush2.bf16.msra.mxu0 %v5490
      %7482 = vmatprep.mubr.bf16.mxu0 %v1967
      %7483 = vmatmul.mubr.bf16.gmra.mxu0 %v1966
      %v7484 = vpop.f32.mrf.mxu0
      %v7485 = vadd.f32 %v7445, %v7484
      %v7486 = vpop.f32.mrf.mxu0
      %v7487 = vpop.f32.mrf.mxu0
      %v7488 = vpop.f32.mrf.mxu0
      %7489 = vdwg.mxu0
      %7490 = vmatprep.subr.bf16.mxu0 0
      %7491 = vmatpush1.bf16.msra.mxu0 %v5505
      %7492 = vmatprep.subr.bf16.mxu0 0
      %7493 = vmatpush1.bf16.msra.mxu0 %v5504
      %7494 = vmatprep.subr.bf16.mxu0 0
      %7495 = vmatpush1.bf16.msra.mxu0 %v5503
      %7496 = vmatprep.subr.bf16.mxu0 0
      %7497 = vmatpush1.bf16.msra.mxu0 %v5502
      %7498 = vmatprep.subr.bf16.mxu0 0
      %7499 = vmatpush1.bf16.msra.mxu0 %v5501
      %7500 = vmatprep.subr.bf16.mxu0 0
      %7501 = vmatpush1.bf16.msra.mxu0 %v5500
      %7502 = vmatprep.subr.bf16.mxu0 0
      %7503 = vmatpush1.bf16.msra.mxu0 %v5499
      %7504 = vmatprep.subr.bf16.mxu0 0
      %7505 = vmatpush1.bf16.msra.mxu0 %v5498
      %7506 = vmatprep.subr.bf16.mxu0 0
      %7507 = vmatpush2.bf16.msra.mxu0 %v5513
      %7508 = vmatprep.subr.bf16.mxu0 0
      %7509 = vmatpush2.bf16.msra.mxu0 %v5512
      %7510 = vmatprep.subr.bf16.mxu0 0
      %7511 = vmatpush2.bf16.msra.mxu0 %v5511
      %7512 = vmatprep.subr.bf16.mxu0 0
      %7513 = vmatpush2.bf16.msra.mxu0 %v5510
      %7514 = vmatprep.subr.bf16.mxu0 0
      %7515 = vmatpush2.bf16.msra.mxu0 %v5509
      %7516 = vmatprep.subr.bf16.mxu0 0
      %7517 = vmatpush2.bf16.msra.mxu0 %v5508
      %7518 = vmatprep.subr.bf16.mxu0 0
      %7519 = vmatpush2.bf16.msra.mxu0 %v5507
      %7520 = vmatprep.subr.bf16.mxu0 0
      %7521 = vmatpush2.bf16.msra.mxu0 %v5506
      %7522 = vmatprep.mubr.bf16.mxu0 %v1969
      %7523 = vmatmul.mubr.bf16.gmra.mxu0 %v1968
      %v7524 = vpop.f32.mrf.mxu0
      %v7525 = vadd.f32 %v7485, %v7524
      %v7526 = vpop.f32.mrf.mxu0
      %v7527 = vpop.f32.mrf.mxu0
      %v7528 = vpop.f32.mrf.mxu0
      %7529 = vdwg.mxu0
      %7530 = vmatprep.subr.bf16.mxu0 0
      %7531 = vmatpush1.bf16.msra.mxu0 %v5521
      %7532 = vmatprep.subr.bf16.mxu0 0
      %7533 = vmatpush1.bf16.msra.mxu0 %v5520
      %7534 = vmatprep.subr.bf16.mxu0 0
      %7535 = vmatpush1.bf16.msra.mxu0 %v5519
      %7536 = vmatprep.subr.bf16.mxu0 0
      %7537 = vmatpush1.bf16.msra.mxu0 %v5518
      %7538 = vmatprep.subr.bf16.mxu0 0
      %7539 = vmatpush1.bf16.msra.mxu0 %v5517
      %7540 = vmatprep.subr.bf16.mxu0 0
      %7541 = vmatpush1.bf16.msra.mxu0 %v5516
      %7542 = vmatprep.subr.bf16.mxu0 0
      %7543 = vmatpush1.bf16.msra.mxu0 %v5515
      %7544 = vmatprep.subr.bf16.mxu0 0
      %7545 = vmatpush1.bf16.msra.mxu0 %v5514
      %7546 = vmatprep.subr.bf16.mxu0 0
      %7547 = vmatpush2.bf16.msra.mxu0 %v5529
      %7548 = vmatprep.subr.bf16.mxu0 0
      %7549 = vmatpush2.bf16.msra.mxu0 %v5528
      %7550 = vmatprep.subr.bf16.mxu0 0
      %7551 = vmatpush2.bf16.msra.mxu0 %v5527
      %7552 = vmatprep.subr.bf16.mxu0 0
      %7553 = vmatpush2.bf16.msra.mxu0 %v5526
      %7554 = vmatprep.subr.bf16.mxu0 0
      %7555 = vmatpush2.bf16.msra.mxu0 %v5525
      %7556 = vmatprep.subr.bf16.mxu0 0
      %7557 = vmatpush2.bf16.msra.mxu0 %v5524
      %7558 = vmatprep.subr.bf16.mxu0 0
      %7559 = vmatpush2.bf16.msra.mxu0 %v5523
      %7560 = vmatprep.subr.bf16.mxu0 0
      %7561 = vmatpush2.bf16.msra.mxu0 %v5522
      %7562 = vmatprep.mubr.bf16.mxu0 %v1971
      %7563 = vmatmul.mubr.bf16.gmra.mxu0 %v1970
      %v7564 = vpop.f32.mrf.mxu0
      %v7565 = vadd.f32 %v7525, %v7564
      %v7566 = vpop.f32.mrf.mxu0
      %v7567 = vpop.f32.mrf.mxu0
      %v7568 = vpop.f32.mrf.mxu0
      %7569 = vdwg.mxu0
      %7570 = vmatprep.subr.bf16.mxu0 0
      %7571 = vmatpush1.bf16.msra.mxu0 %v5537
      %7572 = vmatprep.subr.bf16.mxu0 0
      %7573 = vmatpush1.bf16.msra.mxu0 %v5536
      %7574 = vmatprep.subr.bf16.mxu0 0
      %7575 = vmatpush1.bf16.msra.mxu0 %v5535
      %7576 = vmatprep.subr.bf16.mxu0 0
      %7577 = vmatpush1.bf16.msra.mxu0 %v5534
      %7578 = vmatprep.subr.bf16.mxu0 0
      %7579 = vmatpush1.bf16.msra.mxu0 %v5533
      %7580 = vmatprep.subr.bf16.mxu0 0
      %7581 = vmatpush1.bf16.msra.mxu0 %v5532
      %7582 = vmatprep.subr.bf16.mxu0 0
      %7583 = vmatpush1.bf16.msra.mxu0 %v5531
      %7584 = vmatprep.subr.bf16.mxu0 0
      %7585 = vmatpush1.bf16.msra.mxu0 %v5530
      %7586 = vmatprep.subr.bf16.mxu0 0
      %7587 = vmatpush2.bf16.msra.mxu0 %v5545
      %7588 = vmatprep.subr.bf16.mxu0 0
      %7589 = vmatpush2.bf16.msra.mxu0 %v5544
      %7590 = vmatprep.subr.bf16.mxu0 0
      %7591 = vmatpush2.bf16.msra.mxu0 %v5543
      %7592 = vmatprep.subr.bf16.mxu0 0
      %7593 = vmatpush2.bf16.msra.mxu0 %v5542
      %7594 = vmatprep.subr.bf16.mxu0 0
      %7595 = vmatpush2.bf16.msra.mxu0 %v5541
      %7596 = vmatprep.subr.bf16.mxu0 0
      %7597 = vmatpush2.bf16.msra.mxu0 %v5540
      %7598 = vmatprep.subr.bf16.mxu0 0
      %7599 = vmatpush2.bf16.msra.mxu0 %v5539
      %7600 = vmatprep.subr.bf16.mxu0 0
      %7601 = vmatpush2.bf16.msra.mxu0 %v5538
      %7602 = vmatprep.mubr.bf16.mxu0 %v1973
      %7603 = vmatmul.mubr.bf16.gmra.mxu0 %v1972
      %v7604 = vpop.f32.mrf.mxu0
      %v7605 = vadd.f32 %v7565, %v7604
      %v7606 = vpop.f32.mrf.mxu0
      %v7607 = vpop.f32.mrf.mxu0
      %v7608 = vpop.f32.mrf.mxu0
      %7609 = vdwg.mxu0
      %7610 = vmatprep.subr.bf16.mxu0 0
      %7611 = vmatpush1.bf16.msra.mxu0 %v5553
      %7612 = vmatprep.subr.bf16.mxu0 0
      %7613 = vmatpush1.bf16.msra.mxu0 %v5552
      %7614 = vmatprep.subr.bf16.mxu0 0
      %7615 = vmatpush1.bf16.msra.mxu0 %v5551
      %7616 = vmatprep.subr.bf16.mxu0 0
      %7617 = vmatpush1.bf16.msra.mxu0 %v5550
      %7618 = vmatprep.subr.bf16.mxu0 0
      %7619 = vmatpush1.bf16.msra.mxu0 %v5549
      %7620 = vmatprep.subr.bf16.mxu0 0
      %7621 = vmatpush1.bf16.msra.mxu0 %v5548
      %7622 = vmatprep.subr.bf16.mxu0 0
      %7623 = vmatpush1.bf16.msra.mxu0 %v5547
      %7624 = vmatprep.subr.bf16.mxu0 0
      %7625 = vmatpush1.bf16.msra.mxu0 %v5546
      %7626 = vmatprep.subr.bf16.mxu0 0
      %7627 = vmatpush2.bf16.msra.mxu0 %v5561
      %7628 = vmatprep.subr.bf16.mxu0 0
      %7629 = vmatpush2.bf16.msra.mxu0 %v5560
      %7630 = vmatprep.subr.bf16.mxu0 0
      %7631 = vmatpush2.bf16.msra.mxu0 %v5559
      %7632 = vmatprep.subr.bf16.mxu0 0
      %7633 = vmatpush2.bf16.msra.mxu0 %v5558
      %7634 = vmatprep.subr.bf16.mxu0 0
      %7635 = vmatpush2.bf16.msra.mxu0 %v5557
      %7636 = vmatprep.subr.bf16.mxu0 0
      %7637 = vmatpush2.bf16.msra.mxu0 %v5556
      %7638 = vmatprep.subr.bf16.mxu0 0
      %7639 = vmatpush2.bf16.msra.mxu0 %v5555
      %7640 = vmatprep.subr.bf16.mxu0 0
      %7641 = vmatpush2.bf16.msra.mxu0 %v5554
      %7642 = vmatprep.mubr.bf16.mxu0 %v1975
      %7643 = vmatmul.mubr.bf16.gmra.mxu0 %v1974
      %v7644 = vpop.f32.mrf.mxu0
      %v7645 = vadd.f32 %v7605, %v7644
      %v7646 = vpop.f32.mrf.mxu0
      %v7647 = vpop.f32.mrf.mxu0
      %v7648 = vpop.f32.mrf.mxu0
      %7649 = vdwg.mxu0
      %7650 = vmatprep.subr.bf16.mxu0 0
      %7651 = vmatpush1.bf16.msra.mxu0 %v5569
      %7652 = vmatprep.subr.bf16.mxu0 0
      %7653 = vmatpush1.bf16.msra.mxu0 %v5568
      %7654 = vmatprep.subr.bf16.mxu0 0
      %7655 = vmatpush1.bf16.msra.mxu0 %v5567
      %7656 = vmatprep.subr.bf16.mxu0 0
      %7657 = vmatpush1.bf16.msra.mxu0 %v5566
      %7658 = vmatprep.subr.bf16.mxu0 0
      %7659 = vmatpush1.bf16.msra.mxu0 %v5565
      %7660 = vmatprep.subr.bf16.mxu0 0
      %7661 = vmatpush1.bf16.msra.mxu0 %v5564
      %7662 = vmatprep.subr.bf16.mxu0 0
      %7663 = vmatpush1.bf16.msra.mxu0 %v5563
      %7664 = vmatprep.subr.bf16.mxu0 0
      %7665 = vmatpush1.bf16.msra.mxu0 %v5562
      %7666 = vmatprep.subr.bf16.mxu0 0
      %7667 = vmatpush2.bf16.msra.mxu0 %v5577
      %7668 = vmatprep.subr.bf16.mxu0 0
      %7669 = vmatpush2.bf16.msra.mxu0 %v5576
      %7670 = vmatprep.subr.bf16.mxu0 0
      %7671 = vmatpush2.bf16.msra.mxu0 %v5575
      %7672 = vmatprep.subr.bf16.mxu0 0
      %7673 = vmatpush2.bf16.msra.mxu0 %v5574
      %7674 = vmatprep.subr.bf16.mxu0 0
      %7675 = vmatpush2.bf16.msra.mxu0 %v5573
      %7676 = vmatprep.subr.bf16.mxu0 0
      %7677 = vmatpush2.bf16.msra.mxu0 %v5572
      %7678 = vmatprep.subr.bf16.mxu0 0
      %7679 = vmatpush2.bf16.msra.mxu0 %v5571
      %7680 = vmatprep.subr.bf16.mxu0 0
      %7681 = vmatpush2.bf16.msra.mxu0 %v5570
      %7682 = vmatprep.mubr.bf16.mxu0 %v1977
      %7683 = vmatmul.mubr.bf16.gmra.mxu0 %v1976
      %v7684 = vpop.f32.mrf.mxu0
      %v7685 = vadd.f32 %v7645, %v7684
      %v7686 = vpop.f32.mrf.mxu0
      %v7687 = vpop.f32.mrf.mxu0
      %v7688 = vpop.f32.mrf.mxu0
      %7689 = vdwg.mxu0
      %7690 = vmatprep.subr.bf16.mxu0 0
      %7691 = vmatpush1.bf16.msra.mxu0 %v5585
      %7692 = vmatprep.subr.bf16.mxu0 0
      %7693 = vmatpush1.bf16.msra.mxu0 %v5584
      %7694 = vmatprep.subr.bf16.mxu0 0
      %7695 = vmatpush1.bf16.msra.mxu0 %v5583
      %7696 = vmatprep.subr.bf16.mxu0 0
      %7697 = vmatpush1.bf16.msra.mxu0 %v5582
      %7698 = vmatprep.subr.bf16.mxu0 0
      %7699 = vmatpush1.bf16.msra.mxu0 %v5581
      %7700 = vmatprep.subr.bf16.mxu0 0
      %7701 = vmatpush1.bf16.msra.mxu0 %v5580
      %7702 = vmatprep.subr.bf16.mxu0 0
      %7703 = vmatpush1.bf16.msra.mxu0 %v5579
      %7704 = vmatprep.subr.bf16.mxu0 0
      %7705 = vmatpush1.bf16.msra.mxu0 %v5578
      %7706 = vmatprep.subr.bf16.mxu0 0
      %7707 = vmatpush2.bf16.msra.mxu0 %v5593
      %7708 = vmatprep.subr.bf16.mxu0 0
      %7709 = vmatpush2.bf16.msra.mxu0 %v5592
      %7710 = vmatprep.subr.bf16.mxu0 0
      %7711 = vmatpush2.bf16.msra.mxu0 %v5591
      %7712 = vmatprep.subr.bf16.mxu0 0
      %7713 = vmatpush2.bf16.msra.mxu0 %v5590
      %7714 = vmatprep.subr.bf16.mxu0 0
      %7715 = vmatpush2.bf16.msra.mxu0 %v5589
      %7716 = vmatprep.subr.bf16.mxu0 0
      %7717 = vmatpush2.bf16.msra.mxu0 %v5588
      %7718 = vmatprep.subr.bf16.mxu0 0
      %7719 = vmatpush2.bf16.msra.mxu0 %v5587
      %7720 = vmatprep.subr.bf16.mxu0 0
      %7721 = vmatpush2.bf16.msra.mxu0 %v5586
      %7722 = vmatprep.mubr.bf16.mxu0 %v1979
      %7723 = vmatmul.mubr.bf16.gmra.mxu0 %v1978
      %v7724 = vpop.f32.mrf.mxu0
      %v7725 = vadd.f32 %v7685, %v7724
      %v7726 = vpop.f32.mrf.mxu0
      %v7727 = vpop.f32.mrf.mxu0
      %v7728 = vpop.f32.mrf.mxu0
      %7729 = vdwg.mxu0
      %7730 = vmatprep.subr.bf16.mxu0 0
      %7731 = vmatpush1.bf16.msra.mxu0 %v5601
      %7732 = vmatprep.subr.bf16.mxu0 0
      %7733 = vmatpush1.bf16.msra.mxu0 %v5600
      %7734 = vmatprep.subr.bf16.mxu0 0
      %7735 = vmatpush1.bf16.msra.mxu0 %v5599
      %7736 = vmatprep.subr.bf16.mxu0 0
      %7737 = vmatpush1.bf16.msra.mxu0 %v5598
      %7738 = vmatprep.subr.bf16.mxu0 0
      %7739 = vmatpush1.bf16.msra.mxu0 %v5597
      %7740 = vmatprep.subr.bf16.mxu0 0
      %7741 = vmatpush1.bf16.msra.mxu0 %v5596
      %7742 = vmatprep.subr.bf16.mxu0 0
      %7743 = vmatpush1.bf16.msra.mxu0 %v5595
      %7744 = vmatprep.subr.bf16.mxu0 0
      %7745 = vmatpush1.bf16.msra.mxu0 %v5594
      %7746 = vmatprep.subr.bf16.mxu0 0
      %7747 = vmatpush2.bf16.msra.mxu0 %v5609
      %7748 = vmatprep.subr.bf16.mxu0 0
      %7749 = vmatpush2.bf16.msra.mxu0 %v5608
      %7750 = vmatprep.subr.bf16.mxu0 0
      %7751 = vmatpush2.bf16.msra.mxu0 %v5607
      %7752 = vmatprep.subr.bf16.mxu0 0
      %7753 = vmatpush2.bf16.msra.mxu0 %v5606
      %7754 = vmatprep.subr.bf16.mxu0 0
      %7755 = vmatpush2.bf16.msra.mxu0 %v5605
      %7756 = vmatprep.subr.bf16.mxu0 0
      %7757 = vmatpush2.bf16.msra.mxu0 %v5604
      %7758 = vmatprep.subr.bf16.mxu0 0
      %7759 = vmatpush2.bf16.msra.mxu0 %v5603
      %7760 = vmatprep.subr.bf16.mxu0 0
      %7761 = vmatpush2.bf16.msra.mxu0 %v5602
      %7762 = vmatprep.mubr.bf16.mxu0 %v1981
      %7763 = vmatmul.mubr.bf16.gmra.mxu0 %v1980
      %v7764 = vpop.f32.mrf.mxu0
      %v7765 = vadd.f32 %v7725, %v7764
      %v7766 = vpop.f32.mrf.mxu0
      %v7767 = vpop.f32.mrf.mxu0
      %v7768 = vpop.f32.mrf.mxu0
      %7769 = vdwg.mxu0
      %7770 = vmatprep.subr.bf16.mxu0 0
      %7771 = vmatpush1.bf16.msra.mxu0 %v5617
      %7772 = vmatprep.subr.bf16.mxu0 0
      %7773 = vmatpush1.bf16.msra.mxu0 %v5616
      %7774 = vmatprep.subr.bf16.mxu0 0
      %7775 = vmatpush1.bf16.msra.mxu0 %v5615
      %7776 = vmatprep.subr.bf16.mxu0 0
      %7777 = vmatpush1.bf16.msra.mxu0 %v5614
      %7778 = vmatprep.subr.bf16.mxu0 0
      %7779 = vmatpush1.bf16.msra.mxu0 %v5613
      %7780 = vmatprep.subr.bf16.mxu0 0
      %7781 = vmatpush1.bf16.msra.mxu0 %v5612
      %7782 = vmatprep.subr.bf16.mxu0 0
      %7783 = vmatpush1.bf16.msra.mxu0 %v5611
      %7784 = vmatprep.subr.bf16.mxu0 0
      %7785 = vmatpush1.bf16.msra.mxu0 %v5610
      %7786 = vmatprep.subr.bf16.mxu0 0
      %7787 = vmatpush2.bf16.msra.mxu0 %v5625
      %7788 = vmatprep.subr.bf16.mxu0 0
      %7789 = vmatpush2.bf16.msra.mxu0 %v5624
      %7790 = vmatprep.subr.bf16.mxu0 0
      %7791 = vmatpush2.bf16.msra.mxu0 %v5623
      %7792 = vmatprep.subr.bf16.mxu0 0
      %7793 = vmatpush2.bf16.msra.mxu0 %v5622
      %7794 = vmatprep.subr.bf16.mxu0 0
      %7795 = vmatpush2.bf16.msra.mxu0 %v5621
      %7796 = vmatprep.subr.bf16.mxu0 0
      %7797 = vmatpush2.bf16.msra.mxu0 %v5620
      %7798 = vmatprep.subr.bf16.mxu0 0
      %7799 = vmatpush2.bf16.msra.mxu0 %v5619
      %7800 = vmatprep.subr.bf16.mxu0 0
      %7801 = vmatpush2.bf16.msra.mxu0 %v5618
      %7802 = vmatprep.mubr.bf16.mxu0 %v1983
      %7803 = vmatmul.mubr.bf16.gmra.mxu0 %v1982
      %v7804 = vpop.f32.mrf.mxu0
      %v7805 = vadd.f32 %v7765, %v7804
      %v7806 = vpop.f32.mrf.mxu0
      %v7807 = vpop.f32.mrf.mxu0
      %v7808 = vpop.f32.mrf.mxu0
      %7809 = vdwg.mxu0
      %7810 = vmatprep.subr.bf16.mxu0 0
      %7811 = vmatpush1.bf16.msra.mxu0 %v5633
      %7812 = vmatprep.subr.bf16.mxu0 0
      %7813 = vmatpush1.bf16.msra.mxu0 %v5632
      %7814 = vmatprep.subr.bf16.mxu0 0
      %7815 = vmatpush1.bf16.msra.mxu0 %v5631
      %7816 = vmatprep.subr.bf16.mxu0 0
      %7817 = vmatpush1.bf16.msra.mxu0 %v5630
      %7818 = vmatprep.subr.bf16.mxu0 0
      %7819 = vmatpush1.bf16.msra.mxu0 %v5629
      %7820 = vmatprep.subr.bf16.mxu0 0
      %7821 = vmatpush1.bf16.msra.mxu0 %v5628
      %7822 = vmatprep.subr.bf16.mxu0 0
      %7823 = vmatpush1.bf16.msra.mxu0 %v5627
      %7824 = vmatprep.subr.bf16.mxu0 0
      %7825 = vmatpush1.bf16.msra.mxu0 %v5626
      %7826 = vmatprep.subr.bf16.mxu0 0
      %7827 = vmatpush2.bf16.msra.mxu0 %v5641
      %7828 = vmatprep.subr.bf16.mxu0 0
      %7829 = vmatpush2.bf16.msra.mxu0 %v5640
      %7830 = vmatprep.subr.bf16.mxu0 0
      %7831 = vmatpush2.bf16.msra.mxu0 %v5639
      %7832 = vmatprep.subr.bf16.mxu0 0
      %7833 = vmatpush2.bf16.msra.mxu0 %v5638
      %7834 = vmatprep.subr.bf16.mxu0 0
      %7835 = vmatpush2.bf16.msra.mxu0 %v5637
      %7836 = vmatprep.subr.bf16.mxu0 0
      %7837 = vmatpush2.bf16.msra.mxu0 %v5636
      %7838 = vmatprep.subr.bf16.mxu0 0
      %7839 = vmatpush2.bf16.msra.mxu0 %v5635
      %7840 = vmatprep.subr.bf16.mxu0 0
      %7841 = vmatpush2.bf16.msra.mxu0 %v5634
      %7842 = vmatprep.mubr.bf16.mxu0 %v1985
      %7843 = vmatmul.mubr.bf16.gmra.mxu0 %v1984
      %v7844 = vpop.f32.mrf.mxu0
      %v7845 = vadd.f32 %v7805, %v7844
      %v7846 = vpop.f32.mrf.mxu0
      %v7847 = vpop.f32.mrf.mxu0
      %v7848 = vpop.f32.mrf.mxu0
      %7849 = vdwg.mxu0
      %7850 = vmatprep.subr.bf16.mxu0 0
      %7851 = vmatpush1.bf16.msra.mxu0 %v5649
      %7852 = vmatprep.subr.bf16.mxu0 0
      %7853 = vmatpush1.bf16.msra.mxu0 %v5648
      %7854 = vmatprep.subr.bf16.mxu0 0
      %7855 = vmatpush1.bf16.msra.mxu0 %v5647
      %7856 = vmatprep.subr.bf16.mxu0 0
      %7857 = vmatpush1.bf16.msra.mxu0 %v5646
      %7858 = vmatprep.subr.bf16.mxu0 0
      %7859 = vmatpush1.bf16.msra.mxu0 %v5645
      %7860 = vmatprep.subr.bf16.mxu0 0
      %7861 = vmatpush1.bf16.msra.mxu0 %v5644
      %7862 = vmatprep.subr.bf16.mxu0 0
      %7863 = vmatpush1.bf16.msra.mxu0 %v5643
      %7864 = vmatprep.subr.bf16.mxu0 0
      %7865 = vmatpush1.bf16.msra.mxu0 %v5642
      %7866 = vmatprep.subr.bf16.mxu0 0
      %7867 = vmatpush2.bf16.msra.mxu0 %v5657
      %7868 = vmatprep.subr.bf16.mxu0 0
      %7869 = vmatpush2.bf16.msra.mxu0 %v5656
      %7870 = vmatprep.subr.bf16.mxu0 0
      %7871 = vmatpush2.bf16.msra.mxu0 %v5655
      %7872 = vmatprep.subr.bf16.mxu0 0
      %7873 = vmatpush2.bf16.msra.mxu0 %v5654
      %7874 = vmatprep.subr.bf16.mxu0 0
      %7875 = vmatpush2.bf16.msra.mxu0 %v5653
      %7876 = vmatprep.subr.bf16.mxu0 0
      %7877 = vmatpush2.bf16.msra.mxu0 %v5652
      %7878 = vmatprep.subr.bf16.mxu0 0
      %7879 = vmatpush2.bf16.msra.mxu0 %v5651
      %7880 = vmatprep.subr.bf16.mxu0 0
      %7881 = vmatpush2.bf16.msra.mxu0 %v5650
      %7882 = vmatprep.mubr.bf16.mxu0 %v1987
      %7883 = vmatmul.mubr.bf16.gmra.mxu0 %v1986
      %v7884 = vpop.f32.mrf.mxu0
      %v7885 = vadd.f32 %v7845, %v7884
      %v7886 = vpop.f32.mrf.mxu0
      %v7887 = vpop.f32.mrf.mxu0
      %v7888 = vpop.f32.mrf.mxu0
      %7889 = vdwg.mxu0
      %7890 = vmatprep.subr.bf16.mxu0 0
      %7891 = vmatpush1.bf16.msra.mxu0 %v5665
      %7892 = vmatprep.subr.bf16.mxu0 0
      %7893 = vmatpush1.bf16.msra.mxu0 %v5664
      %7894 = vmatprep.subr.bf16.mxu0 0
      %7895 = vmatpush1.bf16.msra.mxu0 %v5663
      %7896 = vmatprep.subr.bf16.mxu0 0
      %7897 = vmatpush1.bf16.msra.mxu0 %v5662
      %7898 = vmatprep.subr.bf16.mxu0 0
      %7899 = vmatpush1.bf16.msra.mxu0 %v5661
      %7900 = vmatprep.subr.bf16.mxu0 0
      %7901 = vmatpush1.bf16.msra.mxu0 %v5660
      %7902 = vmatprep.subr.bf16.mxu0 0
      %7903 = vmatpush1.bf16.msra.mxu0 %v5659
      %7904 = vmatprep.subr.bf16.mxu0 0
      %7905 = vmatpush1.bf16.msra.mxu0 %v5658
      %7906 = vmatprep.subr.bf16.mxu0 0
      %7907 = vmatpush2.bf16.msra.mxu0 %v5673
      %7908 = vmatprep.subr.bf16.mxu0 0
      %7909 = vmatpush2.bf16.msra.mxu0 %v5672
      %7910 = vmatprep.subr.bf16.mxu0 0
      %7911 = vmatpush2.bf16.msra.mxu0 %v5671
      %7912 = vmatprep.subr.bf16.mxu0 0
      %7913 = vmatpush2.bf16.msra.mxu0 %v5670
      %7914 = vmatprep.subr.bf16.mxu0 0
      %7915 = vmatpush2.bf16.msra.mxu0 %v5669
      %7916 = vmatprep.subr.bf16.mxu0 0
      %7917 = vmatpush2.bf16.msra.mxu0 %v5668
      %7918 = vmatprep.subr.bf16.mxu0 0
      %7919 = vmatpush2.bf16.msra.mxu0 %v5667
      %7920 = vmatprep.subr.bf16.mxu0 0
      %7921 = vmatpush2.bf16.msra.mxu0 %v5666
      %7922 = vmatprep.mubr.bf16.mxu0 %v1989
      %7923 = vmatmul.mubr.bf16.gmra.mxu0 %v1988
      %v7924 = vpop.f32.mrf.mxu0
      %v7925 = vadd.f32 %v7885, %v7924
      %v7926 = vpop.f32.mrf.mxu0
      %v7927 = vpop.f32.mrf.mxu0
      %v7928 = vpop.f32.mrf.mxu0
      %7929 = vdwg.mxu0
      %7930 = vmatprep.subr.bf16.mxu0 0
      %7931 = vmatpush1.bf16.msra.mxu0 %v5681
      %7932 = vmatprep.subr.bf16.mxu0 0
      %7933 = vmatpush1.bf16.msra.mxu0 %v5680
      %7934 = vmatprep.subr.bf16.mxu0 0
      %7935 = vmatpush1.bf16.msra.mxu0 %v5679
      %7936 = vmatprep.subr.bf16.mxu0 0
      %7937 = vmatpush1.bf16.msra.mxu0 %v5678
      %7938 = vmatprep.subr.bf16.mxu0 0
      %7939 = vmatpush1.bf16.msra.mxu0 %v5677
      %7940 = vmatprep.subr.bf16.mxu0 0
      %7941 = vmatpush1.bf16.msra.mxu0 %v5676
      %7942 = vmatprep.subr.bf16.mxu0 0
      %7943 = vmatpush1.bf16.msra.mxu0 %v5675
      %7944 = vmatprep.subr.bf16.mxu0 0
      %7945 = vmatpush1.bf16.msra.mxu0 %v5674
      %7946 = vmatprep.subr.bf16.mxu0 0
      %7947 = vmatpush2.bf16.msra.mxu0 %v5689
      %7948 = vmatprep.subr.bf16.mxu0 0
      %7949 = vmatpush2.bf16.msra.mxu0 %v5688
      %7950 = vmatprep.subr.bf16.mxu0 0
      %7951 = vmatpush2.bf16.msra.mxu0 %v5687
      %7952 = vmatprep.subr.bf16.mxu0 0
      %7953 = vmatpush2.bf16.msra.mxu0 %v5686
      %7954 = vmatprep.subr.bf16.mxu0 0
      %7955 = vmatpush2.bf16.msra.mxu0 %v5685
      %7956 = vmatprep.subr.bf16.mxu0 0
      %7957 = vmatpush2.bf16.msra.mxu0 %v5684
      %7958 = vmatprep.subr.bf16.mxu0 0
      %7959 = vmatpush2.bf16.msra.mxu0 %v5683
      %7960 = vmatprep.subr.bf16.mxu0 0
      %7961 = vmatpush2.bf16.msra.mxu0 %v5682
      %7962 = vmatprep.mubr.bf16.mxu0 %v1991
      %7963 = vmatmul.mubr.bf16.gmra.mxu0 %v1990
      %v7964 = vpop.f32.mrf.mxu0
      %v7965 = vadd.f32 %v7925, %v7964
      %v7966 = vpop.f32.mrf.mxu0
      %v7967 = vpop.f32.mrf.mxu0
      %v7968 = vpop.f32.mrf.mxu0
      %7969 = vdwg.mxu0
      %7970 = vmatprep.subr.bf16.mxu0 0
      %7971 = vmatpush1.bf16.msra.mxu0 %v5697
      %7972 = vmatprep.subr.bf16.mxu0 0
      %7973 = vmatpush1.bf16.msra.mxu0 %v5696
      %7974 = vmatprep.subr.bf16.mxu0 0
      %7975 = vmatpush1.bf16.msra.mxu0 %v5695
      %7976 = vmatprep.subr.bf16.mxu0 0
      %7977 = vmatpush1.bf16.msra.mxu0 %v5694
      %7978 = vmatprep.subr.bf16.mxu0 0
      %7979 = vmatpush1.bf16.msra.mxu0 %v5693
      %7980 = vmatprep.subr.bf16.mxu0 0
      %7981 = vmatpush1.bf16.msra.mxu0 %v5692
      %7982 = vmatprep.subr.bf16.mxu0 0
      %7983 = vmatpush1.bf16.msra.mxu0 %v5691
      %7984 = vmatprep.subr.bf16.mxu0 0
      %7985 = vmatpush1.bf16.msra.mxu0 %v5690
      %7986 = vmatprep.subr.bf16.mxu0 0
      %7987 = vmatpush2.bf16.msra.mxu0 %v5705
      %7988 = vmatprep.subr.bf16.mxu0 0
      %7989 = vmatpush2.bf16.msra.mxu0 %v5704
      %7990 = vmatprep.subr.bf16.mxu0 0
      %7991 = vmatpush2.bf16.msra.mxu0 %v5703
      %7992 = vmatprep.subr.bf16.mxu0 0
      %7993 = vmatpush2.bf16.msra.mxu0 %v5702
      %7994 = vmatprep.subr.bf16.mxu0 0
      %7995 = vmatpush2.bf16.msra.mxu0 %v5701
      %7996 = vmatprep.subr.bf16.mxu0 0
      %7997 = vmatpush2.bf16.msra.mxu0 %v5700
      %7998 = vmatprep.subr.bf16.mxu0 0
      %7999 = vmatpush2.bf16.msra.mxu0 %v5699
      %8000 = vmatprep.subr.bf16.mxu0 0
      %8001 = vmatpush2.bf16.msra.mxu0 %v5698
      %8002 = vmatprep.mubr.bf16.mxu0 %v1993
      %8003 = vmatmul.mubr.bf16.gmra.mxu0 %v1992
      %v8004 = vpop.f32.mrf.mxu0
      %v8005 = vadd.f32 %v7965, %v8004
      %v8006 = vpop.f32.mrf.mxu0
      %v8007 = vpop.f32.mrf.mxu0
      %v8008 = vpop.f32.mrf.mxu0
      %8009 = vdwg.mxu0
      %8010 = vmatprep.subr.bf16.mxu0 0
      %8011 = vmatpush1.bf16.msra.mxu0 %v5713
      %8012 = vmatprep.subr.bf16.mxu0 0
      %8013 = vmatpush1.bf16.msra.mxu0 %v5712
      %8014 = vmatprep.subr.bf16.mxu0 0
      %8015 = vmatpush1.bf16.msra.mxu0 %v5711
      %8016 = vmatprep.subr.bf16.mxu0 0
      %8017 = vmatpush1.bf16.msra.mxu0 %v5710
      %8018 = vmatprep.subr.bf16.mxu0 0
      %8019 = vmatpush1.bf16.msra.mxu0 %v5709
      %8020 = vmatprep.subr.bf16.mxu0 0
      %8021 = vmatpush1.bf16.msra.mxu0 %v5708
      %8022 = vmatprep.subr.bf16.mxu0 0
      %8023 = vmatpush1.bf16.msra.mxu0 %v5707
      %8024 = vmatprep.subr.bf16.mxu0 0
      %8025 = vmatpush1.bf16.msra.mxu0 %v5706
      %8026 = vmatprep.subr.bf16.mxu0 0
      %8027 = vmatpush2.bf16.msra.mxu0 %v5721
      %8028 = vmatprep.subr.bf16.mxu0 0
      %8029 = vmatpush2.bf16.msra.mxu0 %v5720
      %8030 = vmatprep.subr.bf16.mxu0 0
      %8031 = vmatpush2.bf16.msra.mxu0 %v5719
      %8032 = vmatprep.subr.bf16.mxu0 0
      %8033 = vmatpush2.bf16.msra.mxu0 %v5718
      %8034 = vmatprep.subr.bf16.mxu0 0
      %8035 = vmatpush2.bf16.msra.mxu0 %v5717
      %8036 = vmatprep.subr.bf16.mxu0 0
      %8037 = vmatpush2.bf16.msra.mxu0 %v5716
      %8038 = vmatprep.subr.bf16.mxu0 0
      %8039 = vmatpush2.bf16.msra.mxu0 %v5715
      %8040 = vmatprep.subr.bf16.mxu0 0
      %8041 = vmatpush2.bf16.msra.mxu0 %v5714
      %8042 = vmatprep.mubr.bf16.mxu0 %v1995
      %8043 = vmatmul.mubr.bf16.gmra.mxu0 %v1994
      %v8044 = vpop.f32.mrf.mxu0
      %v8045 = vadd.f32 %v8005, %v8044
      %v8046 = vpop.f32.mrf.mxu0
      %v8047 = vpop.f32.mrf.mxu0
      %v8048 = vpop.f32.mrf.mxu0
      %8049 = vdwg.mxu0
      %8050 = vmatprep.subr.bf16.mxu0 0
      %8051 = vmatpush1.bf16.msra.mxu0 %v5729
      %8052 = vmatprep.subr.bf16.mxu0 0
      %8053 = vmatpush1.bf16.msra.mxu0 %v5728
      %8054 = vmatprep.subr.bf16.mxu0 0
      %8055 = vmatpush1.bf16.msra.mxu0 %v5727
      %8056 = vmatprep.subr.bf16.mxu0 0
      %8057 = vmatpush1.bf16.msra.mxu0 %v5726
      %8058 = vmatprep.subr.bf16.mxu0 0
      %8059 = vmatpush1.bf16.msra.mxu0 %v5725
      %8060 = vmatprep.subr.bf16.mxu0 0
      %8061 = vmatpush1.bf16.msra.mxu0 %v5724
      %8062 = vmatprep.subr.bf16.mxu0 0
      %8063 = vmatpush1.bf16.msra.mxu0 %v5723
      %8064 = vmatprep.subr.bf16.mxu0 0
      %8065 = vmatpush1.bf16.msra.mxu0 %v5722
      %8066 = vmatprep.subr.bf16.mxu0 0
      %8067 = vmatpush2.bf16.msra.mxu0 %v5737
      %8068 = vmatprep.subr.bf16.mxu0 0
      %8069 = vmatpush2.bf16.msra.mxu0 %v5736
      %8070 = vmatprep.subr.bf16.mxu0 0
      %8071 = vmatpush2.bf16.msra.mxu0 %v5735
      %8072 = vmatprep.subr.bf16.mxu0 0
      %8073 = vmatpush2.bf16.msra.mxu0 %v5734
      %8074 = vmatprep.subr.bf16.mxu0 0
      %8075 = vmatpush2.bf16.msra.mxu0 %v5733
      %8076 = vmatprep.subr.bf16.mxu0 0
      %8077 = vmatpush2.bf16.msra.mxu0 %v5732
      %8078 = vmatprep.subr.bf16.mxu0 0
      %8079 = vmatpush2.bf16.msra.mxu0 %v5731
      %8080 = vmatprep.subr.bf16.mxu0 0
      %8081 = vmatpush2.bf16.msra.mxu0 %v5730
      %8082 = vmatprep.mubr.bf16.mxu0 %v1997
      %8083 = vmatmul.mubr.bf16.gmra.mxu0 %v1996
      %v8084 = vpop.f32.mrf.mxu0
      %v8085 = vadd.f32 %v8045, %v8084
      %v8086 = vpop.f32.mrf.mxu0
      %v8087 = vpop.f32.mrf.mxu0
      %v8088 = vpop.f32.mrf.mxu0
      %8089 = vdwg.mxu0
      %8090 = vmatprep.subr.bf16.mxu0 0
      %8091 = vmatpush1.bf16.msra.mxu0 %v5745
      %8092 = vmatprep.subr.bf16.mxu0 0
      %8093 = vmatpush1.bf16.msra.mxu0 %v5744
      %8094 = vmatprep.subr.bf16.mxu0 0
      %8095 = vmatpush1.bf16.msra.mxu0 %v5743
      %8096 = vmatprep.subr.bf16.mxu0 0
      %8097 = vmatpush1.bf16.msra.mxu0 %v5742
      %8098 = vmatprep.subr.bf16.mxu0 0
      %8099 = vmatpush1.bf16.msra.mxu0 %v5741
      %8100 = vmatprep.subr.bf16.mxu0 0
      %8101 = vmatpush1.bf16.msra.mxu0 %v5740
      %8102 = vmatprep.subr.bf16.mxu0 0
      %8103 = vmatpush1.bf16.msra.mxu0 %v5739
      %8104 = vmatprep.subr.bf16.mxu0 0
      %8105 = vmatpush1.bf16.msra.mxu0 %v5738
      %8106 = vmatprep.subr.bf16.mxu0 0
      %8107 = vmatpush2.bf16.msra.mxu0 %v5753
      %8108 = vmatprep.subr.bf16.mxu0 0
      %8109 = vmatpush2.bf16.msra.mxu0 %v5752
      %8110 = vmatprep.subr.bf16.mxu0 0
      %8111 = vmatpush2.bf16.msra.mxu0 %v5751
      %8112 = vmatprep.subr.bf16.mxu0 0
      %8113 = vmatpush2.bf16.msra.mxu0 %v5750
      %8114 = vmatprep.subr.bf16.mxu0 0
      %8115 = vmatpush2.bf16.msra.mxu0 %v5749
      %8116 = vmatprep.subr.bf16.mxu0 0
      %8117 = vmatpush2.bf16.msra.mxu0 %v5748
      %8118 = vmatprep.subr.bf16.mxu0 0
      %8119 = vmatpush2.bf16.msra.mxu0 %v5747
      %8120 = vmatprep.subr.bf16.mxu0 0
      %8121 = vmatpush2.bf16.msra.mxu0 %v5746
      %8122 = vmatprep.mubr.bf16.mxu0 %v1999
      %8123 = vmatmul.mubr.bf16.gmra.mxu0 %v1998
      %v8124 = vpop.f32.mrf.mxu0
      %v8125 = vadd.f32 %v8085, %v8124
      %v8126 = vpop.f32.mrf.mxu0
      %v8127 = vpop.f32.mrf.mxu0
      %v8128 = vpop.f32.mrf.mxu0
      %8129 = vdwg.mxu0
      %8130 = vmatprep.subr.bf16.mxu0 0
      %8131 = vmatpush1.bf16.msra.mxu0 %v5761
      %8132 = vmatprep.subr.bf16.mxu0 0
      %8133 = vmatpush1.bf16.msra.mxu0 %v5760
      %8134 = vmatprep.subr.bf16.mxu0 0
      %8135 = vmatpush1.bf16.msra.mxu0 %v5759
      %8136 = vmatprep.subr.bf16.mxu0 0
      %8137 = vmatpush1.bf16.msra.mxu0 %v5758
      %8138 = vmatprep.subr.bf16.mxu0 0
      %8139 = vmatpush1.bf16.msra.mxu0 %v5757
      %8140 = vmatprep.subr.bf16.mxu0 0
      %8141 = vmatpush1.bf16.msra.mxu0 %v5756
      %8142 = vmatprep.subr.bf16.mxu0 0
      %8143 = vmatpush1.bf16.msra.mxu0 %v5755
      %8144 = vmatprep.subr.bf16.mxu0 0
      %8145 = vmatpush1.bf16.msra.mxu0 %v5754
      %8146 = vmatprep.subr.bf16.mxu0 0
      %8147 = vmatpush2.bf16.msra.mxu0 %v5769
      %8148 = vmatprep.subr.bf16.mxu0 0
      %8149 = vmatpush2.bf16.msra.mxu0 %v5768
      %8150 = vmatprep.subr.bf16.mxu0 0
      %8151 = vmatpush2.bf16.msra.mxu0 %v5767
      %8152 = vmatprep.subr.bf16.mxu0 0
      %8153 = vmatpush2.bf16.msra.mxu0 %v5766
      %8154 = vmatprep.subr.bf16.mxu0 0
      %8155 = vmatpush2.bf16.msra.mxu0 %v5765
      %8156 = vmatprep.subr.bf16.mxu0 0
      %8157 = vmatpush2.bf16.msra.mxu0 %v5764
      %8158 = vmatprep.subr.bf16.mxu0 0
      %8159 = vmatpush2.bf16.msra.mxu0 %v5763
      %8160 = vmatprep.subr.bf16.mxu0 0
      %8161 = vmatpush2.bf16.msra.mxu0 %v5762
      %8162 = vmatprep.mubr.bf16.mxu0 %v2001
      %8163 = vmatmul.mubr.bf16.gmra.mxu0 %v2000
      %v8164 = vpop.f32.mrf.mxu0
      %v8165 = vadd.f32 %v8125, %v8164
      %v8166 = vpop.f32.mrf.mxu0
      %v8167 = vpop.f32.mrf.mxu0
      %v8168 = vpop.f32.mrf.mxu0
      %8169 = vdwg.mxu0
      %8170 = vmatprep.subr.bf16.mxu0 0
      %8171 = vmatpush1.bf16.msra.mxu0 %v5777
      %8172 = vmatprep.subr.bf16.mxu0 0
      %8173 = vmatpush1.bf16.msra.mxu0 %v5776
      %8174 = vmatprep.subr.bf16.mxu0 0
      %8175 = vmatpush1.bf16.msra.mxu0 %v5775
      %8176 = vmatprep.subr.bf16.mxu0 0
      %8177 = vmatpush1.bf16.msra.mxu0 %v5774
      %8178 = vmatprep.subr.bf16.mxu0 0
      %8179 = vmatpush1.bf16.msra.mxu0 %v5773
      %8180 = vmatprep.subr.bf16.mxu0 0
      %8181 = vmatpush1.bf16.msra.mxu0 %v5772
      %8182 = vmatprep.subr.bf16.mxu0 0
      %8183 = vmatpush1.bf16.msra.mxu0 %v5771
      %8184 = vmatprep.subr.bf16.mxu0 0
      %8185 = vmatpush1.bf16.msra.mxu0 %v5770
      %8186 = vmatprep.subr.bf16.mxu0 0
      %8187 = vmatpush2.bf16.msra.mxu0 %v5785
      %8188 = vmatprep.subr.bf16.mxu0 0
      %8189 = vmatpush2.bf16.msra.mxu0 %v5784
      %8190 = vmatprep.subr.bf16.mxu0 0
      %8191 = vmatpush2.bf16.msra.mxu0 %v5783
      %8192 = vmatprep.subr.bf16.mxu0 0
      %8193 = vmatpush2.bf16.msra.mxu0 %v5782
      %8194 = vmatprep.subr.bf16.mxu0 0
      %8195 = vmatpush2.bf16.msra.mxu0 %v5781
      %8196 = vmatprep.subr.bf16.mxu0 0
      %8197 = vmatpush2.bf16.msra.mxu0 %v5780
      %8198 = vmatprep.subr.bf16.mxu0 0
      %8199 = vmatpush2.bf16.msra.mxu0 %v5779
      %8200 = vmatprep.subr.bf16.mxu0 0
      %8201 = vmatpush2.bf16.msra.mxu0 %v5778
      %8202 = vmatprep.mubr.bf16.mxu0 %v2003
      %8203 = vmatmul.mubr.bf16.gmra.mxu0 %v2002
      %v8204 = vpop.f32.mrf.mxu0
      %v8205 = vadd.f32 %v8165, %v8204
      %v8206 = vpop.f32.mrf.mxu0
      %v8207 = vpop.f32.mrf.mxu0
      %v8208 = vpop.f32.mrf.mxu0
      %8209 = vdwg.mxu0
      %8210 = vmatprep.subr.bf16.mxu0 0
      %8211 = vmatpush1.bf16.msra.mxu0 %v5793
      %8212 = vmatprep.subr.bf16.mxu0 0
      %8213 = vmatpush1.bf16.msra.mxu0 %v5792
      %8214 = vmatprep.subr.bf16.mxu0 0
      %8215 = vmatpush1.bf16.msra.mxu0 %v5791
      %8216 = vmatprep.subr.bf16.mxu0 0
      %8217 = vmatpush1.bf16.msra.mxu0 %v5790
      %8218 = vmatprep.subr.bf16.mxu0 0
      %8219 = vmatpush1.bf16.msra.mxu0 %v5789
      %8220 = vmatprep.subr.bf16.mxu0 0
      %8221 = vmatpush1.bf16.msra.mxu0 %v5788
      %8222 = vmatprep.subr.bf16.mxu0 0
      %8223 = vmatpush1.bf16.msra.mxu0 %v5787
      %8224 = vmatprep.subr.bf16.mxu0 0
      %8225 = vmatpush1.bf16.msra.mxu0 %v5786
      %8226 = vmatprep.subr.bf16.mxu0 0
      %8227 = vmatpush2.bf16.msra.mxu0 %v5801
      %8228 = vmatprep.subr.bf16.mxu0 0
      %8229 = vmatpush2.bf16.msra.mxu0 %v5800
      %8230 = vmatprep.subr.bf16.mxu0 0
      %8231 = vmatpush2.bf16.msra.mxu0 %v5799
      %8232 = vmatprep.subr.bf16.mxu0 0
      %8233 = vmatpush2.bf16.msra.mxu0 %v5798
      %8234 = vmatprep.subr.bf16.mxu0 0
      %8235 = vmatpush2.bf16.msra.mxu0 %v5797
      %8236 = vmatprep.subr.bf16.mxu0 0
      %8237 = vmatpush2.bf16.msra.mxu0 %v5796
      %8238 = vmatprep.subr.bf16.mxu0 0
      %8239 = vmatpush2.bf16.msra.mxu0 %v5795
      %8240 = vmatprep.subr.bf16.mxu0 0
      %8241 = vmatpush2.bf16.msra.mxu0 %v5794
      %8242 = vmatprep.mubr.bf16.mxu0 %v2005
      %8243 = vmatmul.mubr.bf16.gmra.mxu0 %v2004
      %v8244 = vpop.f32.mrf.mxu0
      %v8245 = vadd.f32 %v8205, %v8244
      %v8246 = vpop.f32.mrf.mxu0
      %v8247 = vpop.f32.mrf.mxu0
      %v8248 = vpop.f32.mrf.mxu0
      %8249 = vdwg.mxu0
      %8250 = vmatprep.subr.bf16.mxu0 0
      %8251 = vmatpush1.bf16.msra.mxu0 %v5809
      %8252 = vmatprep.subr.bf16.mxu0 0
      %8253 = vmatpush1.bf16.msra.mxu0 %v5808
      %8254 = vmatprep.subr.bf16.mxu0 0
      %8255 = vmatpush1.bf16.msra.mxu0 %v5807
      %8256 = vmatprep.subr.bf16.mxu0 0
      %8257 = vmatpush1.bf16.msra.mxu0 %v5806
      %8258 = vmatprep.subr.bf16.mxu0 0
      %8259 = vmatpush1.bf16.msra.mxu0 %v5805
      %8260 = vmatprep.subr.bf16.mxu0 0
      %8261 = vmatpush1.bf16.msra.mxu0 %v5804
      %8262 = vmatprep.subr.bf16.mxu0 0
      %8263 = vmatpush1.bf16.msra.mxu0 %v5803
      %8264 = vmatprep.subr.bf16.mxu0 0
      %8265 = vmatpush1.bf16.msra.mxu0 %v5802
      %8266 = vmatprep.subr.bf16.mxu0 0
      %8267 = vmatpush2.bf16.msra.mxu0 %v5817
      %8268 = vmatprep.subr.bf16.mxu0 0
      %8269 = vmatpush2.bf16.msra.mxu0 %v5816
      %8270 = vmatprep.subr.bf16.mxu0 0
      %8271 = vmatpush2.bf16.msra.mxu0 %v5815
      %8272 = vmatprep.subr.bf16.mxu0 0
      %8273 = vmatpush2.bf16.msra.mxu0 %v5814
      %8274 = vmatprep.subr.bf16.mxu0 0
      %8275 = vmatpush2.bf16.msra.mxu0 %v5813
      %8276 = vmatprep.subr.bf16.mxu0 0
      %8277 = vmatpush2.bf16.msra.mxu0 %v5812
      %8278 = vmatprep.subr.bf16.mxu0 0
      %8279 = vmatpush2.bf16.msra.mxu0 %v5811
      %8280 = vmatprep.subr.bf16.mxu0 0
      %8281 = vmatpush2.bf16.msra.mxu0 %v5810
      %8282 = vmatprep.mubr.bf16.mxu0 %v2007
      %8283 = vmatmul.mubr.bf16.gmra.mxu0 %v2006
      %v8284 = vpop.f32.mrf.mxu0
      %v8285 = vadd.f32 %v8245, %v8284
      %v8286 = vpop.f32.mrf.mxu0
      %v8287 = vpop.f32.mrf.mxu0
      %v8288 = vpop.f32.mrf.mxu0
      %8289 = vdwg.mxu0
      %8290 = vmatprep.subr.bf16.mxu0 0
      %8291 = vmatpush1.bf16.msra.mxu0 %v5825
      %8292 = vmatprep.subr.bf16.mxu0 0
      %8293 = vmatpush1.bf16.msra.mxu0 %v5824
      %8294 = vmatprep.subr.bf16.mxu0 0
      %8295 = vmatpush1.bf16.msra.mxu0 %v5823
      %8296 = vmatprep.subr.bf16.mxu0 0
      %8297 = vmatpush1.bf16.msra.mxu0 %v5822
      %8298 = vmatprep.subr.bf16.mxu0 0
      %8299 = vmatpush1.bf16.msra.mxu0 %v5821
      %8300 = vmatprep.subr.bf16.mxu0 0
      %8301 = vmatpush1.bf16.msra.mxu0 %v5820
      %8302 = vmatprep.subr.bf16.mxu0 0
      %8303 = vmatpush1.bf16.msra.mxu0 %v5819
      %8304 = vmatprep.subr.bf16.mxu0 0
      %8305 = vmatpush1.bf16.msra.mxu0 %v5818
      %8306 = vmatprep.subr.bf16.mxu0 0
      %8307 = vmatpush2.bf16.msra.mxu0 %v5833
      %8308 = vmatprep.subr.bf16.mxu0 0
      %8309 = vmatpush2.bf16.msra.mxu0 %v5832
      %8310 = vmatprep.subr.bf16.mxu0 0
      %8311 = vmatpush2.bf16.msra.mxu0 %v5831
      %8312 = vmatprep.subr.bf16.mxu0 0
      %8313 = vmatpush2.bf16.msra.mxu0 %v5830
      %8314 = vmatprep.subr.bf16.mxu0 0
      %8315 = vmatpush2.bf16.msra.mxu0 %v5829
      %8316 = vmatprep.subr.bf16.mxu0 0
      %8317 = vmatpush2.bf16.msra.mxu0 %v5828
      %8318 = vmatprep.subr.bf16.mxu0 0
      %8319 = vmatpush2.bf16.msra.mxu0 %v5827
      %8320 = vmatprep.subr.bf16.mxu0 0
      %8321 = vmatpush2.bf16.msra.mxu0 %v5826
      %8322 = vmatprep.mubr.bf16.mxu0 %v2009
      %8323 = vmatmul.mubr.bf16.gmra.mxu0 %v2008
      %v8324 = vpop.f32.mrf.mxu0
      %v8325 = vadd.f32 %v8285, %v8324
      %v8326 = vpop.f32.mrf.mxu0
      %v8327 = vpop.f32.mrf.mxu0
      %v8328 = vpop.f32.mrf.mxu0
      %8329 = vdwg.mxu0
      %8330 = vmatprep.subr.bf16.mxu0 0
      %8331 = vmatpush1.bf16.msra.mxu0 %v5841
      %8332 = vmatprep.subr.bf16.mxu0 0
      %8333 = vmatpush1.bf16.msra.mxu0 %v5840
      %8334 = vmatprep.subr.bf16.mxu0 0
      %8335 = vmatpush1.bf16.msra.mxu0 %v5839
      %8336 = vmatprep.subr.bf16.mxu0 0
      %8337 = vmatpush1.bf16.msra.mxu0 %v5838
      %8338 = vmatprep.subr.bf16.mxu0 0
      %8339 = vmatpush1.bf16.msra.mxu0 %v5837
      %8340 = vmatprep.subr.bf16.mxu0 0
      %8341 = vmatpush1.bf16.msra.mxu0 %v5836
      %8342 = vmatprep.subr.bf16.mxu0 0
      %8343 = vmatpush1.bf16.msra.mxu0 %v5835
      %8344 = vmatprep.subr.bf16.mxu0 0
      %8345 = vmatpush1.bf16.msra.mxu0 %v5834
      %8346 = vmatprep.subr.bf16.mxu0 0
      %8347 = vmatpush2.bf16.msra.mxu0 %v5849
      %8348 = vmatprep.subr.bf16.mxu0 0
      %8349 = vmatpush2.bf16.msra.mxu0 %v5848
      %8350 = vmatprep.subr.bf16.mxu0 0
      %8351 = vmatpush2.bf16.msra.mxu0 %v5847
      %8352 = vmatprep.subr.bf16.mxu0 0
      %8353 = vmatpush2.bf16.msra.mxu0 %v5846
      %8354 = vmatprep.subr.bf16.mxu0 0
      %8355 = vmatpush2.bf16.msra.mxu0 %v5845
      %8356 = vmatprep.subr.bf16.mxu0 0
      %8357 = vmatpush2.bf16.msra.mxu0 %v5844
      %8358 = vmatprep.subr.bf16.mxu0 0
      %8359 = vmatpush2.bf16.msra.mxu0 %v5843
      %8360 = vmatprep.subr.bf16.mxu0 0
      %8361 = vmatpush2.bf16.msra.mxu0 %v5842
      %8362 = vmatprep.mubr.bf16.mxu0 %v2011
      %8363 = vmatmul.mubr.bf16.gmra.mxu0 %v2010
      %v8364 = vpop.f32.mrf.mxu0
      %v8365 = vadd.f32 %v8325, %v8364
      %v8366 = vpop.f32.mrf.mxu0
      %v8367 = vpop.f32.mrf.mxu0
      %v8368 = vpop.f32.mrf.mxu0
      %8369 = vdwg.mxu0
      %8370 = vmatprep.subr.bf16.mxu0 0
      %8371 = vmatpush1.bf16.msra.mxu0 %v5857
      %8372 = vmatprep.subr.bf16.mxu0 0
      %8373 = vmatpush1.bf16.msra.mxu0 %v5856
      %8374 = vmatprep.subr.bf16.mxu0 0
      %8375 = vmatpush1.bf16.msra.mxu0 %v5855
      %8376 = vmatprep.subr.bf16.mxu0 0
      %8377 = vmatpush1.bf16.msra.mxu0 %v5854
      %8378 = vmatprep.subr.bf16.mxu0 0
      %8379 = vmatpush1.bf16.msra.mxu0 %v5853
      %8380 = vmatprep.subr.bf16.mxu0 0
      %8381 = vmatpush1.bf16.msra.mxu0 %v5852
      %8382 = vmatprep.subr.bf16.mxu0 0
      %8383 = vmatpush1.bf16.msra.mxu0 %v5851
      %8384 = vmatprep.subr.bf16.mxu0 0
      %8385 = vmatpush1.bf16.msra.mxu0 %v5850
      %8386 = vmatprep.subr.bf16.mxu0 0
      %8387 = vmatpush2.bf16.msra.mxu0 %v5865
      %8388 = vmatprep.subr.bf16.mxu0 0
      %8389 = vmatpush2.bf16.msra.mxu0 %v5864
      %8390 = vmatprep.subr.bf16.mxu0 0
      %8391 = vmatpush2.bf16.msra.mxu0 %v5863
      %8392 = vmatprep.subr.bf16.mxu0 0
      %8393 = vmatpush2.bf16.msra.mxu0 %v5862
      %8394 = vmatprep.subr.bf16.mxu0 0
      %8395 = vmatpush2.bf16.msra.mxu0 %v5861
      %8396 = vmatprep.subr.bf16.mxu0 0
      %8397 = vmatpush2.bf16.msra.mxu0 %v5860
      %8398 = vmatprep.subr.bf16.mxu0 0
      %8399 = vmatpush2.bf16.msra.mxu0 %v5859
      %8400 = vmatprep.subr.bf16.mxu0 0
      %8401 = vmatpush2.bf16.msra.mxu0 %v5858
      %8402 = vmatprep.mubr.bf16.mxu0 %v2013
      %8403 = vmatmul.mubr.bf16.gmra.mxu0 %v2012
      %v8404 = vpop.f32.mrf.mxu0
      %v8405 = vadd.f32 %v8365, %v8404
      %v8406 = vpop.f32.mrf.mxu0
      %v8407 = vpop.f32.mrf.mxu0
      %v8408 = vpop.f32.mrf.mxu0
      %8409 = vdwg.mxu0
      %8410 = vmatprep.subr.bf16.mxu0 0
      %8411 = vmatpush1.bf16.msra.mxu0 %v5873
      %8412 = vmatprep.subr.bf16.mxu0 0
      %8413 = vmatpush1.bf16.msra.mxu0 %v5872
      %8414 = vmatprep.subr.bf16.mxu0 0
      %8415 = vmatpush1.bf16.msra.mxu0 %v5871
      %8416 = vmatprep.subr.bf16.mxu0 0
      %8417 = vmatpush1.bf16.msra.mxu0 %v5870
      %8418 = vmatprep.subr.bf16.mxu0 0
      %8419 = vmatpush1.bf16.msra.mxu0 %v5869
      %8420 = vmatprep.subr.bf16.mxu0 0
      %8421 = vmatpush1.bf16.msra.mxu0 %v5868
      %8422 = vmatprep.subr.bf16.mxu0 0
      %8423 = vmatpush1.bf16.msra.mxu0 %v5867
      %8424 = vmatprep.subr.bf16.mxu0 0
      %8425 = vmatpush1.bf16.msra.mxu0 %v5866
      %8426 = vmatprep.subr.bf16.mxu0 0
      %8427 = vmatpush2.bf16.msra.mxu0 %v5881
      %8428 = vmatprep.subr.bf16.mxu0 0
      %8429 = vmatpush2.bf16.msra.mxu0 %v5880
      %8430 = vmatprep.subr.bf16.mxu0 0
      %8431 = vmatpush2.bf16.msra.mxu0 %v5879
      %8432 = vmatprep.subr.bf16.mxu0 0
      %8433 = vmatpush2.bf16.msra.mxu0 %v5878
      %8434 = vmatprep.subr.bf16.mxu0 0
      %8435 = vmatpush2.bf16.msra.mxu0 %v5877
      %8436 = vmatprep.subr.bf16.mxu0 0
      %8437 = vmatpush2.bf16.msra.mxu0 %v5876
      %8438 = vmatprep.subr.bf16.mxu0 0
      %8439 = vmatpush2.bf16.msra.mxu0 %v5875
      %8440 = vmatprep.subr.bf16.mxu0 0
      %8441 = vmatpush2.bf16.msra.mxu0 %v5874
      %8442 = vmatprep.mubr.bf16.mxu0 %v2015
      %8443 = vmatmul.mubr.bf16.gmra.mxu0 %v2014
      %v8444 = vpop.f32.mrf.mxu0
      %v8445 = vadd.f32 %v8405, %v8444
      %v8446 = vpop.f32.mrf.mxu0
      %v8447 = vpop.f32.mrf.mxu0
      %v8448 = vpop.f32.mrf.mxu0
      %8449 = vdwg.mxu0
      %8450 = vmatprep.subr.bf16.mxu0 0
      %8451 = vmatpush1.bf16.msra.mxu0 %v5889
      %8452 = vmatprep.subr.bf16.mxu0 0
      %8453 = vmatpush1.bf16.msra.mxu0 %v5888
      %8454 = vmatprep.subr.bf16.mxu0 0
      %8455 = vmatpush1.bf16.msra.mxu0 %v5887
      %8456 = vmatprep.subr.bf16.mxu0 0
      %8457 = vmatpush1.bf16.msra.mxu0 %v5886
      %8458 = vmatprep.subr.bf16.mxu0 0
      %8459 = vmatpush1.bf16.msra.mxu0 %v5885
      %8460 = vmatprep.subr.bf16.mxu0 0
      %8461 = vmatpush1.bf16.msra.mxu0 %v5884
      %8462 = vmatprep.subr.bf16.mxu0 0
      %8463 = vmatpush1.bf16.msra.mxu0 %v5883
      %8464 = vmatprep.subr.bf16.mxu0 0
      %8465 = vmatpush1.bf16.msra.mxu0 %v5882
      %8466 = vmatprep.subr.bf16.mxu0 0
      %8467 = vmatpush2.bf16.msra.mxu0 %v5897
      %8468 = vmatprep.subr.bf16.mxu0 0
      %8469 = vmatpush2.bf16.msra.mxu0 %v5896
      %8470 = vmatprep.subr.bf16.mxu0 0
      %8471 = vmatpush2.bf16.msra.mxu0 %v5895
      %8472 = vmatprep.subr.bf16.mxu0 0
      %8473 = vmatpush2.bf16.msra.mxu0 %v5894
      %8474 = vmatprep.subr.bf16.mxu0 0
      %8475 = vmatpush2.bf16.msra.mxu0 %v5893
      %8476 = vmatprep.subr.bf16.mxu0 0
      %8477 = vmatpush2.bf16.msra.mxu0 %v5892
      %8478 = vmatprep.subr.bf16.mxu0 0
      %8479 = vmatpush2.bf16.msra.mxu0 %v5891
      %8480 = vmatprep.subr.bf16.mxu0 0
      %8481 = vmatpush2.bf16.msra.mxu0 %v5890
      %8482 = vmatprep.mubr.bf16.mxu0 %v2017
      %8483 = vmatmul.mubr.bf16.gmra.mxu0 %v2016
      %v8484 = vpop.f32.mrf.mxu0
      %v8485 = vadd.f32 %v8445, %v8484
      %v8486 = vpop.f32.mrf.mxu0
      %v8487 = vpop.f32.mrf.mxu0
      %v8488 = vpop.f32.mrf.mxu0
      %8489 = vdwg.mxu0
      %8490 = vmatprep.subr.bf16.mxu0 0
      %8491 = vmatpush1.bf16.msra.mxu0 %v5905
      %8492 = vmatprep.subr.bf16.mxu0 0
      %8493 = vmatpush1.bf16.msra.mxu0 %v5904
      %8494 = vmatprep.subr.bf16.mxu0 0
      %8495 = vmatpush1.bf16.msra.mxu0 %v5903
      %8496 = vmatprep.subr.bf16.mxu0 0
      %8497 = vmatpush1.bf16.msra.mxu0 %v5902
      %8498 = vmatprep.subr.bf16.mxu0 0
      %8499 = vmatpush1.bf16.msra.mxu0 %v5901
      %8500 = vmatprep.subr.bf16.mxu0 0
      %8501 = vmatpush1.bf16.msra.mxu0 %v5900
      %8502 = vmatprep.subr.bf16.mxu0 0
      %8503 = vmatpush1.bf16.msra.mxu0 %v5899
      %8504 = vmatprep.subr.bf16.mxu0 0
      %8505 = vmatpush1.bf16.msra.mxu0 %v5898
      %8506 = vmatprep.subr.bf16.mxu0 0
      %8507 = vmatpush2.bf16.msra.mxu0 %v5913
      %8508 = vmatprep.subr.bf16.mxu0 0
      %8509 = vmatpush2.bf16.msra.mxu0 %v5912
      %8510 = vmatprep.subr.bf16.mxu0 0
      %8511 = vmatpush2.bf16.msra.mxu0 %v5911
      %8512 = vmatprep.subr.bf16.mxu0 0
      %8513 = vmatpush2.bf16.msra.mxu0 %v5910
      %8514 = vmatprep.subr.bf16.mxu0 0
      %8515 = vmatpush2.bf16.msra.mxu0 %v5909
      %8516 = vmatprep.subr.bf16.mxu0 0
      %8517 = vmatpush2.bf16.msra.mxu0 %v5908
      %8518 = vmatprep.subr.bf16.mxu0 0
      %8519 = vmatpush2.bf16.msra.mxu0 %v5907
      %8520 = vmatprep.subr.bf16.mxu0 0
      %8521 = vmatpush2.bf16.msra.mxu0 %v5906
      %8522 = vmatprep.mubr.bf16.mxu0 %v2019
      %8523 = vmatmul.mubr.bf16.gmra.mxu0 %v2018
      %v8524 = vpop.f32.mrf.mxu0
      %v8525 = vadd.f32 %v8485, %v8524
      %v8526 = vpop.f32.mrf.mxu0
      %v8527 = vpop.f32.mrf.mxu0
      %v8528 = vpop.f32.mrf.mxu0
      %8529 = vdwg.mxu0
      %8530 = vmatprep.subr.bf16.mxu0 0
      %8531 = vmatpush1.bf16.msra.mxu0 %v5921
      %8532 = vmatprep.subr.bf16.mxu0 0
      %8533 = vmatpush1.bf16.msra.mxu0 %v5920
      %8534 = vmatprep.subr.bf16.mxu0 0
      %8535 = vmatpush1.bf16.msra.mxu0 %v5919
      %8536 = vmatprep.subr.bf16.mxu0 0
      %8537 = vmatpush1.bf16.msra.mxu0 %v5918
      %8538 = vmatprep.subr.bf16.mxu0 0
      %8539 = vmatpush1.bf16.msra.mxu0 %v5917
      %8540 = vmatprep.subr.bf16.mxu0 0
      %8541 = vmatpush1.bf16.msra.mxu0 %v5916
      %8542 = vmatprep.subr.bf16.mxu0 0
      %8543 = vmatpush1.bf16.msra.mxu0 %v5915
      %8544 = vmatprep.subr.bf16.mxu0 0
      %8545 = vmatpush1.bf16.msra.mxu0 %v5914
      %8546 = vmatprep.subr.bf16.mxu0 0
      %8547 = vmatpush2.bf16.msra.mxu0 %v5929
      %8548 = vmatprep.subr.bf16.mxu0 0
      %8549 = vmatpush2.bf16.msra.mxu0 %v5928
      %8550 = vmatprep.subr.bf16.mxu0 0
      %8551 = vmatpush2.bf16.msra.mxu0 %v5927
      %8552 = vmatprep.subr.bf16.mxu0 0
      %8553 = vmatpush2.bf16.msra.mxu0 %v5926
      %8554 = vmatprep.subr.bf16.mxu0 0
      %8555 = vmatpush2.bf16.msra.mxu0 %v5925
      %8556 = vmatprep.subr.bf16.mxu0 0
      %8557 = vmatpush2.bf16.msra.mxu0 %v5924
      %8558 = vmatprep.subr.bf16.mxu0 0
      %8559 = vmatpush2.bf16.msra.mxu0 %v5923
      %8560 = vmatprep.subr.bf16.mxu0 0
      %8561 = vmatpush2.bf16.msra.mxu0 %v5922
      %8562 = vmatprep.mubr.bf16.mxu0 %v2021
      %8563 = vmatmul.mubr.bf16.gmra.mxu0 %v2020
      %v8564 = vpop.f32.mrf.mxu0
      %v8565 = vadd.f32 %v8525, %v8564
      %v8566 = vpop.f32.mrf.mxu0
      %v8567 = vpop.f32.mrf.mxu0
      %v8568 = vpop.f32.mrf.mxu0
      %8569 = vdwg.mxu0
      %8570 = vmatprep.subr.bf16.mxu0 0
      %8571 = vmatpush1.bf16.msra.mxu0 %v5937
      %8572 = vmatprep.subr.bf16.mxu0 0
      %8573 = vmatpush1.bf16.msra.mxu0 %v5936
      %8574 = vmatprep.subr.bf16.mxu0 0
      %8575 = vmatpush1.bf16.msra.mxu0 %v5935
      %8576 = vmatprep.subr.bf16.mxu0 0
      %8577 = vmatpush1.bf16.msra.mxu0 %v5934
      %8578 = vmatprep.subr.bf16.mxu0 0
      %8579 = vmatpush1.bf16.msra.mxu0 %v5933
      %8580 = vmatprep.subr.bf16.mxu0 0
      %8581 = vmatpush1.bf16.msra.mxu0 %v5932
      %8582 = vmatprep.subr.bf16.mxu0 0
      %8583 = vmatpush1.bf16.msra.mxu0 %v5931
      %8584 = vmatprep.subr.bf16.mxu0 0
      %8585 = vmatpush1.bf16.msra.mxu0 %v5930
      %8586 = vmatprep.subr.bf16.mxu0 0
      %8587 = vmatpush2.bf16.msra.mxu0 %v5945
      %8588 = vmatprep.subr.bf16.mxu0 0
      %8589 = vmatpush2.bf16.msra.mxu0 %v5944
      %8590 = vmatprep.subr.bf16.mxu0 0
      %8591 = vmatpush2.bf16.msra.mxu0 %v5943
      %8592 = vmatprep.subr.bf16.mxu0 0
      %8593 = vmatpush2.bf16.msra.mxu0 %v5942
      %8594 = vmatprep.subr.bf16.mxu0 0
      %8595 = vmatpush2.bf16.msra.mxu0 %v5941
      %8596 = vmatprep.subr.bf16.mxu0 0
      %8597 = vmatpush2.bf16.msra.mxu0 %v5940
      %8598 = vmatprep.subr.bf16.mxu0 0
      %8599 = vmatpush2.bf16.msra.mxu0 %v5939
      %8600 = vmatprep.subr.bf16.mxu0 0
      %8601 = vmatpush2.bf16.msra.mxu0 %v5938
      %8602 = vmatprep.mubr.bf16.mxu0 %v2023
      %8603 = vmatmul.mubr.bf16.gmra.mxu0 %v2022
      %v8604 = vpop.f32.mrf.mxu0
      %v8605 = vadd.f32 %v8565, %v8604
      %v8606 = vpop.f32.mrf.mxu0
      %v8607 = vpop.f32.mrf.mxu0
      %v8608 = vpop.f32.mrf.mxu0
      %8609 = vdwg.mxu0
      %8610 = vmatprep.subr.bf16.mxu0 0
      %8611 = vmatpush1.bf16.msra.mxu0 %v5953
      %8612 = vmatprep.subr.bf16.mxu0 0
      %8613 = vmatpush1.bf16.msra.mxu0 %v5952
      %8614 = vmatprep.subr.bf16.mxu0 0
      %8615 = vmatpush1.bf16.msra.mxu0 %v5951
      %8616 = vmatprep.subr.bf16.mxu0 0
      %8617 = vmatpush1.bf16.msra.mxu0 %v5950
      %8618 = vmatprep.subr.bf16.mxu0 0
      %8619 = vmatpush1.bf16.msra.mxu0 %v5949
      %8620 = vmatprep.subr.bf16.mxu0 0
      %8621 = vmatpush1.bf16.msra.mxu0 %v5948
      %8622 = vmatprep.subr.bf16.mxu0 0
      %8623 = vmatpush1.bf16.msra.mxu0 %v5947
      %8624 = vmatprep.subr.bf16.mxu0 0
      %8625 = vmatpush1.bf16.msra.mxu0 %v5946
      %8626 = vmatprep.subr.bf16.mxu0 0
      %8627 = vmatpush2.bf16.msra.mxu0 %v5961
      %8628 = vmatprep.subr.bf16.mxu0 0
      %8629 = vmatpush2.bf16.msra.mxu0 %v5960
      %8630 = vmatprep.subr.bf16.mxu0 0
      %8631 = vmatpush2.bf16.msra.mxu0 %v5959
      %8632 = vmatprep.subr.bf16.mxu0 0
      %8633 = vmatpush2.bf16.msra.mxu0 %v5958
      %8634 = vmatprep.subr.bf16.mxu0 0
      %8635 = vmatpush2.bf16.msra.mxu0 %v5957
      %8636 = vmatprep.subr.bf16.mxu0 0
      %8637 = vmatpush2.bf16.msra.mxu0 %v5956
      %8638 = vmatprep.subr.bf16.mxu0 0
      %8639 = vmatpush2.bf16.msra.mxu0 %v5955
      %8640 = vmatprep.subr.bf16.mxu0 0
      %8641 = vmatpush2.bf16.msra.mxu0 %v5954
      %8642 = vmatprep.mubr.bf16.mxu0 %v2025
      %8643 = vmatmul.mubr.bf16.gmra.mxu0 %v2024
      %v8644 = vpop.f32.mrf.mxu0
      %v8645 = vadd.f32 %v8605, %v8644
      %v8646 = vpop.f32.mrf.mxu0
      %v8647 = vpop.f32.mrf.mxu0
      %v8648 = vpop.f32.mrf.mxu0
      %8649 = vdwg.mxu0
      %v8650 = vmax.f32 %v8645, 0.0
      %v8651 = vld [vmem:[%s2] sm:$0xff]
      %v8652 = vld [vmem:[%s2 + $0x8] sm:$0xff]
      %v8653 = vld [vmem:[%s2 + $0x10] sm:$0xff]
      %v8654 = vld [vmem:[%s2 + $0x18] sm:$0xff]
      %v8655 = vld [vmem:[%s2 + $0x20] sm:$0xff]
      %v8656 = vld [vmem:[%s2 + $0x28] sm:$0xff]
      %v8657 = vld [vmem:[%s2 + $0x30] sm:$0xff]
      %v8658 = vld [vmem:[%s2 + $0x38] sm:$0xff]
      %v8659 = vld [vmem:[%s3 + $0x1] sm:$0x1]
      %v8660 = vlaneseq
      %v8661 = vshrl.u32 %v8660, 7
      %v8662 = vsub.s32 0, %v8661
      %v8663 = vrot.slane %v8659, %v8662
      %vm8664 = vcmask 523264
      %v8666 = vsel %vm8664, %v8650, 0
      %8668 = vmatprep.subr.mxu0 0.0
      %8669 = vmatpush1.msra.mxu0 0.0
      %8670 = vmatprep.subr.mxu0 0.0
      %8671 = vmatpush1.msra.mxu0 0.0
      %8672 = vmatprep.subr.mxu0 0.0
      %8673 = vmatpush1.msra.mxu0 0.0
      %8674 = vmatprep.subr.mxu0 0.0
      %8675 = vmatpush1.msra.mxu0 0.0
      %8676 = vmatprep.subr.mxu0 0.0
      %8677 = vmatpush1.msra.mxu0 0.0
      %8678 = vmatprep.subr.mxu0 0.0
      %8679 = vmatpush1.msra.mxu0 0.0
      %8680 = vmatprep.subr.mxu0 0.0
      %8681 = vmatpush1.msra.mxu0 0.0
      %8682 = vmatprep.subr.mxu0 0.0
      %8683 = vmatpush1.msra.mxu0 0.0
      %8684 = vmatprep.subr.mxu0 0.0
      %8685 = vmatpush1.msra.mxu0 %v8658
      %8686 = vmatprep.subr.mxu0 0.0
      %8687 = vmatpush1.msra.mxu0 %v8657
      %8688 = vmatprep.subr.mxu0 0.0
      %8689 = vmatpush1.msra.mxu0 %v8656
      %8690 = vmatprep.subr.mxu0 0.0
      %8691 = vmatpush1.msra.mxu0 %v8655
      %8692 = vmatprep.subr.mxu0 0.0
      %8693 = vmatpush1.msra.mxu0 %v8654
      %8694 = vmatprep.subr.mxu0 0.0
      %8695 = vmatpush1.msra.mxu0 %v8653
      %8696 = vmatprep.subr.mxu0 0.0
      %8697 = vmatpush1.msra.mxu0 %v8652
      %8698 = vmatprep.subr.mxu0 0.0
      %8699 = vmatpush1.msra.mxu0 %v8651
      %8700 = vmatprep.subr.mxu0 0.0
      %8701 = vmatpush2.msra.mxu0 0.0
      %8702 = vmatprep.subr.mxu0 0.0
      %8703 = vmatpush2.msra.mxu0 0.0
      %8704 = vmatprep.subr.mxu0 0.0
      %8705 = vmatpush2.msra.mxu0 0.0
      %8706 = vmatprep.subr.mxu0 0.0
      %8707 = vmatpush2.msra.mxu0 0.0
      %8708 = vmatprep.subr.mxu0 0.0
      %8709 = vmatpush2.msra.mxu0 0.0
      %8710 = vmatprep.subr.mxu0 0.0
      %8711 = vmatpush2.msra.mxu0 0.0
      %8712 = vmatprep.subr.mxu0 0.0
      %8713 = vmatpush2.msra.mxu0 0.0
      %8714 = vmatprep.subr.mxu0 0.0
      %8715 = vmatpush2.msra.mxu0 0.0
      %8716 = vmatprep.subr.mxu0 0.0
      %8717 = vmatpush2.msra.mxu0 0.0
      %8718 = vmatprep.subr.mxu0 0.0
      %8719 = vmatpush2.msra.mxu0 0.0
      %8720 = vmatprep.subr.mxu0 0.0
      %8721 = vmatpush2.msra.mxu0 0.0
      %8722 = vmatprep.subr.mxu0 0.0
      %8723 = vmatpush2.msra.mxu0 0.0
      %8724 = vmatprep.subr.mxu0 0.0
      %8725 = vmatpush2.msra.mxu0 0.0
      %8726 = vmatprep.subr.mxu0 0.0
      %8727 = vmatpush2.msra.mxu0 0.0
      %8728 = vmatprep.subr.mxu0 0.0
      %8729 = vmatpush2.msra.mxu0 0.0
      %8730 = vmatprep.subr.mxu0 0.0
      %8731 = vmatpush2.msra.mxu0 0.0
      %8732 = vmatprep.mubr.f32.mxu0 0.0
      %8733 = vmatmul.mubr.f32.gmra.mxu0 %v8666
      %v8734 = vpop.f32.mrf.mxu0
      %v8735 = vadd.f32 %v8663, %v8734
      %v8736 = vpop.f32.mrf.mxu0
      %8737 = vdwg.mxu0
      %v8738 = vmax.f32 %v8735, 0.0
      %s8739 = scalar_lea.vmem %s2, 64
      %v8740 = vld [vmem:[%s8739] sm:$0xff]
      %v8741 = vld [vmem:[%s8739 + $0x8] sm:$0xff]
      %v8742 = vld [vmem:[%s8739 + $0x10] sm:$0xff]
      %v8743 = vld [vmem:[%s8739 + $0x18] sm:$0xff]
      %v8744 = vld [vmem:[%s8739 + $0x20] sm:$0xff]
      %v8745 = vld [vmem:[%s8739 + $0x28] sm:$0xff]
      %v8746 = vld [vmem:[%s8739 + $0x30] sm:$0xff]
      %v8747 = vld [vmem:[%s8739 + $0x38] sm:$0xff]
      %v8748 = vld [vmem:[%s3 + $0x2] sm:$0x1]
      %v8749 = vlaneseq
      %v8750 = vshrl.u32 %v8749, 7
      %v8751 = vsub.s32 0, %v8750
      %v8752 = vrot.slane %v8748, %v8751
      %v8754 = vsel %vm8664, %v8738, 0
      %8756 = vmatprep.subr.mxu0 0.0
      %8757 = vmatpush1.msra.mxu0 0.0
      %8758 = vmatprep.subr.mxu0 0.0
      %8759 = vmatpush1.msra.mxu0 0.0
      %8760 = vmatprep.subr.mxu0 0.0
      %8761 = vmatpush1.msra.mxu0 0.0
      %8762 = vmatprep.subr.mxu0 0.0
      %8763 = vmatpush1.msra.mxu0 0.0
      %8764 = vmatprep.subr.mxu0 0.0
      %8765 = vmatpush1.msra.mxu0 0.0
      %8766 = vmatprep.subr.mxu0 0.0
      %8767 = vmatpush1.msra.mxu0 0.0
      %8768 = vmatprep.subr.mxu0 0.0
      %8769 = vmatpush1.msra.mxu0 0.0
      %8770 = vmatprep.subr.mxu0 0.0
      %8771 = vmatpush1.msra.mxu0 0.0
      %8772 = vmatprep.subr.mxu0 0.0
      %8773 = vmatpush1.msra.mxu0 %v8747
      %8774 = vmatprep.subr.mxu0 0.0
      %8775 = vmatpush1.msra.mxu0 %v8746
      %8776 = vmatprep.subr.mxu0 0.0
      %8777 = vmatpush1.msra.mxu0 %v8745
      %8778 = vmatprep.subr.mxu0 0.0
      %8779 = vmatpush1.msra.mxu0 %v8744
      %8780 = vmatprep.subr.mxu0 0.0
      %8781 = vmatpush1.msra.mxu0 %v8743
      %8782 = vmatprep.subr.mxu0 0.0
      %8783 = vmatpush1.msra.mxu0 %v8742
      %8784 = vmatprep.subr.mxu0 0.0
      %8785 = vmatpush1.msra.mxu0 %v8741
      %8786 = vmatprep.subr.mxu0 0.0
      %8787 = vmatpush1.msra.mxu0 %v8740
      %8788 = vmatprep.subr.mxu0 0.0
      %8789 = vmatpush2.msra.mxu0 0.0
      %8790 = vmatprep.subr.mxu0 0.0
      %8791 = vmatpush2.msra.mxu0 0.0
      %8792 = vmatprep.subr.mxu0 0.0
      %8793 = vmatpush2.msra.mxu0 0.0
      %8794 = vmatprep.subr.mxu0 0.0
      %8795 = vmatpush2.msra.mxu0 0.0
      %8796 = vmatprep.subr.mxu0 0.0
      %8797 = vmatpush2.msra.mxu0 0.0
      %8798 = vmatprep.subr.mxu0 0.0
      %8799 = vmatpush2.msra.mxu0 0.0
      %8800 = vmatprep.subr.mxu0 0.0
      %8801 = vmatpush2.msra.mxu0 0.0
      %8802 = vmatprep.subr.mxu0 0.0
      %8803 = vmatpush2.msra.mxu0 0.0
      %8804 = vmatprep.subr.mxu0 0.0
      %8805 = vmatpush2.msra.mxu0 0.0
      %8806 = vmatprep.subr.mxu0 0.0
      %8807 = vmatpush2.msra.mxu0 0.0
      %8808 = vmatprep.subr.mxu0 0.0
      %8809 = vmatpush2.msra.mxu0 0.0
      %8810 = vmatprep.subr.mxu0 0.0
      %8811 = vmatpush2.msra.mxu0 0.0
      %8812 = vmatprep.subr.mxu0 0.0
      %8813 = vmatpush2.msra.mxu0 0.0
      %8814 = vmatprep.subr.mxu0 0.0
      %8815 = vmatpush2.msra.mxu0 0.0
      %8816 = vmatprep.subr.mxu0 0.0
      %8817 = vmatpush2.msra.mxu0 0.0
      %8818 = vmatprep.subr.mxu0 0.0
      %8819 = vmatpush2.msra.mxu0 0.0
      %8820 = vmatprep.mubr.f32.mxu0 0.0
      %8821 = vmatmul.mubr.f32.gmra.mxu0 %v8754
      %v8822 = vpop.f32.mrf.mxu0
      %v8823 = vadd.f32 %v8752, %v8822
      %v8824 = vpop.f32.mrf.mxu0
      %8825 = vdwg.mxu0
      %v8826 = vmax.f32 %v8823, 0.0
      %s8827 = scalar_lea.vmem %s2, 128
      %v8828 = vld [vmem:[%s8827] sm:$0xff]
      %v8829 = vld [vmem:[%s8827 + $0x8] sm:$0xff]
      %v8830 = vld [vmem:[%s8827 + $0x10] sm:$0xff]
      %v8831 = vld [vmem:[%s8827 + $0x18] sm:$0xff]
      %v8832 = vld [vmem:[%s8827 + $0x20] sm:$0xff]
      %v8833 = vld [vmem:[%s8827 + $0x28] sm:$0xff]
      %v8834 = vld [vmem:[%s8827 + $0x30] sm:$0xff]
      %v8835 = vld [vmem:[%s8827 + $0x38] sm:$0xff]
      %v8837 = vsel %vm8664, %v8826, 0
      %8839 = vmatprep.subr.mxu0 0.0
      %8840 = vmatpush1.msra.mxu0 0.0
      %8841 = vmatprep.subr.mxu0 0.0
      %8842 = vmatpush1.msra.mxu0 0.0
      %8843 = vmatprep.subr.mxu0 0.0
      %8844 = vmatpush1.msra.mxu0 0.0
      %8845 = vmatprep.subr.mxu0 0.0
      %8846 = vmatpush1.msra.mxu0 0.0
      %8847 = vmatprep.subr.mxu0 0.0
      %8848 = vmatpush1.msra.mxu0 0.0
      %8849 = vmatprep.subr.mxu0 0.0
      %8850 = vmatpush1.msra.mxu0 0.0
      %8851 = vmatprep.subr.mxu0 0.0
      %8852 = vmatpush1.msra.mxu0 0.0
      %8853 = vmatprep.subr.mxu0 0.0
      %8854 = vmatpush1.msra.mxu0 0.0
      %8855 = vmatprep.subr.mxu0 0.0
      %8856 = vmatpush1.msra.mxu0 %v8835
      %8857 = vmatprep.subr.mxu0 0.0
      %8858 = vmatpush1.msra.mxu0 %v8834
      %8859 = vmatprep.subr.mxu0 0.0
      %8860 = vmatpush1.msra.mxu0 %v8833
      %8861 = vmatprep.subr.mxu0 0.0
      %8862 = vmatpush1.msra.mxu0 %v8832
      %8863 = vmatprep.subr.mxu0 0.0
      %8864 = vmatpush1.msra.mxu0 %v8831
      %8865 = vmatprep.subr.mxu0 0.0
      %8866 = vmatpush1.msra.mxu0 %v8830
      %8867 = vmatprep.subr.mxu0 0.0
      %8868 = vmatpush1.msra.mxu0 %v8829
      %8869 = vmatprep.subr.mxu0 0.0
      %8870 = vmatpush1.msra.mxu0 %v8828
      %8871 = vmatprep.subr.mxu0 0.0
      %8872 = vmatpush2.msra.mxu0 0.0
      %8873 = vmatprep.subr.mxu0 0.0
      %8874 = vmatpush2.msra.mxu0 0.0
      %8875 = vmatprep.subr.mxu0 0.0
      %8876 = vmatpush2.msra.mxu0 0.0
      %8877 = vmatprep.subr.mxu0 0.0
      %8878 = vmatpush2.msra.mxu0 0.0
      %8879 = vmatprep.subr.mxu0 0.0
      %8880 = vmatpush2.msra.mxu0 0.0
      %8881 = vmatprep.subr.mxu0 0.0
      %8882 = vmatpush2.msra.mxu0 0.0
      %8883 = vmatprep.subr.mxu0 0.0
      %8884 = vmatpush2.msra.mxu0 0.0
      %8885 = vmatprep.subr.mxu0 0.0
      %8886 = vmatpush2.msra.mxu0 0.0
      %8887 = vmatprep.subr.mxu0 0.0
      %8888 = vmatpush2.msra.mxu0 0.0
      %8889 = vmatprep.subr.mxu0 0.0
      %8890 = vmatpush2.msra.mxu0 0.0
      %8891 = vmatprep.subr.mxu0 0.0
      %8892 = vmatpush2.msra.mxu0 0.0
      %8893 = vmatprep.subr.mxu0 0.0
      %8894 = vmatpush2.msra.mxu0 0.0
      %8895 = vmatprep.subr.mxu0 0.0
      %8896 = vmatpush2.msra.mxu0 0.0
      %8897 = vmatprep.subr.mxu0 0.0
      %8898 = vmatpush2.msra.mxu0 0.0
      %8899 = vmatprep.subr.mxu0 0.0
      %8900 = vmatpush2.msra.mxu0 0.0
      %8901 = vmatprep.subr.mxu0 0.0
      %8902 = vmatpush2.msra.mxu0 0.0
      %8903 = vmatprep.mubr.f32.mxu0 0.0
      %8904 = vmatmul.mubr.f32.gmra.mxu0 %v8837
      %v8905 = vpop.f32.mrf.mxu0
      %v8906 = vadd.f32 0.0, %v8905
      %v8907 = vpop.f32.mrf.mxu0
      %8908 = vdwg.mxu0
      %v8909 = vld [vmem:[%s3 + $0x3] sm:$0x1]
      %v8910 = vlaneseq
      %v8911 = vshrl.u32 %v8910, 7
      %v8912 = vsub.s32 0, %v8911
      %v8913 = vrot.slane %v8909, %v8912
      %v8914 = vadd.f32 %v8906, %v8913
      %vm8915 = vcmask 15360
      %v8916 = vsel %vm8915, %v8914, -inf
      %8917 = vmax.xlane.f32.xlu0 %v8916
      %v8918 = vpop.xlane.xlu0 %8917
      %v8919 = vsub.f32 %v8914, %v8918
      %v8920 = vmul.f32 %v8919, 1.442695
      %v8921 = vpow.pop %v8920
      %v8922 = vsel %vm8915, %v8921, 0.0
      %8923 = vadd.xlane.f32.xlu0 %v8922
      %v8924 = vpop.xlane.xlu0 %8923
      %v8925 = vlog2.pop %v8924
      %v8926 = vmul.f32 %v8925, 0.6931472
      %v8927 = vsub.f32 %v8919, %v8926
      %8928 = vst.msk [vmem:[%s195] sm:$0xff] %vm8915, %v8927
      %p8929 = scmp.lt.s32.totalorder %s15, 1
      %s8930 = scalar_select %p8929, %s15, 1
      %s8931 = smul.addr %s8930, 8
      %s8932 = scalar_lea.vmem %s4, %s8931
      // Predicated region
      $region37: #{tpu_custom_call.1} parent=35 // pred_check
        %p8933 = pneg %p122
      $region38: #{tpu_custom_call.1} parent=35 // pred_check_branch
        %8935 = sbr.rel (%p8933) target = $region40
      $region39: #{tpu_custom_call.1} parent=35 // pred_region
        _
      $region40: #{tpu_custom_call.1} parent=35 // pred_fallthru
        _
    $region36: #{tpu_custom_call.1} parent=5 // pred_fallthru
      _
    %p8936 = scmp.le.s32.totalorder 2, %s10
    // Predicated region
    $region41: #{tpu_custom_call.1} parent=5 // pred_check
      %p8937 = pneg %p8936
    $region42: #{tpu_custom_call.1} parent=5 // pred_check_branch
      %8939 = sbr.rel (%p8937) target = $region44
    $region43: #{tpu_custom_call.1} parent=5 // pred_region
      %s8940 = ssub.s32 %s10, 2
      // Predicated region
      $region45: #{tpu_custom_call.1} parent=43 // pred_check
        %p8941 = pneg %p128
      $region46: #{tpu_custom_call.1} parent=43 // pred_check_branch
        %8943 = sbr.rel (%p8941) target = $region48
      $region47: #{tpu_custom_call.1} parent=43 // pred_region
        %p8944 = scmp.lt.s32.totalorder %s16, 1
        %s8945 = scalar_select %p8944, %s16, 1
        %s8946 = smul.addr %s8945, 8
        %s8947 = scalar_lea.vmem %s4, %s8946
      $region48: #{tpu_custom_call.1} parent=43 // pred_fallthru
        _
    $region44: #{tpu_custom_call.1} parent=5 // pred_fallthru
      _
  $region6: #{tpu_custom_call.1} parent=0 // loop_footer
    %s14 = sadd.s32 1, %s10
  $region7: #{tpu_custom_call.1} parent=0 // loop_footer_branch
    %9 = sbr.rel target = $region3
  $region8: #{tpu_custom_call.1} parent=0 // loop_exit
    _

</llo_original>
